<compile_context>
chip_gen: v7x
topology: tpu7x:2x2x1
jax: 0.10.0
libtpu: 0.0.40
codegen_flags: <defaults>
</compile_context>

<pallas_src>
import functools
import math

import jax
import jax.numpy as jnp
from jax.experimental import pallas as pl
from jax.experimental.pallas import tpu as pltpu


# ------------------------------------------------------------------- kernel --
def ts_encoder_kernel(B, L,
                      x_ref, m_ref, dec_ref,
                      wse_ref, bse_ref,
                      wihxa_ref, bihxa_ref,
                      whhxa_ref, bhhxa_ref,
                      whrxa_ref, bhrxa_ref,
                      whr1_ref, whr2_ref, bhr_ref,
                      ws_ref, bs_ref,
                      o_ref,
                      gi_sc, xu_sc):
    LB, K = x_ref.shape
    H = o_ref.shape[1]
    H2, H3, H4, H6 = 2 * H, 3 * H, 4 * H, 6 * H

    def mm(a, w):
        # Operand dtype follows the weight dtype (bf16 fast path / f32 check
        # path); accumulation is always f32; elementwise math stays f32.
        return jnp.dot(a.astype(w.dtype), w, preferred_element_type=jnp.float32)

    # Load weights/biases once; they stay resident across all timesteps.
    w_se, b_se = wse_ref[...], bse_ref[...]
    w_ih_xa, b_ih_xa = wihxa_ref[...], bihxa_ref[...]
    w_hh_xa, b_hh_xa = whhxa_ref[...], bhhxa_ref[...]
    w_hr_xa, b_hr_xa = whrxa_ref[...], bhrxa_ref[...]
    w_hr1, w_hr2, b_hr = whr1_ref[...], whr2_ref[...], bhr_ref[...]
    w_s, b_s = ws_ref[...], bs_ref[...]

    # ---- phase 1: batched over all L*B rows (no hidden-state dependence) ----
    x2 = x_ref[...]                                     # (LB, K)
    c = 1.0 - m_ref[...]                                # (LB, K)
    alpha = jax.nn.sigmoid(mm(c, w_se) + b_se)          # std_emb
    x_u = x2 * alpha
    x_s = x2 * jnp.maximum(c, 0.0)
    # One fused dot for the input halves of BOTH decayed GRU cells.
    # Column layout (gate-major, cell-minor): [x_r|a_r | x_z|a_z | x_n|a_n].
    gi_sc[...] = mm(jnp.concatenate([x_s, alpha], axis=1), w_ih_xa) + b_ih_xa
    # x_t_u half of hist_reg (its bias folded here).
    xu_sc[...] = mm(x_u, w_hr2) + b_hr

    # ---- phase 2: sequential recurrence over L (4 MXU dots per step) --------
    # decay arrives as (LB, 1); lane-broadcast ONCE (hoisted) to fused width.
    dec_full = jnp.broadcast_to(dec_ref[...], (LB, H2))

    h = jnp.zeros((B, H), jnp.float32)       # standard_gru hidden
    hxa = jnp.zeros((B, H2), jnp.float32)    # fused [h_x | h_alpha] hidden

    # Full trace-time unroll at L=12 (max LLO scheduler visibility).
    # TODO(synk): for long L switch to lax.fori_loop(..., unroll=2..4) with
    # pl.multiple_of on the row offset to bound generated code size.
    for t in range(L):
        rows = slice(t * B, (t + 1) * B)
        hxa_d = hxa * dec_full[rows, :]
        # dot 1: hidden halves of both decayed cells (block-diag fused).
        gh = mm(hxa_d, w_hh_xa) + b_hh_xa                      # (B, 6H)
        gi = gi_sc[rows, :]                                    # (B, 6H)
        r = jax.nn.sigmoid(gi[:, :H2] + gh[:, :H2])
        z = jax.nn.sigmoid(gi[:, H2:H4] + gh[:, H2:H4])
        n = jnp.tanh(gi[:, H4:H6] + r * gh[:, H4:H6])
        hxa = (1.0 - z) * n + z * hxa_d                        # [h_x | h_alpha]
        # dot 2: hist_reg_x / hist_reg_alpha (block-diag fused).
        hr = mm(hxa, w_hr_xa) + b_hr_xa                        # (B, 2K)
        x_s_1 = hr[:, :K] * jax.nn.sigmoid(hr[:, K:])
        # dot 3: hist_reg applied to x_s_1 (x_u half precomputed in phase 1).
        x_adj = jnp.maximum(mm(x_s_1, w_hr1) + xu_sc[rows, :], 0.0)
        # dot 4: standard_gru input+hidden halves in ONE dot: [x_adj | h].
        gs = mm(jnp.concatenate([x_adj, h], axis=1), w_s) + b_s   # (B, 4H)
        r_s = jax.nn.sigmoid(gs[:, :H])
        z_s = jax.nn.sigmoid(gs[:, H:H2])
        n_s = jnp.tanh(gs[:, H2:H3] + r_s * gs[:, H3:])
        h = (1.0 - z_s) * n_s + z_s * h
        # `h = h*h_m + (1-h_m)*h_state[-1]` is an exact identity -> dropped.
        o_ref[rows, :] = h


# -------------------------------------------------------------- weight prep --
def _fold_gru_biases(bih, bhh, H):
    # r,z: input+hidden biases folded; n: input bias only (hidden n-bias stays
    # inside r * (.)).
    return (bih[:, :H] + bhh[:, :H],
            bih[:, H:2 * H] + bhh[:, H:2 * H],
            bih[:, 2 * H:])


def _build_fused_weights(params, K, H, wdt):
    f32 = jnp.float32
    zK, zH = jnp.zeros((K, H), f32), jnp.zeros((H, H), f32)

    wih_x, wih_a = params['wih_x'], params['wih_a']
    whh_x, whh_a = params['whh_x'], params['whh_a']
    bx = _fold_gru_biases(params['bih_x'], params['bhh_x'], H)
    ba = _fold_gru_biases(params['bih_a'], params['bhh_a'], H)

    # Input half of both decayed cells; LHS = [x_s | alpha] (., 2K).
    w_ih_xa = jnp.concatenate(
        [jnp.block([[wih_x[:, g * H:(g + 1) * H], zK],
                    [zK, wih_a[:, g * H:(g + 1) * H]]]) for g in range(3)],
        axis=1)                                                     # (2K, 6H)
    b_ih_xa = jnp.concatenate([bx[0], ba[0], bx[1], ba[1], bx[2], ba[2]], axis=1)

    # Hidden half of both decayed cells; LHS = [hx_d | ha_d] (., 2H).
    w_hh_xa = jnp.concatenate(
        [jnp.block([[whh_x[:, g * H:(g + 1) * H], zH],
                    [zH, whh_a[:, g * H:(g + 1) * H]]]) for g in range(3)],
        axis=1)                                                     # (2H, 6H)
    z1 = jnp.zeros((1, 2 * H), f32)
    b_hh_xa = jnp.concatenate(
        [z1, z1, params['bhh_x'][:, 2 * H:], params['bhh_a'][:, 2 * H:]], axis=1)

    # hist_reg_x / hist_reg_alpha fused; LHS = [hx | ha] (., 2H).
    zHK = jnp.zeros((H, K), f32)
    w_hr_xa = jnp.block([[params['w_hrx'], zHK], [zHK, params['w_hra']]])  # (2H, 2K)
    b_hr_xa = jnp.concatenate([params['b_hrx'], params['b_hra']], axis=1)

    # hist_reg: rows 0:K act on x_s_1, rows K:2K act on x_u (bias folded there).
    w_hr1, w_hr2 = params['w_hr'][:K], params['w_hr'][K:]

    # standard_gru: one dot with LHS = [x_adj | h] (., K+H).
    wih_s, whh_s = params['wih_s'], params['whh_s']
    bih_s, bhh_s = params['bih_s'], params['bhh_s']
    zKH, zHH = jnp.zeros((K, H), f32), jnp.zeros((H, H), f32)
    w_s = jnp.concatenate(
        [jnp.concatenate([wih_s[:, :H], whh_s[:, :H]], axis=0),          # r
         jnp.concatenate([wih_s[:, H:2 * H], whh_s[:, H:2 * H]], axis=0),  # z
         jnp.concatenate([wih_s[:, 2 * H:], zHH], axis=0),               # gi_n
         jnp.concatenate([zKH, whh_s[:, 2 * H:]], axis=0)], axis=1)      # gh_n
    b_s = jnp.concatenate(
        [bih_s[:, :H] + bhh_s[:, :H], bih_s[:, H:2 * H] + bhh_s[:, H:2 * H],
         bih_s[:, 2 * H:], bhh_s[:, 2 * H:]], axis=1)

    cast = lambda w: w.astype(wdt)        # weights -> bf16 on fast path; biases stay f32
    return (cast(params['w_se']), params['b_se'],
            cast(w_ih_xa), b_ih_xa,
            cast(w_hh_xa), b_hh_xa,
            cast(w_hr_xa), b_hr_xa,
            cast(w_hr1), cast(w_hr2), params['b_hr'],
            cast(w_s), b_s)


# ------------------------------------------------------------------ wrapper --
def _precompute_decay(x, ts_t):
    B, L, _ = x.shape
    d = jnp.abs(ts_t[:, 1:] - ts_t[:, :-1])
    d = jnp.concatenate([jnp.zeros((B, 1), x.dtype), d], axis=1)    # (B, L)
    return 1.0 / jnp.log(jnp.float32(math.e) + d)                   # (B, L)


def ts_encoder_pallas(x, mask, ts_t, params, *, use_bf16=True):
    B, L, K = x.shape
    H = params['whh_s'].shape[0]
    LB = L * B
    wdt = jnp.bfloat16 if use_bf16 else jnp.float32

    decay = _precompute_decay(x, ts_t)                              # (B, L)

    # Time-major, flattened: row t*B + b  <->  (batch b, timestep t).
    x2 = jnp.transpose(x, (1, 0, 2)).reshape(LB, K)
    m2 = jnp.transpose(mask, (1, 0, 2)).reshape(LB, K)
    dec2 = jnp.transpose(decay, (1, 0)).reshape(LB, 1)              # (LB, 1)

    fused = _build_fused_weights(params, K, H, wdt)

    kernel = functools.partial(ts_encoder_kernel, B, L)
    out2 = pl.pallas_call(
        kernel,
        out_shape=jax.ShapeDtypeStruct((LB, H), jnp.float32),
        scratch_shapes=[pltpu.VMEM((LB, 6 * H), jnp.float32),   # fused gate pre-acts
                        pltpu.VMEM((LB, K), jnp.float32)],      # x_u @ w_hr2 + b_hr
        # TODO(synk): for large B on v7x add grid=(2,) over batch halves +
        # dimension_semantics=("parallel",) and set vmem_limit_bytes.
    )(x2, m2, dec2, *fused)

    return jnp.transpose(out2.reshape(L, B, H), (1, 0, 2))          # (B, L, H)


# --------------------------------------------------------- params / reference --
def init_params(key, K, H):
    def uni(k, shape, bound):
        return jax.random.uniform(k, shape, jnp.float32, -bound, bound)

    ks = iter(jax.random.split(key, 32))
    sH, sK, s2K = 1.0 / math.sqrt(H), 1.0 / math.sqrt(K), 1.0 / math.sqrt(2 * K)
    p = {}
    for name in ('x', 'a', 's'):                 # GRU cells (weights stored (in, out))
        p[f'wih_{name}'] = uni(next(ks), (K, 3 * H), sH)
        p[f'whh_{name}'] = uni(next(ks), (H, 3 * H), sH)
        p[f'bih_{name}'] = uni(next(ks), (1, 3 * H), sH)
        p[f'bhh_{name}'] = uni(next(ks), (1, 3 * H), sH)
    p['w_se'] = uni(next(ks), (K, K), sK)
    p['b_se'] = uni(next(ks), (1, K), sK)
    p['w_hrx'] = uni(next(ks), (H, K), sH)
    p['b_hrx'] = uni(next(ks), (1, K), sH)
    p['w_hra'] = uni(next(ks), (H, K), sH)
    p['b_hra'] = uni(next(ks), (1, K), sH)
    p['w_hr'] = uni(next(ks), (2 * K, K), s2K)
    p['b_hr'] = uni(next(ks), (1, K), s2K)
    return p


def ts_encoder_ref(x, mask, ts_t, params):
    """Pure-JAX f32 reference mirroring the PyTorch forward (lax.scan over time)."""
    B, L, K = x.shape
    H = params['whh_s'].shape[0]
    decay = _precompute_decay(x, ts_t)
    hmask = (ts_t != 0).astype(x.dtype)

    def gru(x_in, h, wih, whh, bih, bhh):
        gi = x_in @ wih + bih
        gh = h @ whh + bhh
        r = jax.nn.sigmoid(gi[:, :H] + gh[:, :H])
        z = jax.nn.sigmoid(gi[:, H:2 * H] + gh[:, H:2 * H])
        n = jnp.tanh(gi[:, 2 * H:] + r * gh[:, 2 * H:])
        return (1 - z) * n + z * h

    def step(carry, inp):
        h, hx, ha = carry
        x_t, m_t, dec, hm = inp
        dec, hm = dec[:, None], hm[:, None]
        c_t = 1.0 - m_t
        alpha_t = jax.nn.sigmoid(c_t @ params['w_se'] + params['b_se'])
        x_t_u = x_t * alpha_t
        x_t_s = x_t * jnp.maximum(c_t, 0.0)
        hx = gru(x_t_s, hx * dec, params['wih_x'], params['whh_x'],
                 params['bih_x'], params['bhh_x'])
        ha = gru(alpha_t, ha * dec, params['wih_a'], params['whh_a'],
                 params['bih_a'], params['bhh_a'])
        x_t_s_d = hx @ params['w_hrx'] + params['b_hrx']
        alpha_t_d = jax.nn.sigmoid(ha @ params['w_hra'] + params['b_hra'])
        x_t_s_1 = x_t_s_d * alpha_t_d
        cat = jnp.concatenate([x_t_s_1, x_t_u], axis=-1)
        x_adj = jnp.maximum(cat @ params['w_hr'] + params['b_hr'], 0.0)
        h = gru(x_adj, h, params['wih_s'], params['whh_s'],
                params['bih_s'], params['bhh_s'])
        out = h
        h = h * hm + (1.0 - hm) * h        # identity blend (kept for fidelity)
        return (h, hx, ha), out

    init = (jnp.zeros((B, H), jnp.float32),) * 3
    _, hs = jax.lax.scan(step, init,
                         (jnp.transpose(x, (1, 0, 2)),
                          jnp.transpose(mask, (1, 0, 2)),
                          jnp.transpose(decay, (1, 0)),
                          jnp.transpose(hmask, (1, 0))))
    return jnp.transpose(hs, (1, 0, 2))


# --------------------------------------------------------------------- main --
if __name__ == "__main__":
    B, L, K, H = 8, 12, 16, 32   # data['ts'] (B,L,K), data['ts_t'] (B,L)

    key = jax.random.PRNGKey(0)
    kx, km, kt, kp = jax.random.split(key, 4)

    x = jax.random.normal(kx, (B, L, K), jnp.float32)
    mask = (jax.random.uniform(km, (B, L, K)) > 0.3).astype(jnp.float32)
    # timestamps: monotone increasing, some zeroed so h_mask is non-trivial
    ts_t = jnp.cumsum(jax.random.uniform(kt, (B, L), jnp.float32, 0.1, 1.0), axis=1)
    ts_t = ts_t * (jax.random.uniform(jax.random.fold_in(kt, 1), (B, L)) > 0.1)

    params = init_params(kp, K, H)

    ref = jax.block_until_ready(ts_encoder_ref(x, mask, ts_t, params))

    # 1) Exactness/structure check: f32 weights & operands, tight tolerance.
    out_f32 = jax.block_until_ready(
        ts_encoder_pallas(x, mask, ts_t, params, use_bf16=False))
    assert out_f32.shape == (B, L, H)
    assert jnp.allclose(out_f32, ref, rtol=2e-3, atol=2e-3), \
        f"f32 path: max abs diff {jnp.max(jnp.abs(out_f32 - ref))}"

    # 2) Fast path: bf16 matmul operands / f32 accumulation.  The looser bound
    #    only covers bf16 operand rounding compounded over the L=12 recurrence;
    #    structural correctness is already pinned by the f32 check above.
    out = jax.block_until_ready(
        ts_encoder_pallas(x, mask, ts_t, params, use_bf16=True))
    assert out.shape == (B, L, H)
    assert jnp.allclose(out, ref, rtol=5e-2, atol=5e-2), \
        f"bf16 path: max abs diff {jnp.max(jnp.abs(out - ref))}"

    print("KERNEL_OK")
</pallas_src>

<mosaic_0001>
module attributes {stable_mosaic.version = 11 : i64} {
  func.func @ts_encoder_kernel(%arg0: memref<96x16xf32, #tpu.memory_space<vmem>>, %arg1: memref<96x16xf32, #tpu.memory_space<vmem>>, %arg2: memref<96x1xf32, #tpu.memory_space<vmem>>, %arg3: memref<16x16xf32, #tpu.memory_space<vmem>>, %arg4: memref<1x16xf32, #tpu.memory_space<vmem>>, %arg5: memref<32x192xf32, #tpu.memory_space<vmem>>, %arg6: memref<1x192xf32, #tpu.memory_space<vmem>>, %arg7: memref<64x192xf32, #tpu.memory_space<vmem>>, %arg8: memref<1x192xf32, #tpu.memory_space<vmem>>, %arg9: memref<64x32xf32, #tpu.memory_space<vmem>>, %arg10: memref<1x32xf32, #tpu.memory_space<vmem>>, %arg11: memref<16x16xf32, #tpu.memory_space<vmem>>, %arg12: memref<16x16xf32, #tpu.memory_space<vmem>>, %arg13: memref<1x16xf32, #tpu.memory_space<vmem>>, %arg14: memref<48x128xf32, #tpu.memory_space<vmem>>, %arg15: memref<1x128xf32, #tpu.memory_space<vmem>>, %arg16: memref<96x32xf32, #tpu.memory_space<vmem>>, %arg17: memref<96x192xf32, #tpu.memory_space<vmem>>, %arg18: memref<96x16xf32, #tpu.memory_space<vmem>>) attributes {dimension_semantics = [], scalar_prefetch = 0 : i64, scratch_operands = 2 : i64, tpu.core_type = #tpu.core_type<tc>} {
    %c0 = arith.constant 0 : index
    %c0_0 = arith.constant 0 : index
    %0 = vector.load %arg3[%c0, %c0_0] : memref<16x16xf32, #tpu.memory_space<vmem>>, vector<16x16xf32>
    %c0_1 = arith.constant 0 : index
    %c0_2 = arith.constant 0 : index
    %1 = vector.load %arg4[%c0_1, %c0_2] : memref<1x16xf32, #tpu.memory_space<vmem>>, vector<1x16xf32>
    %c0_3 = arith.constant 0 : index
    %c0_4 = arith.constant 0 : index
    %2 = vector.load %arg5[%c0_3, %c0_4] : memref<32x192xf32, #tpu.memory_space<vmem>>, vector<32x192xf32>
    %c0_5 = arith.constant 0 : index
    %c0_6 = arith.constant 0 : index
    %3 = vector.load %arg6[%c0_5, %c0_6] : memref<1x192xf32, #tpu.memory_space<vmem>>, vector<1x192xf32>
    %c0_7 = arith.constant 0 : index
    %c0_8 = arith.constant 0 : index
    %4 = vector.load %arg7[%c0_7, %c0_8] : memref<64x192xf32, #tpu.memory_space<vmem>>, vector<64x192xf32>
    %c0_9 = arith.constant 0 : index
    %c0_10 = arith.constant 0 : index
    %5 = vector.load %arg8[%c0_9, %c0_10] : memref<1x192xf32, #tpu.memory_space<vmem>>, vector<1x192xf32>
    %c0_11 = arith.constant 0 : index
    %c0_12 = arith.constant 0 : index
    %6 = vector.load %arg9[%c0_11, %c0_12] : memref<64x32xf32, #tpu.memory_space<vmem>>, vector<64x32xf32>
    %c0_13 = arith.constant 0 : index
    %c0_14 = arith.constant 0 : index
    %7 = vector.load %arg10[%c0_13, %c0_14] : memref<1x32xf32, #tpu.memory_space<vmem>>, vector<1x32xf32>
    %c0_15 = arith.constant 0 : index
    %c0_16 = arith.constant 0 : index
    %8 = vector.load %arg11[%c0_15, %c0_16] : memref<16x16xf32, #tpu.memory_space<vmem>>, vector<16x16xf32>
    %c0_17 = arith.constant 0 : index
    %c0_18 = arith.constant 0 : index
    %9 = vector.load %arg12[%c0_17, %c0_18] : memref<16x16xf32, #tpu.memory_space<vmem>>, vector<16x16xf32>
    %c0_19 = arith.constant 0 : index
    %c0_20 = arith.constant 0 : index
    %10 = vector.load %arg13[%c0_19, %c0_20] : memref<1x16xf32, #tpu.memory_space<vmem>>, vector<1x16xf32>
    %c0_21 = arith.constant 0 : index
    %c0_22 = arith.constant 0 : index
    %11 = vector.load %arg14[%c0_21, %c0_22] : memref<48x128xf32, #tpu.memory_space<vmem>>, vector<48x128xf32>
    %c0_23 = arith.constant 0 : index
    %c0_24 = arith.constant 0 : index
    %12 = vector.load %arg15[%c0_23, %c0_24] : memref<1x128xf32, #tpu.memory_space<vmem>>, vector<1x128xf32>
    %c0_25 = arith.constant 0 : index
    %c0_26 = arith.constant 0 : index
    %13 = vector.load %arg0[%c0_25, %c0_26] : memref<96x16xf32, #tpu.memory_space<vmem>>, vector<96x16xf32>
    %c0_27 = arith.constant 0 : index
    %c0_28 = arith.constant 0 : index
    %14 = vector.load %arg1[%c0_27, %c0_28] : memref<96x16xf32, #tpu.memory_space<vmem>>, vector<96x16xf32>
    %cst = arith.constant 1.000000e+00 : f32
    %15 = vector.broadcast %cst : f32 to vector<96x16xf32>
    %16 = arith.subf %15, %14 : vector<96x16xf32>
    %cst_29 = arith.constant dense<0.000000e+00> : vector<96x16xf32>
    %17 = tpu.matmul %16, %0, %cst_29 {dimension_numbers = #tpu.dot_dimension_numbers<[1], [0], [0], [1], [0, 0, 1, 1], [], []>} : vector<96x16xf32>, vector<16x16xf32>, vector<96x16xf32> -> vector<96x16xf32>
    %18 = vector.broadcast %1 : vector<1x16xf32> to vector<96x16xf32>
    %19 = arith.addf %17, %18 : vector<96x16xf32>
    %20 = arith.negf %19 : vector<96x16xf32>
    %21 = math.exp %20 : vector<96x16xf32>
    %cst_30 = arith.constant 1.000000e+00 : f32
    %22 = vector.broadcast %cst_30 : f32 to vector<96x16xf32>
    %23 = arith.addf %22, %21 : vector<96x16xf32>
    %24 = arith.divf %22, %23 : vector<96x16xf32>
    %25 = arith.mulf %13, %24 : vector<96x16xf32>
    %cst_31 = arith.constant 0.000000e+00 : f32
    %26 = vector.broadcast %cst_31 : f32 to vector<96x16xf32>
    %27 = arith.maximumf %16, %26 : vector<96x16xf32>
    %28 = arith.mulf %13, %27 : vector<96x16xf32>
    %29 = tpu.concatenate %28, %24 in 1 : vector<96x16xf32>, vector<96x16xf32> -> vector<96x32xf32>
    %cst_32 = arith.constant dense<0.000000e+00> : vector<96x192xf32>
    %30 = tpu.matmul %29, %2, %cst_32 {dimension_numbers = #tpu.dot_dimension_numbers<[1], [0], [0], [1], [0, 0, 1, 1], [], []>} : vector<96x32xf32>, vector<32x192xf32>, vector<96x192xf32> -> vector<96x192xf32>
    %31 = vector.broadcast %3 : vector<1x192xf32> to vector<96x192xf32>
    %32 = arith.addf %30, %31 : vector<96x192xf32>
    %c0_33 = arith.constant 0 : index
    %c0_34 = arith.constant 0 : index
    %33 = vector.load %arg17[%c0_33, %c0_34] : memref<96x192xf32, #tpu.memory_space<vmem>>, vector<96x192xf32>
    tpu.vector_store %arg17[%c0_33, %c0_34], %32 {strides = array<i32>} : memref<96x192xf32, #tpu.memory_space<vmem>>, vector<96x192xf32>,
    %cst_35 = arith.constant dense<0.000000e+00> : vector<96x16xf32>
    %34 = tpu.matmul %25, %9, %cst_35 {dimension_numbers = #tpu.dot_dimension_numbers<[1], [0], [0], [1], [0, 0, 1, 1], [], []>} : vector<96x16xf32>, vector<16x16xf32>, vector<96x16xf32> -> vector<96x16xf32>
    %35 = vector.broadcast %10 : vector<1x16xf32> to vector<96x16xf32>
    %36 = arith.addf %34, %35 : vector<96x16xf32>
    %c0_36 = arith.constant 0 : index
    %c0_37 = arith.constant 0 : index
    %37 = vector.load %arg18[%c0_36, %c0_37] : memref<96x16xf32, #tpu.memory_space<vmem>>, vector<96x16xf32>
    tpu.vector_store %arg18[%c0_36, %c0_37], %36 {strides = array<i32>} : memref<96x16xf32, #tpu.memory_space<vmem>>, vector<96x16xf32>,
    %c0_38 = arith.constant 0 : index
    %c0_39 = arith.constant 0 : index
    %38 = vector.load %arg2[%c0_38, %c0_39] : memref<96x1xf32, #tpu.memory_space<vmem>>, vector<96x1xf32>
    %39 = vector.shape_cast %38 : vector<96x1xf32> to vector<96x1xf32>
    %40 = vector.broadcast %39 : vector<96x1xf32> to vector<96x64xf32>
    %cst_40 = arith.constant 0.000000e+00 : f32
    %41 = vector.broadcast %cst_40 : f32 to vector<8x32xf32>
    %cst_41 = arith.constant 0.000000e+00 : f32
    %42 = vector.broadcast %cst_41 : f32 to vector<8x64xf32>
    %43 = vector.extract_strided_slice %40 {offsets = [0, 0], sizes = [8, 64], strides = [1, 1]} : vector<96x64xf32> to vector<8x64xf32>
    %44 = arith.mulf %42, %43 : vector<8x64xf32>
    %cst_42 = arith.constant dense<0.000000e+00> : vector<8x192xf32>
    %45 = tpu.matmul %44, %4, %cst_42 {dimension_numbers = #tpu.dot_dimension_numbers<[1], [0], [0], [1], [0, 0, 1, 1], [], []>} : vector<8x64xf32>, vector<64x192xf32>, vector<8x192xf32> -> vector<8x192xf32>
    %46 = vector.broadcast %5 : vector<1x192xf32> to vector<8x192xf32>
    %47 = arith.addf %45, %46 : vector<8x192xf32>
    %c0_43 = arith.constant 0 : index
    %c0_44 = arith.constant 0 : index
    %48 = vector.load %arg17[%c0_43, %c0_44] : memref<96x192xf32, #tpu.memory_space<vmem>>, vector<8x192xf32>
    %49 = vector.extract_strided_slice %48 {offsets = [0, 0], sizes = [8, 64], strides = [1, 1]} : vector<8x192xf32> to vector<8x64xf32>
    %50 = vector.extract_strided_slice %47 {offsets = [0, 0], sizes = [8, 64], strides = [1, 1]} : vector<8x192xf32> to vector<8x64xf32>
    %51 = arith.addf %49, %50 : vector<8x64xf32>
    %52 = arith.negf %51 : vector<8x64xf32>
    %53 = math.exp %52 : vector<8x64xf32>
    %cst_45 = arith.constant 1.000000e+00 : f32
    %54 = vector.broadcast %cst_45 : f32 to vector<8x64xf32>
    %55 = arith.addf %54, %53 : vector<8x64xf32>
    %56 = arith.divf %54, %55 : vector<8x64xf32>
    %57 = vector.extract_strided_slice %48 {offsets = [0, 64], sizes = [8, 64], strides = [1, 1]} : vector<8x192xf32> to vector<8x64xf32>
    %58 = vector.extract_strided_slice %47 {offsets = [0, 64], sizes = [8, 64], strides = [1, 1]} : vector<8x192xf32> to vector<8x64xf32>
    %59 = arith.addf %57, %58 : vector<8x64xf32>
    %60 = arith.negf %59 : vector<8x64xf32>
    %61 = math.exp %60 : vector<8x64xf32>
    %cst_46 = arith.constant 1.000000e+00 : f32
    %62 = vector.broadcast %cst_46 : f32 to vector<8x64xf32>
    %63 = arith.addf %62, %61 : vector<8x64xf32>
    %64 = arith.divf %62, %63 : vector<8x64xf32>
    %65 = vector.extract_strided_slice %48 {offsets = [0, 128], sizes = [8, 64], strides = [1, 1]} : vector<8x192xf32> to vector<8x64xf32>
    %66 = vector.extract_strided_slice %47 {offsets = [0, 128], sizes = [8, 64], strides = [1, 1]} : vector<8x192xf32> to vector<8x64xf32>
    %67 = arith.mulf %56, %66 : vector<8x64xf32>
    %68 = arith.addf %65, %67 : vector<8x64xf32>
    %69 = math.tanh %68 : vector<8x64xf32>
    %cst_47 = arith.constant 1.000000e+00 : f32
    %70 = vector.broadcast %cst_47 : f32 to vector<8x64xf32>
    %71 = arith.subf %70, %64 : vector<8x64xf32>
    %72 = arith.mulf %71, %69 : vector<8x64xf32>
    %73 = arith.mulf %64, %44 : vector<8x64xf32>
    %74 = arith.addf %72, %73 : vector<8x64xf32>
    %cst_48 = arith.constant dense<0.000000e+00> : vector<8x32xf32>
    %75 = tpu.matmul %74, %6, %cst_48 {dimension_numbers = #tpu.dot_dimension_numbers<[1], [0], [0], [1], [0, 0, 1, 1], [], []>} : vector<8x64xf32>, vector<64x32xf32>, vector<8x32xf32> -> vector<8x32xf32>
    %76 = vector.broadcast %7 : vector<1x32xf32> to vector<8x32xf32>
    %77 = arith.addf %75, %76 : vector<8x32xf32>
    %78 = vector.extract_strided_slice %77 {offsets = [0, 0], sizes = [8, 16], strides = [1, 1]} : vector<8x32xf32> to vector<8x16xf32>
    %79 = vector.extract_strided_slice %77 {offsets = [0, 16], sizes = [8, 16], strides = [1, 1]} : vector<8x32xf32> to vector<8x16xf32>
    %80 = arith.negf %79 : vector<8x16xf32>
    %81 = math.exp %80 : vector<8x16xf32>
    %cst_49 = arith.constant 1.000000e+00 : f32
    %82 = vector.broadcast %cst_49 : f32 to vector<8x16xf32>
    %83 = arith.addf %82, %81 : vector<8x16xf32>
    %84 = arith.divf %82, %83 : vector<8x16xf32>
    %85 = arith.mulf %78, %84 : vector<8x16xf32>
    %cst_50 = arith.constant dense<0.000000e+00> : vector<8x16xf32>
    %86 = tpu.matmul %85, %8, %cst_50 {dimension_numbers = #tpu.dot_dimension_numbers<[1], [0], [0], [1], [0, 0, 1, 1], [], []>} : vector<8x16xf32>, vector<16x16xf32>, vector<8x16xf32> -> vector<8x16xf32>
    %c0_51 = arith.constant 0 : index
    %c0_52 = arith.constant 0 : index
    %87 = vector.load %arg18[%c0_51, %c0_52] : memref<96x16xf32, #tpu.memory_space<vmem>>, vector<8x16xf32>
    %88 = arith.addf %86, %87 : vector<8x16xf32>
    %cst_53 = arith.constant 0.000000e+00 : f32
    %89 = vector.broadcast %cst_53 : f32 to vector<8x16xf32>
    %90 = arith.maximumf %88, %89 : vector<8x16xf32>
    %91 = tpu.concatenate %90, %41 in 1 : vector<8x16xf32>, vector<8x32xf32> -> vector<8x48xf32>
    %cst_54 = arith.constant dense<0.000000e+00> : vector<8x128xf32>
    %92 = tpu.matmul %91, %11, %cst_54 {dimension_numbers = #tpu.dot_dimension_numbers<[1], [0], [0], [1], [0, 0, 1, 1], [], []>} : vector<8x48xf32>, vector<48x128xf32>, vector<8x128xf32> -> vector<8x128xf32>
    %93 = vector.broadcast %12 : vector<1x128xf32> to vector<8x128xf32>
    %94 = arith.addf %92, %93 : vector<8x128xf32>
    %95 = vector.extract_strided_slice %94 {offsets = [0, 0], sizes = [8, 32], strides = [1, 1]} : vector<8x128xf32> to vector<8x32xf32>
    %96 = arith.negf %95 : vector<8x32xf32>
    %97 = math.exp %96 : vector<8x32xf32>
    %cst_55 = arith.constant 1.000000e+00 : f32
    %98 = vector.broadcast %cst_55 : f32 to vector<8x32xf32>
    %99 = arith.addf %98, %97 : vector<8x32xf32>
    %100 = arith.divf %98, %99 : vector<8x32xf32>
    %101 = vector.extract_strided_slice %94 {offsets = [0, 32], sizes = [8, 32], strides = [1, 1]} : vector<8x128xf32> to vector<8x32xf32>
    %102 = arith.negf %101 : vector<8x32xf32>
    %103 = math.exp %102 : vector<8x32xf32>
    %cst_56 = arith.constant 1.000000e+00 : f32
    %104 = vector.broadcast %cst_56 : f32 to vector<8x32xf32>
    %105 = arith.addf %104, %103 : vector<8x32xf32>
    %106 = arith.divf %104, %105 : vector<8x32xf32>
    %107 = vector.extract_strided_slice %94 {offsets = [0, 64], sizes = [8, 32], strides = [1, 1]} : vector<8x128xf32> to vector<8x32xf32>
    %108 = vector.extract_strided_slice %94 {offsets = [0, 96], sizes = [8, 32], strides = [1, 1]} : vector<8x128xf32> to vector<8x32xf32>
    %109 = arith.mulf %100, %108 : vector<8x32xf32>
    %110 = arith.addf %107, %109 : vector<8x32xf32>
    %111 = math.tanh %110 : vector<8x32xf32>
    %cst_57 = arith.constant 1.000000e+00 : f32
    %112 = vector.broadcast %cst_57 : f32 to vector<8x32xf32>
    %113 = arith.subf %112, %106 : vector<8x32xf32>
    %114 = arith.mulf %113, %111 : vector<8x32xf32>
    %115 = arith.mulf %106, %41 : vector<8x32xf32>
    %116 = arith.addf %114, %115 : vector<8x32xf32>
    %c0_58 = arith.constant 0 : index
    %c0_59 = arith.constant 0 : index
    %117 = vector.load %arg16[%c0_58, %c0_59] : memref<96x32xf32, #tpu.memory_space<vmem>>, vector<8x32xf32>
    tpu.vector_store %arg16[%c0_58, %c0_59], %116 {strides = array<i32>} : memref<96x32xf32, #tpu.memory_space<vmem>>, vector<8x32xf32>,
    %118 = vector.extract_strided_slice %40 {offsets = [8, 0], sizes = [8, 64], strides = [1, 1]} : vector<96x64xf32> to vector<8x64xf32>
    %119 = arith.mulf %74, %118 : vector<8x64xf32>
    %cst_60 = arith.constant dense<0.000000e+00> : vector<8x192xf32>
    %120 = tpu.matmul %119, %4, %cst_60 {dimension_numbers = #tpu.dot_dimension_numbers<[1], [0], [0], [1], [0, 0, 1, 1], [], []>} : vector<8x64xf32>, vector<64x192xf32>, vector<8x192xf32> -> vector<8x192xf32>
    %121 = vector.broadcast %5 : vector<1x192xf32> to vector<8x192xf32>
    %122 = arith.addf %120, %121 : vector<8x192xf32>
    %c8 = arith.constant 8 : index
    %c0_61 = arith.constant 0 : index
    %123 = vector.load %arg17[%c8, %c0_61] : memref<96x192xf32, #tpu.memory_space<vmem>>, vector<8x192xf32>
    %124 = vector.extract_strided_slice %123 {offsets = [0, 0], sizes = [8, 64], strides = [1, 1]} : vector<8x192xf32> to vector<8x64xf32>
    %125 = vector.extract_strided_slice %122 {offsets = [0, 0], sizes = [8, 64], strides = [1, 1]} : vector<8x192xf32> to vector<8x64xf32>
    %126 = arith.addf %124, %125 : vector<8x64xf32>
    %127 = arith.negf %126 : vector<8x64xf32>
    %128 = math.exp %127 : vector<8x64xf32>
    %cst_62 = arith.constant 1.000000e+00 : f32
    %129 = vector.broadcast %cst_62 : f32 to vector<8x64xf32>
    %130 = arith.addf %129, %128 : vector<8x64xf32>
    %131 = arith.divf %129, %130 : vector<8x64xf32>
    %132 = vector.extract_strided_slice %123 {offsets = [0, 64], sizes = [8, 64], strides = [1, 1]} : vector<8x192xf32> to vector<8x64xf32>
    %133 = vector.extract_strided_slice %122 {offsets = [0, 64], sizes = [8, 64], strides = [1, 1]} : vector<8x192xf32> to vector<8x64xf32>
    %134 = arith.addf %132, %133 : vector<8x64xf32>
    %135 = arith.negf %134 : vector<8x64xf32>
    %136 = math.exp %135 : vector<8x64xf32>
    %cst_63 = arith.constant 1.000000e+00 : f32
    %137 = vector.broadcast %cst_63 : f32 to vector<8x64xf32>
    %138 = arith.addf %137, %136 : vector<8x64xf32>
    %139 = arith.divf %137, %138 : vector<8x64xf32>
    %140 = vector.extract_strided_slice %123 {offsets = [0, 128], sizes = [8, 64], strides = [1, 1]} : vector<8x192xf32> to vector<8x64xf32>
    %141 = vector.extract_strided_slice %122 {offsets = [0, 128], sizes = [8, 64], strides = [1, 1]} : vector<8x192xf32> to vector<8x64xf32>
    %142 = arith.mulf %131, %141 : vector<8x64xf32>
    %143 = arith.addf %140, %142 : vector<8x64xf32>
    %144 = math.tanh %143 : vector<8x64xf32>
    %cst_64 = arith.constant 1.000000e+00 : f32
    %145 = vector.broadcast %cst_64 : f32 to vector<8x64xf32>
    %146 = arith.subf %145, %139 : vector<8x64xf32>
    %147 = arith.mulf %146, %144 : vector<8x64xf32>
    %148 = arith.mulf %139, %119 : vector<8x64xf32>
    %149 = arith.addf %147, %148 : vector<8x64xf32>
    %cst_65 = arith.constant dense<0.000000e+00> : vector<8x32xf32>
    %150 = tpu.matmul %149, %6, %cst_65 {dimension_numbers = #tpu.dot_dimension_numbers<[1], [0], [0], [1], [0, 0, 1, 1], [], []>} : vector<8x64xf32>, vector<64x32xf32>, vector<8x32xf32> -> vector<8x32xf32>
    %151 = vector.broadcast %7 : vector<1x32xf32> to vector<8x32xf32>
    %152 = arith.addf %150, %151 : vector<8x32xf32>
    %153 = vector.extract_strided_slice %152 {offsets = [0, 0], sizes = [8, 16], strides = [1, 1]} : vector<8x32xf32> to vector<8x16xf32>
    %154 = vector.extract_strided_slice %152 {offsets = [0, 16], sizes = [8, 16], strides = [1, 1]} : vector<8x32xf32> to vector<8x16xf32>
    %155 = arith.negf %154 : vector<8x16xf32>
    %156 = math.exp %155 : vector<8x16xf32>
    %cst_66 = arith.constant 1.000000e+00 : f32
    %157 = vector.broadcast %cst_66 : f32 to vector<8x16xf32>
    %158 = arith.addf %157, %156 : vector<8x16xf32>
    %159 = arith.divf %157, %158 : vector<8x16xf32>
    %160 = arith.mulf %153, %159 : vector<8x16xf32>
    %cst_67 = arith.constant dense<0.000000e+00> : vector<8x16xf32>
    %161 = tpu.matmul %160, %8, %cst_67 {dimension_numbers = #tpu.dot_dimension_numbers<[1], [0], [0], [1], [0, 0, 1, 1], [], []>} : vector<8x16xf32>, vector<16x16xf32>, vector<8x16xf32> -> vector<8x16xf32>
    %c8_68 = arith.constant 8 : index
    %c0_69 = arith.constant 0 : index
    %162 = vector.load %arg18[%c8_68, %c0_69] : memref<96x16xf32, #tpu.memory_space<vmem>>, vector<8x16xf32>
    %163 = arith.addf %161, %162 : vector<8x16xf32>
    %cst_70 = arith.constant 0.000000e+00 : f32
    %164 = vector.broadcast %cst_70 : f32 to vector<8x16xf32>
    %165 = arith.maximumf %163, %164 : vector<8x16xf32>
    %166 = tpu.concatenate %165, %116 in 1 : vector<8x16xf32>, vector<8x32xf32> -> vector<8x48xf32>
    %cst_71 = arith.constant dense<0.000000e+00> : vector<8x128xf32>
    %167 = tpu.matmul %166, %11, %cst_71 {dimension_numbers = #tpu.dot_dimension_numbers<[1], [0], [0], [1], [0, 0, 1, 1], [], []>} : vector<8x48xf32>, vector<48x128xf32>, vector<8x128xf32> -> vector<8x128xf32>
    %168 = vector.broadcast %12 : vector<1x128xf32> to vector<8x128xf32>
    %169 = arith.addf %167, %168 : vector<8x128xf32>
    %170 = vector.extract_strided_slice %169 {offsets = [0, 0], sizes = [8, 32], strides = [1, 1]} : vector<8x128xf32> to vector<8x32xf32>
    %171 = arith.negf %170 : vector<8x32xf32>
    %172 = math.exp %171 : vector<8x32xf32>
    %cst_72 = arith.constant 1.000000e+00 : f32
    %173 = vector.broadcast %cst_72 : f32 to vector<8x32xf32>
    %174 = arith.addf %173, %172 : vector<8x32xf32>
    %175 = arith.divf %173, %174 : vector<8x32xf32>
    %176 = vector.extract_strided_slice %169 {offsets = [0, 32], sizes = [8, 32], strides = [1, 1]} : vector<8x128xf32> to vector<8x32xf32>
    %177 = arith.negf %176 : vector<8x32xf32>
    %178 = math.exp %177 : vector<8x32xf32>
    %cst_73 = arith.constant 1.000000e+00 : f32
    %179 = vector.broadcast %cst_73 : f32 to vector<8x32xf32>
    %180 = arith.addf %179, %178 : vector<8x32xf32>
    %181 = arith.divf %179, %180 : vector<8x32xf32>
    %182 = vector.extract_strided_slice %169 {offsets = [0, 64], sizes = [8, 32], strides = [1, 1]} : vector<8x128xf32> to vector<8x32xf32>
    %183 = vector.extract_strided_slice %169 {offsets = [0, 96], sizes = [8, 32], strides = [1, 1]} : vector<8x128xf32> to vector<8x32xf32>
    %184 = arith.mulf %175, %183 : vector<8x32xf32>
    %185 = arith.addf %182, %184 : vector<8x32xf32>
    %186 = math.tanh %185 : vector<8x32xf32>
    %cst_74 = arith.constant 1.000000e+00 : f32
    %187 = vector.broadcast %cst_74 : f32 to vector<8x32xf32>
    %188 = arith.subf %187, %181 : vector<8x32xf32>
    %189 = arith.mulf %188, %186 : vector<8x32xf32>
    %190 = arith.mulf %181, %116 : vector<8x32xf32>
    %191 = arith.addf %189, %190 : vector<8x32xf32>
    %c8_75 = arith.constant 8 : index
    %c0_76 = arith.constant 0 : index
    %192 = vector.load %arg16[%c8_75, %c0_76] : memref<96x32xf32, #tpu.memory_space<vmem>>, vector<8x32xf32>
    tpu.vector_store %arg16[%c8_75, %c0_76], %191 {strides = array<i32>} : memref<96x32xf32, #tpu.memory_space<vmem>>, vector<8x32xf32>,
    %193 = vector.extract_strided_slice %40 {offsets = [16, 0], sizes = [8, 64], strides = [1, 1]} : vector<96x64xf32> to vector<8x64xf32>
    %194 = arith.mulf %149, %193 : vector<8x64xf32>
    %cst_77 = arith.constant dense<0.000000e+00> : vector<8x192xf32>
    %195 = tpu.matmul %194, %4, %cst_77 {dimension_numbers = #tpu.dot_dimension_numbers<[1], [0], [0], [1], [0, 0, 1, 1], [], []>} : vector<8x64xf32>, vector<64x192xf32>, vector<8x192xf32> -> vector<8x192xf32>
    %196 = vector.broadcast %5 : vector<1x192xf32> to vector<8x192xf32>
    %197 = arith.addf %195, %196 : vector<8x192xf32>
    %c16 = arith.constant 16 : index
    %c0_78 = arith.constant 0 : index
    %198 = vector.load %arg17[%c16, %c0_78] : memref<96x192xf32, #tpu.memory_space<vmem>>, vector<8x192xf32>
    %199 = vector.extract_strided_slice %198 {offsets = [0, 0], sizes = [8, 64], strides = [1, 1]} : vector<8x192xf32> to vector<8x64xf32>
    %200 = vector.extract_strided_slice %197 {offsets = [0, 0], sizes = [8, 64], strides = [1, 1]} : vector<8x192xf32> to vector<8x64xf32>
    %201 = arith.addf %199, %200 : vector<8x64xf32>
    %202 = arith.negf %201 : vector<8x64xf32>
    %203 = math.exp %202 : vector<8x64xf32>
    %cst_79 = arith.constant 1.000000e+00 : f32
    %204 = vector.broadcast %cst_79 : f32 to vector<8x64xf32>
    %205 = arith.addf %204, %203 : vector<8x64xf32>
    %206 = arith.divf %204, %205 : vector<8x64xf32>
    %207 = vector.extract_strided_slice %198 {offsets = [0, 64], sizes = [8, 64], strides = [1, 1]} : vector<8x192xf32> to vector<8x64xf32>
    %208 = vector.extract_strided_slice %197 {offsets = [0, 64], sizes = [8, 64], strides = [1, 1]} : vector<8x192xf32> to vector<8x64xf32>
    %209 = arith.addf %207, %208 : vector<8x64xf32>
    %210 = arith.negf %209 : vector<8x64xf32>
    %211 = math.exp %210 : vector<8x64xf32>
    %cst_80 = arith.constant 1.000000e+00 : f32
    %212 = vector.broadcast %cst_80 : f32 to vector<8x64xf32>
    %213 = arith.addf %212, %211 : vector<8x64xf32>
    %214 = arith.divf %212, %213 : vector<8x64xf32>
    %215 = vector.extract_strided_slice %198 {offsets = [0, 128], sizes = [8, 64], strides = [1, 1]} : vector<8x192xf32> to vector<8x64xf32>
    %216 = vector.extract_strided_slice %197 {offsets = [0, 128], sizes = [8, 64], strides = [1, 1]} : vector<8x192xf32> to vector<8x64xf32>
    %217 = arith.mulf %206, %216 : vector<8x64xf32>
    %218 = arith.addf %215, %217 : vector<8x64xf32>
    %219 = math.tanh %218 : vector<8x64xf32>
    %cst_81 = arith.constant 1.000000e+00 : f32
    %220 = vector.broadcast %cst_81 : f32 to vector<8x64xf32>
    %221 = arith.subf %220, %214 : vector<8x64xf32>
    %222 = arith.mulf %221, %219 : vector<8x64xf32>
    %223 = arith.mulf %214, %194 : vector<8x64xf32>
    %224 = arith.addf %222, %223 : vector<8x64xf32>
    %cst_82 = arith.constant dense<0.000000e+00> : vector<8x32xf32>
    %225 = tpu.matmul %224, %6, %cst_82 {dimension_numbers = #tpu.dot_dimension_numbers<[1], [0], [0], [1], [0, 0, 1, 1], [], []>} : vector<8x64xf32>, vector<64x32xf32>, vector<8x32xf32> -> vector<8x32xf32>
    %226 = vector.broadcast %7 : vector<1x32xf32> to vector<8x32xf32>
    %227 = arith.addf %225, %226 : vector<8x32xf32>
    %228 = vector.extract_strided_slice %227 {offsets = [0, 0], sizes = [8, 16], strides = [1, 1]} : vector<8x32xf32> to vector<8x16xf32>
    %229 = vector.extract_strided_slice %227 {offsets = [0, 16], sizes = [8, 16], strides = [1, 1]} : vector<8x32xf32> to vector<8x16xf32>
    %230 = arith.negf %229 : vector<8x16xf32>
    %231 = math.exp %230 : vector<8x16xf32>
    %cst_83 = arith.constant 1.000000e+00 : f32
    %232 = vector.broadcast %cst_83 : f32 to vector<8x16xf32>
    %233 = arith.addf %232, %231 : vector<8x16xf32>
    %234 = arith.divf %232, %233 : vector<8x16xf32>
    %235 = arith.mulf %228, %234 : vector<8x16xf32>
    %cst_84 = arith.constant dense<0.000000e+00> : vector<8x16xf32>
    %236 = tpu.matmul %235, %8, %cst_84 {dimension_numbers = #tpu.dot_dimension_numbers<[1], [0], [0], [1], [0, 0, 1, 1], [], []>} : vector<8x16xf32>, vector<16x16xf32>, vector<8x16xf32> -> vector<8x16xf32>
    %c16_85 = arith.constant 16 : index
    %c0_86 = arith.constant 0 : index
    %237 = vector.load %arg18[%c16_85, %c0_86] : memref<96x16xf32, #tpu.memory_space<vmem>>, vector<8x16xf32>
    %238 = arith.addf %236, %237 : vector<8x16xf32>
    %cst_87 = arith.constant 0.000000e+00 : f32
    %239 = vector.broadcast %cst_87 : f32 to vector<8x16xf32>
    %240 = arith.maximumf %238, %239 : vector<8x16xf32>
    %241 = tpu.concatenate %240, %191 in 1 : vector<8x16xf32>, vector<8x32xf32> -> vector<8x48xf32>
    %cst_88 = arith.constant dense<0.000000e+00> : vector<8x128xf32>
    %242 = tpu.matmul %241, %11, %cst_88 {dimension_numbers = #tpu.dot_dimension_numbers<[1], [0], [0], [1], [0, 0, 1, 1], [], []>} : vector<8x48xf32>, vector<48x128xf32>, vector<8x128xf32> -> vector<8x128xf32>
    %243 = vector.broadcast %12 : vector<1x128xf32> to vector<8x128xf32>
    %244 = arith.addf %242, %243 : vector<8x128xf32>
    %245 = vector.extract_strided_slice %244 {offsets = [0, 0], sizes = [8, 32], strides = [1, 1]} : vector<8x128xf32> to vector<8x32xf32>
    %246 = arith.negf %245 : vector<8x32xf32>
    %247 = math.exp %246 : vector<8x32xf32>
    %cst_89 = arith.constant 1.000000e+00 : f32
    %248 = vector.broadcast %cst_89 : f32 to vector<8x32xf32>
    %249 = arith.addf %248, %247 : vector<8x32xf32>
    %250 = arith.divf %248, %249 : vector<8x32xf32>
    %251 = vector.extract_strided_slice %244 {offsets = [0, 32], sizes = [8, 32], strides = [1, 1]} : vector<8x128xf32> to vector<8x32xf32>
    %252 = arith.negf %251 : vector<8x32xf32>
    %253 = math.exp %252 : vector<8x32xf32>
    %cst_90 = arith.constant 1.000000e+00 : f32
    %254 = vector.broadcast %cst_90 : f32 to vector<8x32xf32>
    %255 = arith.addf %254, %253 : vector<8x32xf32>
    %256 = arith.divf %254, %255 : vector<8x32xf32>
    %257 = vector.extract_strided_slice %244 {offsets = [0, 64], sizes = [8, 32], strides = [1, 1]} : vector<8x128xf32> to vector<8x32xf32>
    %258 = vector.extract_strided_slice %244 {offsets = [0, 96], sizes = [8, 32], strides = [1, 1]} : vector<8x128xf32> to vector<8x32xf32>
    %259 = arith.mulf %250, %258 : vector<8x32xf32>
    %260 = arith.addf %257, %259 : vector<8x32xf32>
    %261 = math.tanh %260 : vector<8x32xf32>
    %cst_91 = arith.constant 1.000000e+00 : f32
    %262 = vector.broadcast %cst_91 : f32 to vector<8x32xf32>
    %263 = arith.subf %262, %256 : vector<8x32xf32>
    %264 = arith.mulf %263, %261 : vector<8x32xf32>
    %265 = arith.mulf %256, %191 : vector<8x32xf32>
    %266 = arith.addf %264, %265 : vector<8x32xf32>
    %c16_92 = arith.constant 16 : index
    %c0_93 = arith.constant 0 : index
    %267 = vector.load %arg16[%c16_92, %c0_93] : memref<96x32xf32, #tpu.memory_space<vmem>>, vector<8x32xf32>
    tpu.vector_store %arg16[%c16_92, %c0_93], %266 {strides = array<i32>} : memref<96x32xf32, #tpu.memory_space<vmem>>, vector<8x32xf32>,
    %268 = vector.extract_strided_slice %40 {offsets = [24, 0], sizes = [8, 64], strides = [1, 1]} : vector<96x64xf32> to vector<8x64xf32>
    %269 = arith.mulf %224, %268 : vector<8x64xf32>
    %cst_94 = arith.constant dense<0.000000e+00> : vector<8x192xf32>
    %270 = tpu.matmul %269, %4, %cst_94 {dimension_numbers = #tpu.dot_dimension_numbers<[1], [0], [0], [1], [0, 0, 1, 1], [], []>} : vector<8x64xf32>, vector<64x192xf32>, vector<8x192xf32> -> vector<8x192xf32>
    %271 = vector.broadcast %5 : vector<1x192xf32> to vector<8x192xf32>
    %272 = arith.addf %270, %271 : vector<8x192xf32>
    %c24 = arith.constant 24 : index
    %c0_95 = arith.constant 0 : index
    %273 = vector.load %arg17[%c24, %c0_95] : memref<96x192xf32, #tpu.memory_space<vmem>>, vector<8x192xf32>
    %274 = vector.extract_strided_slice %273 {offsets = [0, 0], sizes = [8, 64], strides = [1, 1]} : vector<8x192xf32> to vector<8x64xf32>
    %275 = vector.extract_strided_slice %272 {offsets = [0, 0], sizes = [8, 64], strides = [1, 1]} : vector<8x192xf32> to vector<8x64xf32>
    %276 = arith.addf %274, %275 : vector<8x64xf32>
    %277 = arith.negf %276 : vector<8x64xf32>
    %278 = math.exp %277 : vector<8x64xf32>
    %cst_96 = arith.constant 1.000000e+00 : f32
    %279 = vector.broadcast %cst_96 : f32 to vector<8x64xf32>
    %280 = arith.addf %279, %278 : vector<8x64xf32>
    %281 = arith.divf %279, %280 : vector<8x64xf32>
    %282 = vector.extract_strided_slice %273 {offsets = [0, 64], sizes = [8, 64], strides = [1, 1]} : vector<8x192xf32> to vector<8x64xf32>
    %283 = vector.extract_strided_slice %272 {offsets = [0, 64], sizes = [8, 64], strides = [1, 1]} : vector<8x192xf32> to vector<8x64xf32>
    %284 = arith.addf %282, %283 : vector<8x64xf32>
    %285 = arith.negf %284 : vector<8x64xf32>
    %286 = math.exp %285 : vector<8x64xf32>
    %cst_97 = arith.constant 1.000000e+00 : f32
    %287 = vector.broadcast %cst_97 : f32 to vector<8x64xf32>
    %288 = arith.addf %287, %286 : vector<8x64xf32>
    %289 = arith.divf %287, %288 : vector<8x64xf32>
    %290 = vector.extract_strided_slice %273 {offsets = [0, 128], sizes = [8, 64], strides = [1, 1]} : vector<8x192xf32> to vector<8x64xf32>
    %291 = vector.extract_strided_slice %272 {offsets = [0, 128], sizes = [8, 64], strides = [1, 1]} : vector<8x192xf32> to vector<8x64xf32>
    %292 = arith.mulf %281, %291 : vector<8x64xf32>
    %293 = arith.addf %290, %292 : vector<8x64xf32>
    %294 = math.tanh %293 : vector<8x64xf32>
    %cst_98 = arith.constant 1.000000e+00 : f32
    %295 = vector.broadcast %cst_98 : f32 to vector<8x64xf32>
    %296 = arith.subf %295, %289 : vector<8x64xf32>
    %297 = arith.mulf %296, %294 : vector<8x64xf32>
    %298 = arith.mulf %289, %269 : vector<8x64xf32>
    %299 = arith.addf %297, %298 : vector<8x64xf32>
    %cst_99 = arith.constant dense<0.000000e+00> : vector<8x32xf32>
    %300 = tpu.matmul %299, %6, %cst_99 {dimension_numbers = #tpu.dot_dimension_numbers<[1], [0], [0], [1], [0, 0, 1, 1], [], []>} : vector<8x64xf32>, vector<64x32xf32>, vector<8x32xf32> -> vector<8x32xf32>
    %301 = vector.broadcast %7 : vector<1x32xf32> to vector<8x32xf32>
    %302 = arith.addf %300, %301 : vector<8x32xf32>
    %303 = vector.extract_strided_slice %302 {offsets = [0, 0], sizes = [8, 16], strides = [1, 1]} : vector<8x32xf32> to vector<8x16xf32>
    %304 = vector.extract_strided_slice %302 {offsets = [0, 16], sizes = [8, 16], strides = [1, 1]} : vector<8x32xf32> to vector<8x16xf32>
    %305 = arith.negf %304 : vector<8x16xf32>
    %306 = math.exp %305 : vector<8x16xf32>
    %cst_100 = arith.constant 1.000000e+00 : f32
    %307 = vector.broadcast %cst_100 : f32 to vector<8x16xf32>
    %308 = arith.addf %307, %306 : vector<8x16xf32>
    %309 = arith.divf %307, %308 : vector<8x16xf32>
    %310 = arith.mulf %303, %309 : vector<8x16xf32>
    %cst_101 = arith.constant dense<0.000000e+00> : vector<8x16xf32>
    %311 = tpu.matmul %310, %8, %cst_101 {dimension_numbers = #tpu.dot_dimension_numbers<[1], [0], [0], [1], [0, 0, 1, 1], [], []>} : vector<8x16xf32>, vector<16x16xf32>, vector<8x16xf32> -> vector<8x16xf32>
    %c24_102 = arith.constant 24 : index
    %c0_103 = arith.constant 0 : index
    %312 = vector.load %arg18[%c24_102, %c0_103] : memref<96x16xf32, #tpu.memory_space<vmem>>, vector<8x16xf32>
    %313 = arith.addf %311, %312 : vector<8x16xf32>
    %cst_104 = arith.constant 0.000000e+00 : f32
    %314 = vector.broadcast %cst_104 : f32 to vector<8x16xf32>
    %315 = arith.maximumf %313, %314 : vector<8x16xf32>
    %316 = tpu.concatenate %315, %266 in 1 : vector<8x16xf32>, vector<8x32xf32> -> vector<8x48xf32>
    %cst_105 = arith.constant dense<0.000000e+00> : vector<8x128xf32>
    %317 = tpu.matmul %316, %11, %cst_105 {dimension_numbers = #tpu.dot_dimension_numbers<[1], [0], [0], [1], [0, 0, 1, 1], [], []>} : vector<8x48xf32>, vector<48x128xf32>, vector<8x128xf32> -> vector<8x128xf32>
    %318 = vector.broadcast %12 : vector<1x128xf32> to vector<8x128xf32>
    %319 = arith.addf %317, %318 : vector<8x128xf32>
    %320 = vector.extract_strided_slice %319 {offsets = [0, 0], sizes = [8, 32], strides = [1, 1]} : vector<8x128xf32> to vector<8x32xf32>
    %321 = arith.negf %320 : vector<8x32xf32>
    %322 = math.exp %321 : vector<8x32xf32>
    %cst_106 = arith.constant 1.000000e+00 : f32
    %323 = vector.broadcast %cst_106 : f32 to vector<8x32xf32>
    %324 = arith.addf %323, %322 : vector<8x32xf32>
    %325 = arith.divf %323, %324 : vector<8x32xf32>
    %326 = vector.extract_strided_slice %319 {offsets = [0, 32], sizes = [8, 32], strides = [1, 1]} : vector<8x128xf32> to vector<8x32xf32>
    %327 = arith.negf %326 : vector<8x32xf32>
    %328 = math.exp %327 : vector<8x32xf32>
    %cst_107 = arith.constant 1.000000e+00 : f32
    %329 = vector.broadcast %cst_107 : f32 to vector<8x32xf32>
    %330 = arith.addf %329, %328 : vector<8x32xf32>
    %331 = arith.divf %329, %330 : vector<8x32xf32>
    %332 = vector.extract_strided_slice %319 {offsets = [0, 64], sizes = [8, 32], strides = [1, 1]} : vector<8x128xf32> to vector<8x32xf32>
    %333 = vector.extract_strided_slice %319 {offsets = [0, 96], sizes = [8, 32], strides = [1, 1]} : vector<8x128xf32> to vector<8x32xf32>
    %334 = arith.mulf %325, %333 : vector<8x32xf32>
    %335 = arith.addf %332, %334 : vector<8x32xf32>
    %336 = math.tanh %335 : vector<8x32xf32>
    %cst_108 = arith.constant 1.000000e+00 : f32
    %337 = vector.broadcast %cst_108 : f32 to vector<8x32xf32>
    %338 = arith.subf %337, %331 : vector<8x32xf32>
    %339 = arith.mulf %338, %336 : vector<8x32xf32>
    %340 = arith.mulf %331, %266 : vector<8x32xf32>
    %341 = arith.addf %339, %340 : vector<8x32xf32>
    %c24_109 = arith.constant 24 : index
    %c0_110 = arith.constant 0 : index
    %342 = vector.load %arg16[%c24_109, %c0_110] : memref<96x32xf32, #tpu.memory_space<vmem>>, vector<8x32xf32>
    tpu.vector_store %arg16[%c24_109, %c0_110], %341 {strides = array<i32>} : memref<96x32xf32, #tpu.memory_space<vmem>>, vector<8x32xf32>,
    %343 = vector.extract_strided_slice %40 {offsets = [32, 0], sizes = [8, 64], strides = [1, 1]} : vector<96x64xf32> to vector<8x64xf32>
    %344 = arith.mulf %299, %343 : vector<8x64xf32>
    %cst_111 = arith.constant dense<0.000000e+00> : vector<8x192xf32>
    %345 = tpu.matmul %344, %4, %cst_111 {dimension_numbers = #tpu.dot_dimension_numbers<[1], [0], [0], [1], [0, 0, 1, 1], [], []>} : vector<8x64xf32>, vector<64x192xf32>, vector<8x192xf32> -> vector<8x192xf32>
    %346 = vector.broadcast %5 : vector<1x192xf32> to vector<8x192xf32>
    %347 = arith.addf %345, %346 : vector<8x192xf32>
    %c32 = arith.constant 32 : index
    %c0_112 = arith.constant 0 : index
    %348 = vector.load %arg17[%c32, %c0_112] : memref<96x192xf32, #tpu.memory_space<vmem>>, vector<8x192xf32>
    %349 = vector.extract_strided_slice %348 {offsets = [0, 0], sizes = [8, 64], strides = [1, 1]} : vector<8x192xf32> to vector<8x64xf32>
    %350 = vector.extract_strided_slice %347 {offsets = [0, 0], sizes = [8, 64], strides = [1, 1]} : vector<8x192xf32> to vector<8x64xf32>
    %351 = arith.addf %349, %350 : vector<8x64xf32>
    %352 = arith.negf %351 : vector<8x64xf32>
    %353 = math.exp %352 : vector<8x64xf32>
    %cst_113 = arith.constant 1.000000e+00 : f32
    %354 = vector.broadcast %cst_113 : f32 to vector<8x64xf32>
    %355 = arith.addf %354, %353 : vector<8x64xf32>
    %356 = arith.divf %354, %355 : vector<8x64xf32>
    %357 = vector.extract_strided_slice %348 {offsets = [0, 64], sizes = [8, 64], strides = [1, 1]} : vector<8x192xf32> to vector<8x64xf32>
    %358 = vector.extract_strided_slice %347 {offsets = [0, 64], sizes = [8, 64], strides = [1, 1]} : vector<8x192xf32> to vector<8x64xf32>
    %359 = arith.addf %357, %358 : vector<8x64xf32>
    %360 = arith.negf %359 : vector<8x64xf32>
    %361 = math.exp %360 : vector<8x64xf32>
    %cst_114 = arith.constant 1.000000e+00 : f32
    %362 = vector.broadcast %cst_114 : f32 to vector<8x64xf32>
    %363 = arith.addf %362, %361 : vector<8x64xf32>
    %364 = arith.divf %362, %363 : vector<8x64xf32>
    %365 = vector.extract_strided_slice %348 {offsets = [0, 128], sizes = [8, 64], strides = [1, 1]} : vector<8x192xf32> to vector<8x64xf32>
    %366 = vector.extract_strided_slice %347 {offsets = [0, 128], sizes = [8, 64], strides = [1, 1]} : vector<8x192xf32> to vector<8x64xf32>
    %367 = arith.mulf %356, %366 : vector<8x64xf32>
    %368 = arith.addf %365, %367 : vector<8x64xf32>
    %369 = math.tanh %368 : vector<8x64xf32>
    %cst_115 = arith.constant 1.000000e+00 : f32
    %370 = vector.broadcast %cst_115 : f32 to vector<8x64xf32>
    %371 = arith.subf %370, %364 : vector<8x64xf32>
    %372 = arith.mulf %371, %369 : vector<8x64xf32>
    %373 = arith.mulf %364, %344 : vector<8x64xf32>
    %374 = arith.addf %372, %373 : vector<8x64xf32>
    %cst_116 = arith.constant dense<0.000000e+00> : vector<8x32xf32>
    %375 = tpu.matmul %374, %6, %cst_116 {dimension_numbers = #tpu.dot_dimension_numbers<[1], [0], [0], [1], [0, 0, 1, 1], [], []>} : vector<8x64xf32>, vector<64x32xf32>, vector<8x32xf32> -> vector<8x32xf32>
    %376 = vector.broadcast %7 : vector<1x32xf32> to vector<8x32xf32>
    %377 = arith.addf %375, %376 : vector<8x32xf32>
    %378 = vector.extract_strided_slice %377 {offsets = [0, 0], sizes = [8, 16], strides = [1, 1]} : vector<8x32xf32> to vector<8x16xf32>
    %379 = vector.extract_strided_slice %377 {offsets = [0, 16], sizes = [8, 16], strides = [1, 1]} : vector<8x32xf32> to vector<8x16xf32>
    %380 = arith.negf %379 : vector<8x16xf32>
    %381 = math.exp %380 : vector<8x16xf32>
    %cst_117 = arith.constant 1.000000e+00 : f32
    %382 = vector.broadcast %cst_117 : f32 to vector<8x16xf32>
    %383 = arith.addf %382, %381 : vector<8x16xf32>
    %384 = arith.divf %382, %383 : vector<8x16xf32>
    %385 = arith.mulf %378, %384 : vector<8x16xf32>
    %cst_118 = arith.constant dense<0.000000e+00> : vector<8x16xf32>
    %386 = tpu.matmul %385, %8, %cst_118 {dimension_numbers = #tpu.dot_dimension_numbers<[1], [0], [0], [1], [0, 0, 1, 1], [], []>} : vector<8x16xf32>, vector<16x16xf32>, vector<8x16xf32> -> vector<8x16xf32>
    %c32_119 = arith.constant 32 : index
    %c0_120 = arith.constant 0 : index
    %387 = vector.load %arg18[%c32_119, %c0_120] : memref<96x16xf32, #tpu.memory_space<vmem>>, vector<8x16xf32>
    %388 = arith.addf %386, %387 : vector<8x16xf32>
    %cst_121 = arith.constant 0.000000e+00 : f32
    %389 = vector.broadcast %cst_121 : f32 to vector<8x16xf32>
    %390 = arith.maximumf %388, %389 : vector<8x16xf32>
    %391 = tpu.concatenate %390, %341 in 1 : vector<8x16xf32>, vector<8x32xf32> -> vector<8x48xf32>
    %cst_122 = arith.constant dense<0.000000e+00> : vector<8x128xf32>
    %392 = tpu.matmul %391, %11, %cst_122 {dimension_numbers = #tpu.dot_dimension_numbers<[1], [0], [0], [1], [0, 0, 1, 1], [], []>} : vector<8x48xf32>, vector<48x128xf32>, vector<8x128xf32> -> vector<8x128xf32>
    %393 = vector.broadcast %12 : vector<1x128xf32> to vector<8x128xf32>
    %394 = arith.addf %392, %393 : vector<8x128xf32>
    %395 = vector.extract_strided_slice %394 {offsets = [0, 0], sizes = [8, 32], strides = [1, 1]} : vector<8x128xf32> to vector<8x32xf32>
    %396 = arith.negf %395 : vector<8x32xf32>
    %397 = math.exp %396 : vector<8x32xf32>
    %cst_123 = arith.constant 1.000000e+00 : f32
    %398 = vector.broadcast %cst_123 : f32 to vector<8x32xf32>
    %399 = arith.addf %398, %397 : vector<8x32xf32>
    %400 = arith.divf %398, %399 : vector<8x32xf32>
    %401 = vector.extract_strided_slice %394 {offsets = [0, 32], sizes = [8, 32], strides = [1, 1]} : vector<8x128xf32> to vector<8x32xf32>
    %402 = arith.negf %401 : vector<8x32xf32>
    %403 = math.exp %402 : vector<8x32xf32>
    %cst_124 = arith.constant 1.000000e+00 : f32
    %404 = vector.broadcast %cst_124 : f32 to vector<8x32xf32>
    %405 = arith.addf %404, %403 : vector<8x32xf32>
    %406 = arith.divf %404, %405 : vector<8x32xf32>
    %407 = vector.extract_strided_slice %394 {offsets = [0, 64], sizes = [8, 32], strides = [1, 1]} : vector<8x128xf32> to vector<8x32xf32>
    %408 = vector.extract_strided_slice %394 {offsets = [0, 96], sizes = [8, 32], strides = [1, 1]} : vector<8x128xf32> to vector<8x32xf32>
    %409 = arith.mulf %400, %408 : vector<8x32xf32>
    %410 = arith.addf %407, %409 : vector<8x32xf32>
    %411 = math.tanh %410 : vector<8x32xf32>
    %cst_125 = arith.constant 1.000000e+00 : f32
    %412 = vector.broadcast %cst_125 : f32 to vector<8x32xf32>
    %413 = arith.subf %412, %406 : vector<8x32xf32>
    %414 = arith.mulf %413, %411 : vector<8x32xf32>
    %415 = arith.mulf %406, %341 : vector<8x32xf32>
    %416 = arith.addf %414, %415 : vector<8x32xf32>
    %c32_126 = arith.constant 32 : index
    %c0_127 = arith.constant 0 : index
    %417 = vector.load %arg16[%c32_126, %c0_127] : memref<96x32xf32, #tpu.memory_space<vmem>>, vector<8x32xf32>
    tpu.vector_store %arg16[%c32_126, %c0_127], %416 {strides = array<i32>} : memref<96x32xf32, #tpu.memory_space<vmem>>, vector<8x32xf32>,
    %418 = vector.extract_strided_slice %40 {offsets = [40, 0], sizes = [8, 64], strides = [1, 1]} : vector<96x64xf32> to vector<8x64xf32>
    %419 = arith.mulf %374, %418 : vector<8x64xf32>
    %cst_128 = arith.constant dense<0.000000e+00> : vector<8x192xf32>
    %420 = tpu.matmul %419, %4, %cst_128 {dimension_numbers = #tpu.dot_dimension_numbers<[1], [0], [0], [1], [0, 0, 1, 1], [], []>} : vector<8x64xf32>, vector<64x192xf32>, vector<8x192xf32> -> vector<8x192xf32>
    %421 = vector.broadcast %5 : vector<1x192xf32> to vector<8x192xf32>
    %422 = arith.addf %420, %421 : vector<8x192xf32>
    %c40 = arith.constant 40 : index
    %c0_129 = arith.constant 0 : index
    %423 = vector.load %arg17[%c40, %c0_129] : memref<96x192xf32, #tpu.memory_space<vmem>>, vector<8x192xf32>
    %424 = vector.extract_strided_slice %423 {offsets = [0, 0], sizes = [8, 64], strides = [1, 1]} : vector<8x192xf32> to vector<8x64xf32>
    %425 = vector.extract_strided_slice %422 {offsets = [0, 0], sizes = [8, 64], strides = [1, 1]} : vector<8x192xf32> to vector<8x64xf32>
    %426 = arith.addf %424, %425 : vector<8x64xf32>
    %427 = arith.negf %426 : vector<8x64xf32>
    %428 = math.exp %427 : vector<8x64xf32>
    %cst_130 = arith.constant 1.000000e+00 : f32
    %429 = vector.broadcast %cst_130 : f32 to vector<8x64xf32>
    %430 = arith.addf %429, %428 : vector<8x64xf32>
    %431 = arith.divf %429, %430 : vector<8x64xf32>
    %432 = vector.extract_strided_slice %423 {offsets = [0, 64], sizes = [8, 64], strides = [1, 1]} : vector<8x192xf32> to vector<8x64xf32>
    %433 = vector.extract_strided_slice %422 {offsets = [0, 64], sizes = [8, 64], strides = [1, 1]} : vector<8x192xf32> to vector<8x64xf32>
    %434 = arith.addf %432, %433 : vector<8x64xf32>
    %435 = arith.negf %434 : vector<8x64xf32>
    %436 = math.exp %435 : vector<8x64xf32>
    %cst_131 = arith.constant 1.000000e+00 : f32
    %437 = vector.broadcast %cst_131 : f32 to vector<8x64xf32>
    %438 = arith.addf %437, %436 : vector<8x64xf32>
    %439 = arith.divf %437, %438 : vector<8x64xf32>
    %440 = vector.extract_strided_slice %423 {offsets = [0, 128], sizes = [8, 64], strides = [1, 1]} : vector<8x192xf32> to vector<8x64xf32>
    %441 = vector.extract_strided_slice %422 {offsets = [0, 128], sizes = [8, 64], strides = [1, 1]} : vector<8x192xf32> to vector<8x64xf32>
    %442 = arith.mulf %431, %441 : vector<8x64xf32>
    %443 = arith.addf %440, %442 : vector<8x64xf32>
    %444 = math.tanh %443 : vector<8x64xf32>
    %cst_132 = arith.constant 1.000000e+00 : f32
    %445 = vector.broadcast %cst_132 : f32 to vector<8x64xf32>
    %446 = arith.subf %445, %439 : vector<8x64xf32>
    %447 = arith.mulf %446, %444 : vector<8x64xf32>
    %448 = arith.mulf %439, %419 : vector<8x64xf32>
    %449 = arith.addf %447, %448 : vector<8x64xf32>
    %cst_133 = arith.constant dense<0.000000e+00> : vector<8x32xf32>
    %450 = tpu.matmul %449, %6, %cst_133 {dimension_numbers = #tpu.dot_dimension_numbers<[1], [0], [0], [1], [0, 0, 1, 1], [], []>} : vector<8x64xf32>, vector<64x32xf32>, vector<8x32xf32> -> vector<8x32xf32>
    %451 = vector.broadcast %7 : vector<1x32xf32> to vector<8x32xf32>
    %452 = arith.addf %450, %451 : vector<8x32xf32>
    %453 = vector.extract_strided_slice %452 {offsets = [0, 0], sizes = [8, 16], strides = [1, 1]} : vector<8x32xf32> to vector<8x16xf32>
    %454 = vector.extract_strided_slice %452 {offsets = [0, 16], sizes = [8, 16], strides = [1, 1]} : vector<8x32xf32> to vector<8x16xf32>
    %455 = arith.negf %454 : vector<8x16xf32>
    %456 = math.exp %455 : vector<8x16xf32>
    %cst_134 = arith.constant 1.000000e+00 : f32
    %457 = vector.broadcast %cst_134 : f32 to vector<8x16xf32>
    %458 = arith.addf %457, %456 : vector<8x16xf32>
    %459 = arith.divf %457, %458 : vector<8x16xf32>
    %460 = arith.mulf %453, %459 : vector<8x16xf32>
    %cst_135 = arith.constant dense<0.000000e+00> : vector<8x16xf32>
    %461 = tpu.matmul %460, %8, %cst_135 {dimension_numbers = #tpu.dot_dimension_numbers<[1], [0], [0], [1], [0, 0, 1, 1], [], []>} : vector<8x16xf32>, vector<16x16xf32>, vector<8x16xf32> -> vector<8x16xf32>
    %c40_136 = arith.constant 40 : index
    %c0_137 = arith.constant 0 : index
    %462 = vector.load %arg18[%c40_136, %c0_137] : memref<96x16xf32, #tpu.memory_space<vmem>>, vector<8x16xf32>
    %463 = arith.addf %461, %462 : vector<8x16xf32>
    %cst_138 = arith.constant 0.000000e+00 : f32
    %464 = vector.broadcast %cst_138 : f32 to vector<8x16xf32>
    %465 = arith.maximumf %463, %464 : vector<8x16xf32>
    %466 = tpu.concatenate %465, %416 in 1 : vector<8x16xf32>, vector<8x32xf32> -> vector<8x48xf32>
    %cst_139 = arith.constant dense<0.000000e+00> : vector<8x128xf32>
    %467 = tpu.matmul %466, %11, %cst_139 {dimension_numbers = #tpu.dot_dimension_numbers<[1], [0], [0], [1], [0, 0, 1, 1], [], []>} : vector<8x48xf32>, vector<48x128xf32>, vector<8x128xf32> -> vector<8x128xf32>
    %468 = vector.broadcast %12 : vector<1x128xf32> to vector<8x128xf32>
    %469 = arith.addf %467, %468 : vector<8x128xf32>
    %470 = vector.extract_strided_slice %469 {offsets = [0, 0], sizes = [8, 32], strides = [1, 1]} : vector<8x128xf32> to vector<8x32xf32>
    %471 = arith.negf %470 : vector<8x32xf32>
    %472 = math.exp %471 : vector<8x32xf32>
    %cst_140 = arith.constant 1.000000e+00 : f32
    %473 = vector.broadcast %cst_140 : f32 to vector<8x32xf32>
    %474 = arith.addf %473, %472 : vector<8x32xf32>
    %475 = arith.divf %473, %474 : vector<8x32xf32>
    %476 = vector.extract_strided_slice %469 {offsets = [0, 32], sizes = [8, 32], strides = [1, 1]} : vector<8x128xf32> to vector<8x32xf32>
    %477 = arith.negf %476 : vector<8x32xf32>
    %478 = math.exp %477 : vector<8x32xf32>
    %cst_141 = arith.constant 1.000000e+00 : f32
    %479 = vector.broadcast %cst_141 : f32 to vector<8x32xf32>
    %480 = arith.addf %479, %478 : vector<8x32xf32>
    %481 = arith.divf %479, %480 : vector<8x32xf32>
    %482 = vector.extract_strided_slice %469 {offsets = [0, 64], sizes = [8, 32], strides = [1, 1]} : vector<8x128xf32> to vector<8x32xf32>
    %483 = vector.extract_strided_slice %469 {offsets = [0, 96], sizes = [8, 32], strides = [1, 1]} : vector<8x128xf32> to vector<8x32xf32>
    %484 = arith.mulf %475, %483 : vector<8x32xf32>
    %485 = arith.addf %482, %484 : vector<8x32xf32>
    %486 = math.tanh %485 : vector<8x32xf32>
    %cst_142 = arith.constant 1.000000e+00 : f32
    %487 = vector.broadcast %cst_142 : f32 to vector<8x32xf32>
    %488 = arith.subf %487, %481 : vector<8x32xf32>
    %489 = arith.mulf %488, %486 : vector<8x32xf32>
    %490 = arith.mulf %481, %416 : vector<8x32xf32>
    %491 = arith.addf %489, %490 : vector<8x32xf32>
    %c40_143 = arith.constant 40 : index
    %c0_144 = arith.constant 0 : index
    %492 = vector.load %arg16[%c40_143, %c0_144] : memref<96x32xf32, #tpu.memory_space<vmem>>, vector<8x32xf32>
    tpu.vector_store %arg16[%c40_143, %c0_144], %491 {strides = array<i32>} : memref<96x32xf32, #tpu.memory_space<vmem>>, vector<8x32xf32>,
    %493 = vector.extract_strided_slice %40 {offsets = [48, 0], sizes = [8, 64], strides = [1, 1]} : vector<96x64xf32> to vector<8x64xf32>
    %494 = arith.mulf %449, %493 : vector<8x64xf32>
    %cst_145 = arith.constant dense<0.000000e+00> : vector<8x192xf32>
    %495 = tpu.matmul %494, %4, %cst_145 {dimension_numbers = #tpu.dot_dimension_numbers<[1], [0], [0], [1], [0, 0, 1, 1], [], []>} : vector<8x64xf32>, vector<64x192xf32>, vector<8x192xf32> -> vector<8x192xf32>
    %496 = vector.broadcast %5 : vector<1x192xf32> to vector<8x192xf32>
    %497 = arith.addf %495, %496 : vector<8x192xf32>
    %c48 = arith.constant 48 : index
    %c0_146 = arith.constant 0 : index
    %498 = vector.load %arg17[%c48, %c0_146] : memref<96x192xf32, #tpu.memory_space<vmem>>, vector<8x192xf32>
    %499 = vector.extract_strided_slice %498 {offsets = [0, 0], sizes = [8, 64], strides = [1, 1]} : vector<8x192xf32> to vector<8x64xf32>
    %500 = vector.extract_strided_slice %497 {offsets = [0, 0], sizes = [8, 64], strides = [1, 1]} : vector<8x192xf32> to vector<8x64xf32>
    %501 = arith.addf %499, %500 : vector<8x64xf32>
    %502 = arith.negf %501 : vector<8x64xf32>
    %503 = math.exp %502 : vector<8x64xf32>
    %cst_147 = arith.constant 1.000000e+00 : f32
    %504 = vector.broadcast %cst_147 : f32 to vector<8x64xf32>
    %505 = arith.addf %504, %503 : vector<8x64xf32>
    %506 = arith.divf %504, %505 : vector<8x64xf32>
    %507 = vector.extract_strided_slice %498 {offsets = [0, 64], sizes = [8, 64], strides = [1, 1]} : vector<8x192xf32> to vector<8x64xf32>
    %508 = vector.extract_strided_slice %497 {offsets = [0, 64], sizes = [8, 64], strides = [1, 1]} : vector<8x192xf32> to vector<8x64xf32>
    %509 = arith.addf %507, %508 : vector<8x64xf32>
    %510 = arith.negf %509 : vector<8x64xf32>
    %511 = math.exp %510 : vector<8x64xf32>
    %cst_148 = arith.constant 1.000000e+00 : f32
    %512 = vector.broadcast %cst_148 : f32 to vector<8x64xf32>
    %513 = arith.addf %512, %511 : vector<8x64xf32>
    %514 = arith.divf %512, %513 : vector<8x64xf32>
    %515 = vector.extract_strided_slice %498 {offsets = [0, 128], sizes = [8, 64], strides = [1, 1]} : vector<8x192xf32> to vector<8x64xf32>
    %516 = vector.extract_strided_slice %497 {offsets = [0, 128], sizes = [8, 64], strides = [1, 1]} : vector<8x192xf32> to vector<8x64xf32>
    %517 = arith.mulf %506, %516 : vector<8x64xf32>
    %518 = arith.addf %515, %517 : vector<8x64xf32>
    %519 = math.tanh %518 : vector<8x64xf32>
    %cst_149 = arith.constant 1.000000e+00 : f32
    %520 = vector.broadcast %cst_149 : f32 to vector<8x64xf32>
    %521 = arith.subf %520, %514 : vector<8x64xf32>
    %522 = arith.mulf %521, %519 : vector<8x64xf32>
    %523 = arith.mulf %514, %494 : vector<8x64xf32>
    %524 = arith.addf %522, %523 : vector<8x64xf32>
    %cst_150 = arith.constant dense<0.000000e+00> : vector<8x32xf32>
    %525 = tpu.matmul %524, %6, %cst_150 {dimension_numbers = #tpu.dot_dimension_numbers<[1], [0], [0], [1], [0, 0, 1, 1], [], []>} : vector<8x64xf32>, vector<64x32xf32>, vector<8x32xf32> -> vector<8x32xf32>
    %526 = vector.broadcast %7 : vector<1x32xf32> to vector<8x32xf32>
    %527 = arith.addf %525, %526 : vector<8x32xf32>
    %528 = vector.extract_strided_slice %527 {offsets = [0, 0], sizes = [8, 16], strides = [1, 1]} : vector<8x32xf32> to vector<8x16xf32>
    %529 = vector.extract_strided_slice %527 {offsets = [0, 16], sizes = [8, 16], strides = [1, 1]} : vector<8x32xf32> to vector<8x16xf32>
    %530 = arith.negf %529 : vector<8x16xf32>
    %531 = math.exp %530 : vector<8x16xf32>
    %cst_151 = arith.constant 1.000000e+00 : f32
    %532 = vector.broadcast %cst_151 : f32 to vector<8x16xf32>
    %533 = arith.addf %532, %531 : vector<8x16xf32>
    %534 = arith.divf %532, %533 : vector<8x16xf32>
    %535 = arith.mulf %528, %534 : vector<8x16xf32>
    %cst_152 = arith.constant dense<0.000000e+00> : vector<8x16xf32>
    %536 = tpu.matmul %535, %8, %cst_152 {dimension_numbers = #tpu.dot_dimension_numbers<[1], [0], [0], [1], [0, 0, 1, 1], [], []>} : vector<8x16xf32>, vector<16x16xf32>, vector<8x16xf32> -> vector<8x16xf32>
    %c48_153 = arith.constant 48 : index
    %c0_154 = arith.constant 0 : index
    %537 = vector.load %arg18[%c48_153, %c0_154] : memref<96x16xf32, #tpu.memory_space<vmem>>, vector<8x16xf32>
    %538 = arith.addf %536, %537 : vector<8x16xf32>
    %cst_155 = arith.constant 0.000000e+00 : f32
    %539 = vector.broadcast %cst_155 : f32 to vector<8x16xf32>
    %540 = arith.maximumf %538, %539 : vector<8x16xf32>
    %541 = tpu.concatenate %540, %491 in 1 : vector<8x16xf32>, vector<8x32xf32> -> vector<8x48xf32>
    %cst_156 = arith.constant dense<0.000000e+00> : vector<8x128xf32>
    %542 = tpu.matmul %541, %11, %cst_156 {dimension_numbers = #tpu.dot_dimension_numbers<[1], [0], [0], [1], [0, 0, 1, 1], [], []>} : vector<8x48xf32>, vector<48x128xf32>, vector<8x128xf32> -> vector<8x128xf32>
    %543 = vector.broadcast %12 : vector<1x128xf32> to vector<8x128xf32>
    %544 = arith.addf %542, %543 : vector<8x128xf32>
    %545 = vector.extract_strided_slice %544 {offsets = [0, 0], sizes = [8, 32], strides = [1, 1]} : vector<8x128xf32> to vector<8x32xf32>
    %546 = arith.negf %545 : vector<8x32xf32>
    %547 = math.exp %546 : vector<8x32xf32>
    %cst_157 = arith.constant 1.000000e+00 : f32
    %548 = vector.broadcast %cst_157 : f32 to vector<8x32xf32>
    %549 = arith.addf %548, %547 : vector<8x32xf32>
    %550 = arith.divf %548, %549 : vector<8x32xf32>
    %551 = vector.extract_strided_slice %544 {offsets = [0, 32], sizes = [8, 32], strides = [1, 1]} : vector<8x128xf32> to vector<8x32xf32>
    %552 = arith.negf %551 : vector<8x32xf32>
    %553 = math.exp %552 : vector<8x32xf32>
    %cst_158 = arith.constant 1.000000e+00 : f32
    %554 = vector.broadcast %cst_158 : f32 to vector<8x32xf32>
    %555 = arith.addf %554, %553 : vector<8x32xf32>
    %556 = arith.divf %554, %555 : vector<8x32xf32>
    %557 = vector.extract_strided_slice %544 {offsets = [0, 64], sizes = [8, 32], strides = [1, 1]} : vector<8x128xf32> to vector<8x32xf32>
    %558 = vector.extract_strided_slice %544 {offsets = [0, 96], sizes = [8, 32], strides = [1, 1]} : vector<8x128xf32> to vector<8x32xf32>
    %559 = arith.mulf %550, %558 : vector<8x32xf32>
    %560 = arith.addf %557, %559 : vector<8x32xf32>
    %561 = math.tanh %560 : vector<8x32xf32>
    %cst_159 = arith.constant 1.000000e+00 : f32
    %562 = vector.broadcast %cst_159 : f32 to vector<8x32xf32>
    %563 = arith.subf %562, %556 : vector<8x32xf32>
    %564 = arith.mulf %563, %561 : vector<8x32xf32>
    %565 = arith.mulf %556, %491 : vector<8x32xf32>
    %566 = arith.addf %564, %565 : vector<8x32xf32>
    %c48_160 = arith.constant 48 : index
    %c0_161 = arith.constant 0 : index
    %567 = vector.load %arg16[%c48_160, %c0_161] : memref<96x32xf32, #tpu.memory_space<vmem>>, vector<8x32xf32>
    tpu.vector_store %arg16[%c48_160, %c0_161], %566 {strides = array<i32>} : memref<96x32xf32, #tpu.memory_space<vmem>>, vector<8x32xf32>,
    %568 = vector.extract_strided_slice %40 {offsets = [56, 0], sizes = [8, 64], strides = [1, 1]} : vector<96x64xf32> to vector<8x64xf32>
    %569 = arith.mulf %524, %568 : vector<8x64xf32>
    %cst_162 = arith.constant dense<0.000000e+00> : vector<8x192xf32>
    %570 = tpu.matmul %569, %4, %cst_162 {dimension_numbers = #tpu.dot_dimension_numbers<[1], [0], [0], [1], [0, 0, 1, 1], [], []>} : vector<8x64xf32>, vector<64x192xf32>, vector<8x192xf32> -> vector<8x192xf32>
    %571 = vector.broadcast %5 : vector<1x192xf32> to vector<8x192xf32>
    %572 = arith.addf %570, %571 : vector<8x192xf32>
    %c56 = arith.constant 56 : index
    %c0_163 = arith.constant 0 : index
    %573 = vector.load %arg17[%c56, %c0_163] : memref<96x192xf32, #tpu.memory_space<vmem>>, vector<8x192xf32>
    %574 = vector.extract_strided_slice %573 {offsets = [0, 0], sizes = [8, 64], strides = [1, 1]} : vector<8x192xf32> to vector<8x64xf32>
    %575 = vector.extract_strided_slice %572 {offsets = [0, 0], sizes = [8, 64], strides = [1, 1]} : vector<8x192xf32> to vector<8x64xf32>
    %576 = arith.addf %574, %575 : vector<8x64xf32>
    %577 = arith.negf %576 : vector<8x64xf32>
    %578 = math.exp %577 : vector<8x64xf32>
    %cst_164 = arith.constant 1.000000e+00 : f32
    %579 = vector.broadcast %cst_164 : f32 to vector<8x64xf32>
    %580 = arith.addf %579, %578 : vector<8x64xf32>
    %581 = arith.divf %579, %580 : vector<8x64xf32>
    %582 = vector.extract_strided_slice %573 {offsets = [0, 64], sizes = [8, 64], strides = [1, 1]} : vector<8x192xf32> to vector<8x64xf32>
    %583 = vector.extract_strided_slice %572 {offsets = [0, 64], sizes = [8, 64], strides = [1, 1]} : vector<8x192xf32> to vector<8x64xf32>
    %584 = arith.addf %582, %583 : vector<8x64xf32>
    %585 = arith.negf %584 : vector<8x64xf32>
    %586 = math.exp %585 : vector<8x64xf32>
    %cst_165 = arith.constant 1.000000e+00 : f32
    %587 = vector.broadcast %cst_165 : f32 to vector<8x64xf32>
    %588 = arith.addf %587, %586 : vector<8x64xf32>
    %589 = arith.divf %587, %588 : vector<8x64xf32>
    %590 = vector.extract_strided_slice %573 {offsets = [0, 128], sizes = [8, 64], strides = [1, 1]} : vector<8x192xf32> to vector<8x64xf32>
    %591 = vector.extract_strided_slice %572 {offsets = [0, 128], sizes = [8, 64], strides = [1, 1]} : vector<8x192xf32> to vector<8x64xf32>
    %592 = arith.mulf %581, %591 : vector<8x64xf32>
    %593 = arith.addf %590, %592 : vector<8x64xf32>
    %594 = math.tanh %593 : vector<8x64xf32>
    %cst_166 = arith.constant 1.000000e+00 : f32
    %595 = vector.broadcast %cst_166 : f32 to vector<8x64xf32>
    %596 = arith.subf %595, %589 : vector<8x64xf32>
    %597 = arith.mulf %596, %594 : vector<8x64xf32>
    %598 = arith.mulf %589, %569 : vector<8x64xf32>
    %599 = arith.addf %597, %598 : vector<8x64xf32>
    %cst_167 = arith.constant dense<0.000000e+00> : vector<8x32xf32>
    %600 = tpu.matmul %599, %6, %cst_167 {dimension_numbers = #tpu.dot_dimension_numbers<[1], [0], [0], [1], [0, 0, 1, 1], [], []>} : vector<8x64xf32>, vector<64x32xf32>, vector<8x32xf32> -> vector<8x32xf32>
    %601 = vector.broadcast %7 : vector<1x32xf32> to vector<8x32xf32>
    %602 = arith.addf %600, %601 : vector<8x32xf32>
    %603 = vector.extract_strided_slice %602 {offsets = [0, 0], sizes = [8, 16], strides = [1, 1]} : vector<8x32xf32> to vector<8x16xf32>
    %604 = vector.extract_strided_slice %602 {offsets = [0, 16], sizes = [8, 16], strides = [1, 1]} : vector<8x32xf32> to vector<8x16xf32>
    %605 = arith.negf %604 : vector<8x16xf32>
    %606 = math.exp %605 : vector<8x16xf32>
    %cst_168 = arith.constant 1.000000e+00 : f32
    %607 = vector.broadcast %cst_168 : f32 to vector<8x16xf32>
    %608 = arith.addf %607, %606 : vector<8x16xf32>
    %609 = arith.divf %607, %608 : vector<8x16xf32>
    %610 = arith.mulf %603, %609 : vector<8x16xf32>
    %cst_169 = arith.constant dense<0.000000e+00> : vector<8x16xf32>
    %611 = tpu.matmul %610, %8, %cst_169 {dimension_numbers = #tpu.dot_dimension_numbers<[1], [0], [0], [1], [0, 0, 1, 1], [], []>} : vector<8x16xf32>, vector<16x16xf32>, vector<8x16xf32> -> vector<8x16xf32>
    %c56_170 = arith.constant 56 : index
    %c0_171 = arith.constant 0 : index
    %612 = vector.load %arg18[%c56_170, %c0_171] : memref<96x16xf32, #tpu.memory_space<vmem>>, vector<8x16xf32>
    %613 = arith.addf %611, %612 : vector<8x16xf32>
    %cst_172 = arith.constant 0.000000e+00 : f32
    %614 = vector.broadcast %cst_172 : f32 to vector<8x16xf32>
    %615 = arith.maximumf %613, %614 : vector<8x16xf32>
    %616 = tpu.concatenate %615, %566 in 1 : vector<8x16xf32>, vector<8x32xf32> -> vector<8x48xf32>
    %cst_173 = arith.constant dense<0.000000e+00> : vector<8x128xf32>
    %617 = tpu.matmul %616, %11, %cst_173 {dimension_numbers = #tpu.dot_dimension_numbers<[1], [0], [0], [1], [0, 0, 1, 1], [], []>} : vector<8x48xf32>, vector<48x128xf32>, vector<8x128xf32> -> vector<8x128xf32>
    %618 = vector.broadcast %12 : vector<1x128xf32> to vector<8x128xf32>
    %619 = arith.addf %617, %618 : vector<8x128xf32>
    %620 = vector.extract_strided_slice %619 {offsets = [0, 0], sizes = [8, 32], strides = [1, 1]} : vector<8x128xf32> to vector<8x32xf32>
    %621 = arith.negf %620 : vector<8x32xf32>
    %622 = math.exp %621 : vector<8x32xf32>
    %cst_174 = arith.constant 1.000000e+00 : f32
    %623 = vector.broadcast %cst_174 : f32 to vector<8x32xf32>
    %624 = arith.addf %623, %622 : vector<8x32xf32>
    %625 = arith.divf %623, %624 : vector<8x32xf32>
    %626 = vector.extract_strided_slice %619 {offsets = [0, 32], sizes = [8, 32], strides = [1, 1]} : vector<8x128xf32> to vector<8x32xf32>
    %627 = arith.negf %626 : vector<8x32xf32>
    %628 = math.exp %627 : vector<8x32xf32>
    %cst_175 = arith.constant 1.000000e+00 : f32
    %629 = vector.broadcast %cst_175 : f32 to vector<8x32xf32>
    %630 = arith.addf %629, %628 : vector<8x32xf32>
    %631 = arith.divf %629, %630 : vector<8x32xf32>
    %632 = vector.extract_strided_slice %619 {offsets = [0, 64], sizes = [8, 32], strides = [1, 1]} : vector<8x128xf32> to vector<8x32xf32>
    %633 = vector.extract_strided_slice %619 {offsets = [0, 96], sizes = [8, 32], strides = [1, 1]} : vector<8x128xf32> to vector<8x32xf32>
    %634 = arith.mulf %625, %633 : vector<8x32xf32>
    %635 = arith.addf %632, %634 : vector<8x32xf32>
    %636 = math.tanh %635 : vector<8x32xf32>
    %cst_176 = arith.constant 1.000000e+00 : f32
    %637 = vector.broadcast %cst_176 : f32 to vector<8x32xf32>
    %638 = arith.subf %637, %631 : vector<8x32xf32>
    %639 = arith.mulf %638, %636 : vector<8x32xf32>
    %640 = arith.mulf %631, %566 : vector<8x32xf32>
    %641 = arith.addf %639, %640 : vector<8x32xf32>
    %c56_177 = arith.constant 56 : index
    %c0_178 = arith.constant 0 : index
    %642 = vector.load %arg16[%c56_177, %c0_178] : memref<96x32xf32, #tpu.memory_space<vmem>>, vector<8x32xf32>
    tpu.vector_store %arg16[%c56_177, %c0_178], %641 {strides = array<i32>} : memref<96x32xf32, #tpu.memory_space<vmem>>, vector<8x32xf32>,
    %643 = vector.extract_strided_slice %40 {offsets = [64, 0], sizes = [8, 64], strides = [1, 1]} : vector<96x64xf32> to vector<8x64xf32>
    %644 = arith.mulf %599, %643 : vector<8x64xf32>
    %cst_179 = arith.constant dense<0.000000e+00> : vector<8x192xf32>
    %645 = tpu.matmul %644, %4, %cst_179 {dimension_numbers = #tpu.dot_dimension_numbers<[1], [0], [0], [1], [0, 0, 1, 1], [], []>} : vector<8x64xf32>, vector<64x192xf32>, vector<8x192xf32> -> vector<8x192xf32>
    %646 = vector.broadcast %5 : vector<1x192xf32> to vector<8x192xf32>
    %647 = arith.addf %645, %646 : vector<8x192xf32>
    %c64 = arith.constant 64 : index
    %c0_180 = arith.constant 0 : index
    %648 = vector.load %arg17[%c64, %c0_180] : memref<96x192xf32, #tpu.memory_space<vmem>>, vector<8x192xf32>
    %649 = vector.extract_strided_slice %648 {offsets = [0, 0], sizes = [8, 64], strides = [1, 1]} : vector<8x192xf32> to vector<8x64xf32>
    %650 = vector.extract_strided_slice %647 {offsets = [0, 0], sizes = [8, 64], strides = [1, 1]} : vector<8x192xf32> to vector<8x64xf32>
    %651 = arith.addf %649, %650 : vector<8x64xf32>
    %652 = arith.negf %651 : vector<8x64xf32>
    %653 = math.exp %652 : vector<8x64xf32>
    %cst_181 = arith.constant 1.000000e+00 : f32
    %654 = vector.broadcast %cst_181 : f32 to vector<8x64xf32>
    %655 = arith.addf %654, %653 : vector<8x64xf32>
    %656 = arith.divf %654, %655 : vector<8x64xf32>
    %657 = vector.extract_strided_slice %648 {offsets = [0, 64], sizes = [8, 64], strides = [1, 1]} : vector<8x192xf32> to vector<8x64xf32>
    %658 = vector.extract_strided_slice %647 {offsets = [0, 64], sizes = [8, 64], strides = [1, 1]} : vector<8x192xf32> to vector<8x64xf32>
    %659 = arith.addf %657, %658 : vector<8x64xf32>
    %660 = arith.negf %659 : vector<8x64xf32>
    %661 = math.exp %660 : vector<8x64xf32>
    %cst_182 = arith.constant 1.000000e+00 : f32
    %662 = vector.broadcast %cst_182 : f32 to vector<8x64xf32>
    %663 = arith.addf %662, %661 : vector<8x64xf32>
    %664 = arith.divf %662, %663 : vector<8x64xf32>
    %665 = vector.extract_strided_slice %648 {offsets = [0, 128], sizes = [8, 64], strides = [1, 1]} : vector<8x192xf32> to vector<8x64xf32>
    %666 = vector.extract_strided_slice %647 {offsets = [0, 128], sizes = [8, 64], strides = [1, 1]} : vector<8x192xf32> to vector<8x64xf32>
    %667 = arith.mulf %656, %666 : vector<8x64xf32>
    %668 = arith.addf %665, %667 : vector<8x64xf32>
    %669 = math.tanh %668 : vector<8x64xf32>
    %cst_183 = arith.constant 1.000000e+00 : f32
    %670 = vector.broadcast %cst_183 : f32 to vector<8x64xf32>
    %671 = arith.subf %670, %664 : vector<8x64xf32>
    %672 = arith.mulf %671, %669 : vector<8x64xf32>
    %673 = arith.mulf %664, %644 : vector<8x64xf32>
    %674 = arith.addf %672, %673 : vector<8x64xf32>
    %cst_184 = arith.constant dense<0.000000e+00> : vector<8x32xf32>
    %675 = tpu.matmul %674, %6, %cst_184 {dimension_numbers = #tpu.dot_dimension_numbers<[1], [0], [0], [1], [0, 0, 1, 1], [], []>} : vector<8x64xf32>, vector<64x32xf32>, vector<8x32xf32> -> vector<8x32xf32>
    %676 = vector.broadcast %7 : vector<1x32xf32> to vector<8x32xf32>
    %677 = arith.addf %675, %676 : vector<8x32xf32>
    %678 = vector.extract_strided_slice %677 {offsets = [0, 0], sizes = [8, 16], strides = [1, 1]} : vector<8x32xf32> to vector<8x16xf32>
    %679 = vector.extract_strided_slice %677 {offsets = [0, 16], sizes = [8, 16], strides = [1, 1]} : vector<8x32xf32> to vector<8x16xf32>
    %680 = arith.negf %679 : vector<8x16xf32>
    %681 = math.exp %680 : vector<8x16xf32>
    %cst_185 = arith.constant 1.000000e+00 : f32
    %682 = vector.broadcast %cst_185 : f32 to vector<8x16xf32>
    %683 = arith.addf %682, %681 : vector<8x16xf32>
    %684 = arith.divf %682, %683 : vector<8x16xf32>
    %685 = arith.mulf %678, %684 : vector<8x16xf32>
    %cst_186 = arith.constant dense<0.000000e+00> : vector<8x16xf32>
    %686 = tpu.matmul %685, %8, %cst_186 {dimension_numbers = #tpu.dot_dimension_numbers<[1], [0], [0], [1], [0, 0, 1, 1], [], []>} : vector<8x16xf32>, vector<16x16xf32>, vector<8x16xf32> -> vector<8x16xf32>
    %c64_187 = arith.constant 64 : index
    %c0_188 = arith.constant 0 : index
    %687 = vector.load %arg18[%c64_187, %c0_188] : memref<96x16xf32, #tpu.memory_space<vmem>>, vector<8x16xf32>
    %688 = arith.addf %686, %687 : vector<8x16xf32>
    %cst_189 = arith.constant 0.000000e+00 : f32
    %689 = vector.broadcast %cst_189 : f32 to vector<8x16xf32>
    %690 = arith.maximumf %688, %689 : vector<8x16xf32>
    %691 = tpu.concatenate %690, %641 in 1 : vector<8x16xf32>, vector<8x32xf32> -> vector<8x48xf32>
    %cst_190 = arith.constant dense<0.000000e+00> : vector<8x128xf32>
    %692 = tpu.matmul %691, %11, %cst_190 {dimension_numbers = #tpu.dot_dimension_numbers<[1], [0], [0], [1], [0, 0, 1, 1], [], []>} : vector<8x48xf32>, vector<48x128xf32>, vector<8x128xf32> -> vector<8x128xf32>
    %693 = vector.broadcast %12 : vector<1x128xf32> to vector<8x128xf32>
    %694 = arith.addf %692, %693 : vector<8x128xf32>
    %695 = vector.extract_strided_slice %694 {offsets = [0, 0], sizes = [8, 32], strides = [1, 1]} : vector<8x128xf32> to vector<8x32xf32>
    %696 = arith.negf %695 : vector<8x32xf32>
    %697 = math.exp %696 : vector<8x32xf32>
    %cst_191 = arith.constant 1.000000e+00 : f32
    %698 = vector.broadcast %cst_191 : f32 to vector<8x32xf32>
    %699 = arith.addf %698, %697 : vector<8x32xf32>
    %700 = arith.divf %698, %699 : vector<8x32xf32>
    %701 = vector.extract_strided_slice %694 {offsets = [0, 32], sizes = [8, 32], strides = [1, 1]} : vector<8x128xf32> to vector<8x32xf32>
    %702 = arith.negf %701 : vector<8x32xf32>
    %703 = math.exp %702 : vector<8x32xf32>
    %cst_192 = arith.constant 1.000000e+00 : f32
    %704 = vector.broadcast %cst_192 : f32 to vector<8x32xf32>
    %705 = arith.addf %704, %703 : vector<8x32xf32>
    %706 = arith.divf %704, %705 : vector<8x32xf32>
    %707 = vector.extract_strided_slice %694 {offsets = [0, 64], sizes = [8, 32], strides = [1, 1]} : vector<8x128xf32> to vector<8x32xf32>
    %708 = vector.extract_strided_slice %694 {offsets = [0, 96], sizes = [8, 32], strides = [1, 1]} : vector<8x128xf32> to vector<8x32xf32>
    %709 = arith.mulf %700, %708 : vector<8x32xf32>
    %710 = arith.addf %707, %709 : vector<8x32xf32>
    %711 = math.tanh %710 : vector<8x32xf32>
    %cst_193 = arith.constant 1.000000e+00 : f32
    %712 = vector.broadcast %cst_193 : f32 to vector<8x32xf32>
    %713 = arith.subf %712, %706 : vector<8x32xf32>
    %714 = arith.mulf %713, %711 : vector<8x32xf32>
    %715 = arith.mulf %706, %641 : vector<8x32xf32>
    %716 = arith.addf %714, %715 : vector<8x32xf32>
    %c64_194 = arith.constant 64 : index
    %c0_195 = arith.constant 0 : index
    %717 = vector.load %arg16[%c64_194, %c0_195] : memref<96x32xf32, #tpu.memory_space<vmem>>, vector<8x32xf32>
    tpu.vector_store %arg16[%c64_194, %c0_195], %716 {strides = array<i32>} : memref<96x32xf32, #tpu.memory_space<vmem>>, vector<8x32xf32>,
    %718 = vector.extract_strided_slice %40 {offsets = [72, 0], sizes = [8, 64], strides = [1, 1]} : vector<96x64xf32> to vector<8x64xf32>
    %719 = arith.mulf %674, %718 : vector<8x64xf32>
    %cst_196 = arith.constant dense<0.000000e+00> : vector<8x192xf32>
    %720 = tpu.matmul %719, %4, %cst_196 {dimension_numbers = #tpu.dot_dimension_numbers<[1], [0], [0], [1], [0, 0, 1, 1], [], []>} : vector<8x64xf32>, vector<64x192xf32>, vector<8x192xf32> -> vector<8x192xf32>
    %721 = vector.broadcast %5 : vector<1x192xf32> to vector<8x192xf32>
    %722 = arith.addf %720, %721 : vector<8x192xf32>
    %c72 = arith.constant 72 : index
    %c0_197 = arith.constant 0 : index
    %723 = vector.load %arg17[%c72, %c0_197] : memref<96x192xf32, #tpu.memory_space<vmem>>, vector<8x192xf32>
    %724 = vector.extract_strided_slice %723 {offsets = [0, 0], sizes = [8, 64], strides = [1, 1]} : vector<8x192xf32> to vector<8x64xf32>
    %725 = vector.extract_strided_slice %722 {offsets = [0, 0], sizes = [8, 64], strides = [1, 1]} : vector<8x192xf32> to vector<8x64xf32>
    %726 = arith.addf %724, %725 : vector<8x64xf32>
    %727 = arith.negf %726 : vector<8x64xf32>
    %728 = math.exp %727 : vector<8x64xf32>
    %cst_198 = arith.constant 1.000000e+00 : f32
    %729 = vector.broadcast %cst_198 : f32 to vector<8x64xf32>
    %730 = arith.addf %729, %728 : vector<8x64xf32>
    %731 = arith.divf %729, %730 : vector<8x64xf32>
    %732 = vector.extract_strided_slice %723 {offsets = [0, 64], sizes = [8, 64], strides = [1, 1]} : vector<8x192xf32> to vector<8x64xf32>
    %733 = vector.extract_strided_slice %722 {offsets = [0, 64], sizes = [8, 64], strides = [1, 1]} : vector<8x192xf32> to vector<8x64xf32>
    %734 = arith.addf %732, %733 : vector<8x64xf32>
    %735 = arith.negf %734 : vector<8x64xf32>
    %736 = math.exp %735 : vector<8x64xf32>
    %cst_199 = arith.constant 1.000000e+00 : f32
    %737 = vector.broadcast %cst_199 : f32 to vector<8x64xf32>
    %738 = arith.addf %737, %736 : vector<8x64xf32>
    %739 = arith.divf %737, %738 : vector<8x64xf32>
    %740 = vector.extract_strided_slice %723 {offsets = [0, 128], sizes = [8, 64], strides = [1, 1]} : vector<8x192xf32> to vector<8x64xf32>
    %741 = vector.extract_strided_slice %722 {offsets = [0, 128], sizes = [8, 64], strides = [1, 1]} : vector<8x192xf32> to vector<8x64xf32>
    %742 = arith.mulf %731, %741 : vector<8x64xf32>
    %743 = arith.addf %740, %742 : vector<8x64xf32>
    %744 = math.tanh %743 : vector<8x64xf32>
    %cst_200 = arith.constant 1.000000e+00 : f32
    %745 = vector.broadcast %cst_200 : f32 to vector<8x64xf32>
    %746 = arith.subf %745, %739 : vector<8x64xf32>
    %747 = arith.mulf %746, %744 : vector<8x64xf32>
    %748 = arith.mulf %739, %719 : vector<8x64xf32>
    %749 = arith.addf %747, %748 : vector<8x64xf32>
    %cst_201 = arith.constant dense<0.000000e+00> : vector<8x32xf32>
    %750 = tpu.matmul %749, %6, %cst_201 {dimension_numbers = #tpu.dot_dimension_numbers<[1], [0], [0], [1], [0, 0, 1, 1], [], []>} : vector<8x64xf32>, vector<64x32xf32>, vector<8x32xf32> -> vector<8x32xf32>
    %751 = vector.broadcast %7 : vector<1x32xf32> to vector<8x32xf32>
    %752 = arith.addf %750, %751 : vector<8x32xf32>
    %753 = vector.extract_strided_slice %752 {offsets = [0, 0], sizes = [8, 16], strides = [1, 1]} : vector<8x32xf32> to vector<8x16xf32>
    %754 = vector.extract_strided_slice %752 {offsets = [0, 16], sizes = [8, 16], strides = [1, 1]} : vector<8x32xf32> to vector<8x16xf32>
    %755 = arith.negf %754 : vector<8x16xf32>
    %756 = math.exp %755 : vector<8x16xf32>
    %cst_202 = arith.constant 1.000000e+00 : f32
    %757 = vector.broadcast %cst_202 : f32 to vector<8x16xf32>
    %758 = arith.addf %757, %756 : vector<8x16xf32>
    %759 = arith.divf %757, %758 : vector<8x16xf32>
    %760 = arith.mulf %753, %759 : vector<8x16xf32>
    %cst_203 = arith.constant dense<0.000000e+00> : vector<8x16xf32>
    %761 = tpu.matmul %760, %8, %cst_203 {dimension_numbers = #tpu.dot_dimension_numbers<[1], [0], [0], [1], [0, 0, 1, 1], [], []>} : vector<8x16xf32>, vector<16x16xf32>, vector<8x16xf32> -> vector<8x16xf32>
    %c72_204 = arith.constant 72 : index
    %c0_205 = arith.constant 0 : index
    %762 = vector.load %arg18[%c72_204, %c0_205] : memref<96x16xf32, #tpu.memory_space<vmem>>, vector<8x16xf32>
    %763 = arith.addf %761, %762 : vector<8x16xf32>
    %cst_206 = arith.constant 0.000000e+00 : f32
    %764 = vector.broadcast %cst_206 : f32 to vector<8x16xf32>
    %765 = arith.maximumf %763, %764 : vector<8x16xf32>
    %766 = tpu.concatenate %765, %716 in 1 : vector<8x16xf32>, vector<8x32xf32> -> vector<8x48xf32>
    %cst_207 = arith.constant dense<0.000000e+00> : vector<8x128xf32>
    %767 = tpu.matmul %766, %11, %cst_207 {dimension_numbers = #tpu.dot_dimension_numbers<[1], [0], [0], [1], [0, 0, 1, 1], [], []>} : vector<8x48xf32>, vector<48x128xf32>, vector<8x128xf32> -> vector<8x128xf32>
    %768 = vector.broadcast %12 : vector<1x128xf32> to vector<8x128xf32>
    %769 = arith.addf %767, %768 : vector<8x128xf32>
    %770 = vector.extract_strided_slice %769 {offsets = [0, 0], sizes = [8, 32], strides = [1, 1]} : vector<8x128xf32> to vector<8x32xf32>
    %771 = arith.negf %770 : vector<8x32xf32>
    %772 = math.exp %771 : vector<8x32xf32>
    %cst_208 = arith.constant 1.000000e+00 : f32
    %773 = vector.broadcast %cst_208 : f32 to vector<8x32xf32>
    %774 = arith.addf %773, %772 : vector<8x32xf32>
    %775 = arith.divf %773, %774 : vector<8x32xf32>
    %776 = vector.extract_strided_slice %769 {offsets = [0, 32], sizes = [8, 32], strides = [1, 1]} : vector<8x128xf32> to vector<8x32xf32>
    %777 = arith.negf %776 : vector<8x32xf32>
    %778 = math.exp %777 : vector<8x32xf32>
    %cst_209 = arith.constant 1.000000e+00 : f32
    %779 = vector.broadcast %cst_209 : f32 to vector<8x32xf32>
    %780 = arith.addf %779, %778 : vector<8x32xf32>
    %781 = arith.divf %779, %780 : vector<8x32xf32>
    %782 = vector.extract_strided_slice %769 {offsets = [0, 64], sizes = [8, 32], strides = [1, 1]} : vector<8x128xf32> to vector<8x32xf32>
    %783 = vector.extract_strided_slice %769 {offsets = [0, 96], sizes = [8, 32], strides = [1, 1]} : vector<8x128xf32> to vector<8x32xf32>
    %784 = arith.mulf %775, %783 : vector<8x32xf32>
    %785 = arith.addf %782, %784 : vector<8x32xf32>
    %786 = math.tanh %785 : vector<8x32xf32>
    %cst_210 = arith.constant 1.000000e+00 : f32
    %787 = vector.broadcast %cst_210 : f32 to vector<8x32xf32>
    %788 = arith.subf %787, %781 : vector<8x32xf32>
    %789 = arith.mulf %788, %786 : vector<8x32xf32>
    %790 = arith.mulf %781, %716 : vector<8x32xf32>
    %791 = arith.addf %789, %790 : vector<8x32xf32>
    %c72_211 = arith.constant 72 : index
    %c0_212 = arith.constant 0 : index
    %792 = vector.load %arg16[%c72_211, %c0_212] : memref<96x32xf32, #tpu.memory_space<vmem>>, vector<8x32xf32>
    tpu.vector_store %arg16[%c72_211, %c0_212], %791 {strides = array<i32>} : memref<96x32xf32, #tpu.memory_space<vmem>>, vector<8x32xf32>,
    %793 = vector.extract_strided_slice %40 {offsets = [80, 0], sizes = [8, 64], strides = [1, 1]} : vector<96x64xf32> to vector<8x64xf32>
    %794 = arith.mulf %749, %793 : vector<8x64xf32>
    %cst_213 = arith.constant dense<0.000000e+00> : vector<8x192xf32>
    %795 = tpu.matmul %794, %4, %cst_213 {dimension_numbers = #tpu.dot_dimension_numbers<[1], [0], [0], [1], [0, 0, 1, 1], [], []>} : vector<8x64xf32>, vector<64x192xf32>, vector<8x192xf32> -> vector<8x192xf32>
    %796 = vector.broadcast %5 : vector<1x192xf32> to vector<8x192xf32>
    %797 = arith.addf %795, %796 : vector<8x192xf32>
    %c80 = arith.constant 80 : index
    %c0_214 = arith.constant 0 : index
    %798 = vector.load %arg17[%c80, %c0_214] : memref<96x192xf32, #tpu.memory_space<vmem>>, vector<8x192xf32>
    %799 = vector.extract_strided_slice %798 {offsets = [0, 0], sizes = [8, 64], strides = [1, 1]} : vector<8x192xf32> to vector<8x64xf32>
    %800 = vector.extract_strided_slice %797 {offsets = [0, 0], sizes = [8, 64], strides = [1, 1]} : vector<8x192xf32> to vector<8x64xf32>
    %801 = arith.addf %799, %800 : vector<8x64xf32>
    %802 = arith.negf %801 : vector<8x64xf32>
    %803 = math.exp %802 : vector<8x64xf32>
    %cst_215 = arith.constant 1.000000e+00 : f32
    %804 = vector.broadcast %cst_215 : f32 to vector<8x64xf32>
    %805 = arith.addf %804, %803 : vector<8x64xf32>
    %806 = arith.divf %804, %805 : vector<8x64xf32>
    %807 = vector.extract_strided_slice %798 {offsets = [0, 64], sizes = [8, 64], strides = [1, 1]} : vector<8x192xf32> to vector<8x64xf32>
    %808 = vector.extract_strided_slice %797 {offsets = [0, 64], sizes = [8, 64], strides = [1, 1]} : vector<8x192xf32> to vector<8x64xf32>
    %809 = arith.addf %807, %808 : vector<8x64xf32>
    %810 = arith.negf %809 : vector<8x64xf32>
    %811 = math.exp %810 : vector<8x64xf32>
    %cst_216 = arith.constant 1.000000e+00 : f32
    %812 = vector.broadcast %cst_216 : f32 to vector<8x64xf32>
    %813 = arith.addf %812, %811 : vector<8x64xf32>
    %814 = arith.divf %812, %813 : vector<8x64xf32>
    %815 = vector.extract_strided_slice %798 {offsets = [0, 128], sizes = [8, 64], strides = [1, 1]} : vector<8x192xf32> to vector<8x64xf32>
    %816 = vector.extract_strided_slice %797 {offsets = [0, 128], sizes = [8, 64], strides = [1, 1]} : vector<8x192xf32> to vector<8x64xf32>
    %817 = arith.mulf %806, %816 : vector<8x64xf32>
    %818 = arith.addf %815, %817 : vector<8x64xf32>
    %819 = math.tanh %818 : vector<8x64xf32>
    %cst_217 = arith.constant 1.000000e+00 : f32
    %820 = vector.broadcast %cst_217 : f32 to vector<8x64xf32>
    %821 = arith.subf %820, %814 : vector<8x64xf32>
    %822 = arith.mulf %821, %819 : vector<8x64xf32>
    %823 = arith.mulf %814, %794 : vector<8x64xf32>
    %824 = arith.addf %822, %823 : vector<8x64xf32>
    %cst_218 = arith.constant dense<0.000000e+00> : vector<8x32xf32>
    %825 = tpu.matmul %824, %6, %cst_218 {dimension_numbers = #tpu.dot_dimension_numbers<[1], [0], [0], [1], [0, 0, 1, 1], [], []>} : vector<8x64xf32>, vector<64x32xf32>, vector<8x32xf32> -> vector<8x32xf32>
    %826 = vector.broadcast %7 : vector<1x32xf32> to vector<8x32xf32>
    %827 = arith.addf %825, %826 : vector<8x32xf32>
    %828 = vector.extract_strided_slice %827 {offsets = [0, 0], sizes = [8, 16], strides = [1, 1]} : vector<8x32xf32> to vector<8x16xf32>
    %829 = vector.extract_strided_slice %827 {offsets = [0, 16], sizes = [8, 16], strides = [1, 1]} : vector<8x32xf32> to vector<8x16xf32>
    %830 = arith.negf %829 : vector<8x16xf32>
    %831 = math.exp %830 : vector<8x16xf32>
    %cst_219 = arith.constant 1.000000e+00 : f32
    %832 = vector.broadcast %cst_219 : f32 to vector<8x16xf32>
    %833 = arith.addf %832, %831 : vector<8x16xf32>
    %834 = arith.divf %832, %833 : vector<8x16xf32>
    %835 = arith.mulf %828, %834 : vector<8x16xf32>
    %cst_220 = arith.constant dense<0.000000e+00> : vector<8x16xf32>
    %836 = tpu.matmul %835, %8, %cst_220 {dimension_numbers = #tpu.dot_dimension_numbers<[1], [0], [0], [1], [0, 0, 1, 1], [], []>} : vector<8x16xf32>, vector<16x16xf32>, vector<8x16xf32> -> vector<8x16xf32>
    %c80_221 = arith.constant 80 : index
    %c0_222 = arith.constant 0 : index
    %837 = vector.load %arg18[%c80_221, %c0_222] : memref<96x16xf32, #tpu.memory_space<vmem>>, vector<8x16xf32>
    %838 = arith.addf %836, %837 : vector<8x16xf32>
    %cst_223 = arith.constant 0.000000e+00 : f32
    %839 = vector.broadcast %cst_223 : f32 to vector<8x16xf32>
    %840 = arith.maximumf %838, %839 : vector<8x16xf32>
    %841 = tpu.concatenate %840, %791 in 1 : vector<8x16xf32>, vector<8x32xf32> -> vector<8x48xf32>
    %cst_224 = arith.constant dense<0.000000e+00> : vector<8x128xf32>
    %842 = tpu.matmul %841, %11, %cst_224 {dimension_numbers = #tpu.dot_dimension_numbers<[1], [0], [0], [1], [0, 0, 1, 1], [], []>} : vector<8x48xf32>, vector<48x128xf32>, vector<8x128xf32> -> vector<8x128xf32>
    %843 = vector.broadcast %12 : vector<1x128xf32> to vector<8x128xf32>
    %844 = arith.addf %842, %843 : vector<8x128xf32>
    %845 = vector.extract_strided_slice %844 {offsets = [0, 0], sizes = [8, 32], strides = [1, 1]} : vector<8x128xf32> to vector<8x32xf32>
    %846 = arith.negf %845 : vector<8x32xf32>
    %847 = math.exp %846 : vector<8x32xf32>
    %cst_225 = arith.constant 1.000000e+00 : f32
    %848 = vector.broadcast %cst_225 : f32 to vector<8x32xf32>
    %849 = arith.addf %848, %847 : vector<8x32xf32>
    %850 = arith.divf %848, %849 : vector<8x32xf32>
    %851 = vector.extract_strided_slice %844 {offsets = [0, 32], sizes = [8, 32], strides = [1, 1]} : vector<8x128xf32> to vector<8x32xf32>
    %852 = arith.negf %851 : vector<8x32xf32>
    %853 = math.exp %852 : vector<8x32xf32>
    %cst_226 = arith.constant 1.000000e+00 : f32
    %854 = vector.broadcast %cst_226 : f32 to vector<8x32xf32>
    %855 = arith.addf %854, %853 : vector<8x32xf32>
    %856 = arith.divf %854, %855 : vector<8x32xf32>
    %857 = vector.extract_strided_slice %844 {offsets = [0, 64], sizes = [8, 32], strides = [1, 1]} : vector<8x128xf32> to vector<8x32xf32>
    %858 = vector.extract_strided_slice %844 {offsets = [0, 96], sizes = [8, 32], strides = [1, 1]} : vector<8x128xf32> to vector<8x32xf32>
    %859 = arith.mulf %850, %858 : vector<8x32xf32>
    %860 = arith.addf %857, %859 : vector<8x32xf32>
    %861 = math.tanh %860 : vector<8x32xf32>
    %cst_227 = arith.constant 1.000000e+00 : f32
    %862 = vector.broadcast %cst_227 : f32 to vector<8x32xf32>
    %863 = arith.subf %862, %856 : vector<8x32xf32>
    %864 = arith.mulf %863, %861 : vector<8x32xf32>
    %865 = arith.mulf %856, %791 : vector<8x32xf32>
    %866 = arith.addf %864, %865 : vector<8x32xf32>
    %c80_228 = arith.constant 80 : index
    %c0_229 = arith.constant 0 : index
    %867 = vector.load %arg16[%c80_228, %c0_229] : memref<96x32xf32, #tpu.memory_space<vmem>>, vector<8x32xf32>
    tpu.vector_store %arg16[%c80_228, %c0_229], %866 {strides = array<i32>} : memref<96x32xf32, #tpu.memory_space<vmem>>, vector<8x32xf32>,
    %868 = vector.extract_strided_slice %40 {offsets = [88, 0], sizes = [8, 64], strides = [1, 1]} : vector<96x64xf32> to vector<8x64xf32>
    %869 = arith.mulf %824, %868 : vector<8x64xf32>
    %cst_230 = arith.constant dense<0.000000e+00> : vector<8x192xf32>
    %870 = tpu.matmul %869, %4, %cst_230 {dimension_numbers = #tpu.dot_dimension_numbers<[1], [0], [0], [1], [0, 0, 1, 1], [], []>} : vector<8x64xf32>, vector<64x192xf32>, vector<8x192xf32> -> vector<8x192xf32>
    %871 = vector.broadcast %5 : vector<1x192xf32> to vector<8x192xf32>
    %872 = arith.addf %870, %871 : vector<8x192xf32>
    %c88 = arith.constant 88 : index
    %c0_231 = arith.constant 0 : index
    %873 = vector.load %arg17[%c88, %c0_231] : memref<96x192xf32, #tpu.memory_space<vmem>>, vector<8x192xf32>
    %874 = vector.extract_strided_slice %873 {offsets = [0, 0], sizes = [8, 64], strides = [1, 1]} : vector<8x192xf32> to vector<8x64xf32>
    %875 = vector.extract_strided_slice %872 {offsets = [0, 0], sizes = [8, 64], strides = [1, 1]} : vector<8x192xf32> to vector<8x64xf32>
    %876 = arith.addf %874, %875 : vector<8x64xf32>
    %877 = arith.negf %876 : vector<8x64xf32>
    %878 = math.exp %877 : vector<8x64xf32>
    %cst_232 = arith.constant 1.000000e+00 : f32
    %879 = vector.broadcast %cst_232 : f32 to vector<8x64xf32>
    %880 = arith.addf %879, %878 : vector<8x64xf32>
    %881 = arith.divf %879, %880 : vector<8x64xf32>
    %882 = vector.extract_strided_slice %873 {offsets = [0, 64], sizes = [8, 64], strides = [1, 1]} : vector<8x192xf32> to vector<8x64xf32>
    %883 = vector.extract_strided_slice %872 {offsets = [0, 64], sizes = [8, 64], strides = [1, 1]} : vector<8x192xf32> to vector<8x64xf32>
    %884 = arith.addf %882, %883 : vector<8x64xf32>
    %885 = arith.negf %884 : vector<8x64xf32>
    %886 = math.exp %885 : vector<8x64xf32>
    %cst_233 = arith.constant 1.000000e+00 : f32
    %887 = vector.broadcast %cst_233 : f32 to vector<8x64xf32>
    %888 = arith.addf %887, %886 : vector<8x64xf32>
    %889 = arith.divf %887, %888 : vector<8x64xf32>
    %890 = vector.extract_strided_slice %873 {offsets = [0, 128], sizes = [8, 64], strides = [1, 1]} : vector<8x192xf32> to vector<8x64xf32>
    %891 = vector.extract_strided_slice %872 {offsets = [0, 128], sizes = [8, 64], strides = [1, 1]} : vector<8x192xf32> to vector<8x64xf32>
    %892 = arith.mulf %881, %891 : vector<8x64xf32>
    %893 = arith.addf %890, %892 : vector<8x64xf32>
    %894 = math.tanh %893 : vector<8x64xf32>
    %cst_234 = arith.constant 1.000000e+00 : f32
    %895 = vector.broadcast %cst_234 : f32 to vector<8x64xf32>
    %896 = arith.subf %895, %889 : vector<8x64xf32>
    %897 = arith.mulf %896, %894 : vector<8x64xf32>
    %898 = arith.mulf %889, %869 : vector<8x64xf32>
    %899 = arith.addf %897, %898 : vector<8x64xf32>
    %cst_235 = arith.constant dense<0.000000e+00> : vector<8x32xf32>
    %900 = tpu.matmul %899, %6, %cst_235 {dimension_numbers = #tpu.dot_dimension_numbers<[1], [0], [0], [1], [0, 0, 1, 1], [], []>} : vector<8x64xf32>, vector<64x32xf32>, vector<8x32xf32> -> vector<8x32xf32>
    %901 = vector.broadcast %7 : vector<1x32xf32> to vector<8x32xf32>
    %902 = arith.addf %900, %901 : vector<8x32xf32>
    %903 = vector.extract_strided_slice %902 {offsets = [0, 0], sizes = [8, 16], strides = [1, 1]} : vector<8x32xf32> to vector<8x16xf32>
    %904 = vector.extract_strided_slice %902 {offsets = [0, 16], sizes = [8, 16], strides = [1, 1]} : vector<8x32xf32> to vector<8x16xf32>
    %905 = arith.negf %904 : vector<8x16xf32>
    %906 = math.exp %905 : vector<8x16xf32>
    %cst_236 = arith.constant 1.000000e+00 : f32
    %907 = vector.broadcast %cst_236 : f32 to vector<8x16xf32>
    %908 = arith.addf %907, %906 : vector<8x16xf32>
    %909 = arith.divf %907, %908 : vector<8x16xf32>
    %910 = arith.mulf %903, %909 : vector<8x16xf32>
    %cst_237 = arith.constant dense<0.000000e+00> : vector<8x16xf32>
    %911 = tpu.matmul %910, %8, %cst_237 {dimension_numbers = #tpu.dot_dimension_numbers<[1], [0], [0], [1], [0, 0, 1, 1], [], []>} : vector<8x16xf32>, vector<16x16xf32>, vector<8x16xf32> -> vector<8x16xf32>
    %c88_238 = arith.constant 88 : index
    %c0_239 = arith.constant 0 : index
    %912 = vector.load %arg18[%c88_238, %c0_239] : memref<96x16xf32, #tpu.memory_space<vmem>>, vector<8x16xf32>
    %913 = arith.addf %911, %912 : vector<8x16xf32>
    %cst_240 = arith.constant 0.000000e+00 : f32
    %914 = vector.broadcast %cst_240 : f32 to vector<8x16xf32>
    %915 = arith.maximumf %913, %914 : vector<8x16xf32>
    %916 = tpu.concatenate %915, %866 in 1 : vector<8x16xf32>, vector<8x32xf32> -> vector<8x48xf32>
    %cst_241 = arith.constant dense<0.000000e+00> : vector<8x128xf32>
    %917 = tpu.matmul %916, %11, %cst_241 {dimension_numbers = #tpu.dot_dimension_numbers<[1], [0], [0], [1], [0, 0, 1, 1], [], []>} : vector<8x48xf32>, vector<48x128xf32>, vector<8x128xf32> -> vector<8x128xf32>
    %918 = vector.broadcast %12 : vector<1x128xf32> to vector<8x128xf32>
    %919 = arith.addf %917, %918 : vector<8x128xf32>
    %920 = vector.extract_strided_slice %919 {offsets = [0, 0], sizes = [8, 32], strides = [1, 1]} : vector<8x128xf32> to vector<8x32xf32>
    %921 = arith.negf %920 : vector<8x32xf32>
    %922 = math.exp %921 : vector<8x32xf32>
    %cst_242 = arith.constant 1.000000e+00 : f32
    %923 = vector.broadcast %cst_242 : f32 to vector<8x32xf32>
    %924 = arith.addf %923, %922 : vector<8x32xf32>
    %925 = arith.divf %923, %924 : vector<8x32xf32>
    %926 = vector.extract_strided_slice %919 {offsets = [0, 32], sizes = [8, 32], strides = [1, 1]} : vector<8x128xf32> to vector<8x32xf32>
    %927 = arith.negf %926 : vector<8x32xf32>
    %928 = math.exp %927 : vector<8x32xf32>
    %cst_243 = arith.constant 1.000000e+00 : f32
    %929 = vector.broadcast %cst_243 : f32 to vector<8x32xf32>
    %930 = arith.addf %929, %928 : vector<8x32xf32>
    %931 = arith.divf %929, %930 : vector<8x32xf32>
    %932 = vector.extract_strided_slice %919 {offsets = [0, 64], sizes = [8, 32], strides = [1, 1]} : vector<8x128xf32> to vector<8x32xf32>
    %933 = vector.extract_strided_slice %919 {offsets = [0, 96], sizes = [8, 32], strides = [1, 1]} : vector<8x128xf32> to vector<8x32xf32>
    %934 = arith.mulf %925, %933 : vector<8x32xf32>
    %935 = arith.addf %932, %934 : vector<8x32xf32>
    %936 = math.tanh %935 : vector<8x32xf32>
    %cst_244 = arith.constant 1.000000e+00 : f32
    %937 = vector.broadcast %cst_244 : f32 to vector<8x32xf32>
    %938 = arith.subf %937, %931 : vector<8x32xf32>
    %939 = arith.mulf %938, %936 : vector<8x32xf32>
    %940 = arith.mulf %931, %866 : vector<8x32xf32>
    %941 = arith.addf %939, %940 : vector<8x32xf32>
    %c88_245 = arith.constant 88 : index
    %c0_246 = arith.constant 0 : index
    %942 = vector.load %arg16[%c88_245, %c0_246] : memref<96x32xf32, #tpu.memory_space<vmem>>, vector<8x32xf32>
    tpu.vector_store %arg16[%c88_245, %c0_246], %941 {strides = array<i32>} : memref<96x32xf32, #tpu.memory_space<vmem>>, vector<8x32xf32>,
    return
  }
}

</mosaic_0001>

<llo_original>
// kernel: tpu_custom_call.1
$region0: #{tpu_custom_call.1}
  #allocation0 [shape = 'u32[]', space=smem, size = 0x4, offset = 0x4, fixed_abs, tag = 'smem constant byte address 0x4 - core index']
  #allocation1 [shape = 'u32[144,128]{1,0:T(1,128)}', space=vmem, size = 0x12000, scoped, tag = 'internal scratch']
  #allocation2 [shape = 'f32[96,192]{1,0:T(8,128)}', space=vmem, size = 0x18000, scoped, tag = 'scratch operand']
  #allocation3 [shape = 'f32[96,16]{1,0:T(8,128)}', space=vmem, size = 0xc000, scoped, tag = 'scratch operand']
  %s0 = inlined_call_operand.vmem [shape: f32[96,16], index: 0, kind: input, shape index: {}]
  %s1 = inlined_call_operand.vmem [shape: f32[96,16], index: 1, kind: input, shape index: {}]
  %s2 = inlined_call_operand.vmem [shape: f32[96,1], index: 2, kind: input, shape index: {}]
  %s3 = inlined_call_operand.vmem [shape: f32[16,16], index: 3, kind: input, shape index: {}]
  %s4 = inlined_call_operand.vmem [shape: f32[1,16], index: 4, kind: input, shape index: {}]
  %s5 = inlined_call_operand.vmem [shape: f32[32,192], index: 5, kind: input, shape index: {}]
  %s6 = inlined_call_operand.vmem [shape: f32[1,192], index: 6, kind: input, shape index: {}]
  %s7 = inlined_call_operand.vmem [shape: f32[64,192], index: 7, kind: input, shape index: {}]
  %s8 = inlined_call_operand.vmem [shape: f32[1,192], index: 8, kind: input, shape index: {}]
  %s9 = inlined_call_operand.vmem [shape: f32[64,32], index: 9, kind: input, shape index: {}]
  %s10 = inlined_call_operand.vmem [shape: f32[1,32], index: 10, kind: input, shape index: {}]
  %s11 = inlined_call_operand.vmem [shape: f32[16,16], index: 11, kind: input, shape index: {}]
  %s12 = inlined_call_operand.vmem [shape: f32[16,16], index: 12, kind: input, shape index: {}]
  %s13 = inlined_call_operand.vmem [shape: f32[1,16], index: 13, kind: input, shape index: {}]
  %s14 = inlined_call_operand.vmem [shape: f32[48,128], index: 14, kind: input, shape index: {}]
  %s15 = inlined_call_operand.vmem [shape: f32[1,128], index: 15, kind: input, shape index: {}]
  %s16 = inlined_call_operand.vmem [shape: f32[96,32], index: 16, kind: output, shape index: {}]
  %s17 = sld [smem:[#allocation0]]
  $region74: #{tpu_custom_call.1} parent=0
    _
  %s19 = ssub.s32 1, %s17
  %s20 = scalar_select 0, %s19, %s17
  // Predicated region
  $region2: #{tpu_custom_call.1} parent=0 // pred_check
    _
  $region3: #{tpu_custom_call.1} parent=0 // pred_check_branch
    %22 = sbr.rel (0) target = $region5
  $region4: #{tpu_custom_call.1} parent=0 // pred_region
    _
  $region5: #{tpu_custom_call.1} parent=0 // pred_fallthru
    _
  // Predicated region
  $region6: #{tpu_custom_call.1} parent=0 // pred_check
    _
  $region7: #{tpu_custom_call.1} parent=0 // pred_check_branch
    %24 = sbr.rel (0) target = $region9
  $region8: #{tpu_custom_call.1} parent=0 // pred_region
    _
  $region9: #{tpu_custom_call.1} parent=0 // pred_fallthru
    _
  // Predicated region
  $region10: #{tpu_custom_call.1} parent=0 // pred_check
    _
  $region11: #{tpu_custom_call.1} parent=0 // pred_check_branch
    %26 = sbr.rel (0) target = $region13
  $region12: #{tpu_custom_call.1} parent=0 // pred_region
    _
  $region13: #{tpu_custom_call.1} parent=0 // pred_fallthru
    _
  // Predicated region
  $region14: #{tpu_custom_call.1} parent=0 // pred_check
    _
  $region15: #{tpu_custom_call.1} parent=0 // pred_check_branch
    %28 = sbr.rel (0) target = $region17
  $region16: #{tpu_custom_call.1} parent=0 // pred_region
    _
  $region17: #{tpu_custom_call.1} parent=0 // pred_fallthru
    _
  // Predicated region
  $region18: #{tpu_custom_call.1} parent=0 // pred_check
    _
  $region19: #{tpu_custom_call.1} parent=0 // pred_check_branch
    %30 = sbr.rel (0) target = $region21
  $region20: #{tpu_custom_call.1} parent=0 // pred_region
    _
  $region21: #{tpu_custom_call.1} parent=0 // pred_fallthru
    _
  // Predicated region
  $region22: #{tpu_custom_call.1} parent=0 // pred_check
    _
  $region23: #{tpu_custom_call.1} parent=0 // pred_check_branch
    %32 = sbr.rel (0) target = $region25
  $region24: #{tpu_custom_call.1} parent=0 // pred_region
    _
  $region25: #{tpu_custom_call.1} parent=0 // pred_fallthru
    _
  // Predicated region
  $region26: #{tpu_custom_call.1} parent=0 // pred_check
    _
  $region27: #{tpu_custom_call.1} parent=0 // pred_check_branch
    %34 = sbr.rel (0) target = $region29
  $region28: #{tpu_custom_call.1} parent=0 // pred_region
    _
  $region29: #{tpu_custom_call.1} parent=0 // pred_fallthru
    _
  // Predicated region
  $region30: #{tpu_custom_call.1} parent=0 // pred_check
    _
  $region31: #{tpu_custom_call.1} parent=0 // pred_check_branch
    %36 = sbr.rel (0) target = $region33
  $region32: #{tpu_custom_call.1} parent=0 // pred_region
    _
  $region33: #{tpu_custom_call.1} parent=0 // pred_fallthru
    _
  // Predicated region
  $region34: #{tpu_custom_call.1} parent=0 // pred_check
    _
  $region35: #{tpu_custom_call.1} parent=0 // pred_check_branch
    %38 = sbr.rel (0) target = $region37
  $region36: #{tpu_custom_call.1} parent=0 // pred_region
    _
  $region37: #{tpu_custom_call.1} parent=0 // pred_fallthru
    _
  // Predicated region
  $region38: #{tpu_custom_call.1} parent=0 // pred_check
    _
  $region39: #{tpu_custom_call.1} parent=0 // pred_check_branch
    %40 = sbr.rel (0) target = $region41
  $region40: #{tpu_custom_call.1} parent=0 // pred_region
    _
  $region41: #{tpu_custom_call.1} parent=0 // pred_fallthru
    _
  // Predicated region
  $region42: #{tpu_custom_call.1} parent=0 // pred_check
    _
  $region43: #{tpu_custom_call.1} parent=0 // pred_check_branch
    %42 = sbr.rel (0) target = $region45
  $region44: #{tpu_custom_call.1} parent=0 // pred_region
    _
  $region45: #{tpu_custom_call.1} parent=0 // pred_fallthru
    _
  // Predicated region
  $region46: #{tpu_custom_call.1} parent=0 // pred_check
    _
  $region47: #{tpu_custom_call.1} parent=0 // pred_check_branch
    %44 = sbr.rel (0) target = $region49
  $region48: #{tpu_custom_call.1} parent=0 // pred_region
    _
  $region49: #{tpu_custom_call.1} parent=0 // pred_fallthru
    _
  // Predicated region
  $region50: #{tpu_custom_call.1} parent=0 // pred_check
    _
  $region51: #{tpu_custom_call.1} parent=0 // pred_check_branch
    %46 = sbr.rel (0) target = $region53
  $region52: #{tpu_custom_call.1} parent=0 // pred_region
    _
  $region53: #{tpu_custom_call.1} parent=0 // pred_fallthru
    _
  // Predicated region
  $region54: #{tpu_custom_call.1} parent=0 // pred_check
    _
  $region55: #{tpu_custom_call.1} parent=0 // pred_check_branch
    %48 = sbr.rel (0) target = $region57
  $region56: #{tpu_custom_call.1} parent=0 // pred_region
    _
  $region57: #{tpu_custom_call.1} parent=0 // pred_fallthru
    _
  // Predicated region
  $region58: #{tpu_custom_call.1} parent=0 // pred_check
    _
  $region59: #{tpu_custom_call.1} parent=0 // pred_check_branch
    %50 = sbr.rel (0) target = $region61
  $region60: #{tpu_custom_call.1} parent=0 // pred_region
    _
  $region61: #{tpu_custom_call.1} parent=0 // pred_fallthru
    _
  // Predicated region
  $region62: #{tpu_custom_call.1} parent=0 // pred_check
    _
  $region63: #{tpu_custom_call.1} parent=0 // pred_check_branch
    %52 = sbr.rel (0) target = $region65
  $region64: #{tpu_custom_call.1} parent=0 // pred_region
    _
  $region65: #{tpu_custom_call.1} parent=0 // pred_fallthru
    _
  %v53 = vld [vmem:[%s3] sm:$0xff]
  %v54 = vld [vmem:[%s3 + $0x8] sm:$0xff]
  %v55 = vld [vmem:[%s4] sm:$0x1]
  %v56 = vld [vmem:[%s5] sm:$0xff]
  %v57 = vld [vmem:[%s5 + $0x8] sm:$0xff]
  %v58 = vld [vmem:[%s5 + $0x10] sm:$0xff]
  %v59 = vld [vmem:[%s5 + $0x18] sm:$0xff]
  %v60 = vld [vmem:[%s5 + $0x20] sm:$0xff]
  %v61 = vld [vmem:[%s5 + $0x28] sm:$0xff]
  %v62 = vld [vmem:[%s5 + $0x30] sm:$0xff]
  %v63 = vld [vmem:[%s5 + $0x38] sm:$0xff]
  %v64 = vld [vmem:[%s6] sm:$0x3]
  %v65 = vld [vmem:[%s7] sm:$0xff]
  %v66 = vld [vmem:[%s7 + $0x8] sm:$0xff]
  %v67 = vld [vmem:[%s7 + $0x10] sm:$0xff]
  %v68 = vld [vmem:[%s7 + $0x18] sm:$0xff]
  %v69 = vld [vmem:[%s7 + $0x20] sm:$0xff]
  %v70 = vld [vmem:[%s7 + $0x28] sm:$0xff]
  %v71 = vld [vmem:[%s7 + $0x30] sm:$0xff]
  %v72 = vld [vmem:[%s7 + $0x38] sm:$0xff]
  %v73 = vld [vmem:[%s7 + $0x40] sm:$0xff]
  %v74 = vld [vmem:[%s7 + $0x48] sm:$0xff]
  %v75 = vld [vmem:[%s7 + $0x50] sm:$0xff]
  %v76 = vld [vmem:[%s7 + $0x58] sm:$0xff]
  %v77 = vld [vmem:[%s7 + $0x60] sm:$0xff]
  %v78 = vld [vmem:[%s7 + $0x68] sm:$0xff]
  %v79 = vld [vmem:[%s7 + $0x70] sm:$0xff]
  %v80 = vld [vmem:[%s7 + $0x78] sm:$0xff]
  %v81 = vld [vmem:[%s8] sm:$0x3]
  %v82 = vld [vmem:[%s9] sm:$0xff]
  %v83 = vld [vmem:[%s9 + $0x8] sm:$0xff]
  %v84 = vld [vmem:[%s9 + $0x10] sm:$0xff]
  %v85 = vld [vmem:[%s9 + $0x18] sm:$0xff]
  %v86 = vld [vmem:[%s9 + $0x20] sm:$0xff]
  %v87 = vld [vmem:[%s9 + $0x28] sm:$0xff]
  %v88 = vld [vmem:[%s9 + $0x30] sm:$0xff]
  %v89 = vld [vmem:[%s9 + $0x38] sm:$0xff]
  %v90 = vld [vmem:[%s10] sm:$0x1]
  %v91 = vld [vmem:[%s11] sm:$0xff]
  %v92 = vld [vmem:[%s11 + $0x8] sm:$0xff]
  %v93 = vld [vmem:[%s12] sm:$0xff]
  %v94 = vld [vmem:[%s12 + $0x8] sm:$0xff]
  %v95 = vld [vmem:[%s13] sm:$0x1]
  %v96 = vld [vmem:[%s14] sm:$0xff]
  %v97 = vld [vmem:[%s14 + $0x8] sm:$0xff]
  %v98 = vld [vmem:[%s14 + $0x10] sm:$0xff]
  %v99 = vld [vmem:[%s14 + $0x18] sm:$0xff]
  %v100 = vld [vmem:[%s14 + $0x20] sm:$0xff]
  %v101 = vld [vmem:[%s14 + $0x28] sm:$0xff]
  %v102 = vld [vmem:[%s15] sm:$0x1]
  %v103 = vld [vmem:[%s0] sm:$0xff]
  %v104 = vld [vmem:[%s0 + $0x8] sm:$0xff]
  %v105 = vld [vmem:[%s0 + $0x10] sm:$0xff]
  %v106 = vld [vmem:[%s0 + $0x18] sm:$0xff]
  %v107 = vld [vmem:[%s0 + $0x20] sm:$0xff]
  %v108 = vld [vmem:[%s0 + $0x28] sm:$0xff]
  %v109 = vld [vmem:[%s0 + $0x30] sm:$0xff]
  %v110 = vld [vmem:[%s0 + $0x38] sm:$0xff]
  %v111 = vld [vmem:[%s0 + $0x40] sm:$0xff]
  %v112 = vld [vmem:[%s0 + $0x48] sm:$0xff]
  %v113 = vld [vmem:[%s0 + $0x50] sm:$0xff]
  %v114 = vld [vmem:[%s0 + $0x58] sm:$0xff]
  %v115 = vld [vmem:[%s1] sm:$0xff]
  %v116 = vld [vmem:[%s1 + $0x8] sm:$0xff]
  %v117 = vld [vmem:[%s1 + $0x10] sm:$0xff]
  %v118 = vld [vmem:[%s1 + $0x18] sm:$0xff]
  %v119 = vld [vmem:[%s1 + $0x20] sm:$0xff]
  %v120 = vld [vmem:[%s1 + $0x28] sm:$0xff]
  %v121 = vld [vmem:[%s1 + $0x30] sm:$0xff]
  %v122 = vld [vmem:[%s1 + $0x38] sm:$0xff]
  %v123 = vld [vmem:[%s1 + $0x40] sm:$0xff]
  %v124 = vld [vmem:[%s1 + $0x48] sm:$0xff]
  %v125 = vld [vmem:[%s1 + $0x50] sm:$0xff]
  %v126 = vld [vmem:[%s1 + $0x58] sm:$0xff]
  %v127 = vsub.f32 1.0, %v115
  %v128 = vsub.f32 1.0, %v116
  %v129 = vsub.f32 1.0, %v117
  %v130 = vsub.f32 1.0, %v118
  %v131 = vsub.f32 1.0, %v119
  %v132 = vsub.f32 1.0, %v120
  %v133 = vsub.f32 1.0, %v121
  %v134 = vsub.f32 1.0, %v122
  %v135 = vsub.f32 1.0, %v123
  %v136 = vsub.f32 1.0, %v124
  %v137 = vsub.f32 1.0, %v125
  %v138 = vsub.f32 1.0, %v126
  %v140 = vlaneseq
  %v141 = vshrl.u32 %v140, 7
  %v142 = vsub.s32 0, %v141
  %v143 = vrot.slane %v55, %v142
  %vm145 = vcmask 130048
  %v147 = vsel %vm145, %v127, 0
  %v150 = vsel %vm145, %v128, 0
  %v153 = vsel %vm145, %v129, 0
  %v156 = vsel %vm145, %v130, 0
  %v159 = vsel %vm145, %v131, 0
  %v162 = vsel %vm145, %v132, 0
  %v165 = vsel %vm145, %v133, 0
  %v168 = vsel %vm145, %v134, 0
  %v171 = vsel %vm145, %v135, 0
  %v174 = vsel %vm145, %v136, 0
  %v177 = vsel %vm145, %v137, 0
  %v180 = vsel %vm145, %v138, 0
  %182 = vmatprep.subr.mxu0 0.0
  %183 = vmatpush1.msra.mxu0 %v53
  %184 = vmatprep.subr.mxu0 0.0
  %185 = vmatpush1.msra.mxu0 %v54
  %186 = vmatprep.subr.mxu0 0.0
  %187 = vmatpush1.msra.mxu0 0.0
  %188 = vmatprep.subr.mxu0 0.0
  %189 = vmatpush1.msra.mxu0 0.0
  %190 = vmatprep.subr.mxu0 0.0
  %191 = vmatpush1.msra.mxu0 0.0
  %192 = vmatprep.subr.mxu0 0.0
  %193 = vmatpush1.msra.mxu0 0.0
  %194 = vmatprep.subr.mxu0 0.0
  %195 = vmatpush1.msra.mxu0 0.0
  %196 = vmatprep.subr.mxu0 0.0
  %197 = vmatpush1.msra.mxu0 0.0
  %198 = vmatprep.subr.mxu0 0.0
  %199 = vmatpush1.msra.mxu0 0.0
  %200 = vmatprep.subr.mxu0 0.0
  %201 = vmatpush1.msra.mxu0 0.0
  %202 = vmatprep.subr.mxu0 0.0
  %203 = vmatpush1.msra.mxu0 0.0
  %204 = vmatprep.subr.mxu0 0.0
  %205 = vmatpush1.msra.mxu0 0.0
  %206 = vmatprep.subr.mxu0 0.0
  %207 = vmatpush1.msra.mxu0 0.0
  %208 = vmatprep.subr.mxu0 0.0
  %209 = vmatpush1.msra.mxu0 0.0
  %210 = vmatprep.subr.mxu0 0.0
  %211 = vmatpush1.msra.mxu0 0.0
  %212 = vmatprep.subr.mxu0 0.0
  %213 = vmatpush1.msra.mxu0 0.0
  %214 = vmatprep.subr.mxu0 0.0
  %215 = vmatpush1.msra.mxu0 0.0
  %216 = vmatprep.subr.mxu0 0.0
  %217 = vmatpush1.msra.mxu0 0.0
  %218 = vmatprep.subr.mxu0 0.0
  %219 = vmatpush1.msra.mxu0 0.0
  %220 = vmatprep.subr.mxu0 0.0
  %221 = vmatpush1.msra.mxu0 0.0
  %222 = vmatprep.subr.mxu0 0.0
  %223 = vmatpush1.msra.mxu0 0.0
  %224 = vmatprep.subr.mxu0 0.0
  %225 = vmatpush1.msra.mxu0 0.0
  %226 = vmatprep.subr.mxu0 0.0
  %227 = vmatpush1.msra.mxu0 0.0
  %228 = vmatprep.subr.mxu0 0.0
  %229 = vmatpush1.msra.mxu0 0.0
  %230 = vmatprep.subr.mxu0 0.0
  %231 = vmatpush1.msra.mxu0 0.0
  %232 = vmatprep.subr.mxu0 0.0
  %233 = vmatpush1.msra.mxu0 0.0
  %234 = vmatprep.subr.mxu0 0.0
  %235 = vmatpush1.msra.mxu0 0.0
  %236 = vmatprep.subr.mxu0 0.0
  %237 = vmatpush1.msra.mxu0 0.0
  %238 = vmatprep.subr.mxu0 0.0
  %239 = vmatpush1.msra.mxu0 0.0
  %240 = vmatprep.subr.mxu0 0.0
  %241 = vmatpush1.msra.mxu0 0.0
  %242 = vmatprep.subr.mxu0 0.0
  %243 = vmatpush1.msra.mxu0 0.0
  %244 = vmatprep.subr.mxu0 0.0
  %245 = vmatpush1.msra.mxu0 0.0
  %246 = vmatprep.mubr.f32.mxu0 0.0
  %247 = vmatmul.mubr.f32.gmra.mrb[0].mxu0 %v147
  %v248 = vpop.f32.mrb[0].mxu0
  %v249 = vadd.f32 %v143, %v248
  %v250 = vpop.f32.mrb[0].mxu0
  %251 = vmatprep.mubr.f32.mxu0 0.0
  %252 = vmatmul.mubr.f32.gmra.mrb[0].mxu0 %v150
  %v253 = vpop.f32.mrb[0].mxu0
  %v254 = vadd.f32 %v143, %v253
  %v255 = vpop.f32.mrb[0].mxu0
  %256 = vmatprep.mubr.f32.mxu0 0.0
  %257 = vmatmul.mubr.f32.gmra.mrb[0].mxu0 %v153
  %v258 = vpop.f32.mrb[0].mxu0
  %v259 = vadd.f32 %v143, %v258
  %v260 = vpop.f32.mrb[0].mxu0
  %261 = vmatprep.mubr.f32.mxu0 0.0
  %262 = vmatmul.mubr.f32.gmra.mrb[0].mxu0 %v156
  %v263 = vpop.f32.mrb[0].mxu0
  %v264 = vadd.f32 %v143, %v263
  %v265 = vpop.f32.mrb[0].mxu0
  %266 = vmatprep.mubr.f32.mxu0 0.0
  %267 = vmatmul.mubr.f32.gmra.mrb[0].mxu0 %v159
  %v268 = vpop.f32.mrb[0].mxu0
  %v269 = vadd.f32 %v143, %v268
  %v270 = vpop.f32.mrb[0].mxu0
  %271 = vmatprep.mubr.f32.mxu0 0.0
  %272 = vmatmul.mubr.f32.gmra.mrb[0].mxu0 %v162
  %v273 = vpop.f32.mrb[0].mxu0
  %v274 = vadd.f32 %v143, %v273
  %v275 = vpop.f32.mrb[0].mxu0
  %276 = vmatprep.mubr.f32.mxu0 0.0
  %277 = vmatmul.mubr.f32.gmra.mrb[0].mxu0 %v165
  %v278 = vpop.f32.mrb[0].mxu0
  %v279 = vadd.f32 %v143, %v278
  %v280 = vpop.f32.mrb[0].mxu0
  %281 = vmatprep.mubr.f32.mxu0 0.0
  %282 = vmatmul.mubr.f32.gmra.mrb[0].mxu0 %v168
  %v283 = vpop.f32.mrb[0].mxu0
  %v284 = vadd.f32 %v143, %v283
  %v285 = vpop.f32.mrb[0].mxu0
  %286 = vmatprep.mubr.f32.mxu0 0.0
  %287 = vmatmul.mubr.f32.gmra.mrb[0].mxu0 %v171
  %v288 = vpop.f32.mrb[0].mxu0
  %v289 = vadd.f32 %v143, %v288
  %v290 = vpop.f32.mrb[0].mxu0
  %291 = vmatprep.mubr.f32.mxu0 0.0
  %292 = vmatmul.mubr.f32.gmra.mrb[0].mxu0 %v174
  %v293 = vpop.f32.mrb[0].mxu0
  %v294 = vadd.f32 %v143, %v293
  %v295 = vpop.f32.mrb[0].mxu0
  %296 = vmatprep.mubr.f32.mxu0 0.0
  %297 = vmatmul.mubr.f32.gmra.mrb[0].mxu0 %v177
  %v298 = vpop.f32.mrb[0].mxu0
  %v299 = vadd.f32 %v143, %v298
  %v300 = vpop.f32.mrb[0].mxu0
  %301 = vmatprep.mubr.f32.mxu0 0.0
  %302 = vmatmul.mubr.f32.gmra.mrb[0].mxu0 %v180
  %v303 = vpop.f32.mrb[0].mxu0
  %v304 = vadd.f32 %v143, %v303
  %v305 = vpop.f32.mrb[0].mxu0
  %306 = vdwg.mxu0
  %v307 = vxor.u32 %v249, 2147483648
  %v308 = vxor.u32 %v254, 2147483648
  %v309 = vxor.u32 %v259, 2147483648
  %v310 = vxor.u32 %v264, 2147483648
  %v311 = vxor.u32 %v269, 2147483648
  %v312 = vxor.u32 %v274, 2147483648
  %v313 = vxor.u32 %v279, 2147483648
  %v314 = vxor.u32 %v284, 2147483648
  %v315 = vxor.u32 %v289, 2147483648
  %v316 = vxor.u32 %v294, 2147483648
  %v317 = vxor.u32 %v299, 2147483648
  %v318 = vxor.u32 %v304, 2147483648
  %v319 = vmul.f32 %v307, 1.442695
  %v320 = vpow.pop %v319
  %v321 = vmul.f32 %v308, 1.442695
  %v322 = vpow.pop %v321
  %v323 = vmul.f32 %v309, 1.442695
  %v324 = vpow.pop %v323
  %v325 = vmul.f32 %v310, 1.442695
  %v326 = vpow.pop %v325
  %v327 = vmul.f32 %v311, 1.442695
  %v328 = vpow.pop %v327
  %v329 = vmul.f32 %v312, 1.442695
  %v330 = vpow.pop %v329
  %v331 = vmul.f32 %v313, 1.442695
  %v332 = vpow.pop %v331
  %v333 = vmul.f32 %v314, 1.442695
  %v334 = vpow.pop %v333
  %v335 = vmul.f32 %v315, 1.442695
  %v336 = vpow.pop %v335
  %v337 = vmul.f32 %v316, 1.442695
  %v338 = vpow.pop %v337
  %v339 = vmul.f32 %v317, 1.442695
  %v340 = vpow.pop %v339
  %v341 = vmul.f32 %v318, 1.442695
  %v342 = vpow.pop %v341
  %v343 = vadd.f32 %v320, 1.0
  %v344 = vadd.f32 %v322, 1.0
  %v345 = vadd.f32 %v324, 1.0
  %v346 = vadd.f32 %v326, 1.0
  %v347 = vadd.f32 %v328, 1.0
  %v348 = vadd.f32 %v330, 1.0
  %v349 = vadd.f32 %v332, 1.0
  %v350 = vadd.f32 %v334, 1.0
  %v351 = vadd.f32 %v336, 1.0
  %v352 = vadd.f32 %v338, 1.0
  %v353 = vadd.f32 %v340, 1.0
  %v354 = vadd.f32 %v342, 1.0
  %v355 = vrcp.pop %v343
  %v356 = vmul.f32 1.0, %v355
  %v357 = vrcp.pop %v344
  %v358 = vmul.f32 1.0, %v357
  %v359 = vrcp.pop %v345
  %v360 = vmul.f32 1.0, %v359
  %v361 = vrcp.pop %v346
  %v362 = vmul.f32 1.0, %v361
  %v363 = vrcp.pop %v347
  %v364 = vmul.f32 1.0, %v363
  %v365 = vrcp.pop %v348
  %v366 = vmul.f32 1.0, %v365
  %v367 = vrcp.pop %v349
  %v368 = vmul.f32 1.0, %v367
  %v369 = vrcp.pop %v350
  %v370 = vmul.f32 1.0, %v369
  %v371 = vrcp.pop %v351
  %v372 = vmul.f32 1.0, %v371
  %v373 = vrcp.pop %v352
  %v374 = vmul.f32 1.0, %v373
  %v375 = vrcp.pop %v353
  %v376 = vmul.f32 1.0, %v375
  %v377 = vrcp.pop %v354
  %v378 = vmul.f32 1.0, %v377
  %v379 = vmul.f32 %v103, %v356
  %v380 = vmul.f32 %v104, %v358
  %v381 = vmul.f32 %v105, %v360
  %v382 = vmul.f32 %v106, %v362
  %v383 = vmul.f32 %v107, %v364
  %v384 = vmul.f32 %v108, %v366
  %v385 = vmul.f32 %v109, %v368
  %v386 = vmul.f32 %v110, %v370
  %v387 = vmul.f32 %v111, %v372
  %v388 = vmul.f32 %v112, %v374
  %v389 = vmul.f32 %v113, %v376
  %v390 = vmul.f32 %v114, %v378
  %v391 = vmax.f32 %v127, 0.0
  %v392 = vmax.f32 %v128, 0.0
  %v393 = vmax.f32 %v129, 0.0
  %v394 = vmax.f32 %v130, 0.0
  %v395 = vmax.f32 %v131, 0.0
  %v396 = vmax.f32 %v132, 0.0
  %v397 = vmax.f32 %v133, 0.0
  %v398 = vmax.f32 %v134, 0.0
  %v399 = vmax.f32 %v135, 0.0
  %v400 = vmax.f32 %v136, 0.0
  %v401 = vmax.f32 %v137, 0.0
  %v402 = vmax.f32 %v138, 0.0
  %v403 = vmul.f32 %v103, %v391
  %v404 = vmul.f32 %v104, %v392
  %v405 = vmul.f32 %v105, %v393
  %v406 = vmul.f32 %v106, %v394
  %v407 = vmul.f32 %v107, %v395
  %v408 = vmul.f32 %v108, %v396
  %v409 = vmul.f32 %v109, %v397
  %v410 = vmul.f32 %v110, %v398
  %v411 = vmul.f32 %v111, %v399
  %v412 = vmul.f32 %v112, %v400
  %v413 = vmul.f32 %v113, %v401
  %v414 = vmul.f32 %v114, %v402
  %427 = vrot.lane.b32.xlu0 %v356, 16
  %v428 = vpop.permute.xlu0 %427
  %429 = vrot.lane.b32.xlu0 %v358, 16
  %v430 = vpop.permute.xlu0 %429
  %431 = vrot.lane.b32.xlu0 %v360, 16
  %v432 = vpop.permute.xlu0 %431
  %433 = vrot.lane.b32.xlu0 %v362, 16
  %v434 = vpop.permute.xlu0 %433
  %435 = vrot.lane.b32.xlu0 %v364, 16
  %v436 = vpop.permute.xlu0 %435
  %437 = vrot.lane.b32.xlu0 %v366, 16
  %v438 = vpop.permute.xlu0 %437
  %439 = vrot.lane.b32.xlu0 %v368, 16
  %v440 = vpop.permute.xlu0 %439
  %441 = vrot.lane.b32.xlu0 %v370, 16
  %v442 = vpop.permute.xlu0 %441
  %443 = vrot.lane.b32.xlu0 %v372, 16
  %v444 = vpop.permute.xlu0 %443
  %445 = vrot.lane.b32.xlu0 %v374, 16
  %v446 = vpop.permute.xlu0 %445
  %447 = vrot.lane.b32.xlu0 %v376, 16
  %v448 = vpop.permute.xlu0 %447
  %449 = vrot.lane.b32.xlu0 %v378, 16
  %v450 = vpop.permute.xlu0 %449
  %v463 = vsel %vm145, %v403, %v428
  %v464 = vsel %vm145, %v404, %v430
  %v465 = vsel %vm145, %v405, %v432
  %v466 = vsel %vm145, %v406, %v434
  %v467 = vsel %vm145, %v407, %v436
  %v468 = vsel %vm145, %v408, %v438
  %v469 = vsel %vm145, %v409, %v440
  %v470 = vsel %vm145, %v410, %v442
  %v471 = vsel %vm145, %v411, %v444
  %v472 = vsel %vm145, %v412, %v446
  %v473 = vsel %vm145, %v413, %v448
  %v474 = vsel %vm145, %v414, %v450
  %v476 = vlaneseq
  %v477 = vshrl.u32 %v476, 7
  %v478 = vsub.s32 0, %v477
  %v479 = vrot.slane %v64, %v478
  %v480 = vlaneseq
  %v481 = vshrl.u32 %v480, 7
  %v482 = vsub.s32 1, %v481
  %v483 = vrot.slane %v64, %v482
  %vm486 = vcmask 261120
  %v488 = vsel %vm486, %v463, 0
  %v491 = vsel %vm486, %v464, 0
  %v494 = vsel %vm486, %v465, 0
  %v497 = vsel %vm486, %v466, 0
  %v500 = vsel %vm486, %v467, 0
  %v503 = vsel %vm486, %v468, 0
  %v506 = vsel %vm486, %v469, 0
  %v509 = vsel %vm486, %v470, 0
  %v512 = vsel %vm486, %v471, 0
  %v515 = vsel %vm486, %v472, 0
  %v518 = vsel %vm486, %v473, 0
  %v521 = vsel %vm486, %v474, 0
  %523 = vmatprep.subr.mxu0 %v57
  %524 = vmatpush1.msra.mxu0 %v56
  %525 = vmatprep.subr.mxu0 %v59
  %526 = vmatpush1.msra.mxu0 %v58
  %527 = vmatprep.subr.mxu0 %v61
  %528 = vmatpush1.msra.mxu0 %v60
  %529 = vmatprep.subr.mxu0 %v63
  %530 = vmatpush1.msra.mxu0 %v62
  %531 = vmatprep.subr.mxu0 0.0
  %532 = vmatpush1.msra.mxu0 0.0
  %533 = vmatprep.subr.mxu0 0.0
  %534 = vmatpush1.msra.mxu0 0.0
  %535 = vmatprep.subr.mxu0 0.0
  %536 = vmatpush1.msra.mxu0 0.0
  %537 = vmatprep.subr.mxu0 0.0
  %538 = vmatpush1.msra.mxu0 0.0
  %539 = vmatprep.subr.mxu0 0.0
  %540 = vmatpush1.msra.mxu0 0.0
  %541 = vmatprep.subr.mxu0 0.0
  %542 = vmatpush1.msra.mxu0 0.0
  %543 = vmatprep.subr.mxu0 0.0
  %544 = vmatpush1.msra.mxu0 0.0
  %545 = vmatprep.subr.mxu0 0.0
  %546 = vmatpush1.msra.mxu0 0.0
  %547 = vmatprep.subr.mxu0 0.0
  %548 = vmatpush1.msra.mxu0 0.0
  %549 = vmatprep.subr.mxu0 0.0
  %550 = vmatpush1.msra.mxu0 0.0
  %551 = vmatprep.subr.mxu0 0.0
  %552 = vmatpush1.msra.mxu0 0.0
  %553 = vmatprep.subr.mxu0 0.0
  %554 = vmatpush1.msra.mxu0 0.0
  %555 = vmatprep.subr.mxu0 0.0
  %556 = vmatpush1.msra.mxu0 0.0
  %557 = vmatprep.subr.mxu0 0.0
  %558 = vmatpush1.msra.mxu0 0.0
  %559 = vmatprep.subr.mxu0 0.0
  %560 = vmatpush1.msra.mxu0 0.0
  %561 = vmatprep.subr.mxu0 0.0
  %562 = vmatpush1.msra.mxu0 0.0
  %563 = vmatprep.subr.mxu0 0.0
  %564 = vmatpush1.msra.mxu0 0.0
  %565 = vmatprep.subr.mxu0 0.0
  %566 = vmatpush1.msra.mxu0 0.0
  %567 = vmatprep.subr.mxu0 0.0
  %568 = vmatpush1.msra.mxu0 0.0
  %569 = vmatprep.subr.mxu0 0.0
  %570 = vmatpush1.msra.mxu0 0.0
  %571 = vmatprep.subr.mxu0 0.0
  %572 = vmatpush1.msra.mxu0 0.0
  %573 = vmatprep.subr.mxu0 0.0
  %574 = vmatpush1.msra.mxu0 0.0
  %575 = vmatprep.subr.mxu0 0.0
  %576 = vmatpush1.msra.mxu0 0.0
  %577 = vmatprep.subr.mxu0 0.0
  %578 = vmatpush1.msra.mxu0 0.0
  %579 = vmatprep.subr.mxu0 0.0
  %580 = vmatpush1.msra.mxu0 0.0
  %581 = vmatprep.subr.mxu0 0.0
  %582 = vmatpush1.msra.mxu0 0.0
  %583 = vmatprep.subr.mxu0 0.0
  %584 = vmatpush1.msra.mxu0 0.0
  %585 = vmatprep.subr.mxu0 0.0
  %586 = vmatpush1.msra.mxu0 0.0
  %587 = vmatprep.mubr.f32.mxu0 0.0
  %588 = vmatmul.mubr.f32.gmra.mrb[0].mxu0 %v488
  %v589 = vpop.f32.mrb[0].mxu0
  %v590 = vadd.f32 %v479, %v589
  %v591 = vpop.f32.mrb[0].mxu0
  %v592 = vadd.f32 %v483, %v591
  %593 = vmatprep.mubr.f32.mxu0 0.0
  %594 = vmatmul.mubr.f32.gmra.mrb[0].mxu0 %v491
  %v595 = vpop.f32.mrb[0].mxu0
  %v596 = vadd.f32 %v479, %v595
  %v597 = vpop.f32.mrb[0].mxu0
  %v598 = vadd.f32 %v483, %v597
  %599 = vmatprep.mubr.f32.mxu0 0.0
  %600 = vmatmul.mubr.f32.gmra.mrb[0].mxu0 %v494
  %v601 = vpop.f32.mrb[0].mxu0
  %v602 = vadd.f32 %v479, %v601
  %v603 = vpop.f32.mrb[0].mxu0
  %v604 = vadd.f32 %v483, %v603
  %605 = vmatprep.mubr.f32.mxu0 0.0
  %606 = vmatmul.mubr.f32.gmra.mrb[0].mxu0 %v497
  %v607 = vpop.f32.mrb[0].mxu0
  %v608 = vadd.f32 %v479, %v607
  %v609 = vpop.f32.mrb[0].mxu0
  %v610 = vadd.f32 %v483, %v609
  %611 = vmatprep.mubr.f32.mxu0 0.0
  %612 = vmatmul.mubr.f32.gmra.mrb[0].mxu0 %v500
  %v613 = vpop.f32.mrb[0].mxu0
  %v614 = vadd.f32 %v479, %v613
  %v615 = vpop.f32.mrb[0].mxu0
  %v616 = vadd.f32 %v483, %v615
  %617 = vmatprep.mubr.f32.mxu0 0.0
  %618 = vmatmul.mubr.f32.gmra.mrb[0].mxu0 %v503
  %v619 = vpop.f32.mrb[0].mxu0
  %v620 = vadd.f32 %v479, %v619
  %v621 = vpop.f32.mrb[0].mxu0
  %v622 = vadd.f32 %v483, %v621
  %623 = vmatprep.mubr.f32.mxu0 0.0
  %624 = vmatmul.mubr.f32.gmra.mrb[0].mxu0 %v506
  %v625 = vpop.f32.mrb[0].mxu0
  %v626 = vadd.f32 %v479, %v625
  %v627 = vpop.f32.mrb[0].mxu0
  %v628 = vadd.f32 %v483, %v627
  %629 = vmatprep.mubr.f32.mxu0 0.0
  %630 = vmatmul.mubr.f32.gmra.mrb[0].mxu0 %v509
  %v631 = vpop.f32.mrb[0].mxu0
  %v632 = vadd.f32 %v479, %v631
  %v633 = vpop.f32.mrb[0].mxu0
  %v634 = vadd.f32 %v483, %v633
  %635 = vmatprep.mubr.f32.mxu0 0.0
  %636 = vmatmul.mubr.f32.gmra.mrb[0].mxu0 %v512
  %v637 = vpop.f32.mrb[0].mxu0
  %v638 = vadd.f32 %v479, %v637
  %v639 = vpop.f32.mrb[0].mxu0
  %v640 = vadd.f32 %v483, %v639
  %641 = vmatprep.mubr.f32.mxu0 0.0
  %642 = vmatmul.mubr.f32.gmra.mrb[0].mxu0 %v515
  %v643 = vpop.f32.mrb[0].mxu0
  %v644 = vadd.f32 %v479, %v643
  %v645 = vpop.f32.mrb[0].mxu0
  %v646 = vadd.f32 %v483, %v645
  %647 = vmatprep.mubr.f32.mxu0 0.0
  %648 = vmatmul.mubr.f32.gmra.mrb[0].mxu0 %v518
  %v649 = vpop.f32.mrb[0].mxu0
  %v650 = vadd.f32 %v479, %v649
  %v651 = vpop.f32.mrb[0].mxu0
  %v652 = vadd.f32 %v483, %v651
  %653 = vmatprep.mubr.f32.mxu0 0.0
  %654 = vmatmul.mubr.f32.gmra.mrb[0].mxu0 %v521
  %v655 = vpop.f32.mrb[0].mxu0
  %v656 = vadd.f32 %v479, %v655
  %v657 = vpop.f32.mrb[0].mxu0
  %v658 = vadd.f32 %v483, %v657
  %659 = vdwg.mxu0
  %660 = vst [vmem:[#allocation2] sm:$0xff] %v590
  %vm661 = vcmask 523264
  %662 = vst.msk [vmem:[#allocation2 + $0x8] sm:$0xff] %vm661, %v592
  %663 = vst [vmem:[#allocation2 + $0x10] sm:$0xff] %v596
  %664 = vst.msk [vmem:[#allocation2 + $0x18] sm:$0xff] %vm661, %v598
  %665 = vst [vmem:[#allocation2 + $0x20] sm:$0xff] %v602
  %666 = vst.msk [vmem:[#allocation2 + $0x28] sm:$0xff] %vm661, %v604
  %667 = vst [vmem:[#allocation2 + $0x30] sm:$0xff] %v608
  %668 = vst.msk [vmem:[#allocation2 + $0x38] sm:$0xff] %vm661, %v610
  %669 = vst [vmem:[#allocation2 + $0x40] sm:$0xff] %v614
  %670 = vst.msk [vmem:[#allocation2 + $0x48] sm:$0xff] %vm661, %v616
  %671 = vst [vmem:[#allocation2 + $0x50] sm:$0xff] %v620
  %672 = vst.msk [vmem:[#allocation2 + $0x58] sm:$0xff] %vm661, %v622
  %673 = vst [vmem:[#allocation2 + $0x60] sm:$0xff] %v626
  %674 = vst.msk [vmem:[#allocation2 + $0x68] sm:$0xff] %vm661, %v628
  %675 = vst [vmem:[#allocation2 + $0x70] sm:$0xff] %v632
  %676 = vst.msk [vmem:[#allocation2 + $0x78] sm:$0xff] %vm661, %v634
  %677 = vst [vmem:[#allocation2 + $0x80] sm:$0xff] %v638
  %678 = vst.msk [vmem:[#allocation2 + $0x88] sm:$0xff] %vm661, %v640
  %679 = vst [vmem:[#allocation2 + $0x90] sm:$0xff] %v644
  %680 = vst.msk [vmem:[#allocation2 + $0x98] sm:$0xff] %vm661, %v646
  %681 = vst [vmem:[#allocation2 + $0xa0] sm:$0xff] %v650
  %682 = vst.msk [vmem:[#allocation2 + $0xa8] sm:$0xff] %vm661, %v652
  %683 = vst [vmem:[#allocation2 + $0xb0] sm:$0xff] %v656
  %684 = vst.msk [vmem:[#allocation2 + $0xb8] sm:$0xff] %vm661, %v658
  %v686 = vlaneseq
  %v687 = vshrl.u32 %v686, 7
  %v688 = vsub.s32 0, %v687
  %v689 = vrot.slane %v95, %v688
  %v692 = vsel %vm145, %v379, 0
  %v695 = vsel %vm145, %v380, 0
  %v698 = vsel %vm145, %v381, 0
  %v701 = vsel %vm145, %v382, 0
  %v704 = vsel %vm145, %v383, 0
  %v707 = vsel %vm145, %v384, 0
  %v710 = vsel %vm145, %v385, 0
  %v713 = vsel %vm145, %v386, 0
  %v716 = vsel %vm145, %v387, 0
  %v719 = vsel %vm145, %v388, 0
  %v722 = vsel %vm145, %v389, 0
  %v725 = vsel %vm145, %v390, 0
  %727 = vmatprep.subr.mxu0 0.0
  %728 = vmatpush1.msra.mxu0 %v93
  %729 = vmatprep.subr.mxu0 0.0
  %730 = vmatpush1.msra.mxu0 %v94
  %731 = vmatprep.subr.mxu0 0.0
  %732 = vmatpush1.msra.mxu0 0.0
  %733 = vmatprep.subr.mxu0 0.0
  %734 = vmatpush1.msra.mxu0 0.0
  %735 = vmatprep.subr.mxu0 0.0
  %736 = vmatpush1.msra.mxu0 0.0
  %737 = vmatprep.subr.mxu0 0.0
  %738 = vmatpush1.msra.mxu0 0.0
  %739 = vmatprep.subr.mxu0 0.0
  %740 = vmatpush1.msra.mxu0 0.0
  %741 = vmatprep.subr.mxu0 0.0
  %742 = vmatpush1.msra.mxu0 0.0
  %743 = vmatprep.subr.mxu0 0.0
  %744 = vmatpush1.msra.mxu0 0.0
  %745 = vmatprep.subr.mxu0 0.0
  %746 = vmatpush1.msra.mxu0 0.0
  %747 = vmatprep.subr.mxu0 0.0
  %748 = vmatpush1.msra.mxu0 0.0
  %749 = vmatprep.subr.mxu0 0.0
  %750 = vmatpush1.msra.mxu0 0.0
  %751 = vmatprep.subr.mxu0 0.0
  %752 = vmatpush1.msra.mxu0 0.0
  %753 = vmatprep.subr.mxu0 0.0
  %754 = vmatpush1.msra.mxu0 0.0
  %755 = vmatprep.subr.mxu0 0.0
  %756 = vmatpush1.msra.mxu0 0.0
  %757 = vmatprep.subr.mxu0 0.0
  %758 = vmatpush1.msra.mxu0 0.0
  %759 = vmatprep.subr.mxu0 0.0
  %760 = vmatpush1.msra.mxu0 0.0
  %761 = vmatprep.subr.mxu0 0.0
  %762 = vmatpush1.msra.mxu0 0.0
  %763 = vmatprep.subr.mxu0 0.0
  %764 = vmatpush1.msra.mxu0 0.0
  %765 = vmatprep.subr.mxu0 0.0
  %766 = vmatpush1.msra.mxu0 0.0
  %767 = vmatprep.subr.mxu0 0.0
  %768 = vmatpush1.msra.mxu0 0.0
  %769 = vmatprep.subr.mxu0 0.0
  %770 = vmatpush1.msra.mxu0 0.0
  %771 = vmatprep.subr.mxu0 0.0
  %772 = vmatpush1.msra.mxu0 0.0
  %773 = vmatprep.subr.mxu0 0.0
  %774 = vmatpush1.msra.mxu0 0.0
  %775 = vmatprep.subr.mxu0 0.0
  %776 = vmatpush1.msra.mxu0 0.0
  %777 = vmatprep.subr.mxu0 0.0
  %778 = vmatpush1.msra.mxu0 0.0
  %779 = vmatprep.subr.mxu0 0.0
  %780 = vmatpush1.msra.mxu0 0.0
  %781 = vmatprep.subr.mxu0 0.0
  %782 = vmatpush1.msra.mxu0 0.0
  %783 = vmatprep.subr.mxu0 0.0
  %784 = vmatpush1.msra.mxu0 0.0
  %785 = vmatprep.subr.mxu0 0.0
  %786 = vmatpush1.msra.mxu0 0.0
  %787 = vmatprep.subr.mxu0 0.0
  %788 = vmatpush1.msra.mxu0 0.0
  %789 = vmatprep.subr.mxu0 0.0
  %790 = vmatpush1.msra.mxu0 0.0
  %791 = vmatprep.mubr.f32.mxu0 0.0
  %792 = vmatmul.mubr.f32.gmra.mrb[0].mxu0 %v692
  %v793 = vpop.f32.mrb[0].mxu0
  %v794 = vadd.f32 %v689, %v793
  %v795 = vpop.f32.mrb[0].mxu0
  %796 = vmatprep.mubr.f32.mxu0 0.0
  %797 = vmatmul.mubr.f32.gmra.mrb[0].mxu0 %v695
  %v798 = vpop.f32.mrb[0].mxu0
  %v799 = vadd.f32 %v689, %v798
  %v800 = vpop.f32.mrb[0].mxu0
  %801 = vmatprep.mubr.f32.mxu0 0.0
  %802 = vmatmul.mubr.f32.gmra.mrb[0].mxu0 %v698
  %v803 = vpop.f32.mrb[0].mxu0
  %v804 = vadd.f32 %v689, %v803
  %v805 = vpop.f32.mrb[0].mxu0
  %806 = vmatprep.mubr.f32.mxu0 0.0
  %807 = vmatmul.mubr.f32.gmra.mrb[0].mxu0 %v701
  %v808 = vpop.f32.mrb[0].mxu0
  %v809 = vadd.f32 %v689, %v808
  %v810 = vpop.f32.mrb[0].mxu0
  %811 = vmatprep.mubr.f32.mxu0 0.0
  %812 = vmatmul.mubr.f32.gmra.mrb[0].mxu0 %v704
  %v813 = vpop.f32.mrb[0].mxu0
  %v814 = vadd.f32 %v689, %v813
  %v815 = vpop.f32.mrb[0].mxu0
  %816 = vmatprep.mubr.f32.mxu0 0.0
  %817 = vmatmul.mubr.f32.gmra.mrb[0].mxu0 %v707
  %v818 = vpop.f32.mrb[0].mxu0
  %v819 = vadd.f32 %v689, %v818
  %v820 = vpop.f32.mrb[0].mxu0
  %821 = vmatprep.mubr.f32.mxu0 0.0
  %822 = vmatmul.mubr.f32.gmra.mrb[0].mxu0 %v710
  %v823 = vpop.f32.mrb[0].mxu0
  %v824 = vadd.f32 %v689, %v823
  %v825 = vpop.f32.mrb[0].mxu0
  %826 = vmatprep.mubr.f32.mxu0 0.0
  %827 = vmatmul.mubr.f32.gmra.mrb[0].mxu0 %v713
  %v828 = vpop.f32.mrb[0].mxu0
  %v829 = vadd.f32 %v689, %v828
  %v830 = vpop.f32.mrb[0].mxu0
  %831 = vmatprep.mubr.f32.mxu0 0.0
  %832 = vmatmul.mubr.f32.gmra.mrb[0].mxu0 %v716
  %v833 = vpop.f32.mrb[0].mxu0
  %v834 = vadd.f32 %v689, %v833
  %v835 = vpop.f32.mrb[0].mxu0
  %836 = vmatprep.mubr.f32.mxu0 0.0
  %837 = vmatmul.mubr.f32.gmra.mrb[0].mxu0 %v719
  %v838 = vpop.f32.mrb[0].mxu0
  %v839 = vadd.f32 %v689, %v838
  %v840 = vpop.f32.mrb[0].mxu0
  %841 = vmatprep.mubr.f32.mxu0 0.0
  %842 = vmatmul.mubr.f32.gmra.mrb[0].mxu0 %v722
  %v843 = vpop.f32.mrb[0].mxu0
  %v844 = vadd.f32 %v689, %v843
  %v845 = vpop.f32.mrb[0].mxu0
  %846 = vmatprep.mubr.f32.mxu0 0.0
  %847 = vmatmul.mubr.f32.gmra.mrb[0].mxu0 %v725
  %v848 = vpop.f32.mrb[0].mxu0
  %v849 = vadd.f32 %v689, %v848
  %v850 = vpop.f32.mrb[0].mxu0
  %851 = vdwg.mxu0
  %852 = vst.msk [vmem:[#allocation3] sm:$0xff] %vm145, %v794
  %853 = vst.msk [vmem:[#allocation3 + $0x8] sm:$0xff] %vm145, %v799
  %854 = vst.msk [vmem:[#allocation3 + $0x10] sm:$0xff] %vm145, %v804
  %855 = vst.msk [vmem:[#allocation3 + $0x18] sm:$0xff] %vm145, %v809
  %856 = vst.msk [vmem:[#allocation3 + $0x20] sm:$0xff] %vm145, %v814
  %857 = vst.msk [vmem:[#allocation3 + $0x28] sm:$0xff] %vm145, %v819
  %858 = vst.msk [vmem:[#allocation3 + $0x30] sm:$0xff] %vm145, %v824
  %859 = vst.msk [vmem:[#allocation3 + $0x38] sm:$0xff] %vm145, %v829
  %860 = vst.msk [vmem:[#allocation3 + $0x40] sm:$0xff] %vm145, %v834
  %861 = vst.msk [vmem:[#allocation3 + $0x48] sm:$0xff] %vm145, %v839
  %862 = vst.msk [vmem:[#allocation3 + $0x50] sm:$0xff] %vm145, %v844
  %863 = vst.msk [vmem:[#allocation3 + $0x58] sm:$0xff] %vm145, %v849
  %v864 = vld [vmem:[%s2] sm:$0xff]
  %v865 = vld [vmem:[%s2 + $0x8] sm:$0xff]
  %v866 = vld [vmem:[%s2 + $0x10] sm:$0xff]
  %v867 = vld [vmem:[%s2 + $0x18] sm:$0xff]
  %v868 = vld [vmem:[%s2 + $0x20] sm:$0xff]
  %v869 = vld [vmem:[%s2 + $0x28] sm:$0xff]
  %v870 = vld [vmem:[%s2 + $0x30] sm:$0xff]
  %v871 = vld [vmem:[%s2 + $0x38] sm:$0xff]
  %v872 = vld [vmem:[%s2 + $0x40] sm:$0xff]
  %v873 = vld [vmem:[%s2 + $0x48] sm:$0xff]
  %v874 = vld [vmem:[%s2 + $0x50] sm:$0xff]
  %v875 = vld [vmem:[%s2 + $0x58] sm:$0xff]
  %877 = vset.pattern.permute.xlu0 0
  %878 = vperm.xlu0 %877, %v864
  %v879 = vpop.permute.xlu0 %878
  %v881 = vmul.f32 %v879, 0.0
  %v883 = vlaneseq
  %v884 = vshrl.u32 %v883, 7
  %v885 = vsub.s32 0, %v884
  %v886 = vrot.slane %v81, %v885
  %v887 = vlaneseq
  %v888 = vshrl.u32 %v887, 7
  %v889 = vsub.s32 1, %v888
  %v890 = vrot.slane %v81, %v889
  %v894 = vsel %vm661, %v881, 0
  %896 = vmatprep.subr.mxu0 %v66
  %897 = vmatpush1.msra.mxu0 %v65
  %898 = vmatprep.subr.mxu0 %v68
  %899 = vmatpush1.msra.mxu0 %v67
  %900 = vmatprep.subr.mxu0 %v70
  %901 = vmatpush1.msra.mxu0 %v69
  %902 = vmatprep.subr.mxu0 %v72
  %903 = vmatpush1.msra.mxu0 %v71
  %904 = vmatprep.subr.mxu0 %v74
  %905 = vmatpush1.msra.mxu0 %v73
  %906 = vmatprep.subr.mxu0 %v76
  %907 = vmatpush1.msra.mxu0 %v75
  %908 = vmatprep.subr.mxu0 %v78
  %909 = vmatpush1.msra.mxu0 %v77
  %910 = vmatprep.subr.mxu0 %v80
  %911 = vmatpush1.msra.mxu0 %v79
  %912 = vmatprep.subr.mxu0 0.0
  %913 = vmatpush1.msra.mxu0 0.0
  %914 = vmatprep.subr.mxu0 0.0
  %915 = vmatpush1.msra.mxu0 0.0
  %916 = vmatprep.subr.mxu0 0.0
  %917 = vmatpush1.msra.mxu0 0.0
  %918 = vmatprep.subr.mxu0 0.0
  %919 = vmatpush1.msra.mxu0 0.0
  %920 = vmatprep.subr.mxu0 0.0
  %921 = vmatpush1.msra.mxu0 0.0
  %922 = vmatprep.subr.mxu0 0.0
  %923 = vmatpush1.msra.mxu0 0.0
  %924 = vmatprep.subr.mxu0 0.0
  %925 = vmatpush1.msra.mxu0 0.0
  %926 = vmatprep.subr.mxu0 0.0
  %927 = vmatpush1.msra.mxu0 0.0
  %928 = vmatprep.subr.mxu0 0.0
  %929 = vmatpush1.msra.mxu0 0.0
  %930 = vmatprep.subr.mxu0 0.0
  %931 = vmatpush1.msra.mxu0 0.0
  %932 = vmatprep.subr.mxu0 0.0
  %933 = vmatpush1.msra.mxu0 0.0
  %934 = vmatprep.subr.mxu0 0.0
  %935 = vmatpush1.msra.mxu0 0.0
  %936 = vmatprep.subr.mxu0 0.0
  %937 = vmatpush1.msra.mxu0 0.0
  %938 = vmatprep.subr.mxu0 0.0
  %939 = vmatpush1.msra.mxu0 0.0
  %940 = vmatprep.subr.mxu0 0.0
  %941 = vmatpush1.msra.mxu0 0.0
  %942 = vmatprep.subr.mxu0 0.0
  %943 = vmatpush1.msra.mxu0 0.0
  %944 = vmatprep.subr.mxu0 0.0
  %945 = vmatpush1.msra.mxu0 0.0
  %946 = vmatprep.subr.mxu0 0.0
  %947 = vmatpush1.msra.mxu0 0.0
  %948 = vmatprep.subr.mxu0 0.0
  %949 = vmatpush1.msra.mxu0 0.0
  %950 = vmatprep.subr.mxu0 0.0
  %951 = vmatpush1.msra.mxu0 0.0
  %952 = vmatprep.subr.mxu0 0.0
  %953 = vmatpush1.msra.mxu0 0.0
  %954 = vmatprep.subr.mxu0 0.0
  %955 = vmatpush1.msra.mxu0 0.0
  %956 = vmatprep.subr.mxu0 0.0
  %957 = vmatpush1.msra.mxu0 0.0
  %958 = vmatprep.subr.mxu0 0.0
  %959 = vmatpush1.msra.mxu0 0.0
  %960 = vmatprep.mubr.f32.mxu0 0.0
  %961 = vmatmul.mubr.f32.gmra.mrb[0].mxu0 %v894
  %v962 = vpop.f32.mrb[0].mxu0
  %v963 = vadd.f32 %v886, %v962
  %v964 = vpop.f32.mrb[0].mxu0
  %v965 = vadd.f32 %v890, %v964
  %966 = vdwg.mxu0
  %v967 = vld [vmem:[#allocation2] sm:$0xff]
  %v968 = vld [vmem:[#allocation2 + $0x8] sm:$0xff]
  %v969 = vadd.f32 %v967, %v963
  %v970 = vxor.u32 %v969, 2147483648
  %v971 = vmul.f32 %v970, 1.442695
  %v972 = vpow.pop %v971
  %v973 = vadd.f32 %v972, 1.0
  %v974 = vrcp.pop %v973
  %v975 = vmul.f32 1.0, %v974
  %v976 = vmul.f32 %v975, %v965
  %v977 = vadd.f32 %v968, %v976
  %v978 = vtanh.pop %v977
  %v979 = vsub.f32 1.0, %v975
  %981 = vrot.lane.b32.xlu0 %v978, 64
  %v982 = vpop.permute.xlu0 %981
  %v984 = vmul.f32 %v979, %v982
  %v985 = vmul.f32 %v975, %v881
  %v986 = vadd.f32 %v984, %v985
  %v988 = vlaneseq
  %v989 = vshrl.u32 %v988, 7
  %v990 = vsub.s32 0, %v989
  %v991 = vrot.slane %v90, %v990
  %994 = vrot.lane.b32.xlu0 %v986, 64
  %v995 = vpop.permute.xlu0 %994
  %v996 = vsel %vm661, %v995, 0
  %998 = vmatprep.subr.mxu0 0.0
  %999 = vmatpush1.msra.mxu0 %v82
  %1000 = vmatprep.subr.mxu0 0.0
  %1001 = vmatpush1.msra.mxu0 %v83
  %1002 = vmatprep.subr.mxu0 0.0
  %1003 = vmatpush1.msra.mxu0 %v84
  %1004 = vmatprep.subr.mxu0 0.0
  %1005 = vmatpush1.msra.mxu0 %v85
  %1006 = vmatprep.subr.mxu0 0.0
  %1007 = vmatpush1.msra.mxu0 %v86
  %1008 = vmatprep.subr.mxu0 0.0
  %1009 = vmatpush1.msra.mxu0 %v87
  %1010 = vmatprep.subr.mxu0 0.0
  %1011 = vmatpush1.msra.mxu0 %v88
  %1012 = vmatprep.subr.mxu0 0.0
  %1013 = vmatpush1.msra.mxu0 %v89
  %1014 = vmatprep.subr.mxu0 0.0
  %1015 = vmatpush1.msra.mxu0 0.0
  %1016 = vmatprep.subr.mxu0 0.0
  %1017 = vmatpush1.msra.mxu0 0.0
  %1018 = vmatprep.subr.mxu0 0.0
  %1019 = vmatpush1.msra.mxu0 0.0
  %1020 = vmatprep.subr.mxu0 0.0
  %1021 = vmatpush1.msra.mxu0 0.0
  %1022 = vmatprep.subr.mxu0 0.0
  %1023 = vmatpush1.msra.mxu0 0.0
  %1024 = vmatprep.subr.mxu0 0.0
  %1025 = vmatpush1.msra.mxu0 0.0
  %1026 = vmatprep.subr.mxu0 0.0
  %1027 = vmatpush1.msra.mxu0 0.0
  %1028 = vmatprep.subr.mxu0 0.0
  %1029 = vmatpush1.msra.mxu0 0.0
  %1030 = vmatprep.subr.mxu0 0.0
  %1031 = vmatpush1.msra.mxu0 0.0
  %1032 = vmatprep.subr.mxu0 0.0
  %1033 = vmatpush1.msra.mxu0 0.0
  %1034 = vmatprep.subr.mxu0 0.0
  %1035 = vmatpush1.msra.mxu0 0.0
  %1036 = vmatprep.subr.mxu0 0.0
  %1037 = vmatpush1.msra.mxu0 0.0
  %1038 = vmatprep.subr.mxu0 0.0
  %1039 = vmatpush1.msra.mxu0 0.0
  %1040 = vmatprep.subr.mxu0 0.0
  %1041 = vmatpush1.msra.mxu0 0.0
  %1042 = vmatprep.subr.mxu0 0.0
  %1043 = vmatpush1.msra.mxu0 0.0
  %1044 = vmatprep.subr.mxu0 0.0
  %1045 = vmatpush1.msra.mxu0 0.0
  %1046 = vmatprep.subr.mxu0 0.0
  %1047 = vmatpush1.msra.mxu0 0.0
  %1048 = vmatprep.subr.mxu0 0.0
  %1049 = vmatpush1.msra.mxu0 0.0
  %1050 = vmatprep.subr.mxu0 0.0
  %1051 = vmatpush1.msra.mxu0 0.0
  %1052 = vmatprep.subr.mxu0 0.0
  %1053 = vmatpush1.msra.mxu0 0.0
  %1054 = vmatprep.subr.mxu0 0.0
  %1055 = vmatpush1.msra.mxu0 0.0
  %1056 = vmatprep.subr.mxu0 0.0
  %1057 = vmatpush1.msra.mxu0 0.0
  %1058 = vmatprep.subr.mxu0 0.0
  %1059 = vmatpush1.msra.mxu0 0.0
  %1060 = vmatprep.subr.mxu0 0.0
  %1061 = vmatpush1.msra.mxu0 0.0
  %1062 = vmatprep.mubr.f32.mxu0 0.0
  %1063 = vmatmul.mubr.f32.gmra.mrb[0].mxu0 %v996
  %v1064 = vpop.f32.mrb[0].mxu0
  %v1065 = vadd.f32 %v991, %v1064
  %v1066 = vpop.f32.mrb[0].mxu0
  %1067 = vdwg.mxu0
  %v1068 = vxor.u32 %v1065, 2147483648
  %v1069 = vmul.f32 %v1068, 1.442695
  %v1070 = vpow.pop %v1069
  %v1071 = vadd.f32 %v1070, 1.0
  %v1072 = vrcp.pop %v1071
  %v1073 = vmul.f32 1.0, %v1072
  %1075 = vrot.lane.b32.xlu0 %v1073, 112
  %v1076 = vpop.permute.xlu0 %1075
  %v1078 = vmul.f32 %v1065, %v1076
  %v1079 = vld [vmem:[#allocation3] sm:$0xff]
  %v1081 = vsel %vm145, %v1078, 0
  %1083 = vmatprep.subr.mxu0 0.0
  %1084 = vmatpush1.msra.mxu0 %v91
  %1085 = vmatprep.subr.mxu0 0.0
  %1086 = vmatpush1.msra.mxu0 %v92
  %1087 = vmatprep.subr.mxu0 0.0
  %1088 = vmatpush1.msra.mxu0 0.0
  %1089 = vmatprep.subr.mxu0 0.0
  %1090 = vmatpush1.msra.mxu0 0.0
  %1091 = vmatprep.subr.mxu0 0.0
  %1092 = vmatpush1.msra.mxu0 0.0
  %1093 = vmatprep.subr.mxu0 0.0
  %1094 = vmatpush1.msra.mxu0 0.0
  %1095 = vmatprep.subr.mxu0 0.0
  %1096 = vmatpush1.msra.mxu0 0.0
  %1097 = vmatprep.subr.mxu0 0.0
  %1098 = vmatpush1.msra.mxu0 0.0
  %1099 = vmatprep.subr.mxu0 0.0
  %1100 = vmatpush1.msra.mxu0 0.0
  %1101 = vmatprep.subr.mxu0 0.0
  %1102 = vmatpush1.msra.mxu0 0.0
  %1103 = vmatprep.subr.mxu0 0.0
  %1104 = vmatpush1.msra.mxu0 0.0
  %1105 = vmatprep.subr.mxu0 0.0
  %1106 = vmatpush1.msra.mxu0 0.0
  %1107 = vmatprep.subr.mxu0 0.0
  %1108 = vmatpush1.msra.mxu0 0.0
  %1109 = vmatprep.subr.mxu0 0.0
  %1110 = vmatpush1.msra.mxu0 0.0
  %1111 = vmatprep.subr.mxu0 0.0
  %1112 = vmatpush1.msra.mxu0 0.0
  %1113 = vmatprep.subr.mxu0 0.0
  %1114 = vmatpush1.msra.mxu0 0.0
  %1115 = vmatprep.subr.mxu0 0.0
  %1116 = vmatpush1.msra.mxu0 0.0
  %1117 = vmatprep.subr.mxu0 0.0
  %1118 = vmatpush1.msra.mxu0 0.0
  %1119 = vmatprep.subr.mxu0 0.0
  %1120 = vmatpush1.msra.mxu0 0.0
  %1121 = vmatprep.subr.mxu0 0.0
  %1122 = vmatpush1.msra.mxu0 0.0
  %1123 = vmatprep.subr.mxu0 0.0
  %1124 = vmatpush1.msra.mxu0 0.0
  %1125 = vmatprep.subr.mxu0 0.0
  %1126 = vmatpush1.msra.mxu0 0.0
  %1127 = vmatprep.subr.mxu0 0.0
  %1128 = vmatpush1.msra.mxu0 0.0
  %1129 = vmatprep.subr.mxu0 0.0
  %1130 = vmatpush1.msra.mxu0 0.0
  %1131 = vmatprep.subr.mxu0 0.0
  %1132 = vmatpush1.msra.mxu0 0.0
  %1133 = vmatprep.subr.mxu0 0.0
  %1134 = vmatpush1.msra.mxu0 0.0
  %1135 = vmatprep.subr.mxu0 0.0
  %1136 = vmatpush1.msra.mxu0 0.0
  %1137 = vmatprep.subr.mxu0 0.0
  %1138 = vmatpush1.msra.mxu0 0.0
  %1139 = vmatprep.subr.mxu0 0.0
  %1140 = vmatpush1.msra.mxu0 0.0
  %1141 = vmatprep.subr.mxu0 0.0
  %1142 = vmatpush1.msra.mxu0 0.0
  %1143 = vmatprep.subr.mxu0 0.0
  %1144 = vmatpush1.msra.mxu0 0.0
  %1145 = vmatprep.subr.mxu0 0.0
  %1146 = vmatpush1.msra.mxu0 0.0
  %1147 = vmatprep.mubr.f32.mxu0 0.0
  %1148 = vmatmul.mubr.f32.gmra.mrb[0].mxu0 %v1081
  %v1149 = vpop.f32.mrb[0].mxu0
  %v1150 = vadd.f32 %v1079, %v1149
  %v1151 = vpop.f32.mrb[0].mxu0
  %1152 = vdwg.mxu0
  %v1153 = vmax.f32 %v1150, 0.0
  %v1154 = vsel %vm145, %v1153, 0.0
  %v1156 = vlaneseq
  %v1157 = vshrl.u32 %v1156, 7
  %v1158 = vsub.s32 0, %v1157
  %v1159 = vrot.slane %v102, %v1158
  %vm1161 = vcmask 392192
  %v1163 = vsel %vm1161, %v1154, 0
  %1165 = vmatprep.subr.mxu0 0.0
  %1166 = vmatpush1.msra.mxu0 %v96
  %1167 = vmatprep.subr.mxu0 0.0
  %1168 = vmatpush1.msra.mxu0 %v97
  %1169 = vmatprep.subr.mxu0 0.0
  %1170 = vmatpush1.msra.mxu0 %v98
  %1171 = vmatprep.subr.mxu0 0.0
  %1172 = vmatpush1.msra.mxu0 %v99
  %1173 = vmatprep.subr.mxu0 0.0
  %1174 = vmatpush1.msra.mxu0 %v100
  %1175 = vmatprep.subr.mxu0 0.0
  %1176 = vmatpush1.msra.mxu0 %v101
  %1177 = vmatprep.subr.mxu0 0.0
  %1178 = vmatpush1.msra.mxu0 0.0
  %1179 = vmatprep.subr.mxu0 0.0
  %1180 = vmatpush1.msra.mxu0 0.0
  %1181 = vmatprep.subr.mxu0 0.0
  %1182 = vmatpush1.msra.mxu0 0.0
  %1183 = vmatprep.subr.mxu0 0.0
  %1184 = vmatpush1.msra.mxu0 0.0
  %1185 = vmatprep.subr.mxu0 0.0
  %1186 = vmatpush1.msra.mxu0 0.0
  %1187 = vmatprep.subr.mxu0 0.0
  %1188 = vmatpush1.msra.mxu0 0.0
  %1189 = vmatprep.subr.mxu0 0.0
  %1190 = vmatpush1.msra.mxu0 0.0
  %1191 = vmatprep.subr.mxu0 0.0
  %1192 = vmatpush1.msra.mxu0 0.0
  %1193 = vmatprep.subr.mxu0 0.0
  %1194 = vmatpush1.msra.mxu0 0.0
  %1195 = vmatprep.subr.mxu0 0.0
  %1196 = vmatpush1.msra.mxu0 0.0
  %1197 = vmatprep.subr.mxu0 0.0
  %1198 = vmatpush1.msra.mxu0 0.0
  %1199 = vmatprep.subr.mxu0 0.0
  %1200 = vmatpush1.msra.mxu0 0.0
  %1201 = vmatprep.subr.mxu0 0.0
  %1202 = vmatpush1.msra.mxu0 0.0
  %1203 = vmatprep.subr.mxu0 0.0
  %1204 = vmatpush1.msra.mxu0 0.0
  %1205 = vmatprep.subr.mxu0 0.0
  %1206 = vmatpush1.msra.mxu0 0.0
  %1207 = vmatprep.subr.mxu0 0.0
  %1208 = vmatpush1.msra.mxu0 0.0
  %1209 = vmatprep.subr.mxu0 0.0
  %1210 = vmatpush1.msra.mxu0 0.0
  %1211 = vmatprep.subr.mxu0 0.0
  %1212 = vmatpush1.msra.mxu0 0.0
  %1213 = vmatprep.subr.mxu0 0.0
  %1214 = vmatpush1.msra.mxu0 0.0
  %1215 = vmatprep.subr.mxu0 0.0
  %1216 = vmatpush1.msra.mxu0 0.0
  %1217 = vmatprep.subr.mxu0 0.0
  %1218 = vmatpush1.msra.mxu0 0.0
  %1219 = vmatprep.subr.mxu0 0.0
  %1220 = vmatpush1.msra.mxu0 0.0
  %1221 = vmatprep.subr.mxu0 0.0
  %1222 = vmatpush1.msra.mxu0 0.0
  %1223 = vmatprep.subr.mxu0 0.0
  %1224 = vmatpush1.msra.mxu0 0.0
  %1225 = vmatprep.subr.mxu0 0.0
  %1226 = vmatpush1.msra.mxu0 0.0
  %1227 = vmatprep.subr.mxu0 0.0
  %1228 = vmatpush1.msra.mxu0 0.0
  %1229 = vmatprep.mubr.f32.mxu0 0.0
  %1230 = vmatmul.mubr.f32.gmra.mrb[0].mxu0 %v1163
  %v1231 = vpop.f32.mrb[0].mxu0
  %v1232 = vadd.f32 %v1159, %v1231
  %v1233 = vpop.f32.mrb[0].mxu0
  %1234 = vdwg.mxu0
  %v1235 = vxor.u32 %v1232, 2147483648
  %v1236 = vmul.f32 %v1235, 1.442695
  %v1237 = vpow.pop %v1236
  %v1238 = vadd.f32 %v1237, 1.0
  %v1239 = vrcp.pop %v1238
  %v1240 = vmul.f32 1.0, %v1239
  %1242 = vrot.lane.b32.xlu0 %v1232, 32
  %v1243 = vpop.permute.xlu0 %1242
  %v1245 = vmul.f32 %v1240, %v1243
  %1247 = vrot.lane.b32.xlu0 %v1245, 64
  %v1248 = vpop.permute.xlu0 %1247
  %v1250 = vadd.f32 %v1232, %v1248
  %v1251 = vtanh.pop %v1250
  %v1252 = vsub.f32 1.0, %v1240
  %1254 = vrot.lane.b32.xlu0 %v1251, 96
  %v1255 = vpop.permute.xlu0 %1254
  %v1257 = vmul.f32 %v1252, %v1255
  %v1258 = vmul.f32 %v1240, 0.0
  %v1259 = vadd.f32 %v1257, %v1258
  %1261 = vrot.lane.b32.xlu0 %v1259, 96
  %v1262 = vpop.permute.xlu0 %1261
  %1264 = vst.msk [vmem:[%s16] sm:$0xff] %vm486, %v1262
  %1266 = vset.pattern.permute.xlu0 0
  %1267 = vperm.xlu0 %1266, %v865
  %v1268 = vpop.permute.xlu0 %1267
  %v1270 = vmul.f32 %v986, %v1268
  %1272 = vrot.lane.b32.xlu0 %v1270, 64
  %v1273 = vpop.permute.xlu0 %1272
  %v1274 = vsel %vm661, %v1273, 0
  %1276 = vmatprep.subr.mxu0 %v66
  %1277 = vmatpush1.msra.mxu0 %v65
  %1278 = vmatprep.subr.mxu0 %v68
  %1279 = vmatpush1.msra.mxu0 %v67
  %1280 = vmatprep.subr.mxu0 %v70
  %1281 = vmatpush1.msra.mxu0 %v69
  %1282 = vmatprep.subr.mxu0 %v72
  %1283 = vmatpush1.msra.mxu0 %v71
  %1284 = vmatprep.subr.mxu0 %v74
  %1285 = vmatpush1.msra.mxu0 %v73
  %1286 = vmatprep.subr.mxu0 %v76
  %1287 = vmatpush1.msra.mxu0 %v75
  %1288 = vmatprep.subr.mxu0 %v78
  %1289 = vmatpush1.msra.mxu0 %v77
  %1290 = vmatprep.subr.mxu0 %v80
  %1291 = vmatpush1.msra.mxu0 %v79
  %1292 = vmatprep.subr.mxu0 0.0
  %1293 = vmatpush1.msra.mxu0 0.0
  %1294 = vmatprep.subr.mxu0 0.0
  %1295 = vmatpush1.msra.mxu0 0.0
  %1296 = vmatprep.subr.mxu0 0.0
  %1297 = vmatpush1.msra.mxu0 0.0
  %1298 = vmatprep.subr.mxu0 0.0
  %1299 = vmatpush1.msra.mxu0 0.0
  %1300 = vmatprep.subr.mxu0 0.0
  %1301 = vmatpush1.msra.mxu0 0.0
  %1302 = vmatprep.subr.mxu0 0.0
  %1303 = vmatpush1.msra.mxu0 0.0
  %1304 = vmatprep.subr.mxu0 0.0
  %1305 = vmatpush1.msra.mxu0 0.0
  %1306 = vmatprep.subr.mxu0 0.0
  %1307 = vmatpush1.msra.mxu0 0.0
  %1308 = vmatprep.subr.mxu0 0.0
  %1309 = vmatpush1.msra.mxu0 0.0
  %1310 = vmatprep.subr.mxu0 0.0
  %1311 = vmatpush1.msra.mxu0 0.0
  %1312 = vmatprep.subr.mxu0 0.0
  %1313 = vmatpush1.msra.mxu0 0.0
  %1314 = vmatprep.subr.mxu0 0.0
  %1315 = vmatpush1.msra.mxu0 0.0
  %1316 = vmatprep.subr.mxu0 0.0
  %1317 = vmatpush1.msra.mxu0 0.0
  %1318 = vmatprep.subr.mxu0 0.0
  %1319 = vmatpush1.msra.mxu0 0.0
  %1320 = vmatprep.subr.mxu0 0.0
  %1321 = vmatpush1.msra.mxu0 0.0
  %1322 = vmatprep.subr.mxu0 0.0
  %1323 = vmatpush1.msra.mxu0 0.0
  %1324 = vmatprep.subr.mxu0 0.0
  %1325 = vmatpush1.msra.mxu0 0.0
  %1326 = vmatprep.subr.mxu0 0.0
  %1327 = vmatpush1.msra.mxu0 0.0
  %1328 = vmatprep.subr.mxu0 0.0
  %1329 = vmatpush1.msra.mxu0 0.0
  %1330 = vmatprep.subr.mxu0 0.0
  %1331 = vmatpush1.msra.mxu0 0.0
  %1332 = vmatprep.subr.mxu0 0.0
  %1333 = vmatpush1.msra.mxu0 0.0
  %1334 = vmatprep.subr.mxu0 0.0
  %1335 = vmatpush1.msra.mxu0 0.0
  %1336 = vmatprep.subr.mxu0 0.0
  %1337 = vmatpush1.msra.mxu0 0.0
  %1338 = vmatprep.subr.mxu0 0.0
  %1339 = vmatpush1.msra.mxu0 0.0
  %1340 = vmatprep.mubr.f32.mxu0 0.0
  %1341 = vmatmul.mubr.f32.gmra.mrb[0].mxu0 %v1274
  %v1342 = vpop.f32.mrb[0].mxu0
  %v1343 = vadd.f32 %v886, %v1342
  %v1344 = vpop.f32.mrb[0].mxu0
  %v1345 = vadd.f32 %v890, %v1344
  %1346 = vdwg.mxu0
  %v1347 = vld [vmem:[#allocation2 + $0x10] sm:$0xff]
  %v1348 = vld [vmem:[#allocation2 + $0x18] sm:$0xff]
  %v1349 = vadd.f32 %v1347, %v1343
  %v1350 = vxor.u32 %v1349, 2147483648
  %v1351 = vmul.f32 %v1350, 1.442695
  %v1352 = vpow.pop %v1351
  %v1353 = vadd.f32 %v1352, 1.0
  %v1354 = vrcp.pop %v1353
  %v1355 = vmul.f32 1.0, %v1354
  %v1356 = vmul.f32 %v1355, %v1345
  %v1357 = vadd.f32 %v1348, %v1356
  %v1358 = vtanh.pop %v1357
  %v1359 = vsub.f32 1.0, %v1355
  %1361 = vrot.lane.b32.xlu0 %v1358, 64
  %v1362 = vpop.permute.xlu0 %1361
  %v1364 = vmul.f32 %v1359, %v1362
  %v1365 = vmul.f32 %v1355, %v1270
  %v1366 = vadd.f32 %v1364, %v1365
  %1368 = vrot.lane.b32.xlu0 %v1366, 64
  %v1369 = vpop.permute.xlu0 %1368
  %v1370 = vsel %vm661, %v1369, 0
  %1372 = vmatprep.subr.mxu0 0.0
  %1373 = vmatpush1.msra.mxu0 %v82
  %1374 = vmatprep.subr.mxu0 0.0
  %1375 = vmatpush1.msra.mxu0 %v83
  %1376 = vmatprep.subr.mxu0 0.0
  %1377 = vmatpush1.msra.mxu0 %v84
  %1378 = vmatprep.subr.mxu0 0.0
  %1379 = vmatpush1.msra.mxu0 %v85
  %1380 = vmatprep.subr.mxu0 0.0
  %1381 = vmatpush1.msra.mxu0 %v86
  %1382 = vmatprep.subr.mxu0 0.0
  %1383 = vmatpush1.msra.mxu0 %v87
  %1384 = vmatprep.subr.mxu0 0.0
  %1385 = vmatpush1.msra.mxu0 %v88
  %1386 = vmatprep.subr.mxu0 0.0
  %1387 = vmatpush1.msra.mxu0 %v89
  %1388 = vmatprep.subr.mxu0 0.0
  %1389 = vmatpush1.msra.mxu0 0.0
  %1390 = vmatprep.subr.mxu0 0.0
  %1391 = vmatpush1.msra.mxu0 0.0
  %1392 = vmatprep.subr.mxu0 0.0
  %1393 = vmatpush1.msra.mxu0 0.0
  %1394 = vmatprep.subr.mxu0 0.0
  %1395 = vmatpush1.msra.mxu0 0.0
  %1396 = vmatprep.subr.mxu0 0.0
  %1397 = vmatpush1.msra.mxu0 0.0
  %1398 = vmatprep.subr.mxu0 0.0
  %1399 = vmatpush1.msra.mxu0 0.0
  %1400 = vmatprep.subr.mxu0 0.0
  %1401 = vmatpush1.msra.mxu0 0.0
  %1402 = vmatprep.subr.mxu0 0.0
  %1403 = vmatpush1.msra.mxu0 0.0
  %1404 = vmatprep.subr.mxu0 0.0
  %1405 = vmatpush1.msra.mxu0 0.0
  %1406 = vmatprep.subr.mxu0 0.0
  %1407 = vmatpush1.msra.mxu0 0.0
  %1408 = vmatprep.subr.mxu0 0.0
  %1409 = vmatpush1.msra.mxu0 0.0
  %1410 = vmatprep.subr.mxu0 0.0
  %1411 = vmatpush1.msra.mxu0 0.0
  %1412 = vmatprep.subr.mxu0 0.0
  %1413 = vmatpush1.msra.mxu0 0.0
  %1414 = vmatprep.subr.mxu0 0.0
  %1415 = vmatpush1.msra.mxu0 0.0
  %1416 = vmatprep.subr.mxu0 0.0
  %1417 = vmatpush1.msra.mxu0 0.0
  %1418 = vmatprep.subr.mxu0 0.0
  %1419 = vmatpush1.msra.mxu0 0.0
  %1420 = vmatprep.subr.mxu0 0.0
  %1421 = vmatpush1.msra.mxu0 0.0
  %1422 = vmatprep.subr.mxu0 0.0
  %1423 = vmatpush1.msra.mxu0 0.0
  %1424 = vmatprep.subr.mxu0 0.0
  %1425 = vmatpush1.msra.mxu0 0.0
  %1426 = vmatprep.subr.mxu0 0.0
  %1427 = vmatpush1.msra.mxu0 0.0
  %1428 = vmatprep.subr.mxu0 0.0
  %1429 = vmatpush1.msra.mxu0 0.0
  %1430 = vmatprep.subr.mxu0 0.0
  %1431 = vmatpush1.msra.mxu0 0.0
  %1432 = vmatprep.subr.mxu0 0.0
  %1433 = vmatpush1.msra.mxu0 0.0
  %1434 = vmatprep.subr.mxu0 0.0
  %1435 = vmatpush1.msra.mxu0 0.0
  %1436 = vmatprep.mubr.f32.mxu0 0.0
  %1437 = vmatmul.mubr.f32.gmra.mrb[0].mxu0 %v1370
  %v1438 = vpop.f32.mrb[0].mxu0
  %v1439 = vadd.f32 %v991, %v1438
  %v1440 = vpop.f32.mrb[0].mxu0
  %1441 = vdwg.mxu0
  %v1442 = vxor.u32 %v1439, 2147483648
  %v1443 = vmul.f32 %v1442, 1.442695
  %v1444 = vpow.pop %v1443
  %v1445 = vadd.f32 %v1444, 1.0
  %v1446 = vrcp.pop %v1445
  %v1447 = vmul.f32 1.0, %v1446
  %1449 = vrot.lane.b32.xlu0 %v1447, 112
  %v1450 = vpop.permute.xlu0 %1449
  %v1452 = vmul.f32 %v1439, %v1450
  %v1453 = vld [vmem:[#allocation3 + $0x8] sm:$0xff]
  %v1455 = vsel %vm145, %v1452, 0
  %1457 = vmatprep.subr.mxu0 0.0
  %1458 = vmatpush1.msra.mxu0 %v91
  %1459 = vmatprep.subr.mxu0 0.0
  %1460 = vmatpush1.msra.mxu0 %v92
  %1461 = vmatprep.subr.mxu0 0.0
  %1462 = vmatpush1.msra.mxu0 0.0
  %1463 = vmatprep.subr.mxu0 0.0
  %1464 = vmatpush1.msra.mxu0 0.0
  %1465 = vmatprep.subr.mxu0 0.0
  %1466 = vmatpush1.msra.mxu0 0.0
  %1467 = vmatprep.subr.mxu0 0.0
  %1468 = vmatpush1.msra.mxu0 0.0
  %1469 = vmatprep.subr.mxu0 0.0
  %1470 = vmatpush1.msra.mxu0 0.0
  %1471 = vmatprep.subr.mxu0 0.0
  %1472 = vmatpush1.msra.mxu0 0.0
  %1473 = vmatprep.subr.mxu0 0.0
  %1474 = vmatpush1.msra.mxu0 0.0
  %1475 = vmatprep.subr.mxu0 0.0
  %1476 = vmatpush1.msra.mxu0 0.0
  %1477 = vmatprep.subr.mxu0 0.0
  %1478 = vmatpush1.msra.mxu0 0.0
  %1479 = vmatprep.subr.mxu0 0.0
  %1480 = vmatpush1.msra.mxu0 0.0
  %1481 = vmatprep.subr.mxu0 0.0
  %1482 = vmatpush1.msra.mxu0 0.0
  %1483 = vmatprep.subr.mxu0 0.0
  %1484 = vmatpush1.msra.mxu0 0.0
  %1485 = vmatprep.subr.mxu0 0.0
  %1486 = vmatpush1.msra.mxu0 0.0
  %1487 = vmatprep.subr.mxu0 0.0
  %1488 = vmatpush1.msra.mxu0 0.0
  %1489 = vmatprep.subr.mxu0 0.0
  %1490 = vmatpush1.msra.mxu0 0.0
  %1491 = vmatprep.subr.mxu0 0.0
  %1492 = vmatpush1.msra.mxu0 0.0
  %1493 = vmatprep.subr.mxu0 0.0
  %1494 = vmatpush1.msra.mxu0 0.0
  %1495 = vmatprep.subr.mxu0 0.0
  %1496 = vmatpush1.msra.mxu0 0.0
  %1497 = vmatprep.subr.mxu0 0.0
  %1498 = vmatpush1.msra.mxu0 0.0
  %1499 = vmatprep.subr.mxu0 0.0
  %1500 = vmatpush1.msra.mxu0 0.0
  %1501 = vmatprep.subr.mxu0 0.0
  %1502 = vmatpush1.msra.mxu0 0.0
  %1503 = vmatprep.subr.mxu0 0.0
  %1504 = vmatpush1.msra.mxu0 0.0
  %1505 = vmatprep.subr.mxu0 0.0
  %1506 = vmatpush1.msra.mxu0 0.0
  %1507 = vmatprep.subr.mxu0 0.0
  %1508 = vmatpush1.msra.mxu0 0.0
  %1509 = vmatprep.subr.mxu0 0.0
  %1510 = vmatpush1.msra.mxu0 0.0
  %1511 = vmatprep.subr.mxu0 0.0
  %1512 = vmatpush1.msra.mxu0 0.0
  %1513 = vmatprep.subr.mxu0 0.0
  %1514 = vmatpush1.msra.mxu0 0.0
  %1515 = vmatprep.subr.mxu0 0.0
  %1516 = vmatpush1.msra.mxu0 0.0
  %1517 = vmatprep.subr.mxu0 0.0
  %1518 = vmatpush1.msra.mxu0 0.0
  %1519 = vmatprep.subr.mxu0 0.0
  %1520 = vmatpush1.msra.mxu0 0.0
  %1521 = vmatprep.mubr.f32.mxu0 0.0
  %1522 = vmatmul.mubr.f32.gmra.mrb[0].mxu0 %v1455
  %v1523 = vpop.f32.mrb[0].mxu0
  %v1524 = vadd.f32 %v1453, %v1523
  %v1525 = vpop.f32.mrb[0].mxu0
  %1526 = vdwg.mxu0
  %v1527 = vmax.f32 %v1524, 0.0
  %1528 = vrot.lane.b32.xlu0 %v1259, 112
  %v1529 = vpop.permute.xlu0 %1528
  %v1531 = vsel %vm145, %v1527, %v1529
  %v1533 = vsel %vm1161, %v1531, 0
  %1535 = vmatprep.subr.mxu0 0.0
  %1536 = vmatpush1.msra.mxu0 %v96
  %1537 = vmatprep.subr.mxu0 0.0
  %1538 = vmatpush1.msra.mxu0 %v97
  %1539 = vmatprep.subr.mxu0 0.0
  %1540 = vmatpush1.msra.mxu0 %v98
  %1541 = vmatprep.subr.mxu0 0.0
  %1542 = vmatpush1.msra.mxu0 %v99
  %1543 = vmatprep.subr.mxu0 0.0
  %1544 = vmatpush1.msra.mxu0 %v100
  %1545 = vmatprep.subr.mxu0 0.0
  %1546 = vmatpush1.msra.mxu0 %v101
  %1547 = vmatprep.subr.mxu0 0.0
  %1548 = vmatpush1.msra.mxu0 0.0
  %1549 = vmatprep.subr.mxu0 0.0
  %1550 = vmatpush1.msra.mxu0 0.0
  %1551 = vmatprep.subr.mxu0 0.0
  %1552 = vmatpush1.msra.mxu0 0.0
  %1553 = vmatprep.subr.mxu0 0.0
  %1554 = vmatpush1.msra.mxu0 0.0
  %1555 = vmatprep.subr.mxu0 0.0
  %1556 = vmatpush1.msra.mxu0 0.0
  %1557 = vmatprep.subr.mxu0 0.0
  %1558 = vmatpush1.msra.mxu0 0.0
  %1559 = vmatprep.subr.mxu0 0.0
  %1560 = vmatpush1.msra.mxu0 0.0
  %1561 = vmatprep.subr.mxu0 0.0
  %1562 = vmatpush1.msra.mxu0 0.0
  %1563 = vmatprep.subr.mxu0 0.0
  %1564 = vmatpush1.msra.mxu0 0.0
  %1565 = vmatprep.subr.mxu0 0.0
  %1566 = vmatpush1.msra.mxu0 0.0
  %1567 = vmatprep.subr.mxu0 0.0
  %1568 = vmatpush1.msra.mxu0 0.0
  %1569 = vmatprep.subr.mxu0 0.0
  %1570 = vmatpush1.msra.mxu0 0.0
  %1571 = vmatprep.subr.mxu0 0.0
  %1572 = vmatpush1.msra.mxu0 0.0
  %1573 = vmatprep.subr.mxu0 0.0
  %1574 = vmatpush1.msra.mxu0 0.0
  %1575 = vmatprep.subr.mxu0 0.0
  %1576 = vmatpush1.msra.mxu0 0.0
  %1577 = vmatprep.subr.mxu0 0.0
  %1578 = vmatpush1.msra.mxu0 0.0
  %1579 = vmatprep.subr.mxu0 0.0
  %1580 = vmatpush1.msra.mxu0 0.0
  %1581 = vmatprep.subr.mxu0 0.0
  %1582 = vmatpush1.msra.mxu0 0.0
  %1583 = vmatprep.subr.mxu0 0.0
  %1584 = vmatpush1.msra.mxu0 0.0
  %1585 = vmatprep.subr.mxu0 0.0
  %1586 = vmatpush1.msra.mxu0 0.0
  %1587 = vmatprep.subr.mxu0 0.0
  %1588 = vmatpush1.msra.mxu0 0.0
  %1589 = vmatprep.subr.mxu0 0.0
  %1590 = vmatpush1.msra.mxu0 0.0
  %1591 = vmatprep.subr.mxu0 0.0
  %1592 = vmatpush1.msra.mxu0 0.0
  %1593 = vmatprep.subr.mxu0 0.0
  %1594 = vmatpush1.msra.mxu0 0.0
  %1595 = vmatprep.subr.mxu0 0.0
  %1596 = vmatpush1.msra.mxu0 0.0
  %1597 = vmatprep.subr.mxu0 0.0
  %1598 = vmatpush1.msra.mxu0 0.0
  %1599 = vmatprep.mubr.f32.mxu0 0.0
  %1600 = vmatmul.mubr.f32.gmra.mrb[0].mxu0 %v1533
  %v1601 = vpop.f32.mrb[0].mxu0
  %v1602 = vadd.f32 %v1159, %v1601
  %v1603 = vpop.f32.mrb[0].mxu0
  %1604 = vdwg.mxu0
  %v1605 = vxor.u32 %v1602, 2147483648
  %v1606 = vmul.f32 %v1605, 1.442695
  %v1607 = vpow.pop %v1606
  %v1608 = vadd.f32 %v1607, 1.0
  %v1609 = vrcp.pop %v1608
  %v1610 = vmul.f32 1.0, %v1609
  %1612 = vrot.lane.b32.xlu0 %v1602, 32
  %v1613 = vpop.permute.xlu0 %1612
  %v1615 = vmul.f32 %v1610, %v1613
  %1617 = vrot.lane.b32.xlu0 %v1615, 64
  %v1618 = vpop.permute.xlu0 %1617
  %v1620 = vadd.f32 %v1602, %v1618
  %v1621 = vtanh.pop %v1620
  %v1622 = vsub.f32 1.0, %v1610
  %1624 = vrot.lane.b32.xlu0 %v1621, 96
  %v1625 = vpop.permute.xlu0 %1624
  %v1627 = vmul.f32 %v1622, %v1625
  %v1628 = vmul.f32 %v1610, %v1259
  %v1629 = vadd.f32 %v1627, %v1628
  %1631 = vrot.lane.b32.xlu0 %v1629, 96
  %v1632 = vpop.permute.xlu0 %1631
  %1634 = vst.msk [vmem:[%s16 + $0x8] sm:$0xff] %vm486, %v1632
  %1636 = vset.pattern.permute.xlu0 0
  %1637 = vperm.xlu0 %1636, %v866
  %v1638 = vpop.permute.xlu0 %1637
  %v1640 = vmul.f32 %v1366, %v1638
  %1642 = vrot.lane.b32.xlu0 %v1640, 64
  %v1643 = vpop.permute.xlu0 %1642
  %v1644 = vsel %vm661, %v1643, 0
  %1646 = vmatprep.subr.mxu0 %v66
  %1647 = vmatpush1.msra.mxu0 %v65
  %1648 = vmatprep.subr.mxu0 %v68
  %1649 = vmatpush1.msra.mxu0 %v67
  %1650 = vmatprep.subr.mxu0 %v70
  %1651 = vmatpush1.msra.mxu0 %v69
  %1652 = vmatprep.subr.mxu0 %v72
  %1653 = vmatpush1.msra.mxu0 %v71
  %1654 = vmatprep.subr.mxu0 %v74
  %1655 = vmatpush1.msra.mxu0 %v73
  %1656 = vmatprep.subr.mxu0 %v76
  %1657 = vmatpush1.msra.mxu0 %v75
  %1658 = vmatprep.subr.mxu0 %v78
  %1659 = vmatpush1.msra.mxu0 %v77
  %1660 = vmatprep.subr.mxu0 %v80
  %1661 = vmatpush1.msra.mxu0 %v79
  %1662 = vmatprep.subr.mxu0 0.0
  %1663 = vmatpush1.msra.mxu0 0.0
  %1664 = vmatprep.subr.mxu0 0.0
  %1665 = vmatpush1.msra.mxu0 0.0
  %1666 = vmatprep.subr.mxu0 0.0
  %1667 = vmatpush1.msra.mxu0 0.0
  %1668 = vmatprep.subr.mxu0 0.0
  %1669 = vmatpush1.msra.mxu0 0.0
  %1670 = vmatprep.subr.mxu0 0.0
  %1671 = vmatpush1.msra.mxu0 0.0
  %1672 = vmatprep.subr.mxu0 0.0
  %1673 = vmatpush1.msra.mxu0 0.0
  %1674 = vmatprep.subr.mxu0 0.0
  %1675 = vmatpush1.msra.mxu0 0.0
  %1676 = vmatprep.subr.mxu0 0.0
  %1677 = vmatpush1.msra.mxu0 0.0
  %1678 = vmatprep.subr.mxu0 0.0
  %1679 = vmatpush1.msra.mxu0 0.0
  %1680 = vmatprep.subr.mxu0 0.0
  %1681 = vmatpush1.msra.mxu0 0.0
  %1682 = vmatprep.subr.mxu0 0.0
  %1683 = vmatpush1.msra.mxu0 0.0
  %1684 = vmatprep.subr.mxu0 0.0
  %1685 = vmatpush1.msra.mxu0 0.0
  %1686 = vmatprep.subr.mxu0 0.0
  %1687 = vmatpush1.msra.mxu0 0.0
  %1688 = vmatprep.subr.mxu0 0.0
  %1689 = vmatpush1.msra.mxu0 0.0
  %1690 = vmatprep.subr.mxu0 0.0
  %1691 = vmatpush1.msra.mxu0 0.0
  %1692 = vmatprep.subr.mxu0 0.0
  %1693 = vmatpush1.msra.mxu0 0.0
  %1694 = vmatprep.subr.mxu0 0.0
  %1695 = vmatpush1.msra.mxu0 0.0
  %1696 = vmatprep.subr.mxu0 0.0
  %1697 = vmatpush1.msra.mxu0 0.0
  %1698 = vmatprep.subr.mxu0 0.0
  %1699 = vmatpush1.msra.mxu0 0.0
  %1700 = vmatprep.subr.mxu0 0.0
  %1701 = vmatpush1.msra.mxu0 0.0
  %1702 = vmatprep.subr.mxu0 0.0
  %1703 = vmatpush1.msra.mxu0 0.0
  %1704 = vmatprep.subr.mxu0 0.0
  %1705 = vmatpush1.msra.mxu0 0.0
  %1706 = vmatprep.subr.mxu0 0.0
  %1707 = vmatpush1.msra.mxu0 0.0
  %1708 = vmatprep.subr.mxu0 0.0
  %1709 = vmatpush1.msra.mxu0 0.0
  %1710 = vmatprep.mubr.f32.mxu0 0.0
  %1711 = vmatmul.mubr.f32.gmra.mrb[0].mxu0 %v1644
  %v1712 = vpop.f32.mrb[0].mxu0
  %v1713 = vadd.f32 %v886, %v1712
  %v1714 = vpop.f32.mrb[0].mxu0
  %v1715 = vadd.f32 %v890, %v1714
  %1716 = vdwg.mxu0
  %v1717 = vld [vmem:[#allocation2 + $0x20] sm:$0xff]
  %v1718 = vld [vmem:[#allocation2 + $0x28] sm:$0xff]
  %v1719 = vadd.f32 %v1717, %v1713
  %v1720 = vxor.u32 %v1719, 2147483648
  %v1721 = vmul.f32 %v1720, 1.442695
  %v1722 = vpow.pop %v1721
  %v1723 = vadd.f32 %v1722, 1.0
  %v1724 = vrcp.pop %v1723
  %v1725 = vmul.f32 1.0, %v1724
  %v1726 = vmul.f32 %v1725, %v1715
  %v1727 = vadd.f32 %v1718, %v1726
  %v1728 = vtanh.pop %v1727
  %v1729 = vsub.f32 1.0, %v1725
  %1731 = vrot.lane.b32.xlu0 %v1728, 64
  %v1732 = vpop.permute.xlu0 %1731
  %v1734 = vmul.f32 %v1729, %v1732
  %v1735 = vmul.f32 %v1725, %v1640
  %v1736 = vadd.f32 %v1734, %v1735
  %1738 = vrot.lane.b32.xlu0 %v1736, 64
  %v1739 = vpop.permute.xlu0 %1738
  %v1740 = vsel %vm661, %v1739, 0
  %1742 = vmatprep.subr.mxu0 0.0
  %1743 = vmatpush1.msra.mxu0 %v82
  %1744 = vmatprep.subr.mxu0 0.0
  %1745 = vmatpush1.msra.mxu0 %v83
  %1746 = vmatprep.subr.mxu0 0.0
  %1747 = vmatpush1.msra.mxu0 %v84
  %1748 = vmatprep.subr.mxu0 0.0
  %1749 = vmatpush1.msra.mxu0 %v85
  %1750 = vmatprep.subr.mxu0 0.0
  %1751 = vmatpush1.msra.mxu0 %v86
  %1752 = vmatprep.subr.mxu0 0.0
  %1753 = vmatpush1.msra.mxu0 %v87
  %1754 = vmatprep.subr.mxu0 0.0
  %1755 = vmatpush1.msra.mxu0 %v88
  %1756 = vmatprep.subr.mxu0 0.0
  %1757 = vmatpush1.msra.mxu0 %v89
  %1758 = vmatprep.subr.mxu0 0.0
  %1759 = vmatpush1.msra.mxu0 0.0
  %1760 = vmatprep.subr.mxu0 0.0
  %1761 = vmatpush1.msra.mxu0 0.0
  %1762 = vmatprep.subr.mxu0 0.0
  %1763 = vmatpush1.msra.mxu0 0.0
  %1764 = vmatprep.subr.mxu0 0.0
  %1765 = vmatpush1.msra.mxu0 0.0
  %1766 = vmatprep.subr.mxu0 0.0
  %1767 = vmatpush1.msra.mxu0 0.0
  %1768 = vmatprep.subr.mxu0 0.0
  %1769 = vmatpush1.msra.mxu0 0.0
  %1770 = vmatprep.subr.mxu0 0.0
  %1771 = vmatpush1.msra.mxu0 0.0
  %1772 = vmatprep.subr.mxu0 0.0
  %1773 = vmatpush1.msra.mxu0 0.0
  %1774 = vmatprep.subr.mxu0 0.0
  %1775 = vmatpush1.msra.mxu0 0.0
  %1776 = vmatprep.subr.mxu0 0.0
  %1777 = vmatpush1.msra.mxu0 0.0
  %1778 = vmatprep.subr.mxu0 0.0
  %1779 = vmatpush1.msra.mxu0 0.0
  %1780 = vmatprep.subr.mxu0 0.0
  %1781 = vmatpush1.msra.mxu0 0.0
  %1782 = vmatprep.subr.mxu0 0.0
  %1783 = vmatpush1.msra.mxu0 0.0
  %1784 = vmatprep.subr.mxu0 0.0
  %1785 = vmatpush1.msra.mxu0 0.0
  %1786 = vmatprep.subr.mxu0 0.0
  %1787 = vmatpush1.msra.mxu0 0.0
  %1788 = vmatprep.subr.mxu0 0.0
  %1789 = vmatpush1.msra.mxu0 0.0
  %1790 = vmatprep.subr.mxu0 0.0
  %1791 = vmatpush1.msra.mxu0 0.0
  %1792 = vmatprep.subr.mxu0 0.0
  %1793 = vmatpush1.msra.mxu0 0.0
  %1794 = vmatprep.subr.mxu0 0.0
  %1795 = vmatpush1.msra.mxu0 0.0
  %1796 = vmatprep.subr.mxu0 0.0
  %1797 = vmatpush1.msra.mxu0 0.0
  %1798 = vmatprep.subr.mxu0 0.0
  %1799 = vmatpush1.msra.mxu0 0.0
  %1800 = vmatprep.subr.mxu0 0.0
  %1801 = vmatpush1.msra.mxu0 0.0
  %1802 = vmatprep.subr.mxu0 0.0
  %1803 = vmatpush1.msra.mxu0 0.0
  %1804 = vmatprep.subr.mxu0 0.0
  %1805 = vmatpush1.msra.mxu0 0.0
  %1806 = vmatprep.mubr.f32.mxu0 0.0
  %1807 = vmatmul.mubr.f32.gmra.mrb[0].mxu0 %v1740
  %v1808 = vpop.f32.mrb[0].mxu0
  %v1809 = vadd.f32 %v991, %v1808
  %v1810 = vpop.f32.mrb[0].mxu0
  %1811 = vdwg.mxu0
  %v1812 = vxor.u32 %v1809, 2147483648
  %v1813 = vmul.f32 %v1812, 1.442695
  %v1814 = vpow.pop %v1813
  %v1815 = vadd.f32 %v1814, 1.0
  %v1816 = vrcp.pop %v1815
  %v1817 = vmul.f32 1.0, %v1816
  %1819 = vrot.lane.b32.xlu0 %v1817, 112
  %v1820 = vpop.permute.xlu0 %1819
  %v1822 = vmul.f32 %v1809, %v1820
  %v1823 = vld [vmem:[#allocation3 + $0x10] sm:$0xff]
  %v1825 = vsel %vm145, %v1822, 0
  %1827 = vmatprep.subr.mxu0 0.0
  %1828 = vmatpush1.msra.mxu0 %v91
  %1829 = vmatprep.subr.mxu0 0.0
  %1830 = vmatpush1.msra.mxu0 %v92
  %1831 = vmatprep.subr.mxu0 0.0
  %1832 = vmatpush1.msra.mxu0 0.0
  %1833 = vmatprep.subr.mxu0 0.0
  %1834 = vmatpush1.msra.mxu0 0.0
  %1835 = vmatprep.subr.mxu0 0.0
  %1836 = vmatpush1.msra.mxu0 0.0
  %1837 = vmatprep.subr.mxu0 0.0
  %1838 = vmatpush1.msra.mxu0 0.0
  %1839 = vmatprep.subr.mxu0 0.0
  %1840 = vmatpush1.msra.mxu0 0.0
  %1841 = vmatprep.subr.mxu0 0.0
  %1842 = vmatpush1.msra.mxu0 0.0
  %1843 = vmatprep.subr.mxu0 0.0
  %1844 = vmatpush1.msra.mxu0 0.0
  %1845 = vmatprep.subr.mxu0 0.0
  %1846 = vmatpush1.msra.mxu0 0.0
  %1847 = vmatprep.subr.mxu0 0.0
  %1848 = vmatpush1.msra.mxu0 0.0
  %1849 = vmatprep.subr.mxu0 0.0
  %1850 = vmatpush1.msra.mxu0 0.0
  %1851 = vmatprep.subr.mxu0 0.0
  %1852 = vmatpush1.msra.mxu0 0.0
  %1853 = vmatprep.subr.mxu0 0.0
  %1854 = vmatpush1.msra.mxu0 0.0
  %1855 = vmatprep.subr.mxu0 0.0
  %1856 = vmatpush1.msra.mxu0 0.0
  %1857 = vmatprep.subr.mxu0 0.0
  %1858 = vmatpush1.msra.mxu0 0.0
  %1859 = vmatprep.subr.mxu0 0.0
  %1860 = vmatpush1.msra.mxu0 0.0
  %1861 = vmatprep.subr.mxu0 0.0
  %1862 = vmatpush1.msra.mxu0 0.0
  %1863 = vmatprep.subr.mxu0 0.0
  %1864 = vmatpush1.msra.mxu0 0.0
  %1865 = vmatprep.subr.mxu0 0.0
  %1866 = vmatpush1.msra.mxu0 0.0
  %1867 = vmatprep.subr.mxu0 0.0
  %1868 = vmatpush1.msra.mxu0 0.0
  %1869 = vmatprep.subr.mxu0 0.0
  %1870 = vmatpush1.msra.mxu0 0.0
  %1871 = vmatprep.subr.mxu0 0.0
  %1872 = vmatpush1.msra.mxu0 0.0
  %1873 = vmatprep.subr.mxu0 0.0
  %1874 = vmatpush1.msra.mxu0 0.0
  %1875 = vmatprep.subr.mxu0 0.0
  %1876 = vmatpush1.msra.mxu0 0.0
  %1877 = vmatprep.subr.mxu0 0.0
  %1878 = vmatpush1.msra.mxu0 0.0
  %1879 = vmatprep.subr.mxu0 0.0
  %1880 = vmatpush1.msra.mxu0 0.0
  %1881 = vmatprep.subr.mxu0 0.0
  %1882 = vmatpush1.msra.mxu0 0.0
  %1883 = vmatprep.subr.mxu0 0.0
  %1884 = vmatpush1.msra.mxu0 0.0
  %1885 = vmatprep.subr.mxu0 0.0
  %1886 = vmatpush1.msra.mxu0 0.0
  %1887 = vmatprep.subr.mxu0 0.0
  %1888 = vmatpush1.msra.mxu0 0.0
  %1889 = vmatprep.subr.mxu0 0.0
  %1890 = vmatpush1.msra.mxu0 0.0
  %1891 = vmatprep.mubr.f32.mxu0 0.0
  %1892 = vmatmul.mubr.f32.gmra.mrb[0].mxu0 %v1825
  %v1893 = vpop.f32.mrb[0].mxu0
  %v1894 = vadd.f32 %v1823, %v1893
  %v1895 = vpop.f32.mrb[0].mxu0
  %1896 = vdwg.mxu0
  %v1897 = vmax.f32 %v1894, 0.0
  %1898 = vrot.lane.b32.xlu0 %v1629, 112
  %v1899 = vpop.permute.xlu0 %1898
  %v1901 = vsel %vm145, %v1897, %v1899
  %v1903 = vsel %vm1161, %v1901, 0
  %1905 = vmatprep.subr.mxu0 0.0
  %1906 = vmatpush1.msra.mxu0 %v96
  %1907 = vmatprep.subr.mxu0 0.0
  %1908 = vmatpush1.msra.mxu0 %v97
  %1909 = vmatprep.subr.mxu0 0.0
  %1910 = vmatpush1.msra.mxu0 %v98
  %1911 = vmatprep.subr.mxu0 0.0
  %1912 = vmatpush1.msra.mxu0 %v99
  %1913 = vmatprep.subr.mxu0 0.0
  %1914 = vmatpush1.msra.mxu0 %v100
  %1915 = vmatprep.subr.mxu0 0.0
  %1916 = vmatpush1.msra.mxu0 %v101
  %1917 = vmatprep.subr.mxu0 0.0
  %1918 = vmatpush1.msra.mxu0 0.0
  %1919 = vmatprep.subr.mxu0 0.0
  %1920 = vmatpush1.msra.mxu0 0.0
  %1921 = vmatprep.subr.mxu0 0.0
  %1922 = vmatpush1.msra.mxu0 0.0
  %1923 = vmatprep.subr.mxu0 0.0
  %1924 = vmatpush1.msra.mxu0 0.0
  %1925 = vmatprep.subr.mxu0 0.0
  %1926 = vmatpush1.msra.mxu0 0.0
  %1927 = vmatprep.subr.mxu0 0.0
  %1928 = vmatpush1.msra.mxu0 0.0
  %1929 = vmatprep.subr.mxu0 0.0
  %1930 = vmatpush1.msra.mxu0 0.0
  %1931 = vmatprep.subr.mxu0 0.0
  %1932 = vmatpush1.msra.mxu0 0.0
  %1933 = vmatprep.subr.mxu0 0.0
  %1934 = vmatpush1.msra.mxu0 0.0
  %1935 = vmatprep.subr.mxu0 0.0
  %1936 = vmatpush1.msra.mxu0 0.0
  %1937 = vmatprep.subr.mxu0 0.0
  %1938 = vmatpush1.msra.mxu0 0.0
  %1939 = vmatprep.subr.mxu0 0.0
  %1940 = vmatpush1.msra.mxu0 0.0
  %1941 = vmatprep.subr.mxu0 0.0
  %1942 = vmatpush1.msra.mxu0 0.0
  %1943 = vmatprep.subr.mxu0 0.0
  %1944 = vmatpush1.msra.mxu0 0.0
  %1945 = vmatprep.subr.mxu0 0.0
  %1946 = vmatpush1.msra.mxu0 0.0
  %1947 = vmatprep.subr.mxu0 0.0
  %1948 = vmatpush1.msra.mxu0 0.0
  %1949 = vmatprep.subr.mxu0 0.0
  %1950 = vmatpush1.msra.mxu0 0.0
  %1951 = vmatprep.subr.mxu0 0.0
  %1952 = vmatpush1.msra.mxu0 0.0
  %1953 = vmatprep.subr.mxu0 0.0
  %1954 = vmatpush1.msra.mxu0 0.0
  %1955 = vmatprep.subr.mxu0 0.0
  %1956 = vmatpush1.msra.mxu0 0.0
  %1957 = vmatprep.subr.mxu0 0.0
  %1958 = vmatpush1.msra.mxu0 0.0
  %1959 = vmatprep.subr.mxu0 0.0
  %1960 = vmatpush1.msra.mxu0 0.0
  %1961 = vmatprep.subr.mxu0 0.0
  %1962 = vmatpush1.msra.mxu0 0.0
  %1963 = vmatprep.subr.mxu0 0.0
  %1964 = vmatpush1.msra.mxu0 0.0
  %1965 = vmatprep.subr.mxu0 0.0
  %1966 = vmatpush1.msra.mxu0 0.0
  %1967 = vmatprep.subr.mxu0 0.0
  %1968 = vmatpush1.msra.mxu0 0.0
  %1969 = vmatprep.mubr.f32.mxu0 0.0
  %1970 = vmatmul.mubr.f32.gmra.mrb[0].mxu0 %v1903
  %v1971 = vpop.f32.mrb[0].mxu0
  %v1972 = vadd.f32 %v1159, %v1971
  %v1973 = vpop.f32.mrb[0].mxu0
  %1974 = vdwg.mxu0
  %v1975 = vxor.u32 %v1972, 2147483648
  %v1976 = vmul.f32 %v1975, 1.442695
  %v1977 = vpow.pop %v1976
  %v1978 = vadd.f32 %v1977, 1.0
  %v1979 = vrcp.pop %v1978
  %v1980 = vmul.f32 1.0, %v1979
  %1982 = vrot.lane.b32.xlu0 %v1972, 32
  %v1983 = vpop.permute.xlu0 %1982
  %v1985 = vmul.f32 %v1980, %v1983
  %1987 = vrot.lane.b32.xlu0 %v1985, 64
  %v1988 = vpop.permute.xlu0 %1987
  %v1990 = vadd.f32 %v1972, %v1988
  %v1991 = vtanh.pop %v1990
  %v1992 = vsub.f32 1.0, %v1980
  %1994 = vrot.lane.b32.xlu0 %v1991, 96
  %v1995 = vpop.permute.xlu0 %1994
  %v1997 = vmul.f32 %v1992, %v1995
  %v1998 = vmul.f32 %v1980, %v1629
  %v1999 = vadd.f32 %v1997, %v1998
  %2001 = vrot.lane.b32.xlu0 %v1999, 96
  %v2002 = vpop.permute.xlu0 %2001
  %2004 = vst.msk [vmem:[%s16 + $0x10] sm:$0xff] %vm486, %v2002
  %2006 = vset.pattern.permute.xlu0 0
  %2007 = vperm.xlu0 %2006, %v867
  %v2008 = vpop.permute.xlu0 %2007
  %v2010 = vmul.f32 %v1736, %v2008
  %2012 = vrot.lane.b32.xlu0 %v2010, 64
  %v2013 = vpop.permute.xlu0 %2012
  %v2014 = vsel %vm661, %v2013, 0
  %2016 = vmatprep.subr.mxu0 %v66
  %2017 = vmatpush1.msra.mxu0 %v65
  %2018 = vmatprep.subr.mxu0 %v68
  %2019 = vmatpush1.msra.mxu0 %v67
  %2020 = vmatprep.subr.mxu0 %v70
  %2021 = vmatpush1.msra.mxu0 %v69
  %2022 = vmatprep.subr.mxu0 %v72
  %2023 = vmatpush1.msra.mxu0 %v71
  %2024 = vmatprep.subr.mxu0 %v74
  %2025 = vmatpush1.msra.mxu0 %v73
  %2026 = vmatprep.subr.mxu0 %v76
  %2027 = vmatpush1.msra.mxu0 %v75
  %2028 = vmatprep.subr.mxu0 %v78
  %2029 = vmatpush1.msra.mxu0 %v77
  %2030 = vmatprep.subr.mxu0 %v80
  %2031 = vmatpush1.msra.mxu0 %v79
  %2032 = vmatprep.subr.mxu0 0.0
  %2033 = vmatpush1.msra.mxu0 0.0
  %2034 = vmatprep.subr.mxu0 0.0
  %2035 = vmatpush1.msra.mxu0 0.0
  %2036 = vmatprep.subr.mxu0 0.0
  %2037 = vmatpush1.msra.mxu0 0.0
  %2038 = vmatprep.subr.mxu0 0.0
  %2039 = vmatpush1.msra.mxu0 0.0
  %2040 = vmatprep.subr.mxu0 0.0
  %2041 = vmatpush1.msra.mxu0 0.0
  %2042 = vmatprep.subr.mxu0 0.0
  %2043 = vmatpush1.msra.mxu0 0.0
  %2044 = vmatprep.subr.mxu0 0.0
  %2045 = vmatpush1.msra.mxu0 0.0
  %2046 = vmatprep.subr.mxu0 0.0
  %2047 = vmatpush1.msra.mxu0 0.0
  %2048 = vmatprep.subr.mxu0 0.0
  %2049 = vmatpush1.msra.mxu0 0.0
  %2050 = vmatprep.subr.mxu0 0.0
  %2051 = vmatpush1.msra.mxu0 0.0
  %2052 = vmatprep.subr.mxu0 0.0
  %2053 = vmatpush1.msra.mxu0 0.0
  %2054 = vmatprep.subr.mxu0 0.0
  %2055 = vmatpush1.msra.mxu0 0.0
  %2056 = vmatprep.subr.mxu0 0.0
  %2057 = vmatpush1.msra.mxu0 0.0
  %2058 = vmatprep.subr.mxu0 0.0
  %2059 = vmatpush1.msra.mxu0 0.0
  %2060 = vmatprep.subr.mxu0 0.0
  %2061 = vmatpush1.msra.mxu0 0.0
  %2062 = vmatprep.subr.mxu0 0.0
  %2063 = vmatpush1.msra.mxu0 0.0
  %2064 = vmatprep.subr.mxu0 0.0
  %2065 = vmatpush1.msra.mxu0 0.0
  %2066 = vmatprep.subr.mxu0 0.0
  %2067 = vmatpush1.msra.mxu0 0.0
  %2068 = vmatprep.subr.mxu0 0.0
  %2069 = vmatpush1.msra.mxu0 0.0
  %2070 = vmatprep.subr.mxu0 0.0
  %2071 = vmatpush1.msra.mxu0 0.0
  %2072 = vmatprep.subr.mxu0 0.0
  %2073 = vmatpush1.msra.mxu0 0.0
  %2074 = vmatprep.subr.mxu0 0.0
  %2075 = vmatpush1.msra.mxu0 0.0
  %2076 = vmatprep.subr.mxu0 0.0
  %2077 = vmatpush1.msra.mxu0 0.0
  %2078 = vmatprep.subr.mxu0 0.0
  %2079 = vmatpush1.msra.mxu0 0.0
  %2080 = vmatprep.mubr.f32.mxu0 0.0
  %2081 = vmatmul.mubr.f32.gmra.mrb[0].mxu0 %v2014
  %v2082 = vpop.f32.mrb[0].mxu0
  %v2083 = vadd.f32 %v886, %v2082
  %v2084 = vpop.f32.mrb[0].mxu0
  %v2085 = vadd.f32 %v890, %v2084
  %2086 = vdwg.mxu0
  %v2087 = vld [vmem:[#allocation2 + $0x30] sm:$0xff]
  %v2088 = vld [vmem:[#allocation2 + $0x38] sm:$0xff]
  %v2089 = vadd.f32 %v2087, %v2083
  %v2090 = vxor.u32 %v2089, 2147483648
  %v2091 = vmul.f32 %v2090, 1.442695
  %v2092 = vpow.pop %v2091
  %v2093 = vadd.f32 %v2092, 1.0
  %v2094 = vrcp.pop %v2093
  %v2095 = vmul.f32 1.0, %v2094
  %v2096 = vmul.f32 %v2095, %v2085
  %v2097 = vadd.f32 %v2088, %v2096
  %v2098 = vtanh.pop %v2097
  %v2099 = vsub.f32 1.0, %v2095
  %2101 = vrot.lane.b32.xlu0 %v2098, 64
  %v2102 = vpop.permute.xlu0 %2101
  %v2104 = vmul.f32 %v2099, %v2102
  %v2105 = vmul.f32 %v2095, %v2010
  %v2106 = vadd.f32 %v2104, %v2105
  %2108 = vrot.lane.b32.xlu0 %v2106, 64
  %v2109 = vpop.permute.xlu0 %2108
  %v2110 = vsel %vm661, %v2109, 0
  %2112 = vmatprep.subr.mxu0 0.0
  %2113 = vmatpush1.msra.mxu0 %v82
  %2114 = vmatprep.subr.mxu0 0.0
  %2115 = vmatpush1.msra.mxu0 %v83
  %2116 = vmatprep.subr.mxu0 0.0
  %2117 = vmatpush1.msra.mxu0 %v84
  %2118 = vmatprep.subr.mxu0 0.0
  %2119 = vmatpush1.msra.mxu0 %v85
  %2120 = vmatprep.subr.mxu0 0.0
  %2121 = vmatpush1.msra.mxu0 %v86
  %2122 = vmatprep.subr.mxu0 0.0
  %2123 = vmatpush1.msra.mxu0 %v87
  %2124 = vmatprep.subr.mxu0 0.0
  %2125 = vmatpush1.msra.mxu0 %v88
  %2126 = vmatprep.subr.mxu0 0.0
  %2127 = vmatpush1.msra.mxu0 %v89
  %2128 = vmatprep.subr.mxu0 0.0
  %2129 = vmatpush1.msra.mxu0 0.0
  %2130 = vmatprep.subr.mxu0 0.0
  %2131 = vmatpush1.msra.mxu0 0.0
  %2132 = vmatprep.subr.mxu0 0.0
  %2133 = vmatpush1.msra.mxu0 0.0
  %2134 = vmatprep.subr.mxu0 0.0
  %2135 = vmatpush1.msra.mxu0 0.0
  %2136 = vmatprep.subr.mxu0 0.0
  %2137 = vmatpush1.msra.mxu0 0.0
  %2138 = vmatprep.subr.mxu0 0.0
  %2139 = vmatpush1.msra.mxu0 0.0
  %2140 = vmatprep.subr.mxu0 0.0
  %2141 = vmatpush1.msra.mxu0 0.0
  %2142 = vmatprep.subr.mxu0 0.0
  %2143 = vmatpush1.msra.mxu0 0.0
  %2144 = vmatprep.subr.mxu0 0.0
  %2145 = vmatpush1.msra.mxu0 0.0
  %2146 = vmatprep.subr.mxu0 0.0
  %2147 = vmatpush1.msra.mxu0 0.0
  %2148 = vmatprep.subr.mxu0 0.0
  %2149 = vmatpush1.msra.mxu0 0.0
  %2150 = vmatprep.subr.mxu0 0.0
  %2151 = vmatpush1.msra.mxu0 0.0
  %2152 = vmatprep.subr.mxu0 0.0
  %2153 = vmatpush1.msra.mxu0 0.0
  %2154 = vmatprep.subr.mxu0 0.0
  %2155 = vmatpush1.msra.mxu0 0.0
  %2156 = vmatprep.subr.mxu0 0.0
  %2157 = vmatpush1.msra.mxu0 0.0
  %2158 = vmatprep.subr.mxu0 0.0
  %2159 = vmatpush1.msra.mxu0 0.0
  %2160 = vmatprep.subr.mxu0 0.0
  %2161 = vmatpush1.msra.mxu0 0.0
  %2162 = vmatprep.subr.mxu0 0.0
  %2163 = vmatpush1.msra.mxu0 0.0
  %2164 = vmatprep.subr.mxu0 0.0
  %2165 = vmatpush1.msra.mxu0 0.0
  %2166 = vmatprep.subr.mxu0 0.0
  %2167 = vmatpush1.msra.mxu0 0.0
  %2168 = vmatprep.subr.mxu0 0.0
  %2169 = vmatpush1.msra.mxu0 0.0
  %2170 = vmatprep.subr.mxu0 0.0
  %2171 = vmatpush1.msra.mxu0 0.0
  %2172 = vmatprep.subr.mxu0 0.0
  %2173 = vmatpush1.msra.mxu0 0.0
  %2174 = vmatprep.subr.mxu0 0.0
  %2175 = vmatpush1.msra.mxu0 0.0
  %2176 = vmatprep.mubr.f32.mxu0 0.0
  %2177 = vmatmul.mubr.f32.gmra.mrb[0].mxu0 %v2110
  %v2178 = vpop.f32.mrb[0].mxu0
  %v2179 = vadd.f32 %v991, %v2178
  %v2180 = vpop.f32.mrb[0].mxu0
  %2181 = vdwg.mxu0
  %v2182 = vxor.u32 %v2179, 2147483648
  %v2183 = vmul.f32 %v2182, 1.442695
  %v2184 = vpow.pop %v2183
  %v2185 = vadd.f32 %v2184, 1.0
  %v2186 = vrcp.pop %v2185
  %v2187 = vmul.f32 1.0, %v2186
  %2189 = vrot.lane.b32.xlu0 %v2187, 112
  %v2190 = vpop.permute.xlu0 %2189
  %v2192 = vmul.f32 %v2179, %v2190
  %v2193 = vld [vmem:[#allocation3 + $0x18] sm:$0xff]
  %v2195 = vsel %vm145, %v2192, 0
  %2197 = vmatprep.subr.mxu0 0.0
  %2198 = vmatpush1.msra.mxu0 %v91
  %2199 = vmatprep.subr.mxu0 0.0
  %2200 = vmatpush1.msra.mxu0 %v92
  %2201 = vmatprep.subr.mxu0 0.0
  %2202 = vmatpush1.msra.mxu0 0.0
  %2203 = vmatprep.subr.mxu0 0.0
  %2204 = vmatpush1.msra.mxu0 0.0
  %2205 = vmatprep.subr.mxu0 0.0
  %2206 = vmatpush1.msra.mxu0 0.0
  %2207 = vmatprep.subr.mxu0 0.0
  %2208 = vmatpush1.msra.mxu0 0.0
  %2209 = vmatprep.subr.mxu0 0.0
  %2210 = vmatpush1.msra.mxu0 0.0
  %2211 = vmatprep.subr.mxu0 0.0
  %2212 = vmatpush1.msra.mxu0 0.0
  %2213 = vmatprep.subr.mxu0 0.0
  %2214 = vmatpush1.msra.mxu0 0.0
  %2215 = vmatprep.subr.mxu0 0.0
  %2216 = vmatpush1.msra.mxu0 0.0
  %2217 = vmatprep.subr.mxu0 0.0
  %2218 = vmatpush1.msra.mxu0 0.0
  %2219 = vmatprep.subr.mxu0 0.0
  %2220 = vmatpush1.msra.mxu0 0.0
  %2221 = vmatprep.subr.mxu0 0.0
  %2222 = vmatpush1.msra.mxu0 0.0
  %2223 = vmatprep.subr.mxu0 0.0
  %2224 = vmatpush1.msra.mxu0 0.0
  %2225 = vmatprep.subr.mxu0 0.0
  %2226 = vmatpush1.msra.mxu0 0.0
  %2227 = vmatprep.subr.mxu0 0.0
  %2228 = vmatpush1.msra.mxu0 0.0
  %2229 = vmatprep.subr.mxu0 0.0
  %2230 = vmatpush1.msra.mxu0 0.0
  %2231 = vmatprep.subr.mxu0 0.0
  %2232 = vmatpush1.msra.mxu0 0.0
  %2233 = vmatprep.subr.mxu0 0.0
  %2234 = vmatpush1.msra.mxu0 0.0
  %2235 = vmatprep.subr.mxu0 0.0
  %2236 = vmatpush1.msra.mxu0 0.0
  %2237 = vmatprep.subr.mxu0 0.0
  %2238 = vmatpush1.msra.mxu0 0.0
  %2239 = vmatprep.subr.mxu0 0.0
  %2240 = vmatpush1.msra.mxu0 0.0
  %2241 = vmatprep.subr.mxu0 0.0
  %2242 = vmatpush1.msra.mxu0 0.0
  %2243 = vmatprep.subr.mxu0 0.0
  %2244 = vmatpush1.msra.mxu0 0.0
  %2245 = vmatprep.subr.mxu0 0.0
  %2246 = vmatpush1.msra.mxu0 0.0
  %2247 = vmatprep.subr.mxu0 0.0
  %2248 = vmatpush1.msra.mxu0 0.0
  %2249 = vmatprep.subr.mxu0 0.0
  %2250 = vmatpush1.msra.mxu0 0.0
  %2251 = vmatprep.subr.mxu0 0.0
  %2252 = vmatpush1.msra.mxu0 0.0
  %2253 = vmatprep.subr.mxu0 0.0
  %2254 = vmatpush1.msra.mxu0 0.0
  %2255 = vmatprep.subr.mxu0 0.0
  %2256 = vmatpush1.msra.mxu0 0.0
  %2257 = vmatprep.subr.mxu0 0.0
  %2258 = vmatpush1.msra.mxu0 0.0
  %2259 = vmatprep.subr.mxu0 0.0
  %2260 = vmatpush1.msra.mxu0 0.0
  %2261 = vmatprep.mubr.f32.mxu0 0.0
  %2262 = vmatmul.mubr.f32.gmra.mrb[0].mxu0 %v2195
  %v2263 = vpop.f32.mrb[0].mxu0
  %v2264 = vadd.f32 %v2193, %v2263
  %v2265 = vpop.f32.mrb[0].mxu0
  %2266 = vdwg.mxu0
  %v2267 = vmax.f32 %v2264, 0.0
  %2268 = vrot.lane.b32.xlu0 %v1999, 112
  %v2269 = vpop.permute.xlu0 %2268
  %v2271 = vsel %vm145, %v2267, %v2269
  %v2273 = vsel %vm1161, %v2271, 0
  %2275 = vmatprep.subr.mxu0 0.0
  %2276 = vmatpush1.msra.mxu0 %v96
  %2277 = vmatprep.subr.mxu0 0.0
  %2278 = vmatpush1.msra.mxu0 %v97
  %2279 = vmatprep.subr.mxu0 0.0
  %2280 = vmatpush1.msra.mxu0 %v98
  %2281 = vmatprep.subr.mxu0 0.0
  %2282 = vmatpush1.msra.mxu0 %v99
  %2283 = vmatprep.subr.mxu0 0.0
  %2284 = vmatpush1.msra.mxu0 %v100
  %2285 = vmatprep.subr.mxu0 0.0
  %2286 = vmatpush1.msra.mxu0 %v101
  %2287 = vmatprep.subr.mxu0 0.0
  %2288 = vmatpush1.msra.mxu0 0.0
  %2289 = vmatprep.subr.mxu0 0.0
  %2290 = vmatpush1.msra.mxu0 0.0
  %2291 = vmatprep.subr.mxu0 0.0
  %2292 = vmatpush1.msra.mxu0 0.0
  %2293 = vmatprep.subr.mxu0 0.0
  %2294 = vmatpush1.msra.mxu0 0.0
  %2295 = vmatprep.subr.mxu0 0.0
  %2296 = vmatpush1.msra.mxu0 0.0
  %2297 = vmatprep.subr.mxu0 0.0
  %2298 = vmatpush1.msra.mxu0 0.0
  %2299 = vmatprep.subr.mxu0 0.0
  %2300 = vmatpush1.msra.mxu0 0.0
  %2301 = vmatprep.subr.mxu0 0.0
  %2302 = vmatpush1.msra.mxu0 0.0
  %2303 = vmatprep.subr.mxu0 0.0
  %2304 = vmatpush1.msra.mxu0 0.0
  %2305 = vmatprep.subr.mxu0 0.0
  %2306 = vmatpush1.msra.mxu0 0.0
  %2307 = vmatprep.subr.mxu0 0.0
  %2308 = vmatpush1.msra.mxu0 0.0
  %2309 = vmatprep.subr.mxu0 0.0
  %2310 = vmatpush1.msra.mxu0 0.0
  %2311 = vmatprep.subr.mxu0 0.0
  %2312 = vmatpush1.msra.mxu0 0.0
  %2313 = vmatprep.subr.mxu0 0.0
  %2314 = vmatpush1.msra.mxu0 0.0
  %2315 = vmatprep.subr.mxu0 0.0
  %2316 = vmatpush1.msra.mxu0 0.0
  %2317 = vmatprep.subr.mxu0 0.0
  %2318 = vmatpush1.msra.mxu0 0.0
  %2319 = vmatprep.subr.mxu0 0.0
  %2320 = vmatpush1.msra.mxu0 0.0
  %2321 = vmatprep.subr.mxu0 0.0
  %2322 = vmatpush1.msra.mxu0 0.0
  %2323 = vmatprep.subr.mxu0 0.0
  %2324 = vmatpush1.msra.mxu0 0.0
  %2325 = vmatprep.subr.mxu0 0.0
  %2326 = vmatpush1.msra.mxu0 0.0
  %2327 = vmatprep.subr.mxu0 0.0
  %2328 = vmatpush1.msra.mxu0 0.0
  %2329 = vmatprep.subr.mxu0 0.0
  %2330 = vmatpush1.msra.mxu0 0.0
  %2331 = vmatprep.subr.mxu0 0.0
  %2332 = vmatpush1.msra.mxu0 0.0
  %2333 = vmatprep.subr.mxu0 0.0
  %2334 = vmatpush1.msra.mxu0 0.0
  %2335 = vmatprep.subr.mxu0 0.0
  %2336 = vmatpush1.msra.mxu0 0.0
  %2337 = vmatprep.subr.mxu0 0.0
  %2338 = vmatpush1.msra.mxu0 0.0
  %2339 = vmatprep.mubr.f32.mxu0 0.0
  %2340 = vmatmul.mubr.f32.gmra.mrb[0].mxu0 %v2273
  %v2341 = vpop.f32.mrb[0].mxu0
  %v2342 = vadd.f32 %v1159, %v2341
  %v2343 = vpop.f32.mrb[0].mxu0
  %2344 = vdwg.mxu0
  %v2345 = vxor.u32 %v2342, 2147483648
  %v2346 = vmul.f32 %v2345, 1.442695
  %v2347 = vpow.pop %v2346
  %v2348 = vadd.f32 %v2347, 1.0
  %v2349 = vrcp.pop %v2348
  %v2350 = vmul.f32 1.0, %v2349
  %2352 = vrot.lane.b32.xlu0 %v2342, 32
  %v2353 = vpop.permute.xlu0 %2352
  %v2355 = vmul.f32 %v2350, %v2353
  %2357 = vrot.lane.b32.xlu0 %v2355, 64
  %v2358 = vpop.permute.xlu0 %2357
  %v2360 = vadd.f32 %v2342, %v2358
  %v2361 = vtanh.pop %v2360
  %v2362 = vsub.f32 1.0, %v2350
  %2364 = vrot.lane.b32.xlu0 %v2361, 96
  %v2365 = vpop.permute.xlu0 %2364
  %v2367 = vmul.f32 %v2362, %v2365
  %v2368 = vmul.f32 %v2350, %v1999
  %v2369 = vadd.f32 %v2367, %v2368
  %2371 = vrot.lane.b32.xlu0 %v2369, 96
  %v2372 = vpop.permute.xlu0 %2371
  %2374 = vst.msk [vmem:[%s16 + $0x18] sm:$0xff] %vm486, %v2372
  %2376 = vset.pattern.permute.xlu0 0
  %2377 = vperm.xlu0 %2376, %v868
  %v2378 = vpop.permute.xlu0 %2377
  %v2380 = vmul.f32 %v2106, %v2378
  %2382 = vrot.lane.b32.xlu0 %v2380, 64
  %v2383 = vpop.permute.xlu0 %2382
  %v2384 = vsel %vm661, %v2383, 0
  %2386 = vmatprep.subr.mxu0 %v66
  %2387 = vmatpush1.msra.mxu0 %v65
  %2388 = vmatprep.subr.mxu0 %v68
  %2389 = vmatpush1.msra.mxu0 %v67
  %2390 = vmatprep.subr.mxu0 %v70
  %2391 = vmatpush1.msra.mxu0 %v69
  %2392 = vmatprep.subr.mxu0 %v72
  %2393 = vmatpush1.msra.mxu0 %v71
  %2394 = vmatprep.subr.mxu0 %v74
  %2395 = vmatpush1.msra.mxu0 %v73
  %2396 = vmatprep.subr.mxu0 %v76
  %2397 = vmatpush1.msra.mxu0 %v75
  %2398 = vmatprep.subr.mxu0 %v78
  %2399 = vmatpush1.msra.mxu0 %v77
  %2400 = vmatprep.subr.mxu0 %v80
  %2401 = vmatpush1.msra.mxu0 %v79
  %2402 = vmatprep.subr.mxu0 0.0
  %2403 = vmatpush1.msra.mxu0 0.0
  %2404 = vmatprep.subr.mxu0 0.0
  %2405 = vmatpush1.msra.mxu0 0.0
  %2406 = vmatprep.subr.mxu0 0.0
  %2407 = vmatpush1.msra.mxu0 0.0
  %2408 = vmatprep.subr.mxu0 0.0
  %2409 = vmatpush1.msra.mxu0 0.0
  %2410 = vmatprep.subr.mxu0 0.0
  %2411 = vmatpush1.msra.mxu0 0.0
  %2412 = vmatprep.subr.mxu0 0.0
  %2413 = vmatpush1.msra.mxu0 0.0
  %2414 = vmatprep.subr.mxu0 0.0
  %2415 = vmatpush1.msra.mxu0 0.0
  %2416 = vmatprep.subr.mxu0 0.0
  %2417 = vmatpush1.msra.mxu0 0.0
  %2418 = vmatprep.subr.mxu0 0.0
  %2419 = vmatpush1.msra.mxu0 0.0
  %2420 = vmatprep.subr.mxu0 0.0
  %2421 = vmatpush1.msra.mxu0 0.0
  %2422 = vmatprep.subr.mxu0 0.0
  %2423 = vmatpush1.msra.mxu0 0.0
  %2424 = vmatprep.subr.mxu0 0.0
  %2425 = vmatpush1.msra.mxu0 0.0
  %2426 = vmatprep.subr.mxu0 0.0
  %2427 = vmatpush1.msra.mxu0 0.0
  %2428 = vmatprep.subr.mxu0 0.0
  %2429 = vmatpush1.msra.mxu0 0.0
  %2430 = vmatprep.subr.mxu0 0.0
  %2431 = vmatpush1.msra.mxu0 0.0
  %2432 = vmatprep.subr.mxu0 0.0
  %2433 = vmatpush1.msra.mxu0 0.0
  %2434 = vmatprep.subr.mxu0 0.0
  %2435 = vmatpush1.msra.mxu0 0.0
  %2436 = vmatprep.subr.mxu0 0.0
  %2437 = vmatpush1.msra.mxu0 0.0
  %2438 = vmatprep.subr.mxu0 0.0
  %2439 = vmatpush1.msra.mxu0 0.0
  %2440 = vmatprep.subr.mxu0 0.0
  %2441 = vmatpush1.msra.mxu0 0.0
  %2442 = vmatprep.subr.mxu0 0.0
  %2443 = vmatpush1.msra.mxu0 0.0
  %2444 = vmatprep.subr.mxu0 0.0
  %2445 = vmatpush1.msra.mxu0 0.0
  %2446 = vmatprep.subr.mxu0 0.0
  %2447 = vmatpush1.msra.mxu0 0.0
  %2448 = vmatprep.subr.mxu0 0.0
  %2449 = vmatpush1.msra.mxu0 0.0
  %2450 = vmatprep.mubr.f32.mxu0 0.0
  %2451 = vmatmul.mubr.f32.gmra.mrb[0].mxu0 %v2384
  %v2452 = vpop.f32.mrb[0].mxu0
  %v2453 = vadd.f32 %v886, %v2452
  %v2454 = vpop.f32.mrb[0].mxu0
  %v2455 = vadd.f32 %v890, %v2454
  %2456 = vdwg.mxu0
  %v2457 = vld [vmem:[#allocation2 + $0x40] sm:$0xff]
  %v2458 = vld [vmem:[#allocation2 + $0x48] sm:$0xff]
  %v2459 = vadd.f32 %v2457, %v2453
  %v2460 = vxor.u32 %v2459, 2147483648
  %v2461 = vmul.f32 %v2460, 1.442695
  %v2462 = vpow.pop %v2461
  %v2463 = vadd.f32 %v2462, 1.0
  %v2464 = vrcp.pop %v2463
  %v2465 = vmul.f32 1.0, %v2464
  %v2466 = vmul.f32 %v2465, %v2455
  %v2467 = vadd.f32 %v2458, %v2466
  %v2468 = vtanh.pop %v2467
  %v2469 = vsub.f32 1.0, %v2465
  %2471 = vrot.lane.b32.xlu0 %v2468, 64
  %v2472 = vpop.permute.xlu0 %2471
  %v2474 = vmul.f32 %v2469, %v2472
  %v2475 = vmul.f32 %v2465, %v2380
  %v2476 = vadd.f32 %v2474, %v2475
  %2478 = vrot.lane.b32.xlu0 %v2476, 64
  %v2479 = vpop.permute.xlu0 %2478
  %v2480 = vsel %vm661, %v2479, 0
  %2482 = vmatprep.subr.mxu0 0.0
  %2483 = vmatpush1.msra.mxu0 %v82
  %2484 = vmatprep.subr.mxu0 0.0
  %2485 = vmatpush1.msra.mxu0 %v83
  %2486 = vmatprep.subr.mxu0 0.0
  %2487 = vmatpush1.msra.mxu0 %v84
  %2488 = vmatprep.subr.mxu0 0.0
  %2489 = vmatpush1.msra.mxu0 %v85
  %2490 = vmatprep.subr.mxu0 0.0
  %2491 = vmatpush1.msra.mxu0 %v86
  %2492 = vmatprep.subr.mxu0 0.0
  %2493 = vmatpush1.msra.mxu0 %v87
  %2494 = vmatprep.subr.mxu0 0.0
  %2495 = vmatpush1.msra.mxu0 %v88
  %2496 = vmatprep.subr.mxu0 0.0
  %2497 = vmatpush1.msra.mxu0 %v89
  %2498 = vmatprep.subr.mxu0 0.0
  %2499 = vmatpush1.msra.mxu0 0.0
  %2500 = vmatprep.subr.mxu0 0.0
  %2501 = vmatpush1.msra.mxu0 0.0
  %2502 = vmatprep.subr.mxu0 0.0
  %2503 = vmatpush1.msra.mxu0 0.0
  %2504 = vmatprep.subr.mxu0 0.0
  %2505 = vmatpush1.msra.mxu0 0.0
  %2506 = vmatprep.subr.mxu0 0.0
  %2507 = vmatpush1.msra.mxu0 0.0
  %2508 = vmatprep.subr.mxu0 0.0
  %2509 = vmatpush1.msra.mxu0 0.0
  %2510 = vmatprep.subr.mxu0 0.0
  %2511 = vmatpush1.msra.mxu0 0.0
  %2512 = vmatprep.subr.mxu0 0.0
  %2513 = vmatpush1.msra.mxu0 0.0
  %2514 = vmatprep.subr.mxu0 0.0
  %2515 = vmatpush1.msra.mxu0 0.0
  %2516 = vmatprep.subr.mxu0 0.0
  %2517 = vmatpush1.msra.mxu0 0.0
  %2518 = vmatprep.subr.mxu0 0.0
  %2519 = vmatpush1.msra.mxu0 0.0
  %2520 = vmatprep.subr.mxu0 0.0
  %2521 = vmatpush1.msra.mxu0 0.0
  %2522 = vmatprep.subr.mxu0 0.0
  %2523 = vmatpush1.msra.mxu0 0.0
  %2524 = vmatprep.subr.mxu0 0.0
  %2525 = vmatpush1.msra.mxu0 0.0
  %2526 = vmatprep.subr.mxu0 0.0
  %2527 = vmatpush1.msra.mxu0 0.0
  %2528 = vmatprep.subr.mxu0 0.0
  %2529 = vmatpush1.msra.mxu0 0.0
  %2530 = vmatprep.subr.mxu0 0.0
  %2531 = vmatpush1.msra.mxu0 0.0
  %2532 = vmatprep.subr.mxu0 0.0
  %2533 = vmatpush1.msra.mxu0 0.0
  %2534 = vmatprep.subr.mxu0 0.0
  %2535 = vmatpush1.msra.mxu0 0.0
  %2536 = vmatprep.subr.mxu0 0.0
  %2537 = vmatpush1.msra.mxu0 0.0
  %2538 = vmatprep.subr.mxu0 0.0
  %2539 = vmatpush1.msra.mxu0 0.0
  %2540 = vmatprep.subr.mxu0 0.0
  %2541 = vmatpush1.msra.mxu0 0.0
  %2542 = vmatprep.subr.mxu0 0.0
  %2543 = vmatpush1.msra.mxu0 0.0
  %2544 = vmatprep.subr.mxu0 0.0
  %2545 = vmatpush1.msra.mxu0 0.0
  %2546 = vmatprep.mubr.f32.mxu0 0.0
  %2547 = vmatmul.mubr.f32.gmra.mrb[0].mxu0 %v2480
  %v2548 = vpop.f32.mrb[0].mxu0
  %v2549 = vadd.f32 %v991, %v2548
  %v2550 = vpop.f32.mrb[0].mxu0
  %2551 = vdwg.mxu0
  %v2552 = vxor.u32 %v2549, 2147483648
  %v2553 = vmul.f32 %v2552, 1.442695
  %v2554 = vpow.pop %v2553
  %v2555 = vadd.f32 %v2554, 1.0
  %v2556 = vrcp.pop %v2555
  %v2557 = vmul.f32 1.0, %v2556
  %2559 = vrot.lane.b32.xlu0 %v2557, 112
  %v2560 = vpop.permute.xlu0 %2559
  %v2562 = vmul.f32 %v2549, %v2560
  %v2563 = vld [vmem:[#allocation3 + $0x20] sm:$0xff]
  %v2565 = vsel %vm145, %v2562, 0
  %2567 = vmatprep.subr.mxu0 0.0
  %2568 = vmatpush1.msra.mxu0 %v91
  %2569 = vmatprep.subr.mxu0 0.0
  %2570 = vmatpush1.msra.mxu0 %v92
  %2571 = vmatprep.subr.mxu0 0.0
  %2572 = vmatpush1.msra.mxu0 0.0
  %2573 = vmatprep.subr.mxu0 0.0
  %2574 = vmatpush1.msra.mxu0 0.0
  %2575 = vmatprep.subr.mxu0 0.0
  %2576 = vmatpush1.msra.mxu0 0.0
  %2577 = vmatprep.subr.mxu0 0.0
  %2578 = vmatpush1.msra.mxu0 0.0
  %2579 = vmatprep.subr.mxu0 0.0
  %2580 = vmatpush1.msra.mxu0 0.0
  %2581 = vmatprep.subr.mxu0 0.0
  %2582 = vmatpush1.msra.mxu0 0.0
  %2583 = vmatprep.subr.mxu0 0.0
  %2584 = vmatpush1.msra.mxu0 0.0
  %2585 = vmatprep.subr.mxu0 0.0
  %2586 = vmatpush1.msra.mxu0 0.0
  %2587 = vmatprep.subr.mxu0 0.0
  %2588 = vmatpush1.msra.mxu0 0.0
  %2589 = vmatprep.subr.mxu0 0.0
  %2590 = vmatpush1.msra.mxu0 0.0
  %2591 = vmatprep.subr.mxu0 0.0
  %2592 = vmatpush1.msra.mxu0 0.0
  %2593 = vmatprep.subr.mxu0 0.0
  %2594 = vmatpush1.msra.mxu0 0.0
  %2595 = vmatprep.subr.mxu0 0.0
  %2596 = vmatpush1.msra.mxu0 0.0
  %2597 = vmatprep.subr.mxu0 0.0
  %2598 = vmatpush1.msra.mxu0 0.0
  %2599 = vmatprep.subr.mxu0 0.0
  %2600 = vmatpush1.msra.mxu0 0.0
  %2601 = vmatprep.subr.mxu0 0.0
  %2602 = vmatpush1.msra.mxu0 0.0
  %2603 = vmatprep.subr.mxu0 0.0
  %2604 = vmatpush1.msra.mxu0 0.0
  %2605 = vmatprep.subr.mxu0 0.0
  %2606 = vmatpush1.msra.mxu0 0.0
  %2607 = vmatprep.subr.mxu0 0.0
  %2608 = vmatpush1.msra.mxu0 0.0
  %2609 = vmatprep.subr.mxu0 0.0
  %2610 = vmatpush1.msra.mxu0 0.0
  %2611 = vmatprep.subr.mxu0 0.0
  %2612 = vmatpush1.msra.mxu0 0.0
  %2613 = vmatprep.subr.mxu0 0.0
  %2614 = vmatpush1.msra.mxu0 0.0
  %2615 = vmatprep.subr.mxu0 0.0
  %2616 = vmatpush1.msra.mxu0 0.0
  %2617 = vmatprep.subr.mxu0 0.0
  %2618 = vmatpush1.msra.mxu0 0.0
  %2619 = vmatprep.subr.mxu0 0.0
  %2620 = vmatpush1.msra.mxu0 0.0
  %2621 = vmatprep.subr.mxu0 0.0
  %2622 = vmatpush1.msra.mxu0 0.0
  %2623 = vmatprep.subr.mxu0 0.0
  %2624 = vmatpush1.msra.mxu0 0.0
  %2625 = vmatprep.subr.mxu0 0.0
  %2626 = vmatpush1.msra.mxu0 0.0
  %2627 = vmatprep.subr.mxu0 0.0
  %2628 = vmatpush1.msra.mxu0 0.0
  %2629 = vmatprep.subr.mxu0 0.0
  %2630 = vmatpush1.msra.mxu0 0.0
  %2631 = vmatprep.mubr.f32.mxu0 0.0
  %2632 = vmatmul.mubr.f32.gmra.mrb[0].mxu0 %v2565
  %v2633 = vpop.f32.mrb[0].mxu0
  %v2634 = vadd.f32 %v2563, %v2633
  %v2635 = vpop.f32.mrb[0].mxu0
  %2636 = vdwg.mxu0
  %v2637 = vmax.f32 %v2634, 0.0
  %2638 = vrot.lane.b32.xlu0 %v2369, 112
  %v2639 = vpop.permute.xlu0 %2638
  %v2641 = vsel %vm145, %v2637, %v2639
  %v2643 = vsel %vm1161, %v2641, 0
  %2645 = vmatprep.subr.mxu0 0.0
  %2646 = vmatpush1.msra.mxu0 %v96
  %2647 = vmatprep.subr.mxu0 0.0
  %2648 = vmatpush1.msra.mxu0 %v97
  %2649 = vmatprep.subr.mxu0 0.0
  %2650 = vmatpush1.msra.mxu0 %v98
  %2651 = vmatprep.subr.mxu0 0.0
  %2652 = vmatpush1.msra.mxu0 %v99
  %2653 = vmatprep.subr.mxu0 0.0
  %2654 = vmatpush1.msra.mxu0 %v100
  %2655 = vmatprep.subr.mxu0 0.0
  %2656 = vmatpush1.msra.mxu0 %v101
  %2657 = vmatprep.subr.mxu0 0.0
  %2658 = vmatpush1.msra.mxu0 0.0
  %2659 = vmatprep.subr.mxu0 0.0
  %2660 = vmatpush1.msra.mxu0 0.0
  %2661 = vmatprep.subr.mxu0 0.0
  %2662 = vmatpush1.msra.mxu0 0.0
  %2663 = vmatprep.subr.mxu0 0.0
  %2664 = vmatpush1.msra.mxu0 0.0
  %2665 = vmatprep.subr.mxu0 0.0
  %2666 = vmatpush1.msra.mxu0 0.0
  %2667 = vmatprep.subr.mxu0 0.0
  %2668 = vmatpush1.msra.mxu0 0.0
  %2669 = vmatprep.subr.mxu0 0.0
  %2670 = vmatpush1.msra.mxu0 0.0
  %2671 = vmatprep.subr.mxu0 0.0
  %2672 = vmatpush1.msra.mxu0 0.0
  %2673 = vmatprep.subr.mxu0 0.0
  %2674 = vmatpush1.msra.mxu0 0.0
  %2675 = vmatprep.subr.mxu0 0.0
  %2676 = vmatpush1.msra.mxu0 0.0
  %2677 = vmatprep.subr.mxu0 0.0
  %2678 = vmatpush1.msra.mxu0 0.0
  %2679 = vmatprep.subr.mxu0 0.0
  %2680 = vmatpush1.msra.mxu0 0.0
  %2681 = vmatprep.subr.mxu0 0.0
  %2682 = vmatpush1.msra.mxu0 0.0
  %2683 = vmatprep.subr.mxu0 0.0
  %2684 = vmatpush1.msra.mxu0 0.0
  %2685 = vmatprep.subr.mxu0 0.0
  %2686 = vmatpush1.msra.mxu0 0.0
  %2687 = vmatprep.subr.mxu0 0.0
  %2688 = vmatpush1.msra.mxu0 0.0
  %2689 = vmatprep.subr.mxu0 0.0
  %2690 = vmatpush1.msra.mxu0 0.0
  %2691 = vmatprep.subr.mxu0 0.0
  %2692 = vmatpush1.msra.mxu0 0.0
  %2693 = vmatprep.subr.mxu0 0.0
  %2694 = vmatpush1.msra.mxu0 0.0
  %2695 = vmatprep.subr.mxu0 0.0
  %2696 = vmatpush1.msra.mxu0 0.0
  %2697 = vmatprep.subr.mxu0 0.0
  %2698 = vmatpush1.msra.mxu0 0.0
  %2699 = vmatprep.subr.mxu0 0.0
  %2700 = vmatpush1.msra.mxu0 0.0
  %2701 = vmatprep.subr.mxu0 0.0
  %2702 = vmatpush1.msra.mxu0 0.0
  %2703 = vmatprep.subr.mxu0 0.0
  %2704 = vmatpush1.msra.mxu0 0.0
  %2705 = vmatprep.subr.mxu0 0.0
  %2706 = vmatpush1.msra.mxu0 0.0
  %2707 = vmatprep.subr.mxu0 0.0
  %2708 = vmatpush1.msra.mxu0 0.0
  %2709 = vmatprep.mubr.f32.mxu0 0.0
  %2710 = vmatmul.mubr.f32.gmra.mrb[0].mxu0 %v2643
  %v2711 = vpop.f32.mrb[0].mxu0
  %v2712 = vadd.f32 %v1159, %v2711
  %v2713 = vpop.f32.mrb[0].mxu0
  %2714 = vdwg.mxu0
  %v2715 = vxor.u32 %v2712, 2147483648
  %v2716 = vmul.f32 %v2715, 1.442695
  %v2717 = vpow.pop %v2716
  %v2718 = vadd.f32 %v2717, 1.0
  %v2719 = vrcp.pop %v2718
  %v2720 = vmul.f32 1.0, %v2719
  %2722 = vrot.lane.b32.xlu0 %v2712, 32
  %v2723 = vpop.permute.xlu0 %2722
  %v2725 = vmul.f32 %v2720, %v2723
  %2727 = vrot.lane.b32.xlu0 %v2725, 64
  %v2728 = vpop.permute.xlu0 %2727
  %v2730 = vadd.f32 %v2712, %v2728
  %v2731 = vtanh.pop %v2730
  %v2732 = vsub.f32 1.0, %v2720
  %2734 = vrot.lane.b32.xlu0 %v2731, 96
  %v2735 = vpop.permute.xlu0 %2734
  %v2737 = vmul.f32 %v2732, %v2735
  %v2738 = vmul.f32 %v2720, %v2369
  %v2739 = vadd.f32 %v2737, %v2738
  %2741 = vrot.lane.b32.xlu0 %v2739, 96
  %v2742 = vpop.permute.xlu0 %2741
  %2744 = vst.msk [vmem:[%s16 + $0x20] sm:$0xff] %vm486, %v2742
  %2746 = vset.pattern.permute.xlu0 0
  %2747 = vperm.xlu0 %2746, %v869
  %v2748 = vpop.permute.xlu0 %2747
  %v2750 = vmul.f32 %v2476, %v2748
  %2752 = vrot.lane.b32.xlu0 %v2750, 64
  %v2753 = vpop.permute.xlu0 %2752
  %v2754 = vsel %vm661, %v2753, 0
  %2756 = vmatprep.subr.mxu0 %v66
  %2757 = vmatpush1.msra.mxu0 %v65
  %2758 = vmatprep.subr.mxu0 %v68
  %2759 = vmatpush1.msra.mxu0 %v67
  %2760 = vmatprep.subr.mxu0 %v70
  %2761 = vmatpush1.msra.mxu0 %v69
  %2762 = vmatprep.subr.mxu0 %v72
  %2763 = vmatpush1.msra.mxu0 %v71
  %2764 = vmatprep.subr.mxu0 %v74
  %2765 = vmatpush1.msra.mxu0 %v73
  %2766 = vmatprep.subr.mxu0 %v76
  %2767 = vmatpush1.msra.mxu0 %v75
  %2768 = vmatprep.subr.mxu0 %v78
  %2769 = vmatpush1.msra.mxu0 %v77
  %2770 = vmatprep.subr.mxu0 %v80
  %2771 = vmatpush1.msra.mxu0 %v79
  %2772 = vmatprep.subr.mxu0 0.0
  %2773 = vmatpush1.msra.mxu0 0.0
  %2774 = vmatprep.subr.mxu0 0.0
  %2775 = vmatpush1.msra.mxu0 0.0
  %2776 = vmatprep.subr.mxu0 0.0
  %2777 = vmatpush1.msra.mxu0 0.0
  %2778 = vmatprep.subr.mxu0 0.0
  %2779 = vmatpush1.msra.mxu0 0.0
  %2780 = vmatprep.subr.mxu0 0.0
  %2781 = vmatpush1.msra.mxu0 0.0
  %2782 = vmatprep.subr.mxu0 0.0
  %2783 = vmatpush1.msra.mxu0 0.0
  %2784 = vmatprep.subr.mxu0 0.0
  %2785 = vmatpush1.msra.mxu0 0.0
  %2786 = vmatprep.subr.mxu0 0.0
  %2787 = vmatpush1.msra.mxu0 0.0
  %2788 = vmatprep.subr.mxu0 0.0
  %2789 = vmatpush1.msra.mxu0 0.0
  %2790 = vmatprep.subr.mxu0 0.0
  %2791 = vmatpush1.msra.mxu0 0.0
  %2792 = vmatprep.subr.mxu0 0.0
  %2793 = vmatpush1.msra.mxu0 0.0
  %2794 = vmatprep.subr.mxu0 0.0
  %2795 = vmatpush1.msra.mxu0 0.0
  %2796 = vmatprep.subr.mxu0 0.0
  %2797 = vmatpush1.msra.mxu0 0.0
  %2798 = vmatprep.subr.mxu0 0.0
  %2799 = vmatpush1.msra.mxu0 0.0
  %2800 = vmatprep.subr.mxu0 0.0
  %2801 = vmatpush1.msra.mxu0 0.0
  %2802 = vmatprep.subr.mxu0 0.0
  %2803 = vmatpush1.msra.mxu0 0.0
  %2804 = vmatprep.subr.mxu0 0.0
  %2805 = vmatpush1.msra.mxu0 0.0
  %2806 = vmatprep.subr.mxu0 0.0
  %2807 = vmatpush1.msra.mxu0 0.0
  %2808 = vmatprep.subr.mxu0 0.0
  %2809 = vmatpush1.msra.mxu0 0.0
  %2810 = vmatprep.subr.mxu0 0.0
  %2811 = vmatpush1.msra.mxu0 0.0
  %2812 = vmatprep.subr.mxu0 0.0
  %2813 = vmatpush1.msra.mxu0 0.0
  %2814 = vmatprep.subr.mxu0 0.0
  %2815 = vmatpush1.msra.mxu0 0.0
  %2816 = vmatprep.subr.mxu0 0.0
  %2817 = vmatpush1.msra.mxu0 0.0
  %2818 = vmatprep.subr.mxu0 0.0
  %2819 = vmatpush1.msra.mxu0 0.0
  %2820 = vmatprep.mubr.f32.mxu0 0.0
  %2821 = vmatmul.mubr.f32.gmra.mrb[0].mxu0 %v2754
  %v2822 = vpop.f32.mrb[0].mxu0
  %v2823 = vadd.f32 %v886, %v2822
  %v2824 = vpop.f32.mrb[0].mxu0
  %v2825 = vadd.f32 %v890, %v2824
  %2826 = vdwg.mxu0
  %v2827 = vld [vmem:[#allocation2 + $0x50] sm:$0xff]
  %v2828 = vld [vmem:[#allocation2 + $0x58] sm:$0xff]
  %v2829 = vadd.f32 %v2827, %v2823
  %v2830 = vxor.u32 %v2829, 2147483648
  %v2831 = vmul.f32 %v2830, 1.442695
  %v2832 = vpow.pop %v2831
  %v2833 = vadd.f32 %v2832, 1.0
  %v2834 = vrcp.pop %v2833
  %v2835 = vmul.f32 1.0, %v2834
  %v2836 = vmul.f32 %v2835, %v2825
  %v2837 = vadd.f32 %v2828, %v2836
  %v2838 = vtanh.pop %v2837
  %v2839 = vsub.f32 1.0, %v2835
  %2841 = vrot.lane.b32.xlu0 %v2838, 64
  %v2842 = vpop.permute.xlu0 %2841
  %v2844 = vmul.f32 %v2839, %v2842
  %v2845 = vmul.f32 %v2835, %v2750
  %v2846 = vadd.f32 %v2844, %v2845
  %2848 = vrot.lane.b32.xlu0 %v2846, 64
  %v2849 = vpop.permute.xlu0 %2848
  %v2850 = vsel %vm661, %v2849, 0
  %2852 = vmatprep.subr.mxu0 0.0
  %2853 = vmatpush1.msra.mxu0 %v82
  %2854 = vmatprep.subr.mxu0 0.0
  %2855 = vmatpush1.msra.mxu0 %v83
  %2856 = vmatprep.subr.mxu0 0.0
  %2857 = vmatpush1.msra.mxu0 %v84
  %2858 = vmatprep.subr.mxu0 0.0
  %2859 = vmatpush1.msra.mxu0 %v85
  %2860 = vmatprep.subr.mxu0 0.0
  %2861 = vmatpush1.msra.mxu0 %v86
  %2862 = vmatprep.subr.mxu0 0.0
  %2863 = vmatpush1.msra.mxu0 %v87
  %2864 = vmatprep.subr.mxu0 0.0
  %2865 = vmatpush1.msra.mxu0 %v88
  %2866 = vmatprep.subr.mxu0 0.0
  %2867 = vmatpush1.msra.mxu0 %v89
  %2868 = vmatprep.subr.mxu0 0.0
  %2869 = vmatpush1.msra.mxu0 0.0
  %2870 = vmatprep.subr.mxu0 0.0
  %2871 = vmatpush1.msra.mxu0 0.0
  %2872 = vmatprep.subr.mxu0 0.0
  %2873 = vmatpush1.msra.mxu0 0.0
  %2874 = vmatprep.subr.mxu0 0.0
  %2875 = vmatpush1.msra.mxu0 0.0
  %2876 = vmatprep.subr.mxu0 0.0
  %2877 = vmatpush1.msra.mxu0 0.0
  %2878 = vmatprep.subr.mxu0 0.0
  %2879 = vmatpush1.msra.mxu0 0.0
  %2880 = vmatprep.subr.mxu0 0.0
  %2881 = vmatpush1.msra.mxu0 0.0
  %2882 = vmatprep.subr.mxu0 0.0
  %2883 = vmatpush1.msra.mxu0 0.0
  %2884 = vmatprep.subr.mxu0 0.0
  %2885 = vmatpush1.msra.mxu0 0.0
  %2886 = vmatprep.subr.mxu0 0.0
  %2887 = vmatpush1.msra.mxu0 0.0
  %2888 = vmatprep.subr.mxu0 0.0
  %2889 = vmatpush1.msra.mxu0 0.0
  %2890 = vmatprep.subr.mxu0 0.0
  %2891 = vmatpush1.msra.mxu0 0.0
  %2892 = vmatprep.subr.mxu0 0.0
  %2893 = vmatpush1.msra.mxu0 0.0
  %2894 = vmatprep.subr.mxu0 0.0
  %2895 = vmatpush1.msra.mxu0 0.0
  %2896 = vmatprep.subr.mxu0 0.0
  %2897 = vmatpush1.msra.mxu0 0.0
  %2898 = vmatprep.subr.mxu0 0.0
  %2899 = vmatpush1.msra.mxu0 0.0
  %2900 = vmatprep.subr.mxu0 0.0
  %2901 = vmatpush1.msra.mxu0 0.0
  %2902 = vmatprep.subr.mxu0 0.0
  %2903 = vmatpush1.msra.mxu0 0.0
  %2904 = vmatprep.subr.mxu0 0.0
  %2905 = vmatpush1.msra.mxu0 0.0
  %2906 = vmatprep.subr.mxu0 0.0
  %2907 = vmatpush1.msra.mxu0 0.0
  %2908 = vmatprep.subr.mxu0 0.0
  %2909 = vmatpush1.msra.mxu0 0.0
  %2910 = vmatprep.subr.mxu0 0.0
  %2911 = vmatpush1.msra.mxu0 0.0
  %2912 = vmatprep.subr.mxu0 0.0
  %2913 = vmatpush1.msra.mxu0 0.0
  %2914 = vmatprep.subr.mxu0 0.0
  %2915 = vmatpush1.msra.mxu0 0.0
  %2916 = vmatprep.mubr.f32.mxu0 0.0
  %2917 = vmatmul.mubr.f32.gmra.mrb[0].mxu0 %v2850
  %v2918 = vpop.f32.mrb[0].mxu0
  %v2919 = vadd.f32 %v991, %v2918
  %v2920 = vpop.f32.mrb[0].mxu0
  %2921 = vdwg.mxu0
  %v2922 = vxor.u32 %v2919, 2147483648
  %v2923 = vmul.f32 %v2922, 1.442695
  %v2924 = vpow.pop %v2923
  %v2925 = vadd.f32 %v2924, 1.0
  %v2926 = vrcp.pop %v2925
  %v2927 = vmul.f32 1.0, %v2926
  %2929 = vrot.lane.b32.xlu0 %v2927, 112
  %v2930 = vpop.permute.xlu0 %2929
  %v2932 = vmul.f32 %v2919, %v2930
  %v2933 = vld [vmem:[#allocation3 + $0x28] sm:$0xff]
  %v2935 = vsel %vm145, %v2932, 0
  %2937 = vmatprep.subr.mxu0 0.0
  %2938 = vmatpush1.msra.mxu0 %v91
  %2939 = vmatprep.subr.mxu0 0.0
  %2940 = vmatpush1.msra.mxu0 %v92
  %2941 = vmatprep.subr.mxu0 0.0
  %2942 = vmatpush1.msra.mxu0 0.0
  %2943 = vmatprep.subr.mxu0 0.0
  %2944 = vmatpush1.msra.mxu0 0.0
  %2945 = vmatprep.subr.mxu0 0.0
  %2946 = vmatpush1.msra.mxu0 0.0
  %2947 = vmatprep.subr.mxu0 0.0
  %2948 = vmatpush1.msra.mxu0 0.0
  %2949 = vmatprep.subr.mxu0 0.0
  %2950 = vmatpush1.msra.mxu0 0.0
  %2951 = vmatprep.subr.mxu0 0.0
  %2952 = vmatpush1.msra.mxu0 0.0
  %2953 = vmatprep.subr.mxu0 0.0
  %2954 = vmatpush1.msra.mxu0 0.0
  %2955 = vmatprep.subr.mxu0 0.0
  %2956 = vmatpush1.msra.mxu0 0.0
  %2957 = vmatprep.subr.mxu0 0.0
  %2958 = vmatpush1.msra.mxu0 0.0
  %2959 = vmatprep.subr.mxu0 0.0
  %2960 = vmatpush1.msra.mxu0 0.0
  %2961 = vmatprep.subr.mxu0 0.0
  %2962 = vmatpush1.msra.mxu0 0.0
  %2963 = vmatprep.subr.mxu0 0.0
  %2964 = vmatpush1.msra.mxu0 0.0
  %2965 = vmatprep.subr.mxu0 0.0
  %2966 = vmatpush1.msra.mxu0 0.0
  %2967 = vmatprep.subr.mxu0 0.0
  %2968 = vmatpush1.msra.mxu0 0.0
  %2969 = vmatprep.subr.mxu0 0.0
  %2970 = vmatpush1.msra.mxu0 0.0
  %2971 = vmatprep.subr.mxu0 0.0
  %2972 = vmatpush1.msra.mxu0 0.0
  %2973 = vmatprep.subr.mxu0 0.0
  %2974 = vmatpush1.msra.mxu0 0.0
  %2975 = vmatprep.subr.mxu0 0.0
  %2976 = vmatpush1.msra.mxu0 0.0
  %2977 = vmatprep.subr.mxu0 0.0
  %2978 = vmatpush1.msra.mxu0 0.0
  %2979 = vmatprep.subr.mxu0 0.0
  %2980 = vmatpush1.msra.mxu0 0.0
  %2981 = vmatprep.subr.mxu0 0.0
  %2982 = vmatpush1.msra.mxu0 0.0
  %2983 = vmatprep.subr.mxu0 0.0
  %2984 = vmatpush1.msra.mxu0 0.0
  %2985 = vmatprep.subr.mxu0 0.0
  %2986 = vmatpush1.msra.mxu0 0.0
  %2987 = vmatprep.subr.mxu0 0.0
  %2988 = vmatpush1.msra.mxu0 0.0
  %2989 = vmatprep.subr.mxu0 0.0
  %2990 = vmatpush1.msra.mxu0 0.0
  %2991 = vmatprep.subr.mxu0 0.0
  %2992 = vmatpush1.msra.mxu0 0.0
  %2993 = vmatprep.subr.mxu0 0.0
  %2994 = vmatpush1.msra.mxu0 0.0
  %2995 = vmatprep.subr.mxu0 0.0
  %2996 = vmatpush1.msra.mxu0 0.0
  %2997 = vmatprep.subr.mxu0 0.0
  %2998 = vmatpush1.msra.mxu0 0.0
  %2999 = vmatprep.subr.mxu0 0.0
  %3000 = vmatpush1.msra.mxu0 0.0
  %3001 = vmatprep.mubr.f32.mxu0 0.0
  %3002 = vmatmul.mubr.f32.gmra.mrb[0].mxu0 %v2935
  %v3003 = vpop.f32.mrb[0].mxu0
  %v3004 = vadd.f32 %v2933, %v3003
  %v3005 = vpop.f32.mrb[0].mxu0
  %3006 = vdwg.mxu0
  %v3007 = vmax.f32 %v3004, 0.0
  %3008 = vrot.lane.b32.xlu0 %v2739, 112
  %v3009 = vpop.permute.xlu0 %3008
  %v3011 = vsel %vm145, %v3007, %v3009
  %v3013 = vsel %vm1161, %v3011, 0
  %3015 = vmatprep.subr.mxu0 0.0
  %3016 = vmatpush1.msra.mxu0 %v96
  %3017 = vmatprep.subr.mxu0 0.0
  %3018 = vmatpush1.msra.mxu0 %v97
  %3019 = vmatprep.subr.mxu0 0.0
  %3020 = vmatpush1.msra.mxu0 %v98
  %3021 = vmatprep.subr.mxu0 0.0
  %3022 = vmatpush1.msra.mxu0 %v99
  %3023 = vmatprep.subr.mxu0 0.0
  %3024 = vmatpush1.msra.mxu0 %v100
  %3025 = vmatprep.subr.mxu0 0.0
  %3026 = vmatpush1.msra.mxu0 %v101
  %3027 = vmatprep.subr.mxu0 0.0
  %3028 = vmatpush1.msra.mxu0 0.0
  %3029 = vmatprep.subr.mxu0 0.0
  %3030 = vmatpush1.msra.mxu0 0.0
  %3031 = vmatprep.subr.mxu0 0.0
  %3032 = vmatpush1.msra.mxu0 0.0
  %3033 = vmatprep.subr.mxu0 0.0
  %3034 = vmatpush1.msra.mxu0 0.0
  %3035 = vmatprep.subr.mxu0 0.0
  %3036 = vmatpush1.msra.mxu0 0.0
  %3037 = vmatprep.subr.mxu0 0.0
  %3038 = vmatpush1.msra.mxu0 0.0
  %3039 = vmatprep.subr.mxu0 0.0
  %3040 = vmatpush1.msra.mxu0 0.0
  %3041 = vmatprep.subr.mxu0 0.0
  %3042 = vmatpush1.msra.mxu0 0.0
  %3043 = vmatprep.subr.mxu0 0.0
  %3044 = vmatpush1.msra.mxu0 0.0
  %3045 = vmatprep.subr.mxu0 0.0
  %3046 = vmatpush1.msra.mxu0 0.0
  %3047 = vmatprep.subr.mxu0 0.0
  %3048 = vmatpush1.msra.mxu0 0.0
  %3049 = vmatprep.subr.mxu0 0.0
  %3050 = vmatpush1.msra.mxu0 0.0
  %3051 = vmatprep.subr.mxu0 0.0
  %3052 = vmatpush1.msra.mxu0 0.0
  %3053 = vmatprep.subr.mxu0 0.0
  %3054 = vmatpush1.msra.mxu0 0.0
  %3055 = vmatprep.subr.mxu0 0.0
  %3056 = vmatpush1.msra.mxu0 0.0
  %3057 = vmatprep.subr.mxu0 0.0
  %3058 = vmatpush1.msra.mxu0 0.0
  %3059 = vmatprep.subr.mxu0 0.0
  %3060 = vmatpush1.msra.mxu0 0.0
  %3061 = vmatprep.subr.mxu0 0.0
  %3062 = vmatpush1.msra.mxu0 0.0
  %3063 = vmatprep.subr.mxu0 0.0
  %3064 = vmatpush1.msra.mxu0 0.0
  %3065 = vmatprep.subr.mxu0 0.0
  %3066 = vmatpush1.msra.mxu0 0.0
  %3067 = vmatprep.subr.mxu0 0.0
  %3068 = vmatpush1.msra.mxu0 0.0
  %3069 = vmatprep.subr.mxu0 0.0
  %3070 = vmatpush1.msra.mxu0 0.0
  %3071 = vmatprep.subr.mxu0 0.0
  %3072 = vmatpush1.msra.mxu0 0.0
  %3073 = vmatprep.subr.mxu0 0.0
  %3074 = vmatpush1.msra.mxu0 0.0
  %3075 = vmatprep.subr.mxu0 0.0
  %3076 = vmatpush1.msra.mxu0 0.0
  %3077 = vmatprep.subr.mxu0 0.0
  %3078 = vmatpush1.msra.mxu0 0.0
  %3079 = vmatprep.mubr.f32.mxu0 0.0
  %3080 = vmatmul.mubr.f32.gmra.mrb[0].mxu0 %v3013
  %v3081 = vpop.f32.mrb[0].mxu0
  %v3082 = vadd.f32 %v1159, %v3081
  %v3083 = vpop.f32.mrb[0].mxu0
  %3084 = vdwg.mxu0
  %v3085 = vxor.u32 %v3082, 2147483648
  %v3086 = vmul.f32 %v3085, 1.442695
  %v3087 = vpow.pop %v3086
  %v3088 = vadd.f32 %v3087, 1.0
  %v3089 = vrcp.pop %v3088
  %v3090 = vmul.f32 1.0, %v3089
  %3092 = vrot.lane.b32.xlu0 %v3082, 32
  %v3093 = vpop.permute.xlu0 %3092
  %v3095 = vmul.f32 %v3090, %v3093
  %3097 = vrot.lane.b32.xlu0 %v3095, 64
  %v3098 = vpop.permute.xlu0 %3097
  %v3100 = vadd.f32 %v3082, %v3098
  %v3101 = vtanh.pop %v3100
  %v3102 = vsub.f32 1.0, %v3090
  %3104 = vrot.lane.b32.xlu0 %v3101, 96
  %v3105 = vpop.permute.xlu0 %3104
  %v3107 = vmul.f32 %v3102, %v3105
  %v3108 = vmul.f32 %v3090, %v2739
  %v3109 = vadd.f32 %v3107, %v3108
  %3111 = vrot.lane.b32.xlu0 %v3109, 96
  %v3112 = vpop.permute.xlu0 %3111
  %3114 = vst.msk [vmem:[%s16 + $0x28] sm:$0xff] %vm486, %v3112
  %3116 = vset.pattern.permute.xlu0 0
  %3117 = vperm.xlu0 %3116, %v870
  %v3118 = vpop.permute.xlu0 %3117
  %v3120 = vmul.f32 %v2846, %v3118
  %3122 = vrot.lane.b32.xlu0 %v3120, 64
  %v3123 = vpop.permute.xlu0 %3122
  %v3124 = vsel %vm661, %v3123, 0
  %3126 = vmatprep.subr.mxu0 %v66
  %3127 = vmatpush1.msra.mxu0 %v65
  %3128 = vmatprep.subr.mxu0 %v68
  %3129 = vmatpush1.msra.mxu0 %v67
  %3130 = vmatprep.subr.mxu0 %v70
  %3131 = vmatpush1.msra.mxu0 %v69
  %3132 = vmatprep.subr.mxu0 %v72
  %3133 = vmatpush1.msra.mxu0 %v71
  %3134 = vmatprep.subr.mxu0 %v74
  %3135 = vmatpush1.msra.mxu0 %v73
  %3136 = vmatprep.subr.mxu0 %v76
  %3137 = vmatpush1.msra.mxu0 %v75
  %3138 = vmatprep.subr.mxu0 %v78
  %3139 = vmatpush1.msra.mxu0 %v77
  %3140 = vmatprep.subr.mxu0 %v80
  %3141 = vmatpush1.msra.mxu0 %v79
  %3142 = vmatprep.subr.mxu0 0.0
  %3143 = vmatpush1.msra.mxu0 0.0
  %3144 = vmatprep.subr.mxu0 0.0
  %3145 = vmatpush1.msra.mxu0 0.0
  %3146 = vmatprep.subr.mxu0 0.0
  %3147 = vmatpush1.msra.mxu0 0.0
  %3148 = vmatprep.subr.mxu0 0.0
  %3149 = vmatpush1.msra.mxu0 0.0
  %3150 = vmatprep.subr.mxu0 0.0
  %3151 = vmatpush1.msra.mxu0 0.0
  %3152 = vmatprep.subr.mxu0 0.0
  %3153 = vmatpush1.msra.mxu0 0.0
  %3154 = vmatprep.subr.mxu0 0.0
  %3155 = vmatpush1.msra.mxu0 0.0
  %3156 = vmatprep.subr.mxu0 0.0
  %3157 = vmatpush1.msra.mxu0 0.0
  %3158 = vmatprep.subr.mxu0 0.0
  %3159 = vmatpush1.msra.mxu0 0.0
  %3160 = vmatprep.subr.mxu0 0.0
  %3161 = vmatpush1.msra.mxu0 0.0
  %3162 = vmatprep.subr.mxu0 0.0
  %3163 = vmatpush1.msra.mxu0 0.0
  %3164 = vmatprep.subr.mxu0 0.0
  %3165 = vmatpush1.msra.mxu0 0.0
  %3166 = vmatprep.subr.mxu0 0.0
  %3167 = vmatpush1.msra.mxu0 0.0
  %3168 = vmatprep.subr.mxu0 0.0
  %3169 = vmatpush1.msra.mxu0 0.0
  %3170 = vmatprep.subr.mxu0 0.0
  %3171 = vmatpush1.msra.mxu0 0.0
  %3172 = vmatprep.subr.mxu0 0.0
  %3173 = vmatpush1.msra.mxu0 0.0
  %3174 = vmatprep.subr.mxu0 0.0
  %3175 = vmatpush1.msra.mxu0 0.0
  %3176 = vmatprep.subr.mxu0 0.0
  %3177 = vmatpush1.msra.mxu0 0.0
  %3178 = vmatprep.subr.mxu0 0.0
  %3179 = vmatpush1.msra.mxu0 0.0
  %3180 = vmatprep.subr.mxu0 0.0
  %3181 = vmatpush1.msra.mxu0 0.0
  %3182 = vmatprep.subr.mxu0 0.0
  %3183 = vmatpush1.msra.mxu0 0.0
  %3184 = vmatprep.subr.mxu0 0.0
  %3185 = vmatpush1.msra.mxu0 0.0
  %3186 = vmatprep.subr.mxu0 0.0
  %3187 = vmatpush1.msra.mxu0 0.0
  %3188 = vmatprep.subr.mxu0 0.0
  %3189 = vmatpush1.msra.mxu0 0.0
  %3190 = vmatprep.mubr.f32.mxu0 0.0
  %3191 = vmatmul.mubr.f32.gmra.mrb[0].mxu0 %v3124
  %v3192 = vpop.f32.mrb[0].mxu0
  %v3193 = vadd.f32 %v886, %v3192
  %v3194 = vpop.f32.mrb[0].mxu0
  %v3195 = vadd.f32 %v890, %v3194
  %3196 = vdwg.mxu0
  %v3197 = vld [vmem:[#allocation2 + $0x60] sm:$0xff]
  %v3198 = vld [vmem:[#allocation2 + $0x68] sm:$0xff]
  %v3199 = vadd.f32 %v3197, %v3193
  %v3200 = vxor.u32 %v3199, 2147483648
  %v3201 = vmul.f32 %v3200, 1.442695
  %v3202 = vpow.pop %v3201
  %v3203 = vadd.f32 %v3202, 1.0
  %v3204 = vrcp.pop %v3203
  %v3205 = vmul.f32 1.0, %v3204
  %v3206 = vmul.f32 %v3205, %v3195
  %v3207 = vadd.f32 %v3198, %v3206
  %v3208 = vtanh.pop %v3207
  %v3209 = vsub.f32 1.0, %v3205
  %3211 = vrot.lane.b32.xlu0 %v3208, 64
  %v3212 = vpop.permute.xlu0 %3211
  %v3214 = vmul.f32 %v3209, %v3212
  %v3215 = vmul.f32 %v3205, %v3120
  %v3216 = vadd.f32 %v3214, %v3215
  %3218 = vrot.lane.b32.xlu0 %v3216, 64
  %v3219 = vpop.permute.xlu0 %3218
  %v3220 = vsel %vm661, %v3219, 0
  %3222 = vmatprep.subr.mxu0 0.0
  %3223 = vmatpush1.msra.mxu0 %v82
  %3224 = vmatprep.subr.mxu0 0.0
  %3225 = vmatpush1.msra.mxu0 %v83
  %3226 = vmatprep.subr.mxu0 0.0
  %3227 = vmatpush1.msra.mxu0 %v84
  %3228 = vmatprep.subr.mxu0 0.0
  %3229 = vmatpush1.msra.mxu0 %v85
  %3230 = vmatprep.subr.mxu0 0.0
  %3231 = vmatpush1.msra.mxu0 %v86
  %3232 = vmatprep.subr.mxu0 0.0
  %3233 = vmatpush1.msra.mxu0 %v87
  %3234 = vmatprep.subr.mxu0 0.0
  %3235 = vmatpush1.msra.mxu0 %v88
  %3236 = vmatprep.subr.mxu0 0.0
  %3237 = vmatpush1.msra.mxu0 %v89
  %3238 = vmatprep.subr.mxu0 0.0
  %3239 = vmatpush1.msra.mxu0 0.0
  %3240 = vmatprep.subr.mxu0 0.0
  %3241 = vmatpush1.msra.mxu0 0.0
  %3242 = vmatprep.subr.mxu0 0.0
  %3243 = vmatpush1.msra.mxu0 0.0
  %3244 = vmatprep.subr.mxu0 0.0
  %3245 = vmatpush1.msra.mxu0 0.0
  %3246 = vmatprep.subr.mxu0 0.0
  %3247 = vmatpush1.msra.mxu0 0.0
  %3248 = vmatprep.subr.mxu0 0.0
  %3249 = vmatpush1.msra.mxu0 0.0
  %3250 = vmatprep.subr.mxu0 0.0
  %3251 = vmatpush1.msra.mxu0 0.0
  %3252 = vmatprep.subr.mxu0 0.0
  %3253 = vmatpush1.msra.mxu0 0.0
  %3254 = vmatprep.subr.mxu0 0.0
  %3255 = vmatpush1.msra.mxu0 0.0
  %3256 = vmatprep.subr.mxu0 0.0
  %3257 = vmatpush1.msra.mxu0 0.0
  %3258 = vmatprep.subr.mxu0 0.0
  %3259 = vmatpush1.msra.mxu0 0.0
  %3260 = vmatprep.subr.mxu0 0.0
  %3261 = vmatpush1.msra.mxu0 0.0
  %3262 = vmatprep.subr.mxu0 0.0
  %3263 = vmatpush1.msra.mxu0 0.0
  %3264 = vmatprep.subr.mxu0 0.0
  %3265 = vmatpush1.msra.mxu0 0.0
  %3266 = vmatprep.subr.mxu0 0.0
  %3267 = vmatpush1.msra.mxu0 0.0
  %3268 = vmatprep.subr.mxu0 0.0
  %3269 = vmatpush1.msra.mxu0 0.0
  %3270 = vmatprep.subr.mxu0 0.0
  %3271 = vmatpush1.msra.mxu0 0.0
  %3272 = vmatprep.subr.mxu0 0.0
  %3273 = vmatpush1.msra.mxu0 0.0
  %3274 = vmatprep.subr.mxu0 0.0
  %3275 = vmatpush1.msra.mxu0 0.0
  %3276 = vmatprep.subr.mxu0 0.0
  %3277 = vmatpush1.msra.mxu0 0.0
  %3278 = vmatprep.subr.mxu0 0.0
  %3279 = vmatpush1.msra.mxu0 0.0
  %3280 = vmatprep.subr.mxu0 0.0
  %3281 = vmatpush1.msra.mxu0 0.0
  %3282 = vmatprep.subr.mxu0 0.0
  %3283 = vmatpush1.msra.mxu0 0.0
  %3284 = vmatprep.subr.mxu0 0.0
  %3285 = vmatpush1.msra.mxu0 0.0
  %3286 = vmatprep.mubr.f32.mxu0 0.0
  %3287 = vmatmul.mubr.f32.gmra.mrb[0].mxu0 %v3220
  %v3288 = vpop.f32.mrb[0].mxu0
  %v3289 = vadd.f32 %v991, %v3288
  %v3290 = vpop.f32.mrb[0].mxu0
  %3291 = vdwg.mxu0
  %v3292 = vxor.u32 %v3289, 2147483648
  %v3293 = vmul.f32 %v3292, 1.442695
  %v3294 = vpow.pop %v3293
  %v3295 = vadd.f32 %v3294, 1.0
  %v3296 = vrcp.pop %v3295
  %v3297 = vmul.f32 1.0, %v3296
  %3299 = vrot.lane.b32.xlu0 %v3297, 112
  %v3300 = vpop.permute.xlu0 %3299
  %v3302 = vmul.f32 %v3289, %v3300
  %v3303 = vld [vmem:[#allocation3 + $0x30] sm:$0xff]
  %v3305 = vsel %vm145, %v3302, 0
  %3307 = vmatprep.subr.mxu0 0.0
  %3308 = vmatpush1.msra.mxu0 %v91
  %3309 = vmatprep.subr.mxu0 0.0
  %3310 = vmatpush1.msra.mxu0 %v92
  %3311 = vmatprep.subr.mxu0 0.0
  %3312 = vmatpush1.msra.mxu0 0.0
  %3313 = vmatprep.subr.mxu0 0.0
  %3314 = vmatpush1.msra.mxu0 0.0
  %3315 = vmatprep.subr.mxu0 0.0
  %3316 = vmatpush1.msra.mxu0 0.0
  %3317 = vmatprep.subr.mxu0 0.0
  %3318 = vmatpush1.msra.mxu0 0.0
  %3319 = vmatprep.subr.mxu0 0.0
  %3320 = vmatpush1.msra.mxu0 0.0
  %3321 = vmatprep.subr.mxu0 0.0
  %3322 = vmatpush1.msra.mxu0 0.0
  %3323 = vmatprep.subr.mxu0 0.0
  %3324 = vmatpush1.msra.mxu0 0.0
  %3325 = vmatprep.subr.mxu0 0.0
  %3326 = vmatpush1.msra.mxu0 0.0
  %3327 = vmatprep.subr.mxu0 0.0
  %3328 = vmatpush1.msra.mxu0 0.0
  %3329 = vmatprep.subr.mxu0 0.0
  %3330 = vmatpush1.msra.mxu0 0.0
  %3331 = vmatprep.subr.mxu0 0.0
  %3332 = vmatpush1.msra.mxu0 0.0
  %3333 = vmatprep.subr.mxu0 0.0
  %3334 = vmatpush1.msra.mxu0 0.0
  %3335 = vmatprep.subr.mxu0 0.0
  %3336 = vmatpush1.msra.mxu0 0.0
  %3337 = vmatprep.subr.mxu0 0.0
  %3338 = vmatpush1.msra.mxu0 0.0
  %3339 = vmatprep.subr.mxu0 0.0
  %3340 = vmatpush1.msra.mxu0 0.0
  %3341 = vmatprep.subr.mxu0 0.0
  %3342 = vmatpush1.msra.mxu0 0.0
  %3343 = vmatprep.subr.mxu0 0.0
  %3344 = vmatpush1.msra.mxu0 0.0
  %3345 = vmatprep.subr.mxu0 0.0
  %3346 = vmatpush1.msra.mxu0 0.0
  %3347 = vmatprep.subr.mxu0 0.0
  %3348 = vmatpush1.msra.mxu0 0.0
  %3349 = vmatprep.subr.mxu0 0.0
  %3350 = vmatpush1.msra.mxu0 0.0
  %3351 = vmatprep.subr.mxu0 0.0
  %3352 = vmatpush1.msra.mxu0 0.0
  %3353 = vmatprep.subr.mxu0 0.0
  %3354 = vmatpush1.msra.mxu0 0.0
  %3355 = vmatprep.subr.mxu0 0.0
  %3356 = vmatpush1.msra.mxu0 0.0
  %3357 = vmatprep.subr.mxu0 0.0
  %3358 = vmatpush1.msra.mxu0 0.0
  %3359 = vmatprep.subr.mxu0 0.0
  %3360 = vmatpush1.msra.mxu0 0.0
  %3361 = vmatprep.subr.mxu0 0.0
  %3362 = vmatpush1.msra.mxu0 0.0
  %3363 = vmatprep.subr.mxu0 0.0
  %3364 = vmatpush1.msra.mxu0 0.0
  %3365 = vmatprep.subr.mxu0 0.0
  %3366 = vmatpush1.msra.mxu0 0.0
  %3367 = vmatprep.subr.mxu0 0.0
  %3368 = vmatpush1.msra.mxu0 0.0
  %3369 = vmatprep.subr.mxu0 0.0
  %3370 = vmatpush1.msra.mxu0 0.0
  %3371 = vmatprep.mubr.f32.mxu0 0.0
  %3372 = vmatmul.mubr.f32.gmra.mrb[0].mxu0 %v3305
  %v3373 = vpop.f32.mrb[0].mxu0
  %v3374 = vadd.f32 %v3303, %v3373
  %v3375 = vpop.f32.mrb[0].mxu0
  %3376 = vdwg.mxu0
  %v3377 = vmax.f32 %v3374, 0.0
  %3378 = vrot.lane.b32.xlu0 %v3109, 112
  %v3379 = vpop.permute.xlu0 %3378
  %v3381 = vsel %vm145, %v3377, %v3379
  %v3383 = vsel %vm1161, %v3381, 0
  %3385 = vmatprep.subr.mxu0 0.0
  %3386 = vmatpush1.msra.mxu0 %v96
  %3387 = vmatprep.subr.mxu0 0.0
  %3388 = vmatpush1.msra.mxu0 %v97
  %3389 = vmatprep.subr.mxu0 0.0
  %3390 = vmatpush1.msra.mxu0 %v98
  %3391 = vmatprep.subr.mxu0 0.0
  %3392 = vmatpush1.msra.mxu0 %v99
  %3393 = vmatprep.subr.mxu0 0.0
  %3394 = vmatpush1.msra.mxu0 %v100
  %3395 = vmatprep.subr.mxu0 0.0
  %3396 = vmatpush1.msra.mxu0 %v101
  %3397 = vmatprep.subr.mxu0 0.0
  %3398 = vmatpush1.msra.mxu0 0.0
  %3399 = vmatprep.subr.mxu0 0.0
  %3400 = vmatpush1.msra.mxu0 0.0
  %3401 = vmatprep.subr.mxu0 0.0
  %3402 = vmatpush1.msra.mxu0 0.0
  %3403 = vmatprep.subr.mxu0 0.0
  %3404 = vmatpush1.msra.mxu0 0.0
  %3405 = vmatprep.subr.mxu0 0.0
  %3406 = vmatpush1.msra.mxu0 0.0
  %3407 = vmatprep.subr.mxu0 0.0
  %3408 = vmatpush1.msra.mxu0 0.0
  %3409 = vmatprep.subr.mxu0 0.0
  %3410 = vmatpush1.msra.mxu0 0.0
  %3411 = vmatprep.subr.mxu0 0.0
  %3412 = vmatpush1.msra.mxu0 0.0
  %3413 = vmatprep.subr.mxu0 0.0
  %3414 = vmatpush1.msra.mxu0 0.0
  %3415 = vmatprep.subr.mxu0 0.0
  %3416 = vmatpush1.msra.mxu0 0.0
  %3417 = vmatprep.subr.mxu0 0.0
  %3418 = vmatpush1.msra.mxu0 0.0
  %3419 = vmatprep.subr.mxu0 0.0
  %3420 = vmatpush1.msra.mxu0 0.0
  %3421 = vmatprep.subr.mxu0 0.0
  %3422 = vmatpush1.msra.mxu0 0.0
  %3423 = vmatprep.subr.mxu0 0.0
  %3424 = vmatpush1.msra.mxu0 0.0
  %3425 = vmatprep.subr.mxu0 0.0
  %3426 = vmatpush1.msra.mxu0 0.0
  %3427 = vmatprep.subr.mxu0 0.0
  %3428 = vmatpush1.msra.mxu0 0.0
  %3429 = vmatprep.subr.mxu0 0.0
  %3430 = vmatpush1.msra.mxu0 0.0
  %3431 = vmatprep.subr.mxu0 0.0
  %3432 = vmatpush1.msra.mxu0 0.0
  %3433 = vmatprep.subr.mxu0 0.0
  %3434 = vmatpush1.msra.mxu0 0.0
  %3435 = vmatprep.subr.mxu0 0.0
  %3436 = vmatpush1.msra.mxu0 0.0
  %3437 = vmatprep.subr.mxu0 0.0
  %3438 = vmatpush1.msra.mxu0 0.0
  %3439 = vmatprep.subr.mxu0 0.0
  %3440 = vmatpush1.msra.mxu0 0.0
  %3441 = vmatprep.subr.mxu0 0.0
  %3442 = vmatpush1.msra.mxu0 0.0
  %3443 = vmatprep.subr.mxu0 0.0
  %3444 = vmatpush1.msra.mxu0 0.0
  %3445 = vmatprep.subr.mxu0 0.0
  %3446 = vmatpush1.msra.mxu0 0.0
  %3447 = vmatprep.subr.mxu0 0.0
  %3448 = vmatpush1.msra.mxu0 0.0
  %3449 = vmatprep.mubr.f32.mxu0 0.0
  %3450 = vmatmul.mubr.f32.gmra.mrb[0].mxu0 %v3383
  %v3451 = vpop.f32.mrb[0].mxu0
  %v3452 = vadd.f32 %v1159, %v3451
  %v3453 = vpop.f32.mrb[0].mxu0
  %3454 = vdwg.mxu0
  %v3455 = vxor.u32 %v3452, 2147483648
  %v3456 = vmul.f32 %v3455, 1.442695
  %v3457 = vpow.pop %v3456
  %v3458 = vadd.f32 %v3457, 1.0
  %v3459 = vrcp.pop %v3458
  %v3460 = vmul.f32 1.0, %v3459
  %3462 = vrot.lane.b32.xlu0 %v3452, 32
  %v3463 = vpop.permute.xlu0 %3462
  %v3465 = vmul.f32 %v3460, %v3463
  %3467 = vrot.lane.b32.xlu0 %v3465, 64
  %v3468 = vpop.permute.xlu0 %3467
  %v3470 = vadd.f32 %v3452, %v3468
  %v3471 = vtanh.pop %v3470
  %v3472 = vsub.f32 1.0, %v3460
  %3474 = vrot.lane.b32.xlu0 %v3471, 96
  %v3475 = vpop.permute.xlu0 %3474
  %v3477 = vmul.f32 %v3472, %v3475
  %v3478 = vmul.f32 %v3460, %v3109
  %v3479 = vadd.f32 %v3477, %v3478
  %3481 = vrot.lane.b32.xlu0 %v3479, 96
  %v3482 = vpop.permute.xlu0 %3481
  %3484 = vst.msk [vmem:[%s16 + $0x30] sm:$0xff] %vm486, %v3482
  %3486 = vset.pattern.permute.xlu0 0
  %3487 = vperm.xlu0 %3486, %v871
  %v3488 = vpop.permute.xlu0 %3487
  %v3490 = vmul.f32 %v3216, %v3488
  %3492 = vrot.lane.b32.xlu0 %v3490, 64
  %v3493 = vpop.permute.xlu0 %3492
  %v3494 = vsel %vm661, %v3493, 0
  %3496 = vmatprep.subr.mxu0 %v66
  %3497 = vmatpush1.msra.mxu0 %v65
  %3498 = vmatprep.subr.mxu0 %v68
  %3499 = vmatpush1.msra.mxu0 %v67
  %3500 = vmatprep.subr.mxu0 %v70
  %3501 = vmatpush1.msra.mxu0 %v69
  %3502 = vmatprep.subr.mxu0 %v72
  %3503 = vmatpush1.msra.mxu0 %v71
  %3504 = vmatprep.subr.mxu0 %v74
  %3505 = vmatpush1.msra.mxu0 %v73
  %3506 = vmatprep.subr.mxu0 %v76
  %3507 = vmatpush1.msra.mxu0 %v75
  %3508 = vmatprep.subr.mxu0 %v78
  %3509 = vmatpush1.msra.mxu0 %v77
  %3510 = vmatprep.subr.mxu0 %v80
  %3511 = vmatpush1.msra.mxu0 %v79
  %3512 = vmatprep.subr.mxu0 0.0
  %3513 = vmatpush1.msra.mxu0 0.0
  %3514 = vmatprep.subr.mxu0 0.0
  %3515 = vmatpush1.msra.mxu0 0.0
  %3516 = vmatprep.subr.mxu0 0.0
  %3517 = vmatpush1.msra.mxu0 0.0
  %3518 = vmatprep.subr.mxu0 0.0
  %3519 = vmatpush1.msra.mxu0 0.0
  %3520 = vmatprep.subr.mxu0 0.0
  %3521 = vmatpush1.msra.mxu0 0.0
  %3522 = vmatprep.subr.mxu0 0.0
  %3523 = vmatpush1.msra.mxu0 0.0
  %3524 = vmatprep.subr.mxu0 0.0
  %3525 = vmatpush1.msra.mxu0 0.0
  %3526 = vmatprep.subr.mxu0 0.0
  %3527 = vmatpush1.msra.mxu0 0.0
  %3528 = vmatprep.subr.mxu0 0.0
  %3529 = vmatpush1.msra.mxu0 0.0
  %3530 = vmatprep.subr.mxu0 0.0
  %3531 = vmatpush1.msra.mxu0 0.0
  %3532 = vmatprep.subr.mxu0 0.0
  %3533 = vmatpush1.msra.mxu0 0.0
  %3534 = vmatprep.subr.mxu0 0.0
  %3535 = vmatpush1.msra.mxu0 0.0
  %3536 = vmatprep.subr.mxu0 0.0
  %3537 = vmatpush1.msra.mxu0 0.0
  %3538 = vmatprep.subr.mxu0 0.0
  %3539 = vmatpush1.msra.mxu0 0.0
  %3540 = vmatprep.subr.mxu0 0.0
  %3541 = vmatpush1.msra.mxu0 0.0
  %3542 = vmatprep.subr.mxu0 0.0
  %3543 = vmatpush1.msra.mxu0 0.0
  %3544 = vmatprep.subr.mxu0 0.0
  %3545 = vmatpush1.msra.mxu0 0.0
  %3546 = vmatprep.subr.mxu0 0.0
  %3547 = vmatpush1.msra.mxu0 0.0
  %3548 = vmatprep.subr.mxu0 0.0
  %3549 = vmatpush1.msra.mxu0 0.0
  %3550 = vmatprep.subr.mxu0 0.0
  %3551 = vmatpush1.msra.mxu0 0.0
  %3552 = vmatprep.subr.mxu0 0.0
  %3553 = vmatpush1.msra.mxu0 0.0
  %3554 = vmatprep.subr.mxu0 0.0
  %3555 = vmatpush1.msra.mxu0 0.0
  %3556 = vmatprep.subr.mxu0 0.0
  %3557 = vmatpush1.msra.mxu0 0.0
  %3558 = vmatprep.subr.mxu0 0.0
  %3559 = vmatpush1.msra.mxu0 0.0
  %3560 = vmatprep.mubr.f32.mxu0 0.0
  %3561 = vmatmul.mubr.f32.gmra.mrb[0].mxu0 %v3494
  %v3562 = vpop.f32.mrb[0].mxu0
  %v3563 = vadd.f32 %v886, %v3562
  %v3564 = vpop.f32.mrb[0].mxu0
  %v3565 = vadd.f32 %v890, %v3564
  %3566 = vdwg.mxu0
  %v3567 = vld [vmem:[#allocation2 + $0x70] sm:$0xff]
  %v3568 = vld [vmem:[#allocation2 + $0x78] sm:$0xff]
  %v3569 = vadd.f32 %v3567, %v3563
  %v3570 = vxor.u32 %v3569, 2147483648
  %v3571 = vmul.f32 %v3570, 1.442695
  %v3572 = vpow.pop %v3571
  %v3573 = vadd.f32 %v3572, 1.0
  %v3574 = vrcp.pop %v3573
  %v3575 = vmul.f32 1.0, %v3574
  %v3576 = vmul.f32 %v3575, %v3565
  %v3577 = vadd.f32 %v3568, %v3576
  %v3578 = vtanh.pop %v3577
  %v3579 = vsub.f32 1.0, %v3575
  %3581 = vrot.lane.b32.xlu0 %v3578, 64
  %v3582 = vpop.permute.xlu0 %3581
  %v3584 = vmul.f32 %v3579, %v3582
  %v3585 = vmul.f32 %v3575, %v3490
  %v3586 = vadd.f32 %v3584, %v3585
  %3588 = vrot.lane.b32.xlu0 %v3586, 64
  %v3589 = vpop.permute.xlu0 %3588
  %v3590 = vsel %vm661, %v3589, 0
  %3592 = vmatprep.subr.mxu0 0.0
  %3593 = vmatpush1.msra.mxu0 %v82
  %3594 = vmatprep.subr.mxu0 0.0
  %3595 = vmatpush1.msra.mxu0 %v83
  %3596 = vmatprep.subr.mxu0 0.0
  %3597 = vmatpush1.msra.mxu0 %v84
  %3598 = vmatprep.subr.mxu0 0.0
  %3599 = vmatpush1.msra.mxu0 %v85
  %3600 = vmatprep.subr.mxu0 0.0
  %3601 = vmatpush1.msra.mxu0 %v86
  %3602 = vmatprep.subr.mxu0 0.0
  %3603 = vmatpush1.msra.mxu0 %v87
  %3604 = vmatprep.subr.mxu0 0.0
  %3605 = vmatpush1.msra.mxu0 %v88
  %3606 = vmatprep.subr.mxu0 0.0
  %3607 = vmatpush1.msra.mxu0 %v89
  %3608 = vmatprep.subr.mxu0 0.0
  %3609 = vmatpush1.msra.mxu0 0.0
  %3610 = vmatprep.subr.mxu0 0.0
  %3611 = vmatpush1.msra.mxu0 0.0
  %3612 = vmatprep.subr.mxu0 0.0
  %3613 = vmatpush1.msra.mxu0 0.0
  %3614 = vmatprep.subr.mxu0 0.0
  %3615 = vmatpush1.msra.mxu0 0.0
  %3616 = vmatprep.subr.mxu0 0.0
  %3617 = vmatpush1.msra.mxu0 0.0
  %3618 = vmatprep.subr.mxu0 0.0
  %3619 = vmatpush1.msra.mxu0 0.0
  %3620 = vmatprep.subr.mxu0 0.0
  %3621 = vmatpush1.msra.mxu0 0.0
  %3622 = vmatprep.subr.mxu0 0.0
  %3623 = vmatpush1.msra.mxu0 0.0
  %3624 = vmatprep.subr.mxu0 0.0
  %3625 = vmatpush1.msra.mxu0 0.0
  %3626 = vmatprep.subr.mxu0 0.0
  %3627 = vmatpush1.msra.mxu0 0.0
  %3628 = vmatprep.subr.mxu0 0.0
  %3629 = vmatpush1.msra.mxu0 0.0
  %3630 = vmatprep.subr.mxu0 0.0
  %3631 = vmatpush1.msra.mxu0 0.0
  %3632 = vmatprep.subr.mxu0 0.0
  %3633 = vmatpush1.msra.mxu0 0.0
  %3634 = vmatprep.subr.mxu0 0.0
  %3635 = vmatpush1.msra.mxu0 0.0
  %3636 = vmatprep.subr.mxu0 0.0
  %3637 = vmatpush1.msra.mxu0 0.0
  %3638 = vmatprep.subr.mxu0 0.0
  %3639 = vmatpush1.msra.mxu0 0.0
  %3640 = vmatprep.subr.mxu0 0.0
  %3641 = vmatpush1.msra.mxu0 0.0
  %3642 = vmatprep.subr.mxu0 0.0
  %3643 = vmatpush1.msra.mxu0 0.0
  %3644 = vmatprep.subr.mxu0 0.0
  %3645 = vmatpush1.msra.mxu0 0.0
  %3646 = vmatprep.subr.mxu0 0.0
  %3647 = vmatpush1.msra.mxu0 0.0
  %3648 = vmatprep.subr.mxu0 0.0
  %3649 = vmatpush1.msra.mxu0 0.0
  %3650 = vmatprep.subr.mxu0 0.0
  %3651 = vmatpush1.msra.mxu0 0.0
  %3652 = vmatprep.subr.mxu0 0.0
  %3653 = vmatpush1.msra.mxu0 0.0
  %3654 = vmatprep.subr.mxu0 0.0
  %3655 = vmatpush1.msra.mxu0 0.0
  %3656 = vmatprep.mubr.f32.mxu0 0.0
  %3657 = vmatmul.mubr.f32.gmra.mrb[0].mxu0 %v3590
  %v3658 = vpop.f32.mrb[0].mxu0
  %v3659 = vadd.f32 %v991, %v3658
  %v3660 = vpop.f32.mrb[0].mxu0
  %3661 = vdwg.mxu0
  %v3662 = vxor.u32 %v3659, 2147483648
  %v3663 = vmul.f32 %v3662, 1.442695
  %v3664 = vpow.pop %v3663
  %v3665 = vadd.f32 %v3664, 1.0
  %v3666 = vrcp.pop %v3665
  %v3667 = vmul.f32 1.0, %v3666
  %3669 = vrot.lane.b32.xlu0 %v3667, 112
  %v3670 = vpop.permute.xlu0 %3669
  %v3672 = vmul.f32 %v3659, %v3670
  %v3673 = vld [vmem:[#allocation3 + $0x38] sm:$0xff]
  %v3675 = vsel %vm145, %v3672, 0
  %3677 = vmatprep.subr.mxu0 0.0
  %3678 = vmatpush1.msra.mxu0 %v91
  %3679 = vmatprep.subr.mxu0 0.0
  %3680 = vmatpush1.msra.mxu0 %v92
  %3681 = vmatprep.subr.mxu0 0.0
  %3682 = vmatpush1.msra.mxu0 0.0
  %3683 = vmatprep.subr.mxu0 0.0
  %3684 = vmatpush1.msra.mxu0 0.0
  %3685 = vmatprep.subr.mxu0 0.0
  %3686 = vmatpush1.msra.mxu0 0.0
  %3687 = vmatprep.subr.mxu0 0.0
  %3688 = vmatpush1.msra.mxu0 0.0
  %3689 = vmatprep.subr.mxu0 0.0
  %3690 = vmatpush1.msra.mxu0 0.0
  %3691 = vmatprep.subr.mxu0 0.0
  %3692 = vmatpush1.msra.mxu0 0.0
  %3693 = vmatprep.subr.mxu0 0.0
  %3694 = vmatpush1.msra.mxu0 0.0
  %3695 = vmatprep.subr.mxu0 0.0
  %3696 = vmatpush1.msra.mxu0 0.0
  %3697 = vmatprep.subr.mxu0 0.0
  %3698 = vmatpush1.msra.mxu0 0.0
  %3699 = vmatprep.subr.mxu0 0.0
  %3700 = vmatpush1.msra.mxu0 0.0
  %3701 = vmatprep.subr.mxu0 0.0
  %3702 = vmatpush1.msra.mxu0 0.0
  %3703 = vmatprep.subr.mxu0 0.0
  %3704 = vmatpush1.msra.mxu0 0.0
  %3705 = vmatprep.subr.mxu0 0.0
  %3706 = vmatpush1.msra.mxu0 0.0
  %3707 = vmatprep.subr.mxu0 0.0
  %3708 = vmatpush1.msra.mxu0 0.0
  %3709 = vmatprep.subr.mxu0 0.0
  %3710 = vmatpush1.msra.mxu0 0.0
  %3711 = vmatprep.subr.mxu0 0.0
  %3712 = vmatpush1.msra.mxu0 0.0
  %3713 = vmatprep.subr.mxu0 0.0
  %3714 = vmatpush1.msra.mxu0 0.0
  %3715 = vmatprep.subr.mxu0 0.0
  %3716 = vmatpush1.msra.mxu0 0.0
  %3717 = vmatprep.subr.mxu0 0.0
  %3718 = vmatpush1.msra.mxu0 0.0
  %3719 = vmatprep.subr.mxu0 0.0
  %3720 = vmatpush1.msra.mxu0 0.0
  %3721 = vmatprep.subr.mxu0 0.0
  %3722 = vmatpush1.msra.mxu0 0.0
  %3723 = vmatprep.subr.mxu0 0.0
  %3724 = vmatpush1.msra.mxu0 0.0
  %3725 = vmatprep.subr.mxu0 0.0
  %3726 = vmatpush1.msra.mxu0 0.0
  %3727 = vmatprep.subr.mxu0 0.0
  %3728 = vmatpush1.msra.mxu0 0.0
  %3729 = vmatprep.subr.mxu0 0.0
  %3730 = vmatpush1.msra.mxu0 0.0
  %3731 = vmatprep.subr.mxu0 0.0
  %3732 = vmatpush1.msra.mxu0 0.0
  %3733 = vmatprep.subr.mxu0 0.0
  %3734 = vmatpush1.msra.mxu0 0.0
  %3735 = vmatprep.subr.mxu0 0.0
  %3736 = vmatpush1.msra.mxu0 0.0
  %3737 = vmatprep.subr.mxu0 0.0
  %3738 = vmatpush1.msra.mxu0 0.0
  %3739 = vmatprep.subr.mxu0 0.0
  %3740 = vmatpush1.msra.mxu0 0.0
  %3741 = vmatprep.mubr.f32.mxu0 0.0
  %3742 = vmatmul.mubr.f32.gmra.mrb[0].mxu0 %v3675
  %v3743 = vpop.f32.mrb[0].mxu0
  %v3744 = vadd.f32 %v3673, %v3743
  %v3745 = vpop.f32.mrb[0].mxu0
  %3746 = vdwg.mxu0
  %v3747 = vmax.f32 %v3744, 0.0
  %3748 = vrot.lane.b32.xlu0 %v3479, 112
  %v3749 = vpop.permute.xlu0 %3748
  %v3751 = vsel %vm145, %v3747, %v3749
  %v3753 = vsel %vm1161, %v3751, 0
  %3755 = vmatprep.subr.mxu0 0.0
  %3756 = vmatpush1.msra.mxu0 %v96
  %3757 = vmatprep.subr.mxu0 0.0
  %3758 = vmatpush1.msra.mxu0 %v97
  %3759 = vmatprep.subr.mxu0 0.0
  %3760 = vmatpush1.msra.mxu0 %v98
  %3761 = vmatprep.subr.mxu0 0.0
  %3762 = vmatpush1.msra.mxu0 %v99
  %3763 = vmatprep.subr.mxu0 0.0
  %3764 = vmatpush1.msra.mxu0 %v100
  %3765 = vmatprep.subr.mxu0 0.0
  %3766 = vmatpush1.msra.mxu0 %v101
  %3767 = vmatprep.subr.mxu0 0.0
  %3768 = vmatpush1.msra.mxu0 0.0
  %3769 = vmatprep.subr.mxu0 0.0
  %3770 = vmatpush1.msra.mxu0 0.0
  %3771 = vmatprep.subr.mxu0 0.0
  %3772 = vmatpush1.msra.mxu0 0.0
  %3773 = vmatprep.subr.mxu0 0.0
  %3774 = vmatpush1.msra.mxu0 0.0
  %3775 = vmatprep.subr.mxu0 0.0
  %3776 = vmatpush1.msra.mxu0 0.0
  %3777 = vmatprep.subr.mxu0 0.0
  %3778 = vmatpush1.msra.mxu0 0.0
  %3779 = vmatprep.subr.mxu0 0.0
  %3780 = vmatpush1.msra.mxu0 0.0
  %3781 = vmatprep.subr.mxu0 0.0
  %3782 = vmatpush1.msra.mxu0 0.0
  %3783 = vmatprep.subr.mxu0 0.0
  %3784 = vmatpush1.msra.mxu0 0.0
  %3785 = vmatprep.subr.mxu0 0.0
  %3786 = vmatpush1.msra.mxu0 0.0
  %3787 = vmatprep.subr.mxu0 0.0
  %3788 = vmatpush1.msra.mxu0 0.0
  %3789 = vmatprep.subr.mxu0 0.0
  %3790 = vmatpush1.msra.mxu0 0.0
  %3791 = vmatprep.subr.mxu0 0.0
  %3792 = vmatpush1.msra.mxu0 0.0
  %3793 = vmatprep.subr.mxu0 0.0
  %3794 = vmatpush1.msra.mxu0 0.0
  %3795 = vmatprep.subr.mxu0 0.0
  %3796 = vmatpush1.msra.mxu0 0.0
  %3797 = vmatprep.subr.mxu0 0.0
  %3798 = vmatpush1.msra.mxu0 0.0
  %3799 = vmatprep.subr.mxu0 0.0
  %3800 = vmatpush1.msra.mxu0 0.0
  %3801 = vmatprep.subr.mxu0 0.0
  %3802 = vmatpush1.msra.mxu0 0.0
  %3803 = vmatprep.subr.mxu0 0.0
  %3804 = vmatpush1.msra.mxu0 0.0
  %3805 = vmatprep.subr.mxu0 0.0
  %3806 = vmatpush1.msra.mxu0 0.0
  %3807 = vmatprep.subr.mxu0 0.0
  %3808 = vmatpush1.msra.mxu0 0.0
  %3809 = vmatprep.subr.mxu0 0.0
  %3810 = vmatpush1.msra.mxu0 0.0
  %3811 = vmatprep.subr.mxu0 0.0
  %3812 = vmatpush1.msra.mxu0 0.0
  %3813 = vmatprep.subr.mxu0 0.0
  %3814 = vmatpush1.msra.mxu0 0.0
  %3815 = vmatprep.subr.mxu0 0.0
  %3816 = vmatpush1.msra.mxu0 0.0
  %3817 = vmatprep.subr.mxu0 0.0
  %3818 = vmatpush1.msra.mxu0 0.0
  %3819 = vmatprep.mubr.f32.mxu0 0.0
  %3820 = vmatmul.mubr.f32.gmra.mrb[0].mxu0 %v3753
  %v3821 = vpop.f32.mrb[0].mxu0
  %v3822 = vadd.f32 %v1159, %v3821
  %v3823 = vpop.f32.mrb[0].mxu0
  %3824 = vdwg.mxu0
  %v3825 = vxor.u32 %v3822, 2147483648
  %v3826 = vmul.f32 %v3825, 1.442695
  %v3827 = vpow.pop %v3826
  %v3828 = vadd.f32 %v3827, 1.0
  %v3829 = vrcp.pop %v3828
  %v3830 = vmul.f32 1.0, %v3829
  %3832 = vrot.lane.b32.xlu0 %v3822, 32
  %v3833 = vpop.permute.xlu0 %3832
  %v3835 = vmul.f32 %v3830, %v3833
  %3837 = vrot.lane.b32.xlu0 %v3835, 64
  %v3838 = vpop.permute.xlu0 %3837
  %v3840 = vadd.f32 %v3822, %v3838
  %v3841 = vtanh.pop %v3840
  %v3842 = vsub.f32 1.0, %v3830
  %3844 = vrot.lane.b32.xlu0 %v3841, 96
  %v3845 = vpop.permute.xlu0 %3844
  %v3847 = vmul.f32 %v3842, %v3845
  %v3848 = vmul.f32 %v3830, %v3479
  %v3849 = vadd.f32 %v3847, %v3848
  %3851 = vrot.lane.b32.xlu0 %v3849, 96
  %v3852 = vpop.permute.xlu0 %3851
  %3854 = vst.msk [vmem:[%s16 + $0x38] sm:$0xff] %vm486, %v3852
  %3856 = vset.pattern.permute.xlu0 0
  %3857 = vperm.xlu0 %3856, %v872
  %v3858 = vpop.permute.xlu0 %3857
  %v3860 = vmul.f32 %v3586, %v3858
  %3862 = vrot.lane.b32.xlu0 %v3860, 64
  %v3863 = vpop.permute.xlu0 %3862
  %v3864 = vsel %vm661, %v3863, 0
  %3866 = vmatprep.subr.mxu0 %v66
  %3867 = vmatpush1.msra.mxu0 %v65
  %3868 = vmatprep.subr.mxu0 %v68
  %3869 = vmatpush1.msra.mxu0 %v67
  %3870 = vmatprep.subr.mxu0 %v70
  %3871 = vmatpush1.msra.mxu0 %v69
  %3872 = vmatprep.subr.mxu0 %v72
  %3873 = vmatpush1.msra.mxu0 %v71
  %3874 = vmatprep.subr.mxu0 %v74
  %3875 = vmatpush1.msra.mxu0 %v73
  %3876 = vmatprep.subr.mxu0 %v76
  %3877 = vmatpush1.msra.mxu0 %v75
  %3878 = vmatprep.subr.mxu0 %v78
  %3879 = vmatpush1.msra.mxu0 %v77
  %3880 = vmatprep.subr.mxu0 %v80
  %3881 = vmatpush1.msra.mxu0 %v79
  %3882 = vmatprep.subr.mxu0 0.0
  %3883 = vmatpush1.msra.mxu0 0.0
  %3884 = vmatprep.subr.mxu0 0.0
  %3885 = vmatpush1.msra.mxu0 0.0
  %3886 = vmatprep.subr.mxu0 0.0
  %3887 = vmatpush1.msra.mxu0 0.0
  %3888 = vmatprep.subr.mxu0 0.0
  %3889 = vmatpush1.msra.mxu0 0.0
  %3890 = vmatprep.subr.mxu0 0.0
  %3891 = vmatpush1.msra.mxu0 0.0
  %3892 = vmatprep.subr.mxu0 0.0
  %3893 = vmatpush1.msra.mxu0 0.0
  %3894 = vmatprep.subr.mxu0 0.0
  %3895 = vmatpush1.msra.mxu0 0.0
  %3896 = vmatprep.subr.mxu0 0.0
  %3897 = vmatpush1.msra.mxu0 0.0
  %3898 = vmatprep.subr.mxu0 0.0
  %3899 = vmatpush1.msra.mxu0 0.0
  %3900 = vmatprep.subr.mxu0 0.0
  %3901 = vmatpush1.msra.mxu0 0.0
  %3902 = vmatprep.subr.mxu0 0.0
  %3903 = vmatpush1.msra.mxu0 0.0
  %3904 = vmatprep.subr.mxu0 0.0
  %3905 = vmatpush1.msra.mxu0 0.0
  %3906 = vmatprep.subr.mxu0 0.0
  %3907 = vmatpush1.msra.mxu0 0.0
  %3908 = vmatprep.subr.mxu0 0.0
  %3909 = vmatpush1.msra.mxu0 0.0
  %3910 = vmatprep.subr.mxu0 0.0
  %3911 = vmatpush1.msra.mxu0 0.0
  %3912 = vmatprep.subr.mxu0 0.0
  %3913 = vmatpush1.msra.mxu0 0.0
  %3914 = vmatprep.subr.mxu0 0.0
  %3915 = vmatpush1.msra.mxu0 0.0
  %3916 = vmatprep.subr.mxu0 0.0
  %3917 = vmatpush1.msra.mxu0 0.0
  %3918 = vmatprep.subr.mxu0 0.0
  %3919 = vmatpush1.msra.mxu0 0.0
  %3920 = vmatprep.subr.mxu0 0.0
  %3921 = vmatpush1.msra.mxu0 0.0
  %3922 = vmatprep.subr.mxu0 0.0
  %3923 = vmatpush1.msra.mxu0 0.0
  %3924 = vmatprep.subr.mxu0 0.0
  %3925 = vmatpush1.msra.mxu0 0.0
  %3926 = vmatprep.subr.mxu0 0.0
  %3927 = vmatpush1.msra.mxu0 0.0
  %3928 = vmatprep.subr.mxu0 0.0
  %3929 = vmatpush1.msra.mxu0 0.0
  %3930 = vmatprep.mubr.f32.mxu0 0.0
  %3931 = vmatmul.mubr.f32.gmra.mrb[0].mxu0 %v3864
  %v3932 = vpop.f32.mrb[0].mxu0
  %v3933 = vadd.f32 %v886, %v3932
  %v3934 = vpop.f32.mrb[0].mxu0
  %v3935 = vadd.f32 %v890, %v3934
  %3936 = vdwg.mxu0
  %v3937 = vld [vmem:[#allocation2 + $0x80] sm:$0xff]
  %v3938 = vld [vmem:[#allocation2 + $0x88] sm:$0xff]
  %v3939 = vadd.f32 %v3937, %v3933
  %v3940 = vxor.u32 %v3939, 2147483648
  %v3941 = vmul.f32 %v3940, 1.442695
  %v3942 = vpow.pop %v3941
  %v3943 = vadd.f32 %v3942, 1.0
  %v3944 = vrcp.pop %v3943
  %v3945 = vmul.f32 1.0, %v3944
  %v3946 = vmul.f32 %v3945, %v3935
  %v3947 = vadd.f32 %v3938, %v3946
  %v3948 = vtanh.pop %v3947
  %v3949 = vsub.f32 1.0, %v3945
  %3951 = vrot.lane.b32.xlu0 %v3948, 64
  %v3952 = vpop.permute.xlu0 %3951
  %v3954 = vmul.f32 %v3949, %v3952
  %v3955 = vmul.f32 %v3945, %v3860
  %v3956 = vadd.f32 %v3954, %v3955
  %3958 = vrot.lane.b32.xlu0 %v3956, 64
  %v3959 = vpop.permute.xlu0 %3958
  %v3960 = vsel %vm661, %v3959, 0
  %3962 = vmatprep.subr.mxu0 0.0
  %3963 = vmatpush1.msra.mxu0 %v82
  %3964 = vmatprep.subr.mxu0 0.0
  %3965 = vmatpush1.msra.mxu0 %v83
  %3966 = vmatprep.subr.mxu0 0.0
  %3967 = vmatpush1.msra.mxu0 %v84
  %3968 = vmatprep.subr.mxu0 0.0
  %3969 = vmatpush1.msra.mxu0 %v85
  %3970 = vmatprep.subr.mxu0 0.0
  %3971 = vmatpush1.msra.mxu0 %v86
  %3972 = vmatprep.subr.mxu0 0.0
  %3973 = vmatpush1.msra.mxu0 %v87
  %3974 = vmatprep.subr.mxu0 0.0
  %3975 = vmatpush1.msra.mxu0 %v88
  %3976 = vmatprep.subr.mxu0 0.0
  %3977 = vmatpush1.msra.mxu0 %v89
  %3978 = vmatprep.subr.mxu0 0.0
  %3979 = vmatpush1.msra.mxu0 0.0
  %3980 = vmatprep.subr.mxu0 0.0
  %3981 = vmatpush1.msra.mxu0 0.0
  %3982 = vmatprep.subr.mxu0 0.0
  %3983 = vmatpush1.msra.mxu0 0.0
  %3984 = vmatprep.subr.mxu0 0.0
  %3985 = vmatpush1.msra.mxu0 0.0
  %3986 = vmatprep.subr.mxu0 0.0
  %3987 = vmatpush1.msra.mxu0 0.0
  %3988 = vmatprep.subr.mxu0 0.0
  %3989 = vmatpush1.msra.mxu0 0.0
  %3990 = vmatprep.subr.mxu0 0.0
  %3991 = vmatpush1.msra.mxu0 0.0
  %3992 = vmatprep.subr.mxu0 0.0
  %3993 = vmatpush1.msra.mxu0 0.0
  %3994 = vmatprep.subr.mxu0 0.0
  %3995 = vmatpush1.msra.mxu0 0.0
  %3996 = vmatprep.subr.mxu0 0.0
  %3997 = vmatpush1.msra.mxu0 0.0
  %3998 = vmatprep.subr.mxu0 0.0
  %3999 = vmatpush1.msra.mxu0 0.0
  %4000 = vmatprep.subr.mxu0 0.0
  %4001 = vmatpush1.msra.mxu0 0.0
  %4002 = vmatprep.subr.mxu0 0.0
  %4003 = vmatpush1.msra.mxu0 0.0
  %4004 = vmatprep.subr.mxu0 0.0
  %4005 = vmatpush1.msra.mxu0 0.0
  %4006 = vmatprep.subr.mxu0 0.0
  %4007 = vmatpush1.msra.mxu0 0.0
  %4008 = vmatprep.subr.mxu0 0.0
  %4009 = vmatpush1.msra.mxu0 0.0
  %4010 = vmatprep.subr.mxu0 0.0
  %4011 = vmatpush1.msra.mxu0 0.0
  %4012 = vmatprep.subr.mxu0 0.0
  %4013 = vmatpush1.msra.mxu0 0.0
  %4014 = vmatprep.subr.mxu0 0.0
  %4015 = vmatpush1.msra.mxu0 0.0
  %4016 = vmatprep.subr.mxu0 0.0
  %4017 = vmatpush1.msra.mxu0 0.0
  %4018 = vmatprep.subr.mxu0 0.0
  %4019 = vmatpush1.msra.mxu0 0.0
  %4020 = vmatprep.subr.mxu0 0.0
  %4021 = vmatpush1.msra.mxu0 0.0
  %4022 = vmatprep.subr.mxu0 0.0
  %4023 = vmatpush1.msra.mxu0 0.0
  %4024 = vmatprep.subr.mxu0 0.0
  %4025 = vmatpush1.msra.mxu0 0.0
  %4026 = vmatprep.mubr.f32.mxu0 0.0
  %4027 = vmatmul.mubr.f32.gmra.mrb[0].mxu0 %v3960
  %v4028 = vpop.f32.mrb[0].mxu0
  %v4029 = vadd.f32 %v991, %v4028
  %v4030 = vpop.f32.mrb[0].mxu0
  %4031 = vdwg.mxu0
  %v4032 = vxor.u32 %v4029, 2147483648
  %v4033 = vmul.f32 %v4032, 1.442695
  %v4034 = vpow.pop %v4033
  %v4035 = vadd.f32 %v4034, 1.0
  %v4036 = vrcp.pop %v4035
  %v4037 = vmul.f32 1.0, %v4036
  %4039 = vrot.lane.b32.xlu0 %v4037, 112
  %v4040 = vpop.permute.xlu0 %4039
  %v4042 = vmul.f32 %v4029, %v4040
  %v4043 = vld [vmem:[#allocation3 + $0x40] sm:$0xff]
  %v4045 = vsel %vm145, %v4042, 0
  %4047 = vmatprep.subr.mxu0 0.0
  %4048 = vmatpush1.msra.mxu0 %v91
  %4049 = vmatprep.subr.mxu0 0.0
  %4050 = vmatpush1.msra.mxu0 %v92
  %4051 = vmatprep.subr.mxu0 0.0
  %4052 = vmatpush1.msra.mxu0 0.0
  %4053 = vmatprep.subr.mxu0 0.0
  %4054 = vmatpush1.msra.mxu0 0.0
  %4055 = vmatprep.subr.mxu0 0.0
  %4056 = vmatpush1.msra.mxu0 0.0
  %4057 = vmatprep.subr.mxu0 0.0
  %4058 = vmatpush1.msra.mxu0 0.0
  %4059 = vmatprep.subr.mxu0 0.0
  %4060 = vmatpush1.msra.mxu0 0.0
  %4061 = vmatprep.subr.mxu0 0.0
  %4062 = vmatpush1.msra.mxu0 0.0
  %4063 = vmatprep.subr.mxu0 0.0
  %4064 = vmatpush1.msra.mxu0 0.0
  %4065 = vmatprep.subr.mxu0 0.0
  %4066 = vmatpush1.msra.mxu0 0.0
  %4067 = vmatprep.subr.mxu0 0.0
  %4068 = vmatpush1.msra.mxu0 0.0
  %4069 = vmatprep.subr.mxu0 0.0
  %4070 = vmatpush1.msra.mxu0 0.0
  %4071 = vmatprep.subr.mxu0 0.0
  %4072 = vmatpush1.msra.mxu0 0.0
  %4073 = vmatprep.subr.mxu0 0.0
  %4074 = vmatpush1.msra.mxu0 0.0
  %4075 = vmatprep.subr.mxu0 0.0
  %4076 = vmatpush1.msra.mxu0 0.0
  %4077 = vmatprep.subr.mxu0 0.0
  %4078 = vmatpush1.msra.mxu0 0.0
  %4079 = vmatprep.subr.mxu0 0.0
  %4080 = vmatpush1.msra.mxu0 0.0
  %4081 = vmatprep.subr.mxu0 0.0
  %4082 = vmatpush1.msra.mxu0 0.0
  %4083 = vmatprep.subr.mxu0 0.0
  %4084 = vmatpush1.msra.mxu0 0.0
  %4085 = vmatprep.subr.mxu0 0.0
  %4086 = vmatpush1.msra.mxu0 0.0
  %4087 = vmatprep.subr.mxu0 0.0
  %4088 = vmatpush1.msra.mxu0 0.0
  %4089 = vmatprep.subr.mxu0 0.0
  %4090 = vmatpush1.msra.mxu0 0.0
  %4091 = vmatprep.subr.mxu0 0.0
  %4092 = vmatpush1.msra.mxu0 0.0
  %4093 = vmatprep.subr.mxu0 0.0
  %4094 = vmatpush1.msra.mxu0 0.0
  %4095 = vmatprep.subr.mxu0 0.0
  %4096 = vmatpush1.msra.mxu0 0.0
  %4097 = vmatprep.subr.mxu0 0.0
  %4098 = vmatpush1.msra.mxu0 0.0
  %4099 = vmatprep.subr.mxu0 0.0
  %4100 = vmatpush1.msra.mxu0 0.0
  %4101 = vmatprep.subr.mxu0 0.0
  %4102 = vmatpush1.msra.mxu0 0.0
  %4103 = vmatprep.subr.mxu0 0.0
  %4104 = vmatpush1.msra.mxu0 0.0
  %4105 = vmatprep.subr.mxu0 0.0
  %4106 = vmatpush1.msra.mxu0 0.0
  %4107 = vmatprep.subr.mxu0 0.0
  %4108 = vmatpush1.msra.mxu0 0.0
  %4109 = vmatprep.subr.mxu0 0.0
  %4110 = vmatpush1.msra.mxu0 0.0
  %4111 = vmatprep.mubr.f32.mxu0 0.0
  %4112 = vmatmul.mubr.f32.gmra.mrb[0].mxu0 %v4045
  %v4113 = vpop.f32.mrb[0].mxu0
  %v4114 = vadd.f32 %v4043, %v4113
  %v4115 = vpop.f32.mrb[0].mxu0
  %4116 = vdwg.mxu0
  %v4117 = vmax.f32 %v4114, 0.0
  %4118 = vrot.lane.b32.xlu0 %v3849, 112
  %v4119 = vpop.permute.xlu0 %4118
  %v4121 = vsel %vm145, %v4117, %v4119
  %v4123 = vsel %vm1161, %v4121, 0
  %4125 = vmatprep.subr.mxu0 0.0
  %4126 = vmatpush1.msra.mxu0 %v96
  %4127 = vmatprep.subr.mxu0 0.0
  %4128 = vmatpush1.msra.mxu0 %v97
  %4129 = vmatprep.subr.mxu0 0.0
  %4130 = vmatpush1.msra.mxu0 %v98
  %4131 = vmatprep.subr.mxu0 0.0
  %4132 = vmatpush1.msra.mxu0 %v99
  %4133 = vmatprep.subr.mxu0 0.0
  %4134 = vmatpush1.msra.mxu0 %v100
  %4135 = vmatprep.subr.mxu0 0.0
  %4136 = vmatpush1.msra.mxu0 %v101
  %4137 = vmatprep.subr.mxu0 0.0
  %4138 = vmatpush1.msra.mxu0 0.0
  %4139 = vmatprep.subr.mxu0 0.0
  %4140 = vmatpush1.msra.mxu0 0.0
  %4141 = vmatprep.subr.mxu0 0.0
  %4142 = vmatpush1.msra.mxu0 0.0
  %4143 = vmatprep.subr.mxu0 0.0
  %4144 = vmatpush1.msra.mxu0 0.0
  %4145 = vmatprep.subr.mxu0 0.0
  %4146 = vmatpush1.msra.mxu0 0.0
  %4147 = vmatprep.subr.mxu0 0.0
  %4148 = vmatpush1.msra.mxu0 0.0
  %4149 = vmatprep.subr.mxu0 0.0
  %4150 = vmatpush1.msra.mxu0 0.0
  %4151 = vmatprep.subr.mxu0 0.0
  %4152 = vmatpush1.msra.mxu0 0.0
  %4153 = vmatprep.subr.mxu0 0.0
  %4154 = vmatpush1.msra.mxu0 0.0
  %4155 = vmatprep.subr.mxu0 0.0
  %4156 = vmatpush1.msra.mxu0 0.0
  %4157 = vmatprep.subr.mxu0 0.0
  %4158 = vmatpush1.msra.mxu0 0.0
  %4159 = vmatprep.subr.mxu0 0.0
  %4160 = vmatpush1.msra.mxu0 0.0
  %4161 = vmatprep.subr.mxu0 0.0
  %4162 = vmatpush1.msra.mxu0 0.0
  %4163 = vmatprep.subr.mxu0 0.0
  %4164 = vmatpush1.msra.mxu0 0.0
  %4165 = vmatprep.subr.mxu0 0.0
  %4166 = vmatpush1.msra.mxu0 0.0
  %4167 = vmatprep.subr.mxu0 0.0
  %4168 = vmatpush1.msra.mxu0 0.0
  %4169 = vmatprep.subr.mxu0 0.0
  %4170 = vmatpush1.msra.mxu0 0.0
  %4171 = vmatprep.subr.mxu0 0.0
  %4172 = vmatpush1.msra.mxu0 0.0
  %4173 = vmatprep.subr.mxu0 0.0
  %4174 = vmatpush1.msra.mxu0 0.0
  %4175 = vmatprep.subr.mxu0 0.0
  %4176 = vmatpush1.msra.mxu0 0.0
  %4177 = vmatprep.subr.mxu0 0.0
  %4178 = vmatpush1.msra.mxu0 0.0
  %4179 = vmatprep.subr.mxu0 0.0
  %4180 = vmatpush1.msra.mxu0 0.0
  %4181 = vmatprep.subr.mxu0 0.0
  %4182 = vmatpush1.msra.mxu0 0.0
  %4183 = vmatprep.subr.mxu0 0.0
  %4184 = vmatpush1.msra.mxu0 0.0
  %4185 = vmatprep.subr.mxu0 0.0
  %4186 = vmatpush1.msra.mxu0 0.0
  %4187 = vmatprep.subr.mxu0 0.0
  %4188 = vmatpush1.msra.mxu0 0.0
  %4189 = vmatprep.mubr.f32.mxu0 0.0
  %4190 = vmatmul.mubr.f32.gmra.mrb[0].mxu0 %v4123
  %v4191 = vpop.f32.mrb[0].mxu0
  %v4192 = vadd.f32 %v1159, %v4191
  %v4193 = vpop.f32.mrb[0].mxu0
  %4194 = vdwg.mxu0
  %v4195 = vxor.u32 %v4192, 2147483648
  %v4196 = vmul.f32 %v4195, 1.442695
  %v4197 = vpow.pop %v4196
  %v4198 = vadd.f32 %v4197, 1.0
  %v4199 = vrcp.pop %v4198
  %v4200 = vmul.f32 1.0, %v4199
  %4202 = vrot.lane.b32.xlu0 %v4192, 32
  %v4203 = vpop.permute.xlu0 %4202
  %v4205 = vmul.f32 %v4200, %v4203
  %4207 = vrot.lane.b32.xlu0 %v4205, 64
  %v4208 = vpop.permute.xlu0 %4207
  %v4210 = vadd.f32 %v4192, %v4208
  %v4211 = vtanh.pop %v4210
  %v4212 = vsub.f32 1.0, %v4200
  %4214 = vrot.lane.b32.xlu0 %v4211, 96
  %v4215 = vpop.permute.xlu0 %4214
  %v4217 = vmul.f32 %v4212, %v4215
  %v4218 = vmul.f32 %v4200, %v3849
  %v4219 = vadd.f32 %v4217, %v4218
  %4221 = vrot.lane.b32.xlu0 %v4219, 96
  %v4222 = vpop.permute.xlu0 %4221
  %4224 = vst.msk [vmem:[%s16 + $0x40] sm:$0xff] %vm486, %v4222
  %4226 = vset.pattern.permute.xlu0 0
  %4227 = vperm.xlu0 %4226, %v873
  %v4228 = vpop.permute.xlu0 %4227
  %v4230 = vmul.f32 %v3956, %v4228
  %4232 = vrot.lane.b32.xlu0 %v4230, 64
  %v4233 = vpop.permute.xlu0 %4232
  %v4234 = vsel %vm661, %v4233, 0
  %4236 = vmatprep.subr.mxu0 %v66
  %4237 = vmatpush1.msra.mxu0 %v65
  %4238 = vmatprep.subr.mxu0 %v68
  %4239 = vmatpush1.msra.mxu0 %v67
  %4240 = vmatprep.subr.mxu0 %v70
  %4241 = vmatpush1.msra.mxu0 %v69
  %4242 = vmatprep.subr.mxu0 %v72
  %4243 = vmatpush1.msra.mxu0 %v71
  %4244 = vmatprep.subr.mxu0 %v74
  %4245 = vmatpush1.msra.mxu0 %v73
  %4246 = vmatprep.subr.mxu0 %v76
  %4247 = vmatpush1.msra.mxu0 %v75
  %4248 = vmatprep.subr.mxu0 %v78
  %4249 = vmatpush1.msra.mxu0 %v77
  %4250 = vmatprep.subr.mxu0 %v80
  %4251 = vmatpush1.msra.mxu0 %v79
  %4252 = vmatprep.subr.mxu0 0.0
  %4253 = vmatpush1.msra.mxu0 0.0
  %4254 = vmatprep.subr.mxu0 0.0
  %4255 = vmatpush1.msra.mxu0 0.0
  %4256 = vmatprep.subr.mxu0 0.0
  %4257 = vmatpush1.msra.mxu0 0.0
  %4258 = vmatprep.subr.mxu0 0.0
  %4259 = vmatpush1.msra.mxu0 0.0
  %4260 = vmatprep.subr.mxu0 0.0
  %4261 = vmatpush1.msra.mxu0 0.0
  %4262 = vmatprep.subr.mxu0 0.0
  %4263 = vmatpush1.msra.mxu0 0.0
  %4264 = vmatprep.subr.mxu0 0.0
  %4265 = vmatpush1.msra.mxu0 0.0
  %4266 = vmatprep.subr.mxu0 0.0
  %4267 = vmatpush1.msra.mxu0 0.0
  %4268 = vmatprep.subr.mxu0 0.0
  %4269 = vmatpush1.msra.mxu0 0.0
  %4270 = vmatprep.subr.mxu0 0.0
  %4271 = vmatpush1.msra.mxu0 0.0
  %4272 = vmatprep.subr.mxu0 0.0
  %4273 = vmatpush1.msra.mxu0 0.0
  %4274 = vmatprep.subr.mxu0 0.0
  %4275 = vmatpush1.msra.mxu0 0.0
  %4276 = vmatprep.subr.mxu0 0.0
  %4277 = vmatpush1.msra.mxu0 0.0
  %4278 = vmatprep.subr.mxu0 0.0
  %4279 = vmatpush1.msra.mxu0 0.0
  %4280 = vmatprep.subr.mxu0 0.0
  %4281 = vmatpush1.msra.mxu0 0.0
  %4282 = vmatprep.subr.mxu0 0.0
  %4283 = vmatpush1.msra.mxu0 0.0
  %4284 = vmatprep.subr.mxu0 0.0
  %4285 = vmatpush1.msra.mxu0 0.0
  %4286 = vmatprep.subr.mxu0 0.0
  %4287 = vmatpush1.msra.mxu0 0.0
  %4288 = vmatprep.subr.mxu0 0.0
  %4289 = vmatpush1.msra.mxu0 0.0
  %4290 = vmatprep.subr.mxu0 0.0
  %4291 = vmatpush1.msra.mxu0 0.0
  %4292 = vmatprep.subr.mxu0 0.0
  %4293 = vmatpush1.msra.mxu0 0.0
  %4294 = vmatprep.subr.mxu0 0.0
  %4295 = vmatpush1.msra.mxu0 0.0
  %4296 = vmatprep.subr.mxu0 0.0
  %4297 = vmatpush1.msra.mxu0 0.0
  %4298 = vmatprep.subr.mxu0 0.0
  %4299 = vmatpush1.msra.mxu0 0.0
  %4300 = vmatprep.mubr.f32.mxu0 0.0
  %4301 = vmatmul.mubr.f32.gmra.mrb[0].mxu0 %v4234
  %v4302 = vpop.f32.mrb[0].mxu0
  %v4303 = vadd.f32 %v886, %v4302
  %v4304 = vpop.f32.mrb[0].mxu0
  %v4305 = vadd.f32 %v890, %v4304
  %4306 = vdwg.mxu0
  %v4307 = vld [vmem:[#allocation2 + $0x90] sm:$0xff]
  %v4308 = vld [vmem:[#allocation2 + $0x98] sm:$0xff]
  %v4309 = vadd.f32 %v4307, %v4303
  %v4310 = vxor.u32 %v4309, 2147483648
  %v4311 = vmul.f32 %v4310, 1.442695
  %v4312 = vpow.pop %v4311
  %v4313 = vadd.f32 %v4312, 1.0
  %v4314 = vrcp.pop %v4313
  %v4315 = vmul.f32 1.0, %v4314
  %v4316 = vmul.f32 %v4315, %v4305
  %v4317 = vadd.f32 %v4308, %v4316
  %v4318 = vtanh.pop %v4317
  %v4319 = vsub.f32 1.0, %v4315
  %4321 = vrot.lane.b32.xlu0 %v4318, 64
  %v4322 = vpop.permute.xlu0 %4321
  %v4324 = vmul.f32 %v4319, %v4322
  %v4325 = vmul.f32 %v4315, %v4230
  %v4326 = vadd.f32 %v4324, %v4325
  %4328 = vrot.lane.b32.xlu0 %v4326, 64
  %v4329 = vpop.permute.xlu0 %4328
  %v4330 = vsel %vm661, %v4329, 0
  %4332 = vmatprep.subr.mxu0 0.0
  %4333 = vmatpush1.msra.mxu0 %v82
  %4334 = vmatprep.subr.mxu0 0.0
  %4335 = vmatpush1.msra.mxu0 %v83
  %4336 = vmatprep.subr.mxu0 0.0
  %4337 = vmatpush1.msra.mxu0 %v84
  %4338 = vmatprep.subr.mxu0 0.0
  %4339 = vmatpush1.msra.mxu0 %v85
  %4340 = vmatprep.subr.mxu0 0.0
  %4341 = vmatpush1.msra.mxu0 %v86
  %4342 = vmatprep.subr.mxu0 0.0
  %4343 = vmatpush1.msra.mxu0 %v87
  %4344 = vmatprep.subr.mxu0 0.0
  %4345 = vmatpush1.msra.mxu0 %v88
  %4346 = vmatprep.subr.mxu0 0.0
  %4347 = vmatpush1.msra.mxu0 %v89
  %4348 = vmatprep.subr.mxu0 0.0
  %4349 = vmatpush1.msra.mxu0 0.0
  %4350 = vmatprep.subr.mxu0 0.0
  %4351 = vmatpush1.msra.mxu0 0.0
  %4352 = vmatprep.subr.mxu0 0.0
  %4353 = vmatpush1.msra.mxu0 0.0
  %4354 = vmatprep.subr.mxu0 0.0
  %4355 = vmatpush1.msra.mxu0 0.0
  %4356 = vmatprep.subr.mxu0 0.0
  %4357 = vmatpush1.msra.mxu0 0.0
  %4358 = vmatprep.subr.mxu0 0.0
  %4359 = vmatpush1.msra.mxu0 0.0
  %4360 = vmatprep.subr.mxu0 0.0
  %4361 = vmatpush1.msra.mxu0 0.0
  %4362 = vmatprep.subr.mxu0 0.0
  %4363 = vmatpush1.msra.mxu0 0.0
  %4364 = vmatprep.subr.mxu0 0.0
  %4365 = vmatpush1.msra.mxu0 0.0
  %4366 = vmatprep.subr.mxu0 0.0
  %4367 = vmatpush1.msra.mxu0 0.0
  %4368 = vmatprep.subr.mxu0 0.0
  %4369 = vmatpush1.msra.mxu0 0.0
  %4370 = vmatprep.subr.mxu0 0.0
  %4371 = vmatpush1.msra.mxu0 0.0
  %4372 = vmatprep.subr.mxu0 0.0
  %4373 = vmatpush1.msra.mxu0 0.0
  %4374 = vmatprep.subr.mxu0 0.0
  %4375 = vmatpush1.msra.mxu0 0.0
  %4376 = vmatprep.subr.mxu0 0.0
  %4377 = vmatpush1.msra.mxu0 0.0
  %4378 = vmatprep.subr.mxu0 0.0
  %4379 = vmatpush1.msra.mxu0 0.0
  %4380 = vmatprep.subr.mxu0 0.0
  %4381 = vmatpush1.msra.mxu0 0.0
  %4382 = vmatprep.subr.mxu0 0.0
  %4383 = vmatpush1.msra.mxu0 0.0
  %4384 = vmatprep.subr.mxu0 0.0
  %4385 = vmatpush1.msra.mxu0 0.0
  %4386 = vmatprep.subr.mxu0 0.0
  %4387 = vmatpush1.msra.mxu0 0.0
  %4388 = vmatprep.subr.mxu0 0.0
  %4389 = vmatpush1.msra.mxu0 0.0
  %4390 = vmatprep.subr.mxu0 0.0
  %4391 = vmatpush1.msra.mxu0 0.0
  %4392 = vmatprep.subr.mxu0 0.0
  %4393 = vmatpush1.msra.mxu0 0.0
  %4394 = vmatprep.subr.mxu0 0.0
  %4395 = vmatpush1.msra.mxu0 0.0
  %4396 = vmatprep.mubr.f32.mxu0 0.0
  %4397 = vmatmul.mubr.f32.gmra.mrb[0].mxu0 %v4330
  %v4398 = vpop.f32.mrb[0].mxu0
  %v4399 = vadd.f32 %v991, %v4398
  %v4400 = vpop.f32.mrb[0].mxu0
  %4401 = vdwg.mxu0
  %v4402 = vxor.u32 %v4399, 2147483648
  %v4403 = vmul.f32 %v4402, 1.442695
  %v4404 = vpow.pop %v4403
  %v4405 = vadd.f32 %v4404, 1.0
  %v4406 = vrcp.pop %v4405
  %v4407 = vmul.f32 1.0, %v4406
  %4409 = vrot.lane.b32.xlu0 %v4407, 112
  %v4410 = vpop.permute.xlu0 %4409
  %v4412 = vmul.f32 %v4399, %v4410
  %v4413 = vld [vmem:[#allocation3 + $0x48] sm:$0xff]
  %v4415 = vsel %vm145, %v4412, 0
  %4417 = vmatprep.subr.mxu0 0.0
  %4418 = vmatpush1.msra.mxu0 %v91
  %4419 = vmatprep.subr.mxu0 0.0
  %4420 = vmatpush1.msra.mxu0 %v92
  %4421 = vmatprep.subr.mxu0 0.0
  %4422 = vmatpush1.msra.mxu0 0.0
  %4423 = vmatprep.subr.mxu0 0.0
  %4424 = vmatpush1.msra.mxu0 0.0
  %4425 = vmatprep.subr.mxu0 0.0
  %4426 = vmatpush1.msra.mxu0 0.0
  %4427 = vmatprep.subr.mxu0 0.0
  %4428 = vmatpush1.msra.mxu0 0.0
  %4429 = vmatprep.subr.mxu0 0.0
  %4430 = vmatpush1.msra.mxu0 0.0
  %4431 = vmatprep.subr.mxu0 0.0
  %4432 = vmatpush1.msra.mxu0 0.0
  %4433 = vmatprep.subr.mxu0 0.0
  %4434 = vmatpush1.msra.mxu0 0.0
  %4435 = vmatprep.subr.mxu0 0.0
  %4436 = vmatpush1.msra.mxu0 0.0
  %4437 = vmatprep.subr.mxu0 0.0
  %4438 = vmatpush1.msra.mxu0 0.0
  %4439 = vmatprep.subr.mxu0 0.0
  %4440 = vmatpush1.msra.mxu0 0.0
  %4441 = vmatprep.subr.mxu0 0.0
  %4442 = vmatpush1.msra.mxu0 0.0
  %4443 = vmatprep.subr.mxu0 0.0
  %4444 = vmatpush1.msra.mxu0 0.0
  %4445 = vmatprep.subr.mxu0 0.0
  %4446 = vmatpush1.msra.mxu0 0.0
  %4447 = vmatprep.subr.mxu0 0.0
  %4448 = vmatpush1.msra.mxu0 0.0
  %4449 = vmatprep.subr.mxu0 0.0
  %4450 = vmatpush1.msra.mxu0 0.0
  %4451 = vmatprep.subr.mxu0 0.0
  %4452 = vmatpush1.msra.mxu0 0.0
  %4453 = vmatprep.subr.mxu0 0.0
  %4454 = vmatpush1.msra.mxu0 0.0
  %4455 = vmatprep.subr.mxu0 0.0
  %4456 = vmatpush1.msra.mxu0 0.0
  %4457 = vmatprep.subr.mxu0 0.0
  %4458 = vmatpush1.msra.mxu0 0.0
  %4459 = vmatprep.subr.mxu0 0.0
  %4460 = vmatpush1.msra.mxu0 0.0
  %4461 = vmatprep.subr.mxu0 0.0
  %4462 = vmatpush1.msra.mxu0 0.0
  %4463 = vmatprep.subr.mxu0 0.0
  %4464 = vmatpush1.msra.mxu0 0.0
  %4465 = vmatprep.subr.mxu0 0.0
  %4466 = vmatpush1.msra.mxu0 0.0
  %4467 = vmatprep.subr.mxu0 0.0
  %4468 = vmatpush1.msra.mxu0 0.0
  %4469 = vmatprep.subr.mxu0 0.0
  %4470 = vmatpush1.msra.mxu0 0.0
  %4471 = vmatprep.subr.mxu0 0.0
  %4472 = vmatpush1.msra.mxu0 0.0
  %4473 = vmatprep.subr.mxu0 0.0
  %4474 = vmatpush1.msra.mxu0 0.0
  %4475 = vmatprep.subr.mxu0 0.0
  %4476 = vmatpush1.msra.mxu0 0.0
  %4477 = vmatprep.subr.mxu0 0.0
  %4478 = vmatpush1.msra.mxu0 0.0
  %4479 = vmatprep.subr.mxu0 0.0
  %4480 = vmatpush1.msra.mxu0 0.0
  %4481 = vmatprep.mubr.f32.mxu0 0.0
  %4482 = vmatmul.mubr.f32.gmra.mrb[0].mxu0 %v4415
  %v4483 = vpop.f32.mrb[0].mxu0
  %v4484 = vadd.f32 %v4413, %v4483
  %v4485 = vpop.f32.mrb[0].mxu0
  %4486 = vdwg.mxu0
  %v4487 = vmax.f32 %v4484, 0.0
  %4488 = vrot.lane.b32.xlu0 %v4219, 112
  %v4489 = vpop.permute.xlu0 %4488
  %v4491 = vsel %vm145, %v4487, %v4489
  %v4493 = vsel %vm1161, %v4491, 0
  %4495 = vmatprep.subr.mxu0 0.0
  %4496 = vmatpush1.msra.mxu0 %v96
  %4497 = vmatprep.subr.mxu0 0.0
  %4498 = vmatpush1.msra.mxu0 %v97
  %4499 = vmatprep.subr.mxu0 0.0
  %4500 = vmatpush1.msra.mxu0 %v98
  %4501 = vmatprep.subr.mxu0 0.0
  %4502 = vmatpush1.msra.mxu0 %v99
  %4503 = vmatprep.subr.mxu0 0.0
  %4504 = vmatpush1.msra.mxu0 %v100
  %4505 = vmatprep.subr.mxu0 0.0
  %4506 = vmatpush1.msra.mxu0 %v101
  %4507 = vmatprep.subr.mxu0 0.0
  %4508 = vmatpush1.msra.mxu0 0.0
  %4509 = vmatprep.subr.mxu0 0.0
  %4510 = vmatpush1.msra.mxu0 0.0
  %4511 = vmatprep.subr.mxu0 0.0
  %4512 = vmatpush1.msra.mxu0 0.0
  %4513 = vmatprep.subr.mxu0 0.0
  %4514 = vmatpush1.msra.mxu0 0.0
  %4515 = vmatprep.subr.mxu0 0.0
  %4516 = vmatpush1.msra.mxu0 0.0
  %4517 = vmatprep.subr.mxu0 0.0
  %4518 = vmatpush1.msra.mxu0 0.0
  %4519 = vmatprep.subr.mxu0 0.0
  %4520 = vmatpush1.msra.mxu0 0.0
  %4521 = vmatprep.subr.mxu0 0.0
  %4522 = vmatpush1.msra.mxu0 0.0
  %4523 = vmatprep.subr.mxu0 0.0
  %4524 = vmatpush1.msra.mxu0 0.0
  %4525 = vmatprep.subr.mxu0 0.0
  %4526 = vmatpush1.msra.mxu0 0.0
  %4527 = vmatprep.subr.mxu0 0.0
  %4528 = vmatpush1.msra.mxu0 0.0
  %4529 = vmatprep.subr.mxu0 0.0
  %4530 = vmatpush1.msra.mxu0 0.0
  %4531 = vmatprep.subr.mxu0 0.0
  %4532 = vmatpush1.msra.mxu0 0.0
  %4533 = vmatprep.subr.mxu0 0.0
  %4534 = vmatpush1.msra.mxu0 0.0
  %4535 = vmatprep.subr.mxu0 0.0
  %4536 = vmatpush1.msra.mxu0 0.0
  %4537 = vmatprep.subr.mxu0 0.0
  %4538 = vmatpush1.msra.mxu0 0.0
  %4539 = vmatprep.subr.mxu0 0.0
  %4540 = vmatpush1.msra.mxu0 0.0
  %4541 = vmatprep.subr.mxu0 0.0
  %4542 = vmatpush1.msra.mxu0 0.0
  %4543 = vmatprep.subr.mxu0 0.0
  %4544 = vmatpush1.msra.mxu0 0.0
  %4545 = vmatprep.subr.mxu0 0.0
  %4546 = vmatpush1.msra.mxu0 0.0
  %4547 = vmatprep.subr.mxu0 0.0
  %4548 = vmatpush1.msra.mxu0 0.0
  %4549 = vmatprep.subr.mxu0 0.0
  %4550 = vmatpush1.msra.mxu0 0.0
  %4551 = vmatprep.subr.mxu0 0.0
  %4552 = vmatpush1.msra.mxu0 0.0
  %4553 = vmatprep.subr.mxu0 0.0
  %4554 = vmatpush1.msra.mxu0 0.0
  %4555 = vmatprep.subr.mxu0 0.0
  %4556 = vmatpush1.msra.mxu0 0.0
  %4557 = vmatprep.subr.mxu0 0.0
  %4558 = vmatpush1.msra.mxu0 0.0
  %4559 = vmatprep.mubr.f32.mxu0 0.0
  %4560 = vmatmul.mubr.f32.gmra.mrb[0].mxu0 %v4493
  %v4561 = vpop.f32.mrb[0].mxu0
  %v4562 = vadd.f32 %v1159, %v4561
  %v4563 = vpop.f32.mrb[0].mxu0
  %4564 = vdwg.mxu0
  %v4565 = vxor.u32 %v4562, 2147483648
  %v4566 = vmul.f32 %v4565, 1.442695
  %v4567 = vpow.pop %v4566
  %v4568 = vadd.f32 %v4567, 1.0
  %v4569 = vrcp.pop %v4568
  %v4570 = vmul.f32 1.0, %v4569
  %4572 = vrot.lane.b32.xlu0 %v4562, 32
  %v4573 = vpop.permute.xlu0 %4572
  %v4575 = vmul.f32 %v4570, %v4573
  %4577 = vrot.lane.b32.xlu0 %v4575, 64
  %v4578 = vpop.permute.xlu0 %4577
  %v4580 = vadd.f32 %v4562, %v4578
  %v4581 = vtanh.pop %v4580
  %v4582 = vsub.f32 1.0, %v4570
  %4584 = vrot.lane.b32.xlu0 %v4581, 96
  %v4585 = vpop.permute.xlu0 %4584
  %v4587 = vmul.f32 %v4582, %v4585
  %v4588 = vmul.f32 %v4570, %v4219
  %v4589 = vadd.f32 %v4587, %v4588
  %4591 = vrot.lane.b32.xlu0 %v4589, 96
  %v4592 = vpop.permute.xlu0 %4591
  %4594 = vst.msk [vmem:[%s16 + $0x48] sm:$0xff] %vm486, %v4592
  %4596 = vset.pattern.permute.xlu0 0
  %4597 = vperm.xlu0 %4596, %v874
  %v4598 = vpop.permute.xlu0 %4597
  %v4600 = vmul.f32 %v4326, %v4598
  %4602 = vrot.lane.b32.xlu0 %v4600, 64
  %v4603 = vpop.permute.xlu0 %4602
  %v4604 = vsel %vm661, %v4603, 0
  %4606 = vmatprep.subr.mxu0 %v66
  %4607 = vmatpush1.msra.mxu0 %v65
  %4608 = vmatprep.subr.mxu0 %v68
  %4609 = vmatpush1.msra.mxu0 %v67
  %4610 = vmatprep.subr.mxu0 %v70
  %4611 = vmatpush1.msra.mxu0 %v69
  %4612 = vmatprep.subr.mxu0 %v72
  %4613 = vmatpush1.msra.mxu0 %v71
  %4614 = vmatprep.subr.mxu0 %v74
  %4615 = vmatpush1.msra.mxu0 %v73
  %4616 = vmatprep.subr.mxu0 %v76
  %4617 = vmatpush1.msra.mxu0 %v75
  %4618 = vmatprep.subr.mxu0 %v78
  %4619 = vmatpush1.msra.mxu0 %v77
  %4620 = vmatprep.subr.mxu0 %v80
  %4621 = vmatpush1.msra.mxu0 %v79
  %4622 = vmatprep.subr.mxu0 0.0
  %4623 = vmatpush1.msra.mxu0 0.0
  %4624 = vmatprep.subr.mxu0 0.0
  %4625 = vmatpush1.msra.mxu0 0.0
  %4626 = vmatprep.subr.mxu0 0.0
  %4627 = vmatpush1.msra.mxu0 0.0
  %4628 = vmatprep.subr.mxu0 0.0
  %4629 = vmatpush1.msra.mxu0 0.0
  %4630 = vmatprep.subr.mxu0 0.0
  %4631 = vmatpush1.msra.mxu0 0.0
  %4632 = vmatprep.subr.mxu0 0.0
  %4633 = vmatpush1.msra.mxu0 0.0
  %4634 = vmatprep.subr.mxu0 0.0
  %4635 = vmatpush1.msra.mxu0 0.0
  %4636 = vmatprep.subr.mxu0 0.0
  %4637 = vmatpush1.msra.mxu0 0.0
  %4638 = vmatprep.subr.mxu0 0.0
  %4639 = vmatpush1.msra.mxu0 0.0
  %4640 = vmatprep.subr.mxu0 0.0
  %4641 = vmatpush1.msra.mxu0 0.0
  %4642 = vmatprep.subr.mxu0 0.0
  %4643 = vmatpush1.msra.mxu0 0.0
  %4644 = vmatprep.subr.mxu0 0.0
  %4645 = vmatpush1.msra.mxu0 0.0
  %4646 = vmatprep.subr.mxu0 0.0
  %4647 = vmatpush1.msra.mxu0 0.0
  %4648 = vmatprep.subr.mxu0 0.0
  %4649 = vmatpush1.msra.mxu0 0.0
  %4650 = vmatprep.subr.mxu0 0.0
  %4651 = vmatpush1.msra.mxu0 0.0
  %4652 = vmatprep.subr.mxu0 0.0
  %4653 = vmatpush1.msra.mxu0 0.0
  %4654 = vmatprep.subr.mxu0 0.0
  %4655 = vmatpush1.msra.mxu0 0.0
  %4656 = vmatprep.subr.mxu0 0.0
  %4657 = vmatpush1.msra.mxu0 0.0
  %4658 = vmatprep.subr.mxu0 0.0
  %4659 = vmatpush1.msra.mxu0 0.0
  %4660 = vmatprep.subr.mxu0 0.0
  %4661 = vmatpush1.msra.mxu0 0.0
  %4662 = vmatprep.subr.mxu0 0.0
  %4663 = vmatpush1.msra.mxu0 0.0
  %4664 = vmatprep.subr.mxu0 0.0
  %4665 = vmatpush1.msra.mxu0 0.0
  %4666 = vmatprep.subr.mxu0 0.0
  %4667 = vmatpush1.msra.mxu0 0.0
  %4668 = vmatprep.subr.mxu0 0.0
  %4669 = vmatpush1.msra.mxu0 0.0
  %4670 = vmatprep.mubr.f32.mxu0 0.0
  %4671 = vmatmul.mubr.f32.gmra.mrb[0].mxu0 %v4604
  %v4672 = vpop.f32.mrb[0].mxu0
  %v4673 = vadd.f32 %v886, %v4672
  %v4674 = vpop.f32.mrb[0].mxu0
  %v4675 = vadd.f32 %v890, %v4674
  %4676 = vdwg.mxu0
  %v4677 = vld [vmem:[#allocation2 + $0xa0] sm:$0xff]
  %v4678 = vld [vmem:[#allocation2 + $0xa8] sm:$0xff]
  %v4679 = vadd.f32 %v4677, %v4673
  %v4680 = vxor.u32 %v4679, 2147483648
  %v4681 = vmul.f32 %v4680, 1.442695
  %v4682 = vpow.pop %v4681
  %v4683 = vadd.f32 %v4682, 1.0
  %v4684 = vrcp.pop %v4683
  %v4685 = vmul.f32 1.0, %v4684
  %v4686 = vmul.f32 %v4685, %v4675
  %v4687 = vadd.f32 %v4678, %v4686
  %v4688 = vtanh.pop %v4687
  %v4689 = vsub.f32 1.0, %v4685
  %4691 = vrot.lane.b32.xlu0 %v4688, 64
  %v4692 = vpop.permute.xlu0 %4691
  %v4694 = vmul.f32 %v4689, %v4692
  %v4695 = vmul.f32 %v4685, %v4600
  %v4696 = vadd.f32 %v4694, %v4695
  %4698 = vrot.lane.b32.xlu0 %v4696, 64
  %v4699 = vpop.permute.xlu0 %4698
  %v4700 = vsel %vm661, %v4699, 0
  %4702 = vmatprep.subr.mxu0 0.0
  %4703 = vmatpush1.msra.mxu0 %v82
  %4704 = vmatprep.subr.mxu0 0.0
  %4705 = vmatpush1.msra.mxu0 %v83
  %4706 = vmatprep.subr.mxu0 0.0
  %4707 = vmatpush1.msra.mxu0 %v84
  %4708 = vmatprep.subr.mxu0 0.0
  %4709 = vmatpush1.msra.mxu0 %v85
  %4710 = vmatprep.subr.mxu0 0.0
  %4711 = vmatpush1.msra.mxu0 %v86
  %4712 = vmatprep.subr.mxu0 0.0
  %4713 = vmatpush1.msra.mxu0 %v87
  %4714 = vmatprep.subr.mxu0 0.0
  %4715 = vmatpush1.msra.mxu0 %v88
  %4716 = vmatprep.subr.mxu0 0.0
  %4717 = vmatpush1.msra.mxu0 %v89
  %4718 = vmatprep.subr.mxu0 0.0
  %4719 = vmatpush1.msra.mxu0 0.0
  %4720 = vmatprep.subr.mxu0 0.0
  %4721 = vmatpush1.msra.mxu0 0.0
  %4722 = vmatprep.subr.mxu0 0.0
  %4723 = vmatpush1.msra.mxu0 0.0
  %4724 = vmatprep.subr.mxu0 0.0
  %4725 = vmatpush1.msra.mxu0 0.0
  %4726 = vmatprep.subr.mxu0 0.0
  %4727 = vmatpush1.msra.mxu0 0.0
  %4728 = vmatprep.subr.mxu0 0.0
  %4729 = vmatpush1.msra.mxu0 0.0
  %4730 = vmatprep.subr.mxu0 0.0
  %4731 = vmatpush1.msra.mxu0 0.0
  %4732 = vmatprep.subr.mxu0 0.0
  %4733 = vmatpush1.msra.mxu0 0.0
  %4734 = vmatprep.subr.mxu0 0.0
  %4735 = vmatpush1.msra.mxu0 0.0
  %4736 = vmatprep.subr.mxu0 0.0
  %4737 = vmatpush1.msra.mxu0 0.0
  %4738 = vmatprep.subr.mxu0 0.0
  %4739 = vmatpush1.msra.mxu0 0.0
  %4740 = vmatprep.subr.mxu0 0.0
  %4741 = vmatpush1.msra.mxu0 0.0
  %4742 = vmatprep.subr.mxu0 0.0
  %4743 = vmatpush1.msra.mxu0 0.0
  %4744 = vmatprep.subr.mxu0 0.0
  %4745 = vmatpush1.msra.mxu0 0.0
  %4746 = vmatprep.subr.mxu0 0.0
  %4747 = vmatpush1.msra.mxu0 0.0
  %4748 = vmatprep.subr.mxu0 0.0
  %4749 = vmatpush1.msra.mxu0 0.0
  %4750 = vmatprep.subr.mxu0 0.0
  %4751 = vmatpush1.msra.mxu0 0.0
  %4752 = vmatprep.subr.mxu0 0.0
  %4753 = vmatpush1.msra.mxu0 0.0
  %4754 = vmatprep.subr.mxu0 0.0
  %4755 = vmatpush1.msra.mxu0 0.0
  %4756 = vmatprep.subr.mxu0 0.0
  %4757 = vmatpush1.msra.mxu0 0.0
  %4758 = vmatprep.subr.mxu0 0.0
  %4759 = vmatpush1.msra.mxu0 0.0
  %4760 = vmatprep.subr.mxu0 0.0
  %4761 = vmatpush1.msra.mxu0 0.0
  %4762 = vmatprep.subr.mxu0 0.0
  %4763 = vmatpush1.msra.mxu0 0.0
  %4764 = vmatprep.subr.mxu0 0.0
  %4765 = vmatpush1.msra.mxu0 0.0
  %4766 = vmatprep.mubr.f32.mxu0 0.0
  %4767 = vmatmul.mubr.f32.gmra.mrb[0].mxu0 %v4700
  %v4768 = vpop.f32.mrb[0].mxu0
  %v4769 = vadd.f32 %v991, %v4768
  %v4770 = vpop.f32.mrb[0].mxu0
  %4771 = vdwg.mxu0
  %v4772 = vxor.u32 %v4769, 2147483648
  %v4773 = vmul.f32 %v4772, 1.442695
  %v4774 = vpow.pop %v4773
  %v4775 = vadd.f32 %v4774, 1.0
  %v4776 = vrcp.pop %v4775
  %v4777 = vmul.f32 1.0, %v4776
  %4779 = vrot.lane.b32.xlu0 %v4777, 112
  %v4780 = vpop.permute.xlu0 %4779
  %v4782 = vmul.f32 %v4769, %v4780
  %v4783 = vld [vmem:[#allocation3 + $0x50] sm:$0xff]
  %v4785 = vsel %vm145, %v4782, 0
  %4787 = vmatprep.subr.mxu0 0.0
  %4788 = vmatpush1.msra.mxu0 %v91
  %4789 = vmatprep.subr.mxu0 0.0
  %4790 = vmatpush1.msra.mxu0 %v92
  %4791 = vmatprep.subr.mxu0 0.0
  %4792 = vmatpush1.msra.mxu0 0.0
  %4793 = vmatprep.subr.mxu0 0.0
  %4794 = vmatpush1.msra.mxu0 0.0
  %4795 = vmatprep.subr.mxu0 0.0
  %4796 = vmatpush1.msra.mxu0 0.0
  %4797 = vmatprep.subr.mxu0 0.0
  %4798 = vmatpush1.msra.mxu0 0.0
  %4799 = vmatprep.subr.mxu0 0.0
  %4800 = vmatpush1.msra.mxu0 0.0
  %4801 = vmatprep.subr.mxu0 0.0
  %4802 = vmatpush1.msra.mxu0 0.0
  %4803 = vmatprep.subr.mxu0 0.0
  %4804 = vmatpush1.msra.mxu0 0.0
  %4805 = vmatprep.subr.mxu0 0.0
  %4806 = vmatpush1.msra.mxu0 0.0
  %4807 = vmatprep.subr.mxu0 0.0
  %4808 = vmatpush1.msra.mxu0 0.0
  %4809 = vmatprep.subr.mxu0 0.0
  %4810 = vmatpush1.msra.mxu0 0.0
  %4811 = vmatprep.subr.mxu0 0.0
  %4812 = vmatpush1.msra.mxu0 0.0
  %4813 = vmatprep.subr.mxu0 0.0
  %4814 = vmatpush1.msra.mxu0 0.0
  %4815 = vmatprep.subr.mxu0 0.0
  %4816 = vmatpush1.msra.mxu0 0.0
  %4817 = vmatprep.subr.mxu0 0.0
  %4818 = vmatpush1.msra.mxu0 0.0
  %4819 = vmatprep.subr.mxu0 0.0
  %4820 = vmatpush1.msra.mxu0 0.0
  %4821 = vmatprep.subr.mxu0 0.0
  %4822 = vmatpush1.msra.mxu0 0.0
  %4823 = vmatprep.subr.mxu0 0.0
  %4824 = vmatpush1.msra.mxu0 0.0
  %4825 = vmatprep.subr.mxu0 0.0
  %4826 = vmatpush1.msra.mxu0 0.0
  %4827 = vmatprep.subr.mxu0 0.0
  %4828 = vmatpush1.msra.mxu0 0.0
  %4829 = vmatprep.subr.mxu0 0.0
  %4830 = vmatpush1.msra.mxu0 0.0
  %4831 = vmatprep.subr.mxu0 0.0
  %4832 = vmatpush1.msra.mxu0 0.0
  %4833 = vmatprep.subr.mxu0 0.0
  %4834 = vmatpush1.msra.mxu0 0.0
  %4835 = vmatprep.subr.mxu0 0.0
  %4836 = vmatpush1.msra.mxu0 0.0
  %4837 = vmatprep.subr.mxu0 0.0
  %4838 = vmatpush1.msra.mxu0 0.0
  %4839 = vmatprep.subr.mxu0 0.0
  %4840 = vmatpush1.msra.mxu0 0.0
  %4841 = vmatprep.subr.mxu0 0.0
  %4842 = vmatpush1.msra.mxu0 0.0
  %4843 = vmatprep.subr.mxu0 0.0
  %4844 = vmatpush1.msra.mxu0 0.0
  %4845 = vmatprep.subr.mxu0 0.0
  %4846 = vmatpush1.msra.mxu0 0.0
  %4847 = vmatprep.subr.mxu0 0.0
  %4848 = vmatpush1.msra.mxu0 0.0
  %4849 = vmatprep.subr.mxu0 0.0
  %4850 = vmatpush1.msra.mxu0 0.0
  %4851 = vmatprep.mubr.f32.mxu0 0.0
  %4852 = vmatmul.mubr.f32.gmra.mrb[0].mxu0 %v4785
  %v4853 = vpop.f32.mrb[0].mxu0
  %v4854 = vadd.f32 %v4783, %v4853
  %v4855 = vpop.f32.mrb[0].mxu0
  %4856 = vdwg.mxu0
  %v4857 = vmax.f32 %v4854, 0.0
  %4858 = vrot.lane.b32.xlu0 %v4589, 112
  %v4859 = vpop.permute.xlu0 %4858
  %v4861 = vsel %vm145, %v4857, %v4859
  %v4863 = vsel %vm1161, %v4861, 0
  %4865 = vmatprep.subr.mxu0 0.0
  %4866 = vmatpush1.msra.mxu0 %v96
  %4867 = vmatprep.subr.mxu0 0.0
  %4868 = vmatpush1.msra.mxu0 %v97
  %4869 = vmatprep.subr.mxu0 0.0
  %4870 = vmatpush1.msra.mxu0 %v98
  %4871 = vmatprep.subr.mxu0 0.0
  %4872 = vmatpush1.msra.mxu0 %v99
  %4873 = vmatprep.subr.mxu0 0.0
  %4874 = vmatpush1.msra.mxu0 %v100
  %4875 = vmatprep.subr.mxu0 0.0
  %4876 = vmatpush1.msra.mxu0 %v101
  %4877 = vmatprep.subr.mxu0 0.0
  %4878 = vmatpush1.msra.mxu0 0.0
  %4879 = vmatprep.subr.mxu0 0.0
  %4880 = vmatpush1.msra.mxu0 0.0
  %4881 = vmatprep.subr.mxu0 0.0
  %4882 = vmatpush1.msra.mxu0 0.0
  %4883 = vmatprep.subr.mxu0 0.0
  %4884 = vmatpush1.msra.mxu0 0.0
  %4885 = vmatprep.subr.mxu0 0.0
  %4886 = vmatpush1.msra.mxu0 0.0
  %4887 = vmatprep.subr.mxu0 0.0
  %4888 = vmatpush1.msra.mxu0 0.0
  %4889 = vmatprep.subr.mxu0 0.0
  %4890 = vmatpush1.msra.mxu0 0.0
  %4891 = vmatprep.subr.mxu0 0.0
  %4892 = vmatpush1.msra.mxu0 0.0
  %4893 = vmatprep.subr.mxu0 0.0
  %4894 = vmatpush1.msra.mxu0 0.0
  %4895 = vmatprep.subr.mxu0 0.0
  %4896 = vmatpush1.msra.mxu0 0.0
  %4897 = vmatprep.subr.mxu0 0.0
  %4898 = vmatpush1.msra.mxu0 0.0
  %4899 = vmatprep.subr.mxu0 0.0
  %4900 = vmatpush1.msra.mxu0 0.0
  %4901 = vmatprep.subr.mxu0 0.0
  %4902 = vmatpush1.msra.mxu0 0.0
  %4903 = vmatprep.subr.mxu0 0.0
  %4904 = vmatpush1.msra.mxu0 0.0
  %4905 = vmatprep.subr.mxu0 0.0
  %4906 = vmatpush1.msra.mxu0 0.0
  %4907 = vmatprep.subr.mxu0 0.0
  %4908 = vmatpush1.msra.mxu0 0.0
  %4909 = vmatprep.subr.mxu0 0.0
  %4910 = vmatpush1.msra.mxu0 0.0
  %4911 = vmatprep.subr.mxu0 0.0
  %4912 = vmatpush1.msra.mxu0 0.0
  %4913 = vmatprep.subr.mxu0 0.0
  %4914 = vmatpush1.msra.mxu0 0.0
  %4915 = vmatprep.subr.mxu0 0.0
  %4916 = vmatpush1.msra.mxu0 0.0
  %4917 = vmatprep.subr.mxu0 0.0
  %4918 = vmatpush1.msra.mxu0 0.0
  %4919 = vmatprep.subr.mxu0 0.0
  %4920 = vmatpush1.msra.mxu0 0.0
  %4921 = vmatprep.subr.mxu0 0.0
  %4922 = vmatpush1.msra.mxu0 0.0
  %4923 = vmatprep.subr.mxu0 0.0
  %4924 = vmatpush1.msra.mxu0 0.0
  %4925 = vmatprep.subr.mxu0 0.0
  %4926 = vmatpush1.msra.mxu0 0.0
  %4927 = vmatprep.subr.mxu0 0.0
  %4928 = vmatpush1.msra.mxu0 0.0
  %4929 = vmatprep.mubr.f32.mxu0 0.0
  %4930 = vmatmul.mubr.f32.gmra.mrb[0].mxu0 %v4863
  %v4931 = vpop.f32.mrb[0].mxu0
  %v4932 = vadd.f32 %v1159, %v4931
  %v4933 = vpop.f32.mrb[0].mxu0
  %4934 = vdwg.mxu0
  %v4935 = vxor.u32 %v4932, 2147483648
  %v4936 = vmul.f32 %v4935, 1.442695
  %v4937 = vpow.pop %v4936
  %v4938 = vadd.f32 %v4937, 1.0
  %v4939 = vrcp.pop %v4938
  %v4940 = vmul.f32 1.0, %v4939
  %4942 = vrot.lane.b32.xlu0 %v4932, 32
  %v4943 = vpop.permute.xlu0 %4942
  %v4945 = vmul.f32 %v4940, %v4943
  %4947 = vrot.lane.b32.xlu0 %v4945, 64
  %v4948 = vpop.permute.xlu0 %4947
  %v4950 = vadd.f32 %v4932, %v4948
  %v4951 = vtanh.pop %v4950
  %v4952 = vsub.f32 1.0, %v4940
  %4954 = vrot.lane.b32.xlu0 %v4951, 96
  %v4955 = vpop.permute.xlu0 %4954
  %v4957 = vmul.f32 %v4952, %v4955
  %v4958 = vmul.f32 %v4940, %v4589
  %v4959 = vadd.f32 %v4957, %v4958
  %4961 = vrot.lane.b32.xlu0 %v4959, 96
  %v4962 = vpop.permute.xlu0 %4961
  %4964 = vst.msk [vmem:[%s16 + $0x50] sm:$0xff] %vm486, %v4962
  %4966 = vset.pattern.permute.xlu0 0
  %4967 = vperm.xlu0 %4966, %v875
  %v4968 = vpop.permute.xlu0 %4967
  %v4970 = vmul.f32 %v4696, %v4968
  %4972 = vrot.lane.b32.xlu0 %v4970, 64
  %v4973 = vpop.permute.xlu0 %4972
  %v4974 = vsel %vm661, %v4973, 0
  %4976 = vmatprep.subr.mxu0 %v66
  %4977 = vmatpush1.msra.mxu0 %v65
  %4978 = vmatprep.subr.mxu0 %v68
  %4979 = vmatpush1.msra.mxu0 %v67
  %4980 = vmatprep.subr.mxu0 %v70
  %4981 = vmatpush1.msra.mxu0 %v69
  %4982 = vmatprep.subr.mxu0 %v72
  %4983 = vmatpush1.msra.mxu0 %v71
  %4984 = vmatprep.subr.mxu0 %v74
  %4985 = vmatpush1.msra.mxu0 %v73
  %4986 = vmatprep.subr.mxu0 %v76
  %4987 = vmatpush1.msra.mxu0 %v75
  %4988 = vmatprep.subr.mxu0 %v78
  %4989 = vmatpush1.msra.mxu0 %v77
  %4990 = vmatprep.subr.mxu0 %v80
  %4991 = vmatpush1.msra.mxu0 %v79
  %4992 = vmatprep.subr.mxu0 0.0
  %4993 = vmatpush1.msra.mxu0 0.0
  %4994 = vmatprep.subr.mxu0 0.0
  %4995 = vmatpush1.msra.mxu0 0.0
  %4996 = vmatprep.subr.mxu0 0.0
  %4997 = vmatpush1.msra.mxu0 0.0
  %4998 = vmatprep.subr.mxu0 0.0
  %4999 = vmatpush1.msra.mxu0 0.0
  %5000 = vmatprep.subr.mxu0 0.0
  %5001 = vmatpush1.msra.mxu0 0.0
  %5002 = vmatprep.subr.mxu0 0.0
  %5003 = vmatpush1.msra.mxu0 0.0
  %5004 = vmatprep.subr.mxu0 0.0
  %5005 = vmatpush1.msra.mxu0 0.0
  %5006 = vmatprep.subr.mxu0 0.0
  %5007 = vmatpush1.msra.mxu0 0.0
  %5008 = vmatprep.subr.mxu0 0.0
  %5009 = vmatpush1.msra.mxu0 0.0
  %5010 = vmatprep.subr.mxu0 0.0
  %5011 = vmatpush1.msra.mxu0 0.0
  %5012 = vmatprep.subr.mxu0 0.0
  %5013 = vmatpush1.msra.mxu0 0.0
  %5014 = vmatprep.subr.mxu0 0.0
  %5015 = vmatpush1.msra.mxu0 0.0
  %5016 = vmatprep.subr.mxu0 0.0
  %5017 = vmatpush1.msra.mxu0 0.0
  %5018 = vmatprep.subr.mxu0 0.0
  %5019 = vmatpush1.msra.mxu0 0.0
  %5020 = vmatprep.subr.mxu0 0.0
  %5021 = vmatpush1.msra.mxu0 0.0
  %5022 = vmatprep.subr.mxu0 0.0
  %5023 = vmatpush1.msra.mxu0 0.0
  %5024 = vmatprep.subr.mxu0 0.0
  %5025 = vmatpush1.msra.mxu0 0.0
  %5026 = vmatprep.subr.mxu0 0.0
  %5027 = vmatpush1.msra.mxu0 0.0
  %5028 = vmatprep.subr.mxu0 0.0
  %5029 = vmatpush1.msra.mxu0 0.0
  %5030 = vmatprep.subr.mxu0 0.0
  %5031 = vmatpush1.msra.mxu0 0.0
  %5032 = vmatprep.subr.mxu0 0.0
  %5033 = vmatpush1.msra.mxu0 0.0
  %5034 = vmatprep.subr.mxu0 0.0
  %5035 = vmatpush1.msra.mxu0 0.0
  %5036 = vmatprep.subr.mxu0 0.0
  %5037 = vmatpush1.msra.mxu0 0.0
  %5038 = vmatprep.subr.mxu0 0.0
  %5039 = vmatpush1.msra.mxu0 0.0
  %5040 = vmatprep.mubr.f32.mxu0 0.0
  %5041 = vmatmul.mubr.f32.gmra.mrb[0].mxu0 %v4974
  %v5042 = vpop.f32.mrb[0].mxu0
  %v5043 = vadd.f32 %v886, %v5042
  %v5044 = vpop.f32.mrb[0].mxu0
  %v5045 = vadd.f32 %v890, %v5044
  %5046 = vdwg.mxu0
  %v5047 = vld [vmem:[#allocation2 + $0xb0] sm:$0xff]
  %v5048 = vld [vmem:[#allocation2 + $0xb8] sm:$0xff]
  %v5049 = vadd.f32 %v5047, %v5043
  %v5050 = vxor.u32 %v5049, 2147483648
  %v5051 = vmul.f32 %v5050, 1.442695
  %v5052 = vpow.pop %v5051
  %v5053 = vadd.f32 %v5052, 1.0
  %v5054 = vrcp.pop %v5053
  %v5055 = vmul.f32 1.0, %v5054
  %v5056 = vmul.f32 %v5055, %v5045
  %v5057 = vadd.f32 %v5048, %v5056
  %v5058 = vtanh.pop %v5057
  %v5059 = vsub.f32 1.0, %v5055
  %5061 = vrot.lane.b32.xlu0 %v5058, 64
  %v5062 = vpop.permute.xlu0 %5061
  %v5064 = vmul.f32 %v5059, %v5062
  %v5065 = vmul.f32 %v5055, %v4970
  %v5066 = vadd.f32 %v5064, %v5065
  %5068 = vrot.lane.b32.xlu0 %v5066, 64
  %v5069 = vpop.permute.xlu0 %5068
  %v5070 = vsel %vm661, %v5069, 0
  %5072 = vmatprep.subr.mxu0 0.0
  %5073 = vmatpush1.msra.mxu0 %v82
  %5074 = vmatprep.subr.mxu0 0.0
  %5075 = vmatpush1.msra.mxu0 %v83
  %5076 = vmatprep.subr.mxu0 0.0
  %5077 = vmatpush1.msra.mxu0 %v84
  %5078 = vmatprep.subr.mxu0 0.0
  %5079 = vmatpush1.msra.mxu0 %v85
  %5080 = vmatprep.subr.mxu0 0.0
  %5081 = vmatpush1.msra.mxu0 %v86
  %5082 = vmatprep.subr.mxu0 0.0
  %5083 = vmatpush1.msra.mxu0 %v87
  %5084 = vmatprep.subr.mxu0 0.0
  %5085 = vmatpush1.msra.mxu0 %v88
  %5086 = vmatprep.subr.mxu0 0.0
  %5087 = vmatpush1.msra.mxu0 %v89
  %5088 = vmatprep.subr.mxu0 0.0
  %5089 = vmatpush1.msra.mxu0 0.0
  %5090 = vmatprep.subr.mxu0 0.0
  %5091 = vmatpush1.msra.mxu0 0.0
  %5092 = vmatprep.subr.mxu0 0.0
  %5093 = vmatpush1.msra.mxu0 0.0
  %5094 = vmatprep.subr.mxu0 0.0
  %5095 = vmatpush1.msra.mxu0 0.0
  %5096 = vmatprep.subr.mxu0 0.0
  %5097 = vmatpush1.msra.mxu0 0.0
  %5098 = vmatprep.subr.mxu0 0.0
  %5099 = vmatpush1.msra.mxu0 0.0
  %5100 = vmatprep.subr.mxu0 0.0
  %5101 = vmatpush1.msra.mxu0 0.0
  %5102 = vmatprep.subr.mxu0 0.0
  %5103 = vmatpush1.msra.mxu0 0.0
  %5104 = vmatprep.subr.mxu0 0.0
  %5105 = vmatpush1.msra.mxu0 0.0
  %5106 = vmatprep.subr.mxu0 0.0
  %5107 = vmatpush1.msra.mxu0 0.0
  %5108 = vmatprep.subr.mxu0 0.0
  %5109 = vmatpush1.msra.mxu0 0.0
  %5110 = vmatprep.subr.mxu0 0.0
  %5111 = vmatpush1.msra.mxu0 0.0
  %5112 = vmatprep.subr.mxu0 0.0
  %5113 = vmatpush1.msra.mxu0 0.0
  %5114 = vmatprep.subr.mxu0 0.0
  %5115 = vmatpush1.msra.mxu0 0.0
  %5116 = vmatprep.subr.mxu0 0.0
  %5117 = vmatpush1.msra.mxu0 0.0
  %5118 = vmatprep.subr.mxu0 0.0
  %5119 = vmatpush1.msra.mxu0 0.0
  %5120 = vmatprep.subr.mxu0 0.0
  %5121 = vmatpush1.msra.mxu0 0.0
  %5122 = vmatprep.subr.mxu0 0.0
  %5123 = vmatpush1.msra.mxu0 0.0
  %5124 = vmatprep.subr.mxu0 0.0
  %5125 = vmatpush1.msra.mxu0 0.0
  %5126 = vmatprep.subr.mxu0 0.0
  %5127 = vmatpush1.msra.mxu0 0.0
  %5128 = vmatprep.subr.mxu0 0.0
  %5129 = vmatpush1.msra.mxu0 0.0
  %5130 = vmatprep.subr.mxu0 0.0
  %5131 = vmatpush1.msra.mxu0 0.0
  %5132 = vmatprep.subr.mxu0 0.0
  %5133 = vmatpush1.msra.mxu0 0.0
  %5134 = vmatprep.subr.mxu0 0.0
  %5135 = vmatpush1.msra.mxu0 0.0
  %5136 = vmatprep.mubr.f32.mxu0 0.0
  %5137 = vmatmul.mubr.f32.gmra.mrb[0].mxu0 %v5070
  %v5138 = vpop.f32.mrb[0].mxu0
  %v5139 = vadd.f32 %v991, %v5138
  %v5140 = vpop.f32.mrb[0].mxu0
  %5141 = vdwg.mxu0
  %v5142 = vxor.u32 %v5139, 2147483648
  %v5143 = vmul.f32 %v5142, 1.442695
  %v5144 = vpow.pop %v5143
  %v5145 = vadd.f32 %v5144, 1.0
  %v5146 = vrcp.pop %v5145
  %v5147 = vmul.f32 1.0, %v5146
  %5149 = vrot.lane.b32.xlu0 %v5147, 112
  %v5150 = vpop.permute.xlu0 %5149
  %v5152 = vmul.f32 %v5139, %v5150
  %v5153 = vld [vmem:[#allocation3 + $0x58] sm:$0xff]
  %v5155 = vsel %vm145, %v5152, 0
  %5157 = vmatprep.subr.mxu0 0.0
  %5158 = vmatpush1.msra.mxu0 %v91
  %5159 = vmatprep.subr.mxu0 0.0
  %5160 = vmatpush1.msra.mxu0 %v92
  %5161 = vmatprep.subr.mxu0 0.0
  %5162 = vmatpush1.msra.mxu0 0.0
  %5163 = vmatprep.subr.mxu0 0.0
  %5164 = vmatpush1.msra.mxu0 0.0
  %5165 = vmatprep.subr.mxu0 0.0
  %5166 = vmatpush1.msra.mxu0 0.0
  %5167 = vmatprep.subr.mxu0 0.0
  %5168 = vmatpush1.msra.mxu0 0.0
  %5169 = vmatprep.subr.mxu0 0.0
  %5170 = vmatpush1.msra.mxu0 0.0
  %5171 = vmatprep.subr.mxu0 0.0
  %5172 = vmatpush1.msra.mxu0 0.0
  %5173 = vmatprep.subr.mxu0 0.0
  %5174 = vmatpush1.msra.mxu0 0.0
  %5175 = vmatprep.subr.mxu0 0.0
  %5176 = vmatpush1.msra.mxu0 0.0
  %5177 = vmatprep.subr.mxu0 0.0
  %5178 = vmatpush1.msra.mxu0 0.0
  %5179 = vmatprep.subr.mxu0 0.0
  %5180 = vmatpush1.msra.mxu0 0.0
  %5181 = vmatprep.subr.mxu0 0.0
  %5182 = vmatpush1.msra.mxu0 0.0
  %5183 = vmatprep.subr.mxu0 0.0
  %5184 = vmatpush1.msra.mxu0 0.0
  %5185 = vmatprep.subr.mxu0 0.0
  %5186 = vmatpush1.msra.mxu0 0.0
  %5187 = vmatprep.subr.mxu0 0.0
  %5188 = vmatpush1.msra.mxu0 0.0
  %5189 = vmatprep.subr.mxu0 0.0
  %5190 = vmatpush1.msra.mxu0 0.0
  %5191 = vmatprep.subr.mxu0 0.0
  %5192 = vmatpush1.msra.mxu0 0.0
  %5193 = vmatprep.subr.mxu0 0.0
  %5194 = vmatpush1.msra.mxu0 0.0
  %5195 = vmatprep.subr.mxu0 0.0
  %5196 = vmatpush1.msra.mxu0 0.0
  %5197 = vmatprep.subr.mxu0 0.0
  %5198 = vmatpush1.msra.mxu0 0.0
  %5199 = vmatprep.subr.mxu0 0.0
  %5200 = vmatpush1.msra.mxu0 0.0
  %5201 = vmatprep.subr.mxu0 0.0
  %5202 = vmatpush1.msra.mxu0 0.0
  %5203 = vmatprep.subr.mxu0 0.0
  %5204 = vmatpush1.msra.mxu0 0.0
  %5205 = vmatprep.subr.mxu0 0.0
  %5206 = vmatpush1.msra.mxu0 0.0
  %5207 = vmatprep.subr.mxu0 0.0
  %5208 = vmatpush1.msra.mxu0 0.0
  %5209 = vmatprep.subr.mxu0 0.0
  %5210 = vmatpush1.msra.mxu0 0.0
  %5211 = vmatprep.subr.mxu0 0.0
  %5212 = vmatpush1.msra.mxu0 0.0
  %5213 = vmatprep.subr.mxu0 0.0
  %5214 = vmatpush1.msra.mxu0 0.0
  %5215 = vmatprep.subr.mxu0 0.0
  %5216 = vmatpush1.msra.mxu0 0.0
  %5217 = vmatprep.subr.mxu0 0.0
  %5218 = vmatpush1.msra.mxu0 0.0
  %5219 = vmatprep.subr.mxu0 0.0
  %5220 = vmatpush1.msra.mxu0 0.0
  %5221 = vmatprep.mubr.f32.mxu0 0.0
  %5222 = vmatmul.mubr.f32.gmra.mrb[0].mxu0 %v5155
  %v5223 = vpop.f32.mrb[0].mxu0
  %v5224 = vadd.f32 %v5153, %v5223
  %v5225 = vpop.f32.mrb[0].mxu0
  %5226 = vdwg.mxu0
  %v5227 = vmax.f32 %v5224, 0.0
  %5228 = vrot.lane.b32.xlu0 %v4959, 112
  %v5229 = vpop.permute.xlu0 %5228
  %v5231 = vsel %vm145, %v5227, %v5229
  %v5233 = vsel %vm1161, %v5231, 0
  %5235 = vmatprep.subr.mxu0 0.0
  %5236 = vmatpush1.msra.mxu0 %v96
  %5237 = vmatprep.subr.mxu0 0.0
  %5238 = vmatpush1.msra.mxu0 %v97
  %5239 = vmatprep.subr.mxu0 0.0
  %5240 = vmatpush1.msra.mxu0 %v98
  %5241 = vmatprep.subr.mxu0 0.0
  %5242 = vmatpush1.msra.mxu0 %v99
  %5243 = vmatprep.subr.mxu0 0.0
  %5244 = vmatpush1.msra.mxu0 %v100
  %5245 = vmatprep.subr.mxu0 0.0
  %5246 = vmatpush1.msra.mxu0 %v101
  %5247 = vmatprep.subr.mxu0 0.0
  %5248 = vmatpush1.msra.mxu0 0.0
  %5249 = vmatprep.subr.mxu0 0.0
  %5250 = vmatpush1.msra.mxu0 0.0
  %5251 = vmatprep.subr.mxu0 0.0
  %5252 = vmatpush1.msra.mxu0 0.0
  %5253 = vmatprep.subr.mxu0 0.0
  %5254 = vmatpush1.msra.mxu0 0.0
  %5255 = vmatprep.subr.mxu0 0.0
  %5256 = vmatpush1.msra.mxu0 0.0
  %5257 = vmatprep.subr.mxu0 0.0
  %5258 = vmatpush1.msra.mxu0 0.0
  %5259 = vmatprep.subr.mxu0 0.0
  %5260 = vmatpush1.msra.mxu0 0.0
  %5261 = vmatprep.subr.mxu0 0.0
  %5262 = vmatpush1.msra.mxu0 0.0
  %5263 = vmatprep.subr.mxu0 0.0
  %5264 = vmatpush1.msra.mxu0 0.0
  %5265 = vmatprep.subr.mxu0 0.0
  %5266 = vmatpush1.msra.mxu0 0.0
  %5267 = vmatprep.subr.mxu0 0.0
  %5268 = vmatpush1.msra.mxu0 0.0
  %5269 = vmatprep.subr.mxu0 0.0
  %5270 = vmatpush1.msra.mxu0 0.0
  %5271 = vmatprep.subr.mxu0 0.0
  %5272 = vmatpush1.msra.mxu0 0.0
  %5273 = vmatprep.subr.mxu0 0.0
  %5274 = vmatpush1.msra.mxu0 0.0
  %5275 = vmatprep.subr.mxu0 0.0
  %5276 = vmatpush1.msra.mxu0 0.0
  %5277 = vmatprep.subr.mxu0 0.0
  %5278 = vmatpush1.msra.mxu0 0.0
  %5279 = vmatprep.subr.mxu0 0.0
  %5280 = vmatpush1.msra.mxu0 0.0
  %5281 = vmatprep.subr.mxu0 0.0
  %5282 = vmatpush1.msra.mxu0 0.0
  %5283 = vmatprep.subr.mxu0 0.0
  %5284 = vmatpush1.msra.mxu0 0.0
  %5285 = vmatprep.subr.mxu0 0.0
  %5286 = vmatpush1.msra.mxu0 0.0
  %5287 = vmatprep.subr.mxu0 0.0
  %5288 = vmatpush1.msra.mxu0 0.0
  %5289 = vmatprep.subr.mxu0 0.0
  %5290 = vmatpush1.msra.mxu0 0.0
  %5291 = vmatprep.subr.mxu0 0.0
  %5292 = vmatpush1.msra.mxu0 0.0
  %5293 = vmatprep.subr.mxu0 0.0
  %5294 = vmatpush1.msra.mxu0 0.0
  %5295 = vmatprep.subr.mxu0 0.0
  %5296 = vmatpush1.msra.mxu0 0.0
  %5297 = vmatprep.subr.mxu0 0.0
  %5298 = vmatpush1.msra.mxu0 0.0
  %5299 = vmatprep.mubr.f32.mxu0 0.0
  %5300 = vmatmul.mubr.f32.gmra.mrb[0].mxu0 %v5233
  %v5301 = vpop.f32.mrb[0].mxu0
  %v5302 = vadd.f32 %v1159, %v5301
  %v5303 = vpop.f32.mrb[0].mxu0
  %5304 = vdwg.mxu0
  %v5305 = vxor.u32 %v5302, 2147483648
  %v5306 = vmul.f32 %v5305, 1.442695
  %v5307 = vpow.pop %v5306
  %v5308 = vadd.f32 %v5307, 1.0
  %v5309 = vrcp.pop %v5308
  %v5310 = vmul.f32 1.0, %v5309
  %5312 = vrot.lane.b32.xlu0 %v5302, 32
  %v5313 = vpop.permute.xlu0 %5312
  %v5315 = vmul.f32 %v5310, %v5313
  %5317 = vrot.lane.b32.xlu0 %v5315, 64
  %v5318 = vpop.permute.xlu0 %5317
  %v5320 = vadd.f32 %v5302, %v5318
  %v5321 = vtanh.pop %v5320
  %v5322 = vsub.f32 1.0, %v5310
  %5324 = vrot.lane.b32.xlu0 %v5321, 96
  %v5325 = vpop.permute.xlu0 %5324
  %v5327 = vmul.f32 %v5322, %v5325
  %v5328 = vmul.f32 %v5310, %v4959
  %v5329 = vadd.f32 %v5327, %v5328
  %5331 = vrot.lane.b32.xlu0 %v5329, 96
  %v5332 = vpop.permute.xlu0 %5331
  %5334 = vst.msk [vmem:[%s16 + $0x58] sm:$0xff] %vm486, %v5332
  // Predicated region
  $region66: #{tpu_custom_call.1} parent=0 // pred_check
    _
  $region67: #{tpu_custom_call.1} parent=0 // pred_check_branch
    %5336 = sbr.rel (0) target = $region69
  $region68: #{tpu_custom_call.1} parent=0 // pred_region
    _
  $region69: #{tpu_custom_call.1} parent=0 // pred_fallthru
    _
  // Predicated region
  $region70: #{tpu_custom_call.1} parent=0 // pred_check
    _
  $region71: #{tpu_custom_call.1} parent=0 // pred_check_branch
    %5338 = sbr.rel (0) target = $region73
  $region72: #{tpu_custom_call.1} parent=0 // pred_region
    _
  $region73: #{tpu_custom_call.1} parent=0 // pred_fallthru
    _

</llo_original>
